<compile_context>
chip_gen: v5e
topology: v5e:2x2
jax: 0.10.0
libtpu: 0.0.40
codegen_flags: <defaults>
</compile_context>

<pallas_src>
import math

import jax
import jax.numpy as jnp
from jax import lax
from jax.experimental import pallas as pl
from jax.experimental.pallas import tpu as pltpu


def _elu(t):
    # F.elu, alpha=1: t if t > 0 else exp(t) - 1
    return jnp.where(t > 0, t, jnp.exp(jnp.minimum(t, 0.0)) - 1.0)


# --------------------------------------------------------------------------
# ResidualBlock kernel (2x2 conv, padding=1, cropped -> causal-ish)
# --------------------------------------------------------------------------

def _make_res_kernel(hw, w, rows):
    """rows = nb * hw rows per grid step (nb whole images)."""

    def kernel(x_ref, w1_ref, b1_ref, w2v_ref, b2v_ref, w2g_ref, b2g_ref, o_ref):
        x = x_ref[...].astype(jnp.float32)                       # (rows, C)

        row = lax.broadcasted_iota(jnp.int32, (rows, 1), 0)
        rr = row % hw                                            # row index inside its image
        m_down = rr >= w                                         # pixel has a row above it
        m_right = (rr % w) != 0                                  # pixel has a column to its left
        m_dr = m_down & m_right

        def taps(t):
            # shifted copies: t[y-1,x-1], t[y-1,x], t[y,x-1], t[y,x]
            t_d = jnp.where(m_down, pltpu.roll(t, w, 0), 0.0)
            t_r = jnp.where(m_right, pltpu.roll(t, 1, 0), 0.0)
            t_dr = jnp.where(m_dr, pltpu.roll(t, w + 1, 0), 0.0)
            # order must match fused weight rows: w[0,0], w[0,1], w[1,0], w[1,1]
            return jnp.concatenate([t_dr, t_d, t_r, t], axis=1).astype(jnp.bfloat16)

        # out1 = ELU(input_conv(ELU(x)))  (cropped)
        t0 = taps(_elu(x))
        h1 = _elu(jnp.dot(t0, w1_ref[...], preferred_element_type=jnp.float32)
                  + b1_ref[...])
        # out2 = output_conv(out1) (cropped), gated activation (identity * sigmoid)
        t1 = taps(h1)
        val = (jnp.dot(t1, w2v_ref[...], preferred_element_type=jnp.float32)
               + b2v_ref[...])
        gate = (jnp.dot(t1, w2g_ref[...], preferred_element_type=jnp.float32)
                + b2g_ref[...])
        o_ref[...] = (x + val * jax.nn.sigmoid(gate)).astype(o_ref.dtype)

    return kernel


def _residual_block(x_flat, w1, b1, w2, b2, *, h, w, nb):
    """x_flat: (N*H*W, C) f32.  w1/w2 in PyTorch OIHW layout (kernel 2x2)."""
    rows_total, c = x_flat.shape
    hw = h * w
    rows = nb * hw
    grid = (rows_total // rows,)

    def fuse(wk):  # OIHW (O, I, 2, 2) -> (4*I, O) bf16, row order w00,w01,w10,w11
        o, i = wk.shape[0], wk.shape[1]
        return jnp.transpose(wk, (2, 3, 1, 0)).reshape(4 * i, o).astype(jnp.bfloat16)

    w1_f = fuse(w1)
    w2v_f = fuse(w2[:c])          # value half (first C output channels)
    w2g_f = fuse(w2[c:])          # gate half
    b1_r = b1.reshape(1, c).astype(jnp.float32)
    b2v = b2[:c].reshape(1, c).astype(jnp.float32)
    b2g = b2[c:].reshape(1, c).astype(jnp.float32)

    def const_spec(shape):
        return pl.BlockSpec(shape, lambda i: (0, 0))

    return pl.pallas_call(
        _make_res_kernel(hw, w, rows),
        out_shape=jax.ShapeDtypeStruct((rows_total, c), x_flat.dtype),
        grid=grid,
        in_specs=[
            pl.BlockSpec((rows, c), lambda i: (i, 0)),
            const_spec((4 * c, c)), const_spec((1, c)),
            const_spec((4 * c, c)), const_spec((1, c)),
            const_spec((4 * c, c)), const_spec((1, c)),
        ],
        out_specs=pl.BlockSpec((rows, c), lambda i: (i, 0)),
        compiler_params=pltpu.CompilerParams(
            dimension_semantics=("parallel",),
            vmem_limit_bytes=32 * 1024 * 1024),
    )(x_flat, w1_f, b1_r, w2v_f, b2v, w2g_f, b2g)


# --------------------------------------------------------------------------
# AttentionBlock + attention_conv + res_conv + out_conv (all 1x1 convs)
# --------------------------------------------------------------------------

def _make_attn_tail_kernel(hw, scale):
    def kernel(xc_ref, res_ref, wq_ref, bq_ref, wk_ref, bk_ref, wv_ref, bv_ref,
               wac_ref, bac_ref, wrc_ref, brc_ref, woc_ref, boc_ref, o_ref):
        xc = xc_ref[...].astype(jnp.bfloat16)                    # (hw, C+in+2)
        res = res_ref[...].astype(jnp.float32)                   # (hw, C)

        q = jnp.dot(xc, wq_ref[...], preferred_element_type=jnp.float32) + bq_ref[...]
        k = jnp.dot(xc, wk_ref[...], preferred_element_type=jnp.float32) + bk_ref[...]
        v = jnp.dot(xc, wv_ref[...], preferred_element_type=jnp.float32) + bv_ref[...]

        s = lax.dot_general(q.astype(jnp.bfloat16), k.astype(jnp.bfloat16),
                            (((1,), (1,)), ((), ())),
                            preferred_element_type=jnp.float32) * scale
        rows = lax.broadcasted_iota(jnp.int32, (hw, hw), 0)
        cols = lax.broadcasted_iota(jnp.int32, (hw, hw), 1)
        mask = cols < rows                                       # strictly causal (mask_center=True)
        s = jnp.where(mask, s, -1e30)
        m = jnp.max(s, axis=-1, keepdims=True)
        p = jnp.where(mask, jnp.exp(s - m), 0.0)
        denom = jnp.sum(p, axis=-1, keepdims=True)
        attn = p / jnp.maximum(denom, 1e-30)                     # fully-masked row 0 -> all zeros
        att_out = jnp.dot(attn.astype(jnp.bfloat16), v.astype(jnp.bfloat16),
                          preferred_element_type=jnp.float32)    # (hw, V)

        def elu_mm_elu(t, w_ref, b_ref):
            y = jnp.dot(_elu(t).astype(jnp.bfloat16), w_ref[...],
                        preferred_element_type=jnp.float32) + b_ref[...]
            return _elu(y)

        a = elu_mm_elu(att_out, wac_ref, bac_ref)                # attention_conv path
        r = elu_mm_elu(res, wrc_ref, brc_ref)                    # res_conv path
        o_ref[...] = elu_mm_elu(a + r, woc_ref, boc_ref).astype(o_ref.dtype)

    return kernel


def _attention_tail(res_flat, orig_nchw, prm, *, n, c, h, w, key_ch, val_ch, in_ch):
    hw = h * w
    res_img = res_flat.reshape(n, hw, c)
    orig_flat = jnp.transpose(orig_nchw, (0, 2, 3, 1)).reshape(n, hw, in_ch)
    py = -0.5 + jnp.arange(h, dtype=jnp.float32) / h
    px = -0.5 + jnp.arange(w, dtype=jnp.float32) / w
    pos = jnp.stack([jnp.repeat(py, w), jnp.tile(px, h)], axis=-1)    # (hw, 2)
    pos_b = jnp.broadcast_to(pos[None], (n, hw, 2))
    xc = jnp.concatenate([res_img, orig_flat, pos_b], axis=-1).astype(jnp.bfloat16)
    cc = c + in_ch + 2

    def w1x1(wk):  # (O, I, 1, 1) -> (I, O) bf16
        return jnp.transpose(wk[:, :, 0, 0], (1, 0)).astype(jnp.bfloat16)

    def b_(bk):
        return bk.reshape(1, -1).astype(jnp.float32)

    scale = 1.0 / math.sqrt(c + in_ch)

    def const_spec(shape):
        return pl.BlockSpec(shape, lambda b: (0, 0))

    out = pl.pallas_call(
        _make_attn_tail_kernel(hw, scale),
        out_shape=jax.ShapeDtypeStruct((n, hw, c), jnp.float32),
        grid=(n,),
        in_specs=[
            pl.BlockSpec((None, hw, cc), lambda b: (b, 0, 0)),
            pl.BlockSpec((None, hw, c), lambda b: (b, 0, 0)),
            const_spec((cc, key_ch)), const_spec((1, key_ch)),
            const_spec((cc, key_ch)), const_spec((1, key_ch)),
            const_spec((cc, val_ch)), const_spec((1, val_ch)),
            const_spec((val_ch, c)), const_spec((1, c)),
            const_spec((c, c)), const_spec((1, c)),
            const_spec((c, c)), const_spec((1, c)),
        ],
        out_specs=pl.BlockSpec((None, hw, c), lambda b: (b, 0, 0)),
        compiler_params=pltpu.CompilerParams(
            dimension_semantics=("parallel",),
            vmem_limit_bytes=32 * 1024 * 1024),
    )(xc, res_img,
      w1x1(prm['wq']), b_(prm['bq']), w1x1(prm['wk']), b_(prm['bk']),
      w1x1(prm['wv']), b_(prm['bv']),
      w1x1(prm['wac']), b_(prm['bac']),
      w1x1(prm['wrc']), b_(prm['brc']),
      w1x1(prm['woc']), b_(prm['boc']))
    return out                                                    # (n, hw, c)


# --------------------------------------------------------------------------
# Full PixelSNAILBlock forward
# --------------------------------------------------------------------------

def pixelsnail_block(x_nchw, orig_nchw, params, *, key_ch, val_ch):
    n, c, h, w = x_nchw.shape
    in_ch = orig_nchw.shape[1]
    hw = h * w
    # single layout conversion for the whole block
    x_flat = jnp.transpose(x_nchw, (0, 2, 3, 1)).reshape(n * hw, c)

    # batch several whole images per grid step while the block stays small
    nb = n if (n * hw * c * 4) <= (4 << 20) else 1

    for (w1, b1, w2, b2) in params['res']:
        x_flat = _residual_block(x_flat, w1, b1, w2, b2, h=h, w=w, nb=nb)

    out = _attention_tail(x_flat, orig_nchw, params, n=n, c=c, h=h, w=w,
                          key_ch=key_ch, val_ch=val_ch, in_ch=in_ch)
    return jnp.transpose(out.reshape(n, h, w, c), (0, 3, 1, 2))   # back to NCHW


# --------------------------------------------------------------------------
# Pure-JAX reference (mirrors the PyTorch forward + the kernel's bf16 casts)
# --------------------------------------------------------------------------

def _reference(x, orig, prm, *, key_ch, val_ch):
    n, c, h, w = x.shape

    def conv2(t, wk, b):  # 2x2, padding=1 (output later cropped)
        y = lax.conv_general_dilated(
            t.astype(jnp.bfloat16), wk.astype(jnp.bfloat16), (1, 1),
            [(1, 1), (1, 1)], dimension_numbers=("NCHW", "OIHW", "NCHW"),
            preferred_element_type=jnp.float32)
        return y + b[None, :, None, None]

    def conv1(t, wk, b):  # 1x1
        y = jnp.einsum('nihw,oi->nohw', t.astype(jnp.bfloat16),
                       wk[:, :, 0, 0].astype(jnp.bfloat16),
                       preferred_element_type=jnp.float32)
        return y + b[None, :, None, None]

    out = x
    for (w1, b1, w2, b2) in prm['res']:
        h1 = _elu(conv2(_elu(out), w1, b1)[:, :, :h, :w])
        h2 = conv2(h1, w2, b2)[:, :, :h, :w]
        out = out + h2[:, :c] * jax.nn.sigmoid(h2[:, c:])
    res_out = out

    xcat = jnp.concatenate([res_out, orig], axis=1)
    catc = xcat.shape[1]
    ry = jnp.broadcast_to((-0.5 + jnp.arange(h) / h)[None, None, :, None], (n, 1, h, w))
    rx = jnp.broadcast_to((-0.5 + jnp.arange(w) / w)[None, None, None, :], (n, 1, h, w))
    xpe = jnp.concatenate([xcat, ry, rx], axis=1)

    def flat(t):
        return t.reshape(n, t.shape[1], h * w).transpose(0, 2, 1)

    q = flat(conv1(xpe, prm['wq'], prm['bq']))
    k = flat(conv1(xpe, prm['wk'], prm['bk']))
    v = flat(conv1(xpe, prm['wv'], prm['bv']))
    s = jnp.einsum('nqc,npc->nqp', q.astype(jnp.bfloat16), k.astype(jnp.bfloat16),
                   preferred_element_type=jnp.float32) / math.sqrt(catc)
    hw_ = h * w
    mask = jnp.tril(jnp.ones((hw_, hw_), jnp.float32), -1)
    s = jnp.where(mask == 0, -1e30, s)
    m = s.max(-1, keepdims=True)
    p = jnp.where(mask == 0, 0.0, jnp.exp(s - m))
    attn = p / jnp.maximum(p.sum(-1, keepdims=True), 1e-30)
    att = jnp.einsum('nqp,npv->nqv', attn.astype(jnp.bfloat16), v.astype(jnp.bfloat16),
                     preferred_element_type=jnp.float32)
    att_img = att.transpose(0, 2, 1).reshape(n, val_ch, h, w)

    a = _elu(conv1(_elu(att_img), prm['wac'], prm['bac']))
    r = _elu(conv1(_elu(res_out), prm['wrc'], prm['brc']))
    return _elu(conv1(_elu(a + r), prm['woc'], prm['boc']))


# --------------------------------------------------------------------------

if __name__ == "__main__":
    n, c, h, w = 2, 128, 16, 16       # batch, in_channels, spatial
    in_ch = 3                         # input_channels (original image)
    key_ch, val_ch = 16, 128
    n_res_blocks = 2

    keys = jax.random.split(jax.random.PRNGKey(0), 40)
    _ki = iter(range(40))

    def nrm(shape, scale):
        return jax.random.normal(keys[next(_ki)], shape, jnp.float32) * scale

    x = nrm((n, c, h, w), 1.0)
    orig = nrm((n, in_ch, h, w), 1.0)

    params = {'res': []}
    for _ in range(n_res_blocks):
        params['res'].append((
            nrm((c, c, 2, 2), 0.05), nrm((c,), 0.05),
            nrm((2 * c, c, 2, 2), 0.05), nrm((2 * c,), 0.05)))
    cc_in = c + in_ch + 2
    params['wq'] = nrm((key_ch, cc_in, 1, 1), 0.08); params['bq'] = nrm((key_ch,), 0.05)
    params['wk'] = nrm((key_ch, cc_in, 1, 1), 0.08); params['bk'] = nrm((key_ch,), 0.05)
    params['wv'] = nrm((val_ch, cc_in, 1, 1), 0.08); params['bv'] = nrm((val_ch,), 0.05)
    params['wac'] = nrm((c, val_ch, 1, 1), 0.08); params['bac'] = nrm((c,), 0.05)
    params['wrc'] = nrm((c, c, 1, 1), 0.08); params['brc'] = nrm((c,), 0.05)
    params['woc'] = nrm((c, c, 1, 1), 0.08); params['boc'] = nrm((c,), 0.05)

    out = jax.block_until_ready(
        pixelsnail_block(x, orig, params, key_ch=key_ch, val_ch=val_ch))
    ref = jax.block_until_ready(
        _reference(x, orig, params, key_ch=key_ch, val_ch=val_ch))

    assert out.shape == (n, c, h, w)
    err = float(jnp.max(jnp.abs(out - ref)))
    assert jnp.allclose(out, ref, atol=2e-2, rtol=2e-2), err
    print("KERNEL_OK")
</pallas_src>

<mosaic_0001>
module attributes {stable_mosaic.version = 11 : i64} {
  func.func @kernel(%arg0: i32, %arg1: memref<512x128xf32, #tpu.memory_space<vmem>>, %arg2: memref<512x128xbf16, #tpu.memory_space<vmem>>, %arg3: memref<1x128xf32, #tpu.memory_space<vmem>>, %arg4: memref<512x128xbf16, #tpu.memory_space<vmem>>, %arg5: memref<1x128xf32, #tpu.memory_space<vmem>>, %arg6: memref<512x128xbf16, #tpu.memory_space<vmem>>, %arg7: memref<1x128xf32, #tpu.memory_space<vmem>>, %arg8: memref<512x128xf32, #tpu.memory_space<vmem>>) attributes {dimension_semantics = [#tpu.dimension_semantics<parallel>], iteration_bounds = array<i64: 1>, scalar_prefetch = 0 : i64, scratch_operands = 0 : i64, tpu.core_type = #tpu.core_type<tc>, window_params = [{transform_indices = @transform_0, window_bounds = array<i64: 512, 128>}, {pipeline_mode = #tpu.pipeline_mode<synchronous>, transform_indices = @transform_1, window_bounds = array<i64: 512, 128>}, {pipeline_mode = #tpu.pipeline_mode<synchronous>, transform_indices = @transform_2, window_bounds = array<i64: 1, 128>}, {pipeline_mode = #tpu.pipeline_mode<synchronous>, transform_indices = @transform_3, window_bounds = array<i64: 512, 128>}, {pipeline_mode = #tpu.pipeline_mode<synchronous>, transform_indices = @transform_4, window_bounds = array<i64: 1, 128>}, {pipeline_mode = #tpu.pipeline_mode<synchronous>, transform_indices = @transform_5, window_bounds = array<i64: 512, 128>}, {pipeline_mode = #tpu.pipeline_mode<synchronous>, transform_indices = @transform_6, window_bounds = array<i64: 1, 128>}, {transform_indices = @transform_7, window_bounds = array<i64: 512, 128>}]} {
    %c0 = arith.constant 0 : index
    %c0_0 = arith.constant 0 : index
    %0 = vector.load %arg1[%c0, %c0_0] : memref<512x128xf32, #tpu.memory_space<vmem>>, vector<512x128xf32>
    %1 = tpu.iota {dimensions = array<i32: 0>} : vector<512x1xi32>
    %c256_i32 = arith.constant 256 : i32
    %c0_i32 = arith.constant 0 : i32
    %2 = arith.cmpi eq, %c256_i32, %c0_i32 : i32
    %c1_i32 = arith.constant 1 : i32
    %3 = arith.select %2, %c1_i32, %c256_i32 : i32
    %4 = vector.broadcast %3 : i32 to vector<512x1xi32>
    %5 = arith.remsi %1, %4 : vector<512x1xi32>
    %c0_i32_1 = arith.constant 0 : i32
    %6 = vector.broadcast %c0_i32_1 : i32 to vector<512x1xi32>
    %7 = arith.cmpi ne, %5, %6 : vector<512x1xi32>
    %c0_i32_2 = arith.constant 0 : i32
    %8 = vector.broadcast %c0_i32_2 : i32 to vector<512x1xi32>
    %9 = arith.cmpi slt, %5, %8 : vector<512x1xi32>
    %c0_i32_3 = arith.constant 0 : i32
    %10 = arith.cmpi slt, %3, %c0_i32_3 : i32
    %11 = vector.broadcast %10 : i1 to vector<512x1xi1>
    %12 = vector.broadcast %11 : vector<512x1xi1> to vector<512x1xi1>
    %13 = arith.xori %9, %12 : vector<512x1xi1>
    %14 = arith.andi %13, %7 : vector<512x1xi1>
    %15 = vector.broadcast %3 : i32 to vector<512x1xi32>
    %16 = arith.addi %5, %15 : vector<512x1xi32>
    %17 = arith.select %14, %16, %5 : vector<512x1xi1>, vector<512x1xi32>
    %c16_i32 = arith.constant 16 : i32
    %18 = vector.broadcast %c16_i32 : i32 to vector<512x1xi32>
    %19 = arith.cmpi sge, %17, %18 : vector<512x1xi32>
    %c16_i32_4 = arith.constant 16 : i32
    %c0_i32_5 = arith.constant 0 : i32
    %20 = arith.cmpi eq, %c16_i32_4, %c0_i32_5 : i32
    %c1_i32_6 = arith.constant 1 : i32
    %21 = arith.select %20, %c1_i32_6, %c16_i32_4 : i32
    %22 = vector.broadcast %21 : i32 to vector<512x1xi32>
    %23 = arith.remsi %17, %22 : vector<512x1xi32>
    %c0_i32_7 = arith.constant 0 : i32
    %24 = vector.broadcast %c0_i32_7 : i32 to vector<512x1xi32>
    %25 = arith.cmpi ne, %23, %24 : vector<512x1xi32>
    %c0_i32_8 = arith.constant 0 : i32
    %26 = vector.broadcast %c0_i32_8 : i32 to vector<512x1xi32>
    %27 = arith.cmpi slt, %23, %26 : vector<512x1xi32>
    %c0_i32_9 = arith.constant 0 : i32
    %28 = arith.cmpi slt, %21, %c0_i32_9 : i32
    %29 = vector.broadcast %28 : i1 to vector<512x1xi1>
    %30 = vector.broadcast %29 : vector<512x1xi1> to vector<512x1xi1>
    %31 = arith.xori %27, %30 : vector<512x1xi1>
    %32 = arith.andi %31, %25 : vector<512x1xi1>
    %33 = vector.broadcast %21 : i32 to vector<512x1xi32>
    %34 = arith.addi %23, %33 : vector<512x1xi32>
    %35 = arith.select %32, %34, %23 : vector<512x1xi1>, vector<512x1xi32>
    %c0_i32_10 = arith.constant 0 : i32
    %36 = vector.broadcast %c0_i32_10 : i32 to vector<512x1xi32>
    %37 = arith.cmpi ne, %35, %36 : vector<512x1xi32>
    %38 = arith.andi %19, %37 : vector<512x1xi1>
    %cst = arith.constant 0.000000e+00 : f32
    %39 = vector.broadcast %cst : f32 to vector<512x128xf32>
    %40 = arith.cmpf ogt, %0, %39 : vector<512x128xf32>
    %cst_11 = arith.constant 0.000000e+00 : f32
    %41 = vector.broadcast %cst_11 : f32 to vector<512x128xf32>
    %42 = arith.minimumf %0, %41 : vector<512x128xf32>
    %43 = math.exp %42 : vector<512x128xf32>
    %cst_12 = arith.constant 1.000000e+00 : f32
    %44 = vector.broadcast %cst_12 : f32 to vector<512x128xf32>
    %45 = arith.subf %43, %44 : vector<512x128xf32>
    %46 = arith.select %40, %0, %45 : vector<512x128xi1>, vector<512x128xf32>
    %c16_i32_13 = arith.constant 16 : i32
    %47 = tpu.dynamic_rotate %46 by %c16_i32_13 dim 0 : vector<512x128xf32>, i32 -> vector<512x128xf32>
    %cst_14 = arith.constant 0.000000e+00 : f32
    %48 = vector.shape_cast %19 : vector<512x1xi1> to vector<512x1xi1>
    %49 = vector.broadcast %48 : vector<512x1xi1> to vector<512x128xi1>
    %50 = vector.broadcast %cst_14 : f32 to vector<512x128xf32>
    %51 = arith.select %49, %47, %50 : vector<512x128xi1>, vector<512x128xf32>
    %c1_i32_15 = arith.constant 1 : i32
    %52 = tpu.dynamic_rotate %46 by %c1_i32_15 dim 0 : vector<512x128xf32>, i32 -> vector<512x128xf32>
    %cst_16 = arith.constant 0.000000e+00 : f32
    %53 = vector.shape_cast %37 : vector<512x1xi1> to vector<512x1xi1>
    %54 = vector.broadcast %53 : vector<512x1xi1> to vector<512x128xi1>
    %55 = vector.broadcast %cst_16 : f32 to vector<512x128xf32>
    %56 = arith.select %54, %52, %55 : vector<512x128xi1>, vector<512x128xf32>
    %c17_i32 = arith.constant 17 : i32
    %57 = tpu.dynamic_rotate %46 by %c17_i32 dim 0 : vector<512x128xf32>, i32 -> vector<512x128xf32>
    %cst_17 = arith.constant 0.000000e+00 : f32
    %58 = vector.shape_cast %38 : vector<512x1xi1> to vector<512x1xi1>
    %59 = vector.broadcast %58 : vector<512x1xi1> to vector<512x128xi1>
    %60 = vector.broadcast %cst_17 : f32 to vector<512x128xf32>
    %61 = arith.select %59, %57, %60 : vector<512x128xi1>, vector<512x128xf32>
    %62 = tpu.concatenate %61, %51, %56, %46 in 1 : vector<512x128xf32>, vector<512x128xf32>, vector<512x128xf32>, vector<512x128xf32> -> vector<512x512xf32>
    %63 = arith.truncf %62 : vector<512x512xf32> to vector<512x512xbf16>
    %c0_18 = arith.constant 0 : index
    %c0_19 = arith.constant 0 : index
    %64 = vector.load %arg2[%c0_18, %c0_19] : memref<512x128xbf16, #tpu.memory_space<vmem>>, vector<512x128xbf16>
    %cst_20 = arith.constant dense<0.000000e+00> : vector<512x128xf32>
    %65 = tpu.matmul %63, %64, %cst_20 {dimension_numbers = #tpu.dot_dimension_numbers<[1], [0], [0], [1], [0, 0, 1, 1], [], []>} : vector<512x512xbf16>, vector<512x128xbf16>, vector<512x128xf32> -> vector<512x128xf32>
    %c0_21 = arith.constant 0 : index
    %c0_22 = arith.constant 0 : index
    %66 = vector.load %arg3[%c0_21, %c0_22] : memref<1x128xf32, #tpu.memory_space<vmem>>, vector<1x128xf32>
    %67 = vector.broadcast %66 : vector<1x128xf32> to vector<512x128xf32>
    %68 = arith.addf %65, %67 : vector<512x128xf32>
    %cst_23 = arith.constant 0.000000e+00 : f32
    %69 = vector.broadcast %cst_23 : f32 to vector<512x128xf32>
    %70 = arith.cmpf ogt, %68, %69 : vector<512x128xf32>
    %cst_24 = arith.constant 0.000000e+00 : f32
    %71 = vector.broadcast %cst_24 : f32 to vector<512x128xf32>
    %72 = arith.minimumf %68, %71 : vector<512x128xf32>
    %73 = math.exp %72 : vector<512x128xf32>
    %cst_25 = arith.constant 1.000000e+00 : f32
    %74 = vector.broadcast %cst_25 : f32 to vector<512x128xf32>
    %75 = arith.subf %73, %74 : vector<512x128xf32>
    %76 = arith.select %70, %68, %75 : vector<512x128xi1>, vector<512x128xf32>
    %c16_i32_26 = arith.constant 16 : i32
    %77 = tpu.dynamic_rotate %76 by %c16_i32_26 dim 0 : vector<512x128xf32>, i32 -> vector<512x128xf32>
    %cst_27 = arith.constant 0.000000e+00 : f32
    %78 = vector.shape_cast %19 : vector<512x1xi1> to vector<512x1xi1>
    %79 = vector.broadcast %78 : vector<512x1xi1> to vector<512x128xi1>
    %80 = vector.broadcast %cst_27 : f32 to vector<512x128xf32>
    %81 = arith.select %79, %77, %80 : vector<512x128xi1>, vector<512x128xf32>
    %c1_i32_28 = arith.constant 1 : i32
    %82 = tpu.dynamic_rotate %76 by %c1_i32_28 dim 0 : vector<512x128xf32>, i32 -> vector<512x128xf32>
    %cst_29 = arith.constant 0.000000e+00 : f32
    %83 = vector.shape_cast %37 : vector<512x1xi1> to vector<512x1xi1>
    %84 = vector.broadcast %83 : vector<512x1xi1> to vector<512x128xi1>
    %85 = vector.broadcast %cst_29 : f32 to vector<512x128xf32>
    %86 = arith.select %84, %82, %85 : vector<512x128xi1>, vector<512x128xf32>
    %c17_i32_30 = arith.constant 17 : i32
    %87 = tpu.dynamic_rotate %76 by %c17_i32_30 dim 0 : vector<512x128xf32>, i32 -> vector<512x128xf32>
    %cst_31 = arith.constant 0.000000e+00 : f32
    %88 = vector.shape_cast %38 : vector<512x1xi1> to vector<512x1xi1>
    %89 = vector.broadcast %88 : vector<512x1xi1> to vector<512x128xi1>
    %90 = vector.broadcast %cst_31 : f32 to vector<512x128xf32>
    %91 = arith.select %89, %87, %90 : vector<512x128xi1>, vector<512x128xf32>
    %92 = tpu.concatenate %91, %81, %86, %76 in 1 : vector<512x128xf32>, vector<512x128xf32>, vector<512x128xf32>, vector<512x128xf32> -> vector<512x512xf32>
    %93 = arith.truncf %92 : vector<512x512xf32> to vector<512x512xbf16>
    %c0_32 = arith.constant 0 : index
    %c0_33 = arith.constant 0 : index
    %94 = vector.load %arg4[%c0_32, %c0_33] : memref<512x128xbf16, #tpu.memory_space<vmem>>, vector<512x128xbf16>
    %cst_34 = arith.constant dense<0.000000e+00> : vector<512x128xf32>
    %95 = tpu.matmul %93, %94, %cst_34 {dimension_numbers = #tpu.dot_dimension_numbers<[1], [0], [0], [1], [0, 0, 1, 1], [], []>} : vector<512x512xbf16>, vector<512x128xbf16>, vector<512x128xf32> -> vector<512x128xf32>
    %c0_35 = arith.constant 0 : index
    %c0_36 = arith.constant 0 : index
    %96 = vector.load %arg5[%c0_35, %c0_36] : memref<1x128xf32, #tpu.memory_space<vmem>>, vector<1x128xf32>
    %97 = vector.broadcast %96 : vector<1x128xf32> to vector<512x128xf32>
    %98 = arith.addf %95, %97 : vector<512x128xf32>
    %c0_37 = arith.constant 0 : index
    %c0_38 = arith.constant 0 : index
    %99 = vector.load %arg6[%c0_37, %c0_38] : memref<512x128xbf16, #tpu.memory_space<vmem>>, vector<512x128xbf16>
    %cst_39 = arith.constant dense<0.000000e+00> : vector<512x128xf32>
    %100 = tpu.matmul %93, %99, %cst_39 {dimension_numbers = #tpu.dot_dimension_numbers<[1], [0], [0], [1], [0, 0, 1, 1], [], []>} : vector<512x512xbf16>, vector<512x128xbf16>, vector<512x128xf32> -> vector<512x128xf32>
    %c0_40 = arith.constant 0 : index
    %c0_41 = arith.constant 0 : index
    %101 = vector.load %arg7[%c0_40, %c0_41] : memref<1x128xf32, #tpu.memory_space<vmem>>, vector<1x128xf32>
    %102 = vector.broadcast %101 : vector<1x128xf32> to vector<512x128xf32>
    %103 = arith.addf %100, %102 : vector<512x128xf32>
    %104 = arith.negf %103 : vector<512x128xf32>
    %105 = math.exp %104 : vector<512x128xf32>
    %cst_42 = arith.constant 1.000000e+00 : f32
    %106 = vector.broadcast %cst_42 : f32 to vector<512x128xf32>
    %107 = arith.addf %106, %105 : vector<512x128xf32>
    %108 = arith.divf %106, %107 : vector<512x128xf32>
    %109 = arith.mulf %98, %108 : vector<512x128xf32>
    %110 = arith.addf %0, %109 : vector<512x128xf32>
    %c0_43 = arith.constant 0 : index
    %c0_44 = arith.constant 0 : index
    %111 = vector.load %arg8[%c0_43, %c0_44] : memref<512x128xf32, #tpu.memory_space<vmem>>, vector<512x128xf32>
    tpu.vector_store %arg8[%c0_43, %c0_44], %110 {strides = array<i32>} : memref<512x128xf32, #tpu.memory_space<vmem>>, vector<512x128xf32>,
    return
  }
  func.func @transform_0(%arg0: i32) -> (i32, i32) {
    %c0_i32 = arith.constant 0 : i32
    %c0_i32_0 = arith.constant 0 : i32
    return %arg0, %c0_i32 : i32, i32
  }
  func.func @transform_1(%arg0: i32) -> (i32, i32) {
    %c0_i32 = arith.constant 0 : i32
    %c0_i32_0 = arith.constant 0 : i32
    %c0_i32_1 = arith.constant 0 : i32
    return %c0_i32, %c0_i32_0 : i32, i32
  }
  func.func @transform_2(%arg0: i32) -> (i32, i32) {
    %c0_i32 = arith.constant 0 : i32
    %c0_i32_0 = arith.constant 0 : i32
    %c0_i32_1 = arith.constant 0 : i32
    return %c0_i32, %c0_i32_0 : i32, i32
  }
  func.func @transform_3(%arg0: i32) -> (i32, i32) {
    %c0_i32 = arith.constant 0 : i32
    %c0_i32_0 = arith.constant 0 : i32
    %c0_i32_1 = arith.constant 0 : i32
    return %c0_i32, %c0_i32_0 : i32, i32
  }
  func.func @transform_4(%arg0: i32) -> (i32, i32) {
    %c0_i32 = arith.constant 0 : i32
    %c0_i32_0 = arith.constant 0 : i32
    %c0_i32_1 = arith.constant 0 : i32
    return %c0_i32, %c0_i32_0 : i32, i32
  }
  func.func @transform_5(%arg0: i32) -> (i32, i32) {
    %c0_i32 = arith.constant 0 : i32
    %c0_i32_0 = arith.constant 0 : i32
    %c0_i32_1 = arith.constant 0 : i32
    return %c0_i32, %c0_i32_0 : i32, i32
  }
  func.func @transform_6(%arg0: i32) -> (i32, i32) {
    %c0_i32 = arith.constant 0 : i32
    %c0_i32_0 = arith.constant 0 : i32
    %c0_i32_1 = arith.constant 0 : i32
    return %c0_i32, %c0_i32_0 : i32, i32
  }
  func.func @transform_7(%arg0: i32) -> (i32, i32) {
    %c0_i32 = arith.constant 0 : i32
    %c0_i32_0 = arith.constant 0 : i32
    return %arg0, %c0_i32 : i32, i32
  }
}

</mosaic_0001>

<llo_original>
// kernel: tpu_custom_call.1
$region0: #{tpu_custom_call.1}
  #allocation0 [shape = 'u32[]', space=smem, size = 0x4, offset = 0x4, fixed_abs, tag = 'smem constant byte address 0x4 - core index']
  #allocation1 [shape = 'u32[72,128]{1,0:T(1,128)}', space=vmem, size = 0x9000, scoped, tag = 'internal scratch']
  %s0 = inlined_call_operand.hbm [shape: f32[512,128], index: 0, kind: input, shape index: {}]
  %s1 = inlined_call_operand.hbm [shape: bf16[512,128], index: 1, kind: input, shape index: {}]
  %s2 = inlined_call_operand.vmem [shape: f32[1,128], index: 2, kind: input, shape index: {}]
  %s3 = inlined_call_operand.hbm [shape: bf16[512,128], index: 3, kind: input, shape index: {}]
  %s4 = inlined_call_operand.vmem [shape: f32[1,128], index: 4, kind: input, shape index: {}]
  %s5 = inlined_call_operand.hbm [shape: bf16[512,128], index: 5, kind: input, shape index: {}]
  %s6 = inlined_call_operand.vmem [shape: f32[1,128], index: 6, kind: input, shape index: {}]
  %s7 = inlined_call_operand.hbm [shape: f32[512,128], index: 7, kind: output, shape index: {}]
  %s8 = sld [smem:[#allocation0]]
  $region54: #{tpu_custom_call.1} parent=0
    _
  %s10 = ssub.s32 1, %s8
  %s11 = scalar_select 0, %s10, %s8
  $region1: #{tpu_custom_call.1} parent=0
    #allocation2 [shape = 'u8[262144]{0}', space=vmem, size = 0x40000, scoped, tag = 'input window, operand 0, single buffered']
    #allocation3 [shape = 's32[1]{0}', space=sflag, size = 0x4, scoped, tag = 'scoped memory for tpu_custom_call.1']
    #allocation4 [shape = 's32[1]{0}', space=sflag, size = 0x4, scoped, tag = 'scoped memory for tpu_custom_call.1']
    #allocation5 [shape = 'u8[131072]{0}', space=vmem, size = 0x20000, scoped, tag = 'input window, operand 1, single buffered']
    #allocation6 [shape = 's32[1]{0}', space=sflag, size = 0x4, scoped, tag = 'scoped memory for tpu_custom_call.1']
    #allocation7 [shape = 'u8[131072]{0}', space=vmem, size = 0x20000, scoped, tag = 'input window, operand 3, single buffered']
    #allocation8 [shape = 'u8[131072]{0}', space=vmem, size = 0x20000, scoped, tag = 'input window, operand 5, single buffered']
    #allocation9 [shape = 's32[1]{0}', space=sflag, size = 0x4, scoped, tag = 'scoped memory for tpu_custom_call.1']
    #allocation10 [shape = 'u8[262144]{0}', space=vmem, size = 0x40000, scoped, tag = 'output window, operand 0, single buffered']
    %12 = vsyncpa [#allocation3], 0
    %13 = vsyncpa [#allocation6], 0
    %14 = vsyncpa [#allocation9], 0
    %15 = vsyncpa [#allocation4], 0
    // Predicated region
    $region2: #{tpu_custom_call.1} parent=1 // pred_check
      _
    $region3: #{tpu_custom_call.1} parent=1 // pred_check_branch
      %17 = sbr.rel (0) target = $region5
    $region4: #{tpu_custom_call.1} parent=1 // pred_region
      %19 = vsyncadd [#allocation3], 0
      %s20 = sshll.u32 %s0, 4
      %s21 = int_to_ptr.hbm [resolvable:$true] %s20
      %s22 = sshll.u32 [#allocation2], 4
      %s23 = int_to_ptr.vmem [resolvable:$true] %s22
      %28 = dma.hbm_to_vmem [thread:$0]  %s21, 8192, %s23, [#allocation3], 128, 128, 8
    $region5: #{tpu_custom_call.1} parent=1 // pred_fallthru
      _
    // Predicated region
    $region6: #{tpu_custom_call.1} parent=1 // pred_check
      _
    $region7: #{tpu_custom_call.1} parent=1 // pred_check_branch
      %30 = sbr.rel (0) target = $region9
    $region8: #{tpu_custom_call.1} parent=1 // pred_region
      %32 = vsyncadd [#allocation6], 0
      %s33 = sshll.u32 %s1, 4
      %s34 = int_to_ptr.hbm [resolvable:$true] %s33
      %s35 = sshll.u32 [#allocation5], 4
      %s36 = int_to_ptr.vmem [resolvable:$true] %s35
      %41 = dma.hbm_to_vmem [thread:$0]  %s34, 4096, %s36, [#allocation6], 64, 64, 4
    $region9: #{tpu_custom_call.1} parent=1 // pred_fallthru
      _
    // Predicated region
    $region10: #{tpu_custom_call.1} parent=1 // pred_check
      _
    $region11: #{tpu_custom_call.1} parent=1 // pred_check_branch
      %43 = sbr.rel (0) target = $region13
    $region12: #{tpu_custom_call.1} parent=1 // pred_region
      _
    $region13: #{tpu_custom_call.1} parent=1 // pred_fallthru
      _
    // Predicated region
    $region14: #{tpu_custom_call.1} parent=1 // pred_check
      _
    $region15: #{tpu_custom_call.1} parent=1 // pred_check_branch
      %45 = sbr.rel (0) target = $region17
    $region16: #{tpu_custom_call.1} parent=1 // pred_region
      %47 = vsyncadd [#allocation6], 0
      %s48 = sshll.u32 %s3, 4
      %s49 = int_to_ptr.hbm [resolvable:$true] %s48
      %s50 = sshll.u32 [#allocation7], 4
      %s51 = int_to_ptr.vmem [resolvable:$true] %s50
      %56 = dma.hbm_to_vmem [thread:$0]  %s49, 4096, %s51, [#allocation6], 64, 64, 4
    $region17: #{tpu_custom_call.1} parent=1 // pred_fallthru
      _
    // Predicated region
    $region18: #{tpu_custom_call.1} parent=1 // pred_check
      _
    $region19: #{tpu_custom_call.1} parent=1 // pred_check_branch
      %58 = sbr.rel (0) target = $region21
    $region20: #{tpu_custom_call.1} parent=1 // pred_region
      _
    $region21: #{tpu_custom_call.1} parent=1 // pred_fallthru
      _
    // Predicated region
    $region22: #{tpu_custom_call.1} parent=1 // pred_check
      _
    $region23: #{tpu_custom_call.1} parent=1 // pred_check_branch
      %60 = sbr.rel (0) target = $region25
    $region24: #{tpu_custom_call.1} parent=1 // pred_region
      %62 = vsyncadd [#allocation9], 0
      %s63 = sshll.u32 %s5, 4
      %s64 = int_to_ptr.hbm [resolvable:$true] %s63
      %s65 = sshll.u32 [#allocation8], 4
      %s66 = int_to_ptr.vmem [resolvable:$true] %s65
      %71 = dma.hbm_to_vmem [thread:$0]  %s64, 4096, %s66, [#allocation9], 64, 64, 4
    $region25: #{tpu_custom_call.1} parent=1 // pred_fallthru
      _
    // Predicated region
    $region26: #{tpu_custom_call.1} parent=1 // pred_check
      _
    $region27: #{tpu_custom_call.1} parent=1 // pred_check_branch
      %73 = sbr.rel (0) target = $region29
    $region28: #{tpu_custom_call.1} parent=1 // pred_region
      _
    $region29: #{tpu_custom_call.1} parent=1 // pred_fallthru
      _
    // Predicated region
    $region30: #{tpu_custom_call.1} parent=1 // pred_check
      _
    $region31: #{tpu_custom_call.1} parent=1 // pred_check_branch
      %75 = sbr.rel (0) target = $region33
    $region32: #{tpu_custom_call.1} parent=1 // pred_region
      %77 = dma.done [#allocation3], 8192
    $region33: #{tpu_custom_call.1} parent=1 // pred_fallthru
      _
    // Predicated region
    $region34: #{tpu_custom_call.1} parent=1 // pred_check
      _
    $region35: #{tpu_custom_call.1} parent=1 // pred_check_branch
      %79 = sbr.rel (0) target = $region37
    $region36: #{tpu_custom_call.1} parent=1 // pred_region
      %81 = dma.done [#allocation6], 4096
    $region37: #{tpu_custom_call.1} parent=1 // pred_fallthru
      _
    // Predicated region
    $region38: #{tpu_custom_call.1} parent=1 // pred_check
      _
    $region39: #{tpu_custom_call.1} parent=1 // pred_check_branch
      %83 = sbr.rel (0) target = $region41
    $region40: #{tpu_custom_call.1} parent=1 // pred_region
      %85 = dma.done [#allocation6], 4096
    $region41: #{tpu_custom_call.1} parent=1 // pred_fallthru
      _
    // Predicated region
    $region42: #{tpu_custom_call.1} parent=1 // pred_check
      _
    $region43: #{tpu_custom_call.1} parent=1 // pred_check_branch
      %87 = sbr.rel (0) target = $region45
    $region44: #{tpu_custom_call.1} parent=1 // pred_region
      %89 = dma.done [#allocation9], 4096
    $region45: #{tpu_custom_call.1} parent=1 // pred_fallthru
      _
    %v90 = vld [vmem:[#allocation2] sm:$0xff]
    %v91 = vld [vmem:[#allocation2 + $0x8] sm:$0xff]
    %v92 = vld [vmem:[#allocation2 + $0x10] sm:$0xff]
    %v93 = vld [vmem:[#allocation2 + $0x18] sm:$0xff]
    %v94 = vld [vmem:[#allocation2 + $0x20] sm:$0xff]
    %v95 = vld [vmem:[#allocation2 + $0x28] sm:$0xff]
    %v96 = vld [vmem:[#allocation2 + $0x30] sm:$0xff]
    %v97 = vld [vmem:[#allocation2 + $0x38] sm:$0xff]
    %v98 = vld [vmem:[#allocation2 + $0x40] sm:$0xff]
    %v99 = vld [vmem:[#allocation2 + $0x48] sm:$0xff]
    %v100 = vld [vmem:[#allocation2 + $0x50] sm:$0xff]
    %v101 = vld [vmem:[#allocation2 + $0x58] sm:$0xff]
    %v102 = vld [vmem:[#allocation2 + $0x60] sm:$0xff]
    %v103 = vld [vmem:[#allocation2 + $0x68] sm:$0xff]
    %v104 = vld [vmem:[#allocation2 + $0x70] sm:$0xff]
    %v105 = vld [vmem:[#allocation2 + $0x78] sm:$0xff]
    %v106 = vld [vmem:[#allocation2 + $0x80] sm:$0xff]
    %v107 = vld [vmem:[#allocation2 + $0x88] sm:$0xff]
    %v108 = vld [vmem:[#allocation2 + $0x90] sm:$0xff]
    %v109 = vld [vmem:[#allocation2 + $0x98] sm:$0xff]
    %v110 = vld [vmem:[#allocation2 + $0xa0] sm:$0xff]
    %v111 = vld [vmem:[#allocation2 + $0xa8] sm:$0xff]
    %v112 = vld [vmem:[#allocation2 + $0xb0] sm:$0xff]
    %v113 = vld [vmem:[#allocation2 + $0xb8] sm:$0xff]
    %v114 = vld [vmem:[#allocation2 + $0xc0] sm:$0xff]
    %v115 = vld [vmem:[#allocation2 + $0xc8] sm:$0xff]
    %v116 = vld [vmem:[#allocation2 + $0xd0] sm:$0xff]
    %v117 = vld [vmem:[#allocation2 + $0xd8] sm:$0xff]
    %v118 = vld [vmem:[#allocation2 + $0xe0] sm:$0xff]
    %v119 = vld [vmem:[#allocation2 + $0xe8] sm:$0xff]
    %v120 = vld [vmem:[#allocation2 + $0xf0] sm:$0xff]
    %v121 = vld [vmem:[#allocation2 + $0xf8] sm:$0xff]
    %v122 = vld [vmem:[#allocation2 + $0x100] sm:$0xff]
    %v123 = vld [vmem:[#allocation2 + $0x108] sm:$0xff]
    %v124 = vld [vmem:[#allocation2 + $0x110] sm:$0xff]
    %v125 = vld [vmem:[#allocation2 + $0x118] sm:$0xff]
    %v126 = vld [vmem:[#allocation2 + $0x120] sm:$0xff]
    %v127 = vld [vmem:[#allocation2 + $0x128] sm:$0xff]
    %v128 = vld [vmem:[#allocation2 + $0x130] sm:$0xff]
    %v129 = vld [vmem:[#allocation2 + $0x138] sm:$0xff]
    %v130 = vld [vmem:[#allocation2 + $0x140] sm:$0xff]
    %v131 = vld [vmem:[#allocation2 + $0x148] sm:$0xff]
    %v132 = vld [vmem:[#allocation2 + $0x150] sm:$0xff]
    %v133 = vld [vmem:[#allocation2 + $0x158] sm:$0xff]
    %v134 = vld [vmem:[#allocation2 + $0x160] sm:$0xff]
    %v135 = vld [vmem:[#allocation2 + $0x168] sm:$0xff]
    %v136 = vld [vmem:[#allocation2 + $0x170] sm:$0xff]
    %v137 = vld [vmem:[#allocation2 + $0x178] sm:$0xff]
    %v138 = vld [vmem:[#allocation2 + $0x180] sm:$0xff]
    %v139 = vld [vmem:[#allocation2 + $0x188] sm:$0xff]
    %v140 = vld [vmem:[#allocation2 + $0x190] sm:$0xff]
    %v141 = vld [vmem:[#allocation2 + $0x198] sm:$0xff]
    %v142 = vld [vmem:[#allocation2 + $0x1a0] sm:$0xff]
    %v143 = vld [vmem:[#allocation2 + $0x1a8] sm:$0xff]
    %v144 = vld [vmem:[#allocation2 + $0x1b0] sm:$0xff]
    %v145 = vld [vmem:[#allocation2 + $0x1b8] sm:$0xff]
    %v146 = vld [vmem:[#allocation2 + $0x1c0] sm:$0xff]
    %v147 = vld [vmem:[#allocation2 + $0x1c8] sm:$0xff]
    %v148 = vld [vmem:[#allocation2 + $0x1d0] sm:$0xff]
    %v149 = vld [vmem:[#allocation2 + $0x1d8] sm:$0xff]
    %v150 = vld [vmem:[#allocation2 + $0x1e0] sm:$0xff]
    %v151 = vld [vmem:[#allocation2 + $0x1e8] sm:$0xff]
    %v152 = vld [vmem:[#allocation2 + $0x1f0] sm:$0xff]
    %v153 = vld [vmem:[#allocation2 + $0x1f8] sm:$0xff]
    %v154 = vlaneseq
    %v155 = vshrl.u32 %v154, 7
    %v156 = vadd.s32 %v155, 8
    %v157 = vadd.s32 %v155, 16
    %v158 = vadd.s32 %v155, 24
    %v159 = vadd.s32 %v155, 32
    %v160 = vadd.s32 %v155, 40
    %v161 = vadd.s32 %v155, 48
    %v162 = vadd.s32 %v155, 56
    %v163 = vadd.s32 %v155, 64
    %v164 = vadd.s32 %v155, 72
    %v165 = vadd.s32 %v155, 80
    %v166 = vadd.s32 %v155, 88
    %v167 = vadd.s32 %v155, 96
    %v168 = vadd.s32 %v155, 104
    %v169 = vadd.s32 %v155, 112
    %v170 = vadd.s32 %v155, 120
    %v171 = vadd.s32 %v155, 128
    %v172 = vadd.s32 %v155, 136
    %v173 = vadd.s32 %v155, 144
    %v174 = vadd.s32 %v155, 152
    %v175 = vadd.s32 %v155, 160
    %v176 = vadd.s32 %v155, 168
    %v177 = vadd.s32 %v155, 176
    %v178 = vadd.s32 %v155, 184
    %v179 = vadd.s32 %v155, 192
    %v180 = vadd.s32 %v155, 200
    %v181 = vadd.s32 %v155, 208
    %v182 = vadd.s32 %v155, 216
    %v183 = vadd.s32 %v155, 224
    %v184 = vadd.s32 %v155, 232
    %v185 = vadd.s32 %v155, 240
    %v186 = vadd.s32 %v155, 248
    %v187 = vadd.s32 %v155, 256
    %v188 = vadd.s32 %v155, 264
    %v189 = vadd.s32 %v155, 272
    %v190 = vadd.s32 %v155, 280
    %v191 = vadd.s32 %v155, 288
    %v192 = vadd.s32 %v155, 296
    %v193 = vadd.s32 %v155, 304
    %v194 = vadd.s32 %v155, 312
    %v195 = vadd.s32 %v155, 320
    %v196 = vadd.s32 %v155, 328
    %v197 = vadd.s32 %v155, 336
    %v198 = vadd.s32 %v155, 344
    %v199 = vadd.s32 %v155, 352
    %v200 = vadd.s32 %v155, 360
    %v201 = vadd.s32 %v155, 368
    %v202 = vadd.s32 %v155, 376
    %v203 = vadd.s32 %v155, 384
    %v204 = vadd.s32 %v155, 392
    %v205 = vadd.s32 %v155, 400
    %v206 = vadd.s32 %v155, 408
    %v207 = vadd.s32 %v155, 416
    %v208 = vadd.s32 %v155, 424
    %v209 = vadd.s32 %v155, 432
    %v210 = vadd.s32 %v155, 440
    %v211 = vadd.s32 %v155, 448
    %v212 = vadd.s32 %v155, 456
    %v213 = vadd.s32 %v155, 464
    %v214 = vadd.s32 %v155, 472
    %v215 = vadd.s32 %v155, 480
    %v216 = vadd.s32 %v155, 488
    %v217 = vadd.s32 %v155, 496
    %v218 = vadd.s32 %v155, 504
    %vm219 = vcmp.lt.s32.totalorder %v155, 0
    %v220 = vsub.s32 0, %v155
    %v221 = vsel %vm219, %v220, %v155
    %v222 = vshrl.u32 %v221, 8
    %v223 = vand.u32 %v221, 255
    %v224 = vsub.s32 0, %v223
    %v225 = vsel %vm219, %v224, %v223
    %vm226 = vcmp.lt.s32.totalorder %v156, 0
    %v227 = vsub.s32 0, %v156
    %v228 = vsel %vm226, %v227, %v156
    %v229 = vshrl.u32 %v228, 8
    %v230 = vand.u32 %v228, 255
    %v231 = vsub.s32 0, %v230
    %v232 = vsel %vm226, %v231, %v230
    %vm233 = vcmp.lt.s32.totalorder %v157, 0
    %v234 = vsub.s32 0, %v157
    %v235 = vsel %vm233, %v234, %v157
    %v236 = vshrl.u32 %v235, 8
    %v237 = vand.u32 %v235, 255
    %v238 = vsub.s32 0, %v237
    %v239 = vsel %vm233, %v238, %v237
    %vm240 = vcmp.lt.s32.totalorder %v158, 0
    %v241 = vsub.s32 0, %v158
    %v242 = vsel %vm240, %v241, %v158
    %v243 = vshrl.u32 %v242, 8
    %v244 = vand.u32 %v242, 255
    %v245 = vsub.s32 0, %v244
    %v246 = vsel %vm240, %v245, %v244
    %vm247 = vcmp.lt.s32.totalorder %v159, 0
    %v248 = vsub.s32 0, %v159
    %v249 = vsel %vm247, %v248, %v159
    %v250 = vshrl.u32 %v249, 8
    %v251 = vand.u32 %v249, 255
    %v252 = vsub.s32 0, %v251
    %v253 = vsel %vm247, %v252, %v251
    %vm254 = vcmp.lt.s32.totalorder %v160, 0
    %v255 = vsub.s32 0, %v160
    %v256 = vsel %vm254, %v255, %v160
    %v257 = vshrl.u32 %v256, 8
    %v258 = vand.u32 %v256, 255
    %v259 = vsub.s32 0, %v258
    %v260 = vsel %vm254, %v259, %v258
    %vm261 = vcmp.lt.s32.totalorder %v161, 0
    %v262 = vsub.s32 0, %v161
    %v263 = vsel %vm261, %v262, %v161
    %v264 = vshrl.u32 %v263, 8
    %v265 = vand.u32 %v263, 255
    %v266 = vsub.s32 0, %v265
    %v267 = vsel %vm261, %v266, %v265
    %vm268 = vcmp.lt.s32.totalorder %v162, 0
    %v269 = vsub.s32 0, %v162
    %v270 = vsel %vm268, %v269, %v162
    %v271 = vshrl.u32 %v270, 8
    %v272 = vand.u32 %v270, 255
    %v273 = vsub.s32 0, %v272
    %v274 = vsel %vm268, %v273, %v272
    %vm275 = vcmp.lt.s32.totalorder %v163, 0
    %v276 = vsub.s32 0, %v163
    %v277 = vsel %vm275, %v276, %v163
    %v278 = vshrl.u32 %v277, 8
    %v279 = vand.u32 %v277, 255
    %v280 = vsub.s32 0, %v279
    %v281 = vsel %vm275, %v280, %v279
    %vm282 = vcmp.lt.s32.totalorder %v164, 0
    %v283 = vsub.s32 0, %v164
    %v284 = vsel %vm282, %v283, %v164
    %v285 = vshrl.u32 %v284, 8
    %v286 = vand.u32 %v284, 255
    %v287 = vsub.s32 0, %v286
    %v288 = vsel %vm282, %v287, %v286
    %vm289 = vcmp.lt.s32.totalorder %v165, 0
    %v290 = vsub.s32 0, %v165
    %v291 = vsel %vm289, %v290, %v165
    %v292 = vshrl.u32 %v291, 8
    %v293 = vand.u32 %v291, 255
    %v294 = vsub.s32 0, %v293
    %v295 = vsel %vm289, %v294, %v293
    %vm296 = vcmp.lt.s32.totalorder %v166, 0
    %v297 = vsub.s32 0, %v166
    %v298 = vsel %vm296, %v297, %v166
    %v299 = vshrl.u32 %v298, 8
    %v300 = vand.u32 %v298, 255
    %v301 = vsub.s32 0, %v300
    %v302 = vsel %vm296, %v301, %v300
    %vm303 = vcmp.lt.s32.totalorder %v167, 0
    %v304 = vsub.s32 0, %v167
    %v305 = vsel %vm303, %v304, %v167
    %v306 = vshrl.u32 %v305, 8
    %v307 = vand.u32 %v305, 255
    %v308 = vsub.s32 0, %v307
    %v309 = vsel %vm303, %v308, %v307
    %vm310 = vcmp.lt.s32.totalorder %v168, 0
    %v311 = vsub.s32 0, %v168
    %v312 = vsel %vm310, %v311, %v168
    %v313 = vshrl.u32 %v312, 8
    %v314 = vand.u32 %v312, 255
    %v315 = vsub.s32 0, %v314
    %v316 = vsel %vm310, %v315, %v314
    %vm317 = vcmp.lt.s32.totalorder %v169, 0
    %v318 = vsub.s32 0, %v169
    %v319 = vsel %vm317, %v318, %v169
    %v320 = vshrl.u32 %v319, 8
    %v321 = vand.u32 %v319, 255
    %v322 = vsub.s32 0, %v321
    %v323 = vsel %vm317, %v322, %v321
    %vm324 = vcmp.lt.s32.totalorder %v170, 0
    %v325 = vsub.s32 0, %v170
    %v326 = vsel %vm324, %v325, %v170
    %v327 = vshrl.u32 %v326, 8
    %v328 = vand.u32 %v326, 255
    %v329 = vsub.s32 0, %v328
    %v330 = vsel %vm324, %v329, %v328
    %vm331 = vcmp.lt.s32.totalorder %v171, 0
    %v332 = vsub.s32 0, %v171
    %v333 = vsel %vm331, %v332, %v171
    %v334 = vshrl.u32 %v333, 8
    %v335 = vand.u32 %v333, 255
    %v336 = vsub.s32 0, %v335
    %v337 = vsel %vm331, %v336, %v335
    %vm338 = vcmp.lt.s32.totalorder %v172, 0
    %v339 = vsub.s32 0, %v172
    %v340 = vsel %vm338, %v339, %v172
    %v341 = vshrl.u32 %v340, 8
    %v342 = vand.u32 %v340, 255
    %v343 = vsub.s32 0, %v342
    %v344 = vsel %vm338, %v343, %v342
    %vm345 = vcmp.lt.s32.totalorder %v173, 0
    %v346 = vsub.s32 0, %v173
    %v347 = vsel %vm345, %v346, %v173
    %v348 = vshrl.u32 %v347, 8
    %v349 = vand.u32 %v347, 255
    %v350 = vsub.s32 0, %v349
    %v351 = vsel %vm345, %v350, %v349
    %vm352 = vcmp.lt.s32.totalorder %v174, 0
    %v353 = vsub.s32 0, %v174
    %v354 = vsel %vm352, %v353, %v174
    %v355 = vshrl.u32 %v354, 8
    %v356 = vand.u32 %v354, 255
    %v357 = vsub.s32 0, %v356
    %v358 = vsel %vm352, %v357, %v356
    %vm359 = vcmp.lt.s32.totalorder %v175, 0
    %v360 = vsub.s32 0, %v175
    %v361 = vsel %vm359, %v360, %v175
    %v362 = vshrl.u32 %v361, 8
    %v363 = vand.u32 %v361, 255
    %v364 = vsub.s32 0, %v363
    %v365 = vsel %vm359, %v364, %v363
    %vm366 = vcmp.lt.s32.totalorder %v176, 0
    %v367 = vsub.s32 0, %v176
    %v368 = vsel %vm366, %v367, %v176
    %v369 = vshrl.u32 %v368, 8
    %v370 = vand.u32 %v368, 255
    %v371 = vsub.s32 0, %v370
    %v372 = vsel %vm366, %v371, %v370
    %vm373 = vcmp.lt.s32.totalorder %v177, 0
    %v374 = vsub.s32 0, %v177
    %v375 = vsel %vm373, %v374, %v177
    %v376 = vshrl.u32 %v375, 8
    %v377 = vand.u32 %v375, 255
    %v378 = vsub.s32 0, %v377
    %v379 = vsel %vm373, %v378, %v377
    %vm380 = vcmp.lt.s32.totalorder %v178, 0
    %v381 = vsub.s32 0, %v178
    %v382 = vsel %vm380, %v381, %v178
    %v383 = vshrl.u32 %v382, 8
    %v384 = vand.u32 %v382, 255
    %v385 = vsub.s32 0, %v384
    %v386 = vsel %vm380, %v385, %v384
    %vm387 = vcmp.lt.s32.totalorder %v179, 0
    %v388 = vsub.s32 0, %v179
    %v389 = vsel %vm387, %v388, %v179
    %v390 = vshrl.u32 %v389, 8
    %v391 = vand.u32 %v389, 255
    %v392 = vsub.s32 0, %v391
    %v393 = vsel %vm387, %v392, %v391
    %vm394 = vcmp.lt.s32.totalorder %v180, 0
    %v395 = vsub.s32 0, %v180
    %v396 = vsel %vm394, %v395, %v180
    %v397 = vshrl.u32 %v396, 8
    %v398 = vand.u32 %v396, 255
    %v399 = vsub.s32 0, %v398
    %v400 = vsel %vm394, %v399, %v398
    %vm401 = vcmp.lt.s32.totalorder %v181, 0
    %v402 = vsub.s32 0, %v181
    %v403 = vsel %vm401, %v402, %v181
    %v404 = vshrl.u32 %v403, 8
    %v405 = vand.u32 %v403, 255
    %v406 = vsub.s32 0, %v405
    %v407 = vsel %vm401, %v406, %v405
    %vm408 = vcmp.lt.s32.totalorder %v182, 0
    %v409 = vsub.s32 0, %v182
    %v410 = vsel %vm408, %v409, %v182
    %v411 = vshrl.u32 %v410, 8
    %v412 = vand.u32 %v410, 255
    %v413 = vsub.s32 0, %v412
    %v414 = vsel %vm408, %v413, %v412
    %vm415 = vcmp.lt.s32.totalorder %v183, 0
    %v416 = vsub.s32 0, %v183
    %v417 = vsel %vm415, %v416, %v183
    %v418 = vshrl.u32 %v417, 8
    %v419 = vand.u32 %v417, 255
    %v420 = vsub.s32 0, %v419
    %v421 = vsel %vm415, %v420, %v419
    %vm422 = vcmp.lt.s32.totalorder %v184, 0
    %v423 = vsub.s32 0, %v184
    %v424 = vsel %vm422, %v423, %v184
    %v425 = vshrl.u32 %v424, 8
    %v426 = vand.u32 %v424, 255
    %v427 = vsub.s32 0, %v426
    %v428 = vsel %vm422, %v427, %v426
    %vm429 = vcmp.lt.s32.totalorder %v185, 0
    %v430 = vsub.s32 0, %v185
    %v431 = vsel %vm429, %v430, %v185
    %v432 = vshrl.u32 %v431, 8
    %v433 = vand.u32 %v431, 255
    %v434 = vsub.s32 0, %v433
    %v435 = vsel %vm429, %v434, %v433
    %vm436 = vcmp.lt.s32.totalorder %v186, 0
    %v437 = vsub.s32 0, %v186
    %v438 = vsel %vm436, %v437, %v186
    %v439 = vshrl.u32 %v438, 8
    %v440 = vand.u32 %v438, 255
    %v441 = vsub.s32 0, %v440
    %v442 = vsel %vm436, %v441, %v440
    %vm443 = vcmp.lt.s32.totalorder %v187, 0
    %v444 = vsub.s32 0, %v187
    %v445 = vsel %vm443, %v444, %v187
    %v446 = vshrl.u32 %v445, 8
    %v447 = vand.u32 %v445, 255
    %v448 = vsub.s32 0, %v447
    %v449 = vsel %vm443, %v448, %v447
    %vm450 = vcmp.lt.s32.totalorder %v188, 0
    %v451 = vsub.s32 0, %v188
    %v452 = vsel %vm450, %v451, %v188
    %v453 = vshrl.u32 %v452, 8
    %v454 = vand.u32 %v452, 255
    %v455 = vsub.s32 0, %v454
    %v456 = vsel %vm450, %v455, %v454
    %vm457 = vcmp.lt.s32.totalorder %v189, 0
    %v458 = vsub.s32 0, %v189
    %v459 = vsel %vm457, %v458, %v189
    %v460 = vshrl.u32 %v459, 8
    %v461 = vand.u32 %v459, 255
    %v462 = vsub.s32 0, %v461
    %v463 = vsel %vm457, %v462, %v461
    %vm464 = vcmp.lt.s32.totalorder %v190, 0
    %v465 = vsub.s32 0, %v190
    %v466 = vsel %vm464, %v465, %v190
    %v467 = vshrl.u32 %v466, 8
    %v468 = vand.u32 %v466, 255
    %v469 = vsub.s32 0, %v468
    %v470 = vsel %vm464, %v469, %v468
    %vm471 = vcmp.lt.s32.totalorder %v191, 0
    %v472 = vsub.s32 0, %v191
    %v473 = vsel %vm471, %v472, %v191
    %v474 = vshrl.u32 %v473, 8
    %v475 = vand.u32 %v473, 255
    %v476 = vsub.s32 0, %v475
    %v477 = vsel %vm471, %v476, %v475
    %vm478 = vcmp.lt.s32.totalorder %v192, 0
    %v479 = vsub.s32 0, %v192
    %v480 = vsel %vm478, %v479, %v192
    %v481 = vshrl.u32 %v480, 8
    %v482 = vand.u32 %v480, 255
    %v483 = vsub.s32 0, %v482
    %v484 = vsel %vm478, %v483, %v482
    %vm485 = vcmp.lt.s32.totalorder %v193, 0
    %v486 = vsub.s32 0, %v193
    %v487 = vsel %vm485, %v486, %v193
    %v488 = vshrl.u32 %v487, 8
    %v489 = vand.u32 %v487, 255
    %v490 = vsub.s32 0, %v489
    %v491 = vsel %vm485, %v490, %v489
    %vm492 = vcmp.lt.s32.totalorder %v194, 0
    %v493 = vsub.s32 0, %v194
    %v494 = vsel %vm492, %v493, %v194
    %v495 = vshrl.u32 %v494, 8
    %v496 = vand.u32 %v494, 255
    %v497 = vsub.s32 0, %v496
    %v498 = vsel %vm492, %v497, %v496
    %vm499 = vcmp.lt.s32.totalorder %v195, 0
    %v500 = vsub.s32 0, %v195
    %v501 = vsel %vm499, %v500, %v195
    %v502 = vshrl.u32 %v501, 8
    %v503 = vand.u32 %v501, 255
    %v504 = vsub.s32 0, %v503
    %v505 = vsel %vm499, %v504, %v503
    %vm506 = vcmp.lt.s32.totalorder %v196, 0
    %v507 = vsub.s32 0, %v196
    %v508 = vsel %vm506, %v507, %v196
    %v509 = vshrl.u32 %v508, 8
    %v510 = vand.u32 %v508, 255
    %v511 = vsub.s32 0, %v510
    %v512 = vsel %vm506, %v511, %v510
    %vm513 = vcmp.lt.s32.totalorder %v197, 0
    %v514 = vsub.s32 0, %v197
    %v515 = vsel %vm513, %v514, %v197
    %v516 = vshrl.u32 %v515, 8
    %v517 = vand.u32 %v515, 255
    %v518 = vsub.s32 0, %v517
    %v519 = vsel %vm513, %v518, %v517
    %vm520 = vcmp.lt.s32.totalorder %v198, 0
    %v521 = vsub.s32 0, %v198
    %v522 = vsel %vm520, %v521, %v198
    %v523 = vshrl.u32 %v522, 8
    %v524 = vand.u32 %v522, 255
    %v525 = vsub.s32 0, %v524
    %v526 = vsel %vm520, %v525, %v524
    %vm527 = vcmp.lt.s32.totalorder %v199, 0
    %v528 = vsub.s32 0, %v199
    %v529 = vsel %vm527, %v528, %v199
    %v530 = vshrl.u32 %v529, 8
    %v531 = vand.u32 %v529, 255
    %v532 = vsub.s32 0, %v531
    %v533 = vsel %vm527, %v532, %v531
    %vm534 = vcmp.lt.s32.totalorder %v200, 0
    %v535 = vsub.s32 0, %v200
    %v536 = vsel %vm534, %v535, %v200
    %v537 = vshrl.u32 %v536, 8
    %v538 = vand.u32 %v536, 255
    %v539 = vsub.s32 0, %v538
    %v540 = vsel %vm534, %v539, %v538
    %vm541 = vcmp.lt.s32.totalorder %v201, 0
    %v542 = vsub.s32 0, %v201
    %v543 = vsel %vm541, %v542, %v201
    %v544 = vshrl.u32 %v543, 8
    %v545 = vand.u32 %v543, 255
    %v546 = vsub.s32 0, %v545
    %v547 = vsel %vm541, %v546, %v545
    %vm548 = vcmp.lt.s32.totalorder %v202, 0
    %v549 = vsub.s32 0, %v202
    %v550 = vsel %vm548, %v549, %v202
    %v551 = vshrl.u32 %v550, 8
    %v552 = vand.u32 %v550, 255
    %v553 = vsub.s32 0, %v552
    %v554 = vsel %vm548, %v553, %v552
    %vm555 = vcmp.lt.s32.totalorder %v203, 0
    %v556 = vsub.s32 0, %v203
    %v557 = vsel %vm555, %v556, %v203
    %v558 = vshrl.u32 %v557, 8
    %v559 = vand.u32 %v557, 255
    %v560 = vsub.s32 0, %v559
    %v561 = vsel %vm555, %v560, %v559
    %vm562 = vcmp.lt.s32.totalorder %v204, 0
    %v563 = vsub.s32 0, %v204
    %v564 = vsel %vm562, %v563, %v204
    %v565 = vshrl.u32 %v564, 8
    %v566 = vand.u32 %v564, 255
    %v567 = vsub.s32 0, %v566
    %v568 = vsel %vm562, %v567, %v566
    %vm569 = vcmp.lt.s32.totalorder %v205, 0
    %v570 = vsub.s32 0, %v205
    %v571 = vsel %vm569, %v570, %v205
    %v572 = vshrl.u32 %v571, 8
    %v573 = vand.u32 %v571, 255
    %v574 = vsub.s32 0, %v573
    %v575 = vsel %vm569, %v574, %v573
    %vm576 = vcmp.lt.s32.totalorder %v206, 0
    %v577 = vsub.s32 0, %v206
    %v578 = vsel %vm576, %v577, %v206
    %v579 = vshrl.u32 %v578, 8
    %v580 = vand.u32 %v578, 255
    %v581 = vsub.s32 0, %v580
    %v582 = vsel %vm576, %v581, %v580
    %vm583 = vcmp.lt.s32.totalorder %v207, 0
    %v584 = vsub.s32 0, %v207
    %v585 = vsel %vm583, %v584, %v207
    %v586 = vshrl.u32 %v585, 8
    %v587 = vand.u32 %v585, 255
    %v588 = vsub.s32 0, %v587
    %v589 = vsel %vm583, %v588, %v587
    %vm590 = vcmp.lt.s32.totalorder %v208, 0
    %v591 = vsub.s32 0, %v208
    %v592 = vsel %vm590, %v591, %v208
    %v593 = vshrl.u32 %v592, 8
    %v594 = vand.u32 %v592, 255
    %v595 = vsub.s32 0, %v594
    %v596 = vsel %vm590, %v595, %v594
    %vm597 = vcmp.lt.s32.totalorder %v209, 0
    %v598 = vsub.s32 0, %v209
    %v599 = vsel %vm597, %v598, %v209
    %v600 = vshrl.u32 %v599, 8
    %v601 = vand.u32 %v599, 255
    %v602 = vsub.s32 0, %v601
    %v603 = vsel %vm597, %v602, %v601
    %vm604 = vcmp.lt.s32.totalorder %v210, 0
    %v605 = vsub.s32 0, %v210
    %v606 = vsel %vm604, %v605, %v210
    %v607 = vshrl.u32 %v606, 8
    %v608 = vand.u32 %v606, 255
    %v609 = vsub.s32 0, %v608
    %v610 = vsel %vm604, %v609, %v608
    %vm611 = vcmp.lt.s32.totalorder %v211, 0
    %v612 = vsub.s32 0, %v211
    %v613 = vsel %vm611, %v612, %v211
    %v614 = vshrl.u32 %v613, 8
    %v615 = vand.u32 %v613, 255
    %v616 = vsub.s32 0, %v615
    %v617 = vsel %vm611, %v616, %v615
    %vm618 = vcmp.lt.s32.totalorder %v212, 0
    %v619 = vsub.s32 0, %v212
    %v620 = vsel %vm618, %v619, %v212
    %v621 = vshrl.u32 %v620, 8
    %v622 = vand.u32 %v620, 255
    %v623 = vsub.s32 0, %v622
    %v624 = vsel %vm618, %v623, %v622
    %vm625 = vcmp.lt.s32.totalorder %v213, 0
    %v626 = vsub.s32 0, %v213
    %v627 = vsel %vm625, %v626, %v213
    %v628 = vshrl.u32 %v627, 8
    %v629 = vand.u32 %v627, 255
    %v630 = vsub.s32 0, %v629
    %v631 = vsel %vm625, %v630, %v629
    %vm632 = vcmp.lt.s32.totalorder %v214, 0
    %v633 = vsub.s32 0, %v214
    %v634 = vsel %vm632, %v633, %v214
    %v635 = vshrl.u32 %v634, 8
    %v636 = vand.u32 %v634, 255
    %v637 = vsub.s32 0, %v636
    %v638 = vsel %vm632, %v637, %v636
    %vm639 = vcmp.lt.s32.totalorder %v215, 0
    %v640 = vsub.s32 0, %v215
    %v641 = vsel %vm639, %v640, %v215
    %v642 = vshrl.u32 %v641, 8
    %v643 = vand.u32 %v641, 255
    %v644 = vsub.s32 0, %v643
    %v645 = vsel %vm639, %v644, %v643
    %vm646 = vcmp.lt.s32.totalorder %v216, 0
    %v647 = vsub.s32 0, %v216
    %v648 = vsel %vm646, %v647, %v216
    %v649 = vshrl.u32 %v648, 8
    %v650 = vand.u32 %v648, 255
    %v651 = vsub.s32 0, %v650
    %v652 = vsel %vm646, %v651, %v650
    %vm653 = vcmp.lt.s32.totalorder %v217, 0
    %v654 = vsub.s32 0, %v217
    %v655 = vsel %vm653, %v654, %v217
    %v656 = vshrl.u32 %v655, 8
    %v657 = vand.u32 %v655, 255
    %v658 = vsub.s32 0, %v657
    %v659 = vsel %vm653, %v658, %v657
    %vm660 = vcmp.lt.s32.totalorder %v218, 0
    %v661 = vsub.s32 0, %v218
    %v662 = vsel %vm660, %v661, %v218
    %v663 = vshrl.u32 %v662, 8
    %v664 = vand.u32 %v662, 255
    %v665 = vsub.s32 0, %v664
    %v666 = vsel %vm660, %v665, %v664
    %vm667 = vcmp.ne.s32.totalorder %v225, 0
    %vm668 = vcmp.ne.s32.totalorder %v232, 0
    %vm669 = vcmp.ne.s32.totalorder %v239, 0
    %vm670 = vcmp.ne.s32.totalorder %v246, 0
    %vm671 = vcmp.ne.s32.totalorder %v253, 0
    %vm672 = vcmp.ne.s32.totalorder %v260, 0
    %vm673 = vcmp.ne.s32.totalorder %v267, 0
    %vm674 = vcmp.ne.s32.totalorder %v274, 0
    %vm675 = vcmp.ne.s32.totalorder %v281, 0
    %vm676 = vcmp.ne.s32.totalorder %v288, 0
    %vm677 = vcmp.ne.s32.totalorder %v295, 0
    %vm678 = vcmp.ne.s32.totalorder %v302, 0
    %vm679 = vcmp.ne.s32.totalorder %v309, 0
    %vm680 = vcmp.ne.s32.totalorder %v316, 0
    %vm681 = vcmp.ne.s32.totalorder %v323, 0
    %vm682 = vcmp.ne.s32.totalorder %v330, 0
    %vm683 = vcmp.ne.s32.totalorder %v337, 0
    %vm684 = vcmp.ne.s32.totalorder %v344, 0
    %vm685 = vcmp.ne.s32.totalorder %v351, 0
    %vm686 = vcmp.ne.s32.totalorder %v358, 0
    %vm687 = vcmp.ne.s32.totalorder %v365, 0
    %vm688 = vcmp.ne.s32.totalorder %v372, 0
    %vm689 = vcmp.ne.s32.totalorder %v379, 0
    %vm690 = vcmp.ne.s32.totalorder %v386, 0
    %vm691 = vcmp.ne.s32.totalorder %v393, 0
    %vm692 = vcmp.ne.s32.totalorder %v400, 0
    %vm693 = vcmp.ne.s32.totalorder %v407, 0
    %vm694 = vcmp.ne.s32.totalorder %v414, 0
    %vm695 = vcmp.ne.s32.totalorder %v421, 0
    %vm696 = vcmp.ne.s32.totalorder %v428, 0
    %vm697 = vcmp.ne.s32.totalorder %v435, 0
    %vm698 = vcmp.ne.s32.totalorder %v442, 0
    %vm699 = vcmp.ne.s32.totalorder %v449, 0
    %vm700 = vcmp.ne.s32.totalorder %v456, 0
    %vm701 = vcmp.ne.s32.totalorder %v463, 0
    %vm702 = vcmp.ne.s32.totalorder %v470, 0
    %vm703 = vcmp.ne.s32.totalorder %v477, 0
    %vm704 = vcmp.ne.s32.totalorder %v484, 0
    %vm705 = vcmp.ne.s32.totalorder %v491, 0
    %vm706 = vcmp.ne.s32.totalorder %v498, 0
    %vm707 = vcmp.ne.s32.totalorder %v505, 0
    %vm708 = vcmp.ne.s32.totalorder %v512, 0
    %vm709 = vcmp.ne.s32.totalorder %v519, 0
    %vm710 = vcmp.ne.s32.totalorder %v526, 0
    %vm711 = vcmp.ne.s32.totalorder %v533, 0
    %vm712 = vcmp.ne.s32.totalorder %v540, 0
    %vm713 = vcmp.ne.s32.totalorder %v547, 0
    %vm714 = vcmp.ne.s32.totalorder %v554, 0
    %vm715 = vcmp.ne.s32.totalorder %v561, 0
    %vm716 = vcmp.ne.s32.totalorder %v568, 0
    %vm717 = vcmp.ne.s32.totalorder %v575, 0
    %vm718 = vcmp.ne.s32.totalorder %v582, 0
    %vm719 = vcmp.ne.s32.totalorder %v589, 0
    %vm720 = vcmp.ne.s32.totalorder %v596, 0
    %vm721 = vcmp.ne.s32.totalorder %v603, 0
    %vm722 = vcmp.ne.s32.totalorder %v610, 0
    %vm723 = vcmp.ne.s32.totalorder %v617, 0
    %vm724 = vcmp.ne.s32.totalorder %v624, 0
    %vm725 = vcmp.ne.s32.totalorder %v631, 0
    %vm726 = vcmp.ne.s32.totalorder %v638, 0
    %vm727 = vcmp.ne.s32.totalorder %v645, 0
    %vm728 = vcmp.ne.s32.totalorder %v652, 0
    %vm729 = vcmp.ne.s32.totalorder %v659, 0
    %vm730 = vcmp.ne.s32.totalorder %v666, 0
    %vm731 = vcmp.lt.s32.totalorder %v225, 0
    %vm732 = vcmp.lt.s32.totalorder %v232, 0
    %vm733 = vcmp.lt.s32.totalorder %v239, 0
    %vm734 = vcmp.lt.s32.totalorder %v246, 0
    %vm735 = vcmp.lt.s32.totalorder %v253, 0
    %vm736 = vcmp.lt.s32.totalorder %v260, 0
    %vm737 = vcmp.lt.s32.totalorder %v267, 0
    %vm738 = vcmp.lt.s32.totalorder %v274, 0
    %vm739 = vcmp.lt.s32.totalorder %v281, 0
    %vm740 = vcmp.lt.s32.totalorder %v288, 0
    %vm741 = vcmp.lt.s32.totalorder %v295, 0
    %vm742 = vcmp.lt.s32.totalorder %v302, 0
    %vm743 = vcmp.lt.s32.totalorder %v309, 0
    %vm744 = vcmp.lt.s32.totalorder %v316, 0
    %vm745 = vcmp.lt.s32.totalorder %v323, 0
    %vm746 = vcmp.lt.s32.totalorder %v330, 0
    %vm747 = vcmp.lt.s32.totalorder %v337, 0
    %vm748 = vcmp.lt.s32.totalorder %v344, 0
    %vm749 = vcmp.lt.s32.totalorder %v351, 0
    %vm750 = vcmp.lt.s32.totalorder %v358, 0
    %vm751 = vcmp.lt.s32.totalorder %v365, 0
    %vm752 = vcmp.lt.s32.totalorder %v372, 0
    %vm753 = vcmp.lt.s32.totalorder %v379, 0
    %vm754 = vcmp.lt.s32.totalorder %v386, 0
    %vm755 = vcmp.lt.s32.totalorder %v393, 0
    %vm756 = vcmp.lt.s32.totalorder %v400, 0
    %vm757 = vcmp.lt.s32.totalorder %v407, 0
    %vm758 = vcmp.lt.s32.totalorder %v414, 0
    %vm759 = vcmp.lt.s32.totalorder %v421, 0
    %vm760 = vcmp.lt.s32.totalorder %v428, 0
    %vm761 = vcmp.lt.s32.totalorder %v435, 0
    %vm762 = vcmp.lt.s32.totalorder %v442, 0
    %vm763 = vcmp.lt.s32.totalorder %v449, 0
    %vm764 = vcmp.lt.s32.totalorder %v456, 0
    %vm765 = vcmp.lt.s32.totalorder %v463, 0
    %vm766 = vcmp.lt.s32.totalorder %v470, 0
    %vm767 = vcmp.lt.s32.totalorder %v477, 0
    %vm768 = vcmp.lt.s32.totalorder %v484, 0
    %vm769 = vcmp.lt.s32.totalorder %v491, 0
    %vm770 = vcmp.lt.s32.totalorder %v498, 0
    %vm771 = vcmp.lt.s32.totalorder %v505, 0
    %vm772 = vcmp.lt.s32.totalorder %v512, 0
    %vm773 = vcmp.lt.s32.totalorder %v519, 0
    %vm774 = vcmp.lt.s32.totalorder %v526, 0
    %vm775 = vcmp.lt.s32.totalorder %v533, 0
    %vm776 = vcmp.lt.s32.totalorder %v540, 0
    %vm777 = vcmp.lt.s32.totalorder %v547, 0
    %vm778 = vcmp.lt.s32.totalorder %v554, 0
    %vm779 = vcmp.lt.s32.totalorder %v561, 0
    %vm780 = vcmp.lt.s32.totalorder %v568, 0
    %vm781 = vcmp.lt.s32.totalorder %v575, 0
    %vm782 = vcmp.lt.s32.totalorder %v582, 0
    %vm783 = vcmp.lt.s32.totalorder %v589, 0
    %vm784 = vcmp.lt.s32.totalorder %v596, 0
    %vm785 = vcmp.lt.s32.totalorder %v603, 0
    %vm786 = vcmp.lt.s32.totalorder %v610, 0
    %vm787 = vcmp.lt.s32.totalorder %v617, 0
    %vm788 = vcmp.lt.s32.totalorder %v624, 0
    %vm789 = vcmp.lt.s32.totalorder %v631, 0
    %vm790 = vcmp.lt.s32.totalorder %v638, 0
    %vm791 = vcmp.lt.s32.totalorder %v645, 0
    %vm792 = vcmp.lt.s32.totalorder %v652, 0
    %vm793 = vcmp.lt.s32.totalorder %v659, 0
    %vm794 = vcmp.lt.s32.totalorder %v666, 0
    %vm795 = vmand %vm731, %vm667
    %vm796 = vmand %vm732, %vm668
    %vm797 = vmand %vm733, %vm669
    %vm798 = vmand %vm734, %vm670
    %vm799 = vmand %vm735, %vm671
    %vm800 = vmand %vm736, %vm672
    %vm801 = vmand %vm737, %vm673
    %vm802 = vmand %vm738, %vm674
    %vm803 = vmand %vm739, %vm675
    %vm804 = vmand %vm740, %vm676
    %vm805 = vmand %vm741, %vm677
    %vm806 = vmand %vm742, %vm678
    %vm807 = vmand %vm743, %vm679
    %vm808 = vmand %vm744, %vm680
    %vm809 = vmand %vm745, %vm681
    %vm810 = vmand %vm746, %vm682
    %vm811 = vmand %vm747, %vm683
    %vm812 = vmand %vm748, %vm684
    %vm813 = vmand %vm749, %vm685
    %vm814 = vmand %vm750, %vm686
    %vm815 = vmand %vm751, %vm687
    %vm816 = vmand %vm752, %vm688
    %vm817 = vmand %vm753, %vm689
    %vm818 = vmand %vm754, %vm690
    %vm819 = vmand %vm755, %vm691
    %vm820 = vmand %vm756, %vm692
    %vm821 = vmand %vm757, %vm693
    %vm822 = vmand %vm758, %vm694
    %vm823 = vmand %vm759, %vm695
    %vm824 = vmand %vm760, %vm696
    %vm825 = vmand %vm761, %vm697
    %vm826 = vmand %vm762, %vm698
    %vm827 = vmand %vm763, %vm699
    %vm828 = vmand %vm764, %vm700
    %vm829 = vmand %vm765, %vm701
    %vm830 = vmand %vm766, %vm702
    %vm831 = vmand %vm767, %vm703
    %vm832 = vmand %vm768, %vm704
    %vm833 = vmand %vm769, %vm705
    %vm834 = vmand %vm770, %vm706
    %vm835 = vmand %vm771, %vm707
    %vm836 = vmand %vm772, %vm708
    %vm837 = vmand %vm773, %vm709
    %vm838 = vmand %vm774, %vm710
    %vm839 = vmand %vm775, %vm711
    %vm840 = vmand %vm776, %vm712
    %vm841 = vmand %vm777, %vm713
    %vm842 = vmand %vm778, %vm714
    %vm843 = vmand %vm779, %vm715
    %vm844 = vmand %vm780, %vm716
    %vm845 = vmand %vm781, %vm717
    %vm846 = vmand %vm782, %vm718
    %vm847 = vmand %vm783, %vm719
    %vm848 = vmand %vm784, %vm720
    %vm849 = vmand %vm785, %vm721
    %vm850 = vmand %vm786, %vm722
    %vm851 = vmand %vm787, %vm723
    %vm852 = vmand %vm788, %vm724
    %vm853 = vmand %vm789, %vm725
    %vm854 = vmand %vm790, %vm726
    %vm855 = vmand %vm791, %vm727
    %vm856 = vmand %vm792, %vm728
    %vm857 = vmand %vm793, %vm729
    %vm858 = vmand %vm794, %vm730
    %v859 = vadd.s32 %v225, 256
    %v860 = vadd.s32 %v232, 256
    %v861 = vadd.s32 %v239, 256
    %v862 = vadd.s32 %v246, 256
    %v863 = vadd.s32 %v253, 256
    %v864 = vadd.s32 %v260, 256
    %v865 = vadd.s32 %v267, 256
    %v866 = vadd.s32 %v274, 256
    %v867 = vadd.s32 %v281, 256
    %v868 = vadd.s32 %v288, 256
    %v869 = vadd.s32 %v295, 256
    %v870 = vadd.s32 %v302, 256
    %v871 = vadd.s32 %v309, 256
    %v872 = vadd.s32 %v316, 256
    %v873 = vadd.s32 %v323, 256
    %v874 = vadd.s32 %v330, 256
    %v875 = vadd.s32 %v337, 256
    %v876 = vadd.s32 %v344, 256
    %v877 = vadd.s32 %v351, 256
    %v878 = vadd.s32 %v358, 256
    %v879 = vadd.s32 %v365, 256
    %v880 = vadd.s32 %v372, 256
    %v881 = vadd.s32 %v379, 256
    %v882 = vadd.s32 %v386, 256
    %v883 = vadd.s32 %v393, 256
    %v884 = vadd.s32 %v400, 256
    %v885 = vadd.s32 %v407, 256
    %v886 = vadd.s32 %v414, 256
    %v887 = vadd.s32 %v421, 256
    %v888 = vadd.s32 %v428, 256
    %v889 = vadd.s32 %v435, 256
    %v890 = vadd.s32 %v442, 256
    %v891 = vadd.s32 %v449, 256
    %v892 = vadd.s32 %v456, 256
    %v893 = vadd.s32 %v463, 256
    %v894 = vadd.s32 %v470, 256
    %v895 = vadd.s32 %v477, 256
    %v896 = vadd.s32 %v484, 256
    %v897 = vadd.s32 %v491, 256
    %v898 = vadd.s32 %v498, 256
    %v899 = vadd.s32 %v505, 256
    %v900 = vadd.s32 %v512, 256
    %v901 = vadd.s32 %v519, 256
    %v902 = vadd.s32 %v526, 256
    %v903 = vadd.s32 %v533, 256
    %v904 = vadd.s32 %v540, 256
    %v905 = vadd.s32 %v547, 256
    %v906 = vadd.s32 %v554, 256
    %v907 = vadd.s32 %v561, 256
    %v908 = vadd.s32 %v568, 256
    %v909 = vadd.s32 %v575, 256
    %v910 = vadd.s32 %v582, 256
    %v911 = vadd.s32 %v589, 256
    %v912 = vadd.s32 %v596, 256
    %v913 = vadd.s32 %v603, 256
    %v914 = vadd.s32 %v610, 256
    %v915 = vadd.s32 %v617, 256
    %v916 = vadd.s32 %v624, 256
    %v917 = vadd.s32 %v631, 256
    %v918 = vadd.s32 %v638, 256
    %v919 = vadd.s32 %v645, 256
    %v920 = vadd.s32 %v652, 256
    %v921 = vadd.s32 %v659, 256
    %v922 = vadd.s32 %v666, 256
    %v923 = vsel %vm795, %v859, %v225
    %v924 = vsel %vm796, %v860, %v232
    %v925 = vsel %vm797, %v861, %v239
    %v926 = vsel %vm798, %v862, %v246
    %v927 = vsel %vm799, %v863, %v253
    %v928 = vsel %vm800, %v864, %v260
    %v929 = vsel %vm801, %v865, %v267
    %v930 = vsel %vm802, %v866, %v274
    %v931 = vsel %vm803, %v867, %v281
    %v932 = vsel %vm804, %v868, %v288
    %v933 = vsel %vm805, %v869, %v295
    %v934 = vsel %vm806, %v870, %v302
    %v935 = vsel %vm807, %v871, %v309
    %v936 = vsel %vm808, %v872, %v316
    %v937 = vsel %vm809, %v873, %v323
    %v938 = vsel %vm810, %v874, %v330
    %v939 = vsel %vm811, %v875, %v337
    %v940 = vsel %vm812, %v876, %v344
    %v941 = vsel %vm813, %v877, %v351
    %v942 = vsel %vm814, %v878, %v358
    %v943 = vsel %vm815, %v879, %v365
    %v944 = vsel %vm816, %v880, %v372
    %v945 = vsel %vm817, %v881, %v379
    %v946 = vsel %vm818, %v882, %v386
    %v947 = vsel %vm819, %v883, %v393
    %v948 = vsel %vm820, %v884, %v400
    %v949 = vsel %vm821, %v885, %v407
    %v950 = vsel %vm822, %v886, %v414
    %v951 = vsel %vm823, %v887, %v421
    %v952 = vsel %vm824, %v888, %v428
    %v953 = vsel %vm825, %v889, %v435
    %v954 = vsel %vm826, %v890, %v442
    %v955 = vsel %vm827, %v891, %v449
    %v956 = vsel %vm828, %v892, %v456
    %v957 = vsel %vm829, %v893, %v463
    %v958 = vsel %vm830, %v894, %v470
    %v959 = vsel %vm831, %v895, %v477
    %v960 = vsel %vm832, %v896, %v484
    %v961 = vsel %vm833, %v897, %v491
    %v962 = vsel %vm834, %v898, %v498
    %v963 = vsel %vm835, %v899, %v505
    %v964 = vsel %vm836, %v900, %v512
    %v965 = vsel %vm837, %v901, %v519
    %v966 = vsel %vm838, %v902, %v526
    %v967 = vsel %vm839, %v903, %v533
    %v968 = vsel %vm840, %v904, %v540
    %v969 = vsel %vm841, %v905, %v547
    %v970 = vsel %vm842, %v906, %v554
    %v971 = vsel %vm843, %v907, %v561
    %v972 = vsel %vm844, %v908, %v568
    %v973 = vsel %vm845, %v909, %v575
    %v974 = vsel %vm846, %v910, %v582
    %v975 = vsel %vm847, %v911, %v589
    %v976 = vsel %vm848, %v912, %v596
    %v977 = vsel %vm849, %v913, %v603
    %v978 = vsel %vm850, %v914, %v610
    %v979 = vsel %vm851, %v915, %v617
    %v980 = vsel %vm852, %v916, %v624
    %v981 = vsel %vm853, %v917, %v631
    %v982 = vsel %vm854, %v918, %v638
    %v983 = vsel %vm855, %v919, %v645
    %v984 = vsel %vm856, %v920, %v652
    %v985 = vsel %vm857, %v921, %v659
    %v986 = vsel %vm858, %v922, %v666
    %vm987 = vcmp.ge.s32.totalorder %v923, 16
    %vm988 = vcmp.ge.s32.totalorder %v924, 16
    %vm989 = vcmp.ge.s32.totalorder %v925, 16
    %vm990 = vcmp.ge.s32.totalorder %v926, 16
    %vm991 = vcmp.ge.s32.totalorder %v927, 16
    %vm992 = vcmp.ge.s32.totalorder %v928, 16
    %vm993 = vcmp.ge.s32.totalorder %v929, 16
    %vm994 = vcmp.ge.s32.totalorder %v930, 16
    %vm995 = vcmp.ge.s32.totalorder %v931, 16
    %vm996 = vcmp.ge.s32.totalorder %v932, 16
    %vm997 = vcmp.ge.s32.totalorder %v933, 16
    %vm998 = vcmp.ge.s32.totalorder %v934, 16
    %vm999 = vcmp.ge.s32.totalorder %v935, 16
    %vm1000 = vcmp.ge.s32.totalorder %v936, 16
    %vm1001 = vcmp.ge.s32.totalorder %v937, 16
    %vm1002 = vcmp.ge.s32.totalorder %v938, 16
    %vm1003 = vcmp.ge.s32.totalorder %v939, 16
    %vm1004 = vcmp.ge.s32.totalorder %v940, 16
    %vm1005 = vcmp.ge.s32.totalorder %v941, 16
    %vm1006 = vcmp.ge.s32.totalorder %v942, 16
    %vm1007 = vcmp.ge.s32.totalorder %v943, 16
    %vm1008 = vcmp.ge.s32.totalorder %v944, 16
    %vm1009 = vcmp.ge.s32.totalorder %v945, 16
    %vm1010 = vcmp.ge.s32.totalorder %v946, 16
    %vm1011 = vcmp.ge.s32.totalorder %v947, 16
    %vm1012 = vcmp.ge.s32.totalorder %v948, 16
    %vm1013 = vcmp.ge.s32.totalorder %v949, 16
    %vm1014 = vcmp.ge.s32.totalorder %v950, 16
    %vm1015 = vcmp.ge.s32.totalorder %v951, 16
    %vm1016 = vcmp.ge.s32.totalorder %v952, 16
    %vm1017 = vcmp.ge.s32.totalorder %v953, 16
    %vm1018 = vcmp.ge.s32.totalorder %v954, 16
    %vm1019 = vcmp.ge.s32.totalorder %v955, 16
    %vm1020 = vcmp.ge.s32.totalorder %v956, 16
    %vm1021 = vcmp.ge.s32.totalorder %v957, 16
    %vm1022 = vcmp.ge.s32.totalorder %v958, 16
    %vm1023 = vcmp.ge.s32.totalorder %v959, 16
    %vm1024 = vcmp.ge.s32.totalorder %v960, 16
    %vm1025 = vcmp.ge.s32.totalorder %v961, 16
    %vm1026 = vcmp.ge.s32.totalorder %v962, 16
    %vm1027 = vcmp.ge.s32.totalorder %v963, 16
    %vm1028 = vcmp.ge.s32.totalorder %v964, 16
    %vm1029 = vcmp.ge.s32.totalorder %v965, 16
    %vm1030 = vcmp.ge.s32.totalorder %v966, 16
    %vm1031 = vcmp.ge.s32.totalorder %v967, 16
    %vm1032 = vcmp.ge.s32.totalorder %v968, 16
    %vm1033 = vcmp.ge.s32.totalorder %v969, 16
    %vm1034 = vcmp.ge.s32.totalorder %v970, 16
    %vm1035 = vcmp.ge.s32.totalorder %v971, 16
    %vm1036 = vcmp.ge.s32.totalorder %v972, 16
    %vm1037 = vcmp.ge.s32.totalorder %v973, 16
    %vm1038 = vcmp.ge.s32.totalorder %v974, 16
    %vm1039 = vcmp.ge.s32.totalorder %v975, 16
    %vm1040 = vcmp.ge.s32.totalorder %v976, 16
    %vm1041 = vcmp.ge.s32.totalorder %v977, 16
    %vm1042 = vcmp.ge.s32.totalorder %v978, 16
    %vm1043 = vcmp.ge.s32.totalorder %v979, 16
    %vm1044 = vcmp.ge.s32.totalorder %v980, 16
    %vm1045 = vcmp.ge.s32.totalorder %v981, 16
    %vm1046 = vcmp.ge.s32.totalorder %v982, 16
    %vm1047 = vcmp.ge.s32.totalorder %v983, 16
    %vm1048 = vcmp.ge.s32.totalorder %v984, 16
    %vm1049 = vcmp.ge.s32.totalorder %v985, 16
    %vm1050 = vcmp.ge.s32.totalorder %v986, 16
    %vm1051 = vcmp.lt.s32.totalorder %v923, 0
    %v1052 = vsub.s32 0, %v923
    %v1053 = vsel %vm1051, %v1052, %v923
    %v1054 = vshrl.u32 %v1053, 4
    %v1055 = vand.u32 %v1053, 15
    %v1056 = vsub.s32 0, %v1055
    %v1057 = vsel %vm1051, %v1056, %v1055
    %vm1058 = vcmp.lt.s32.totalorder %v924, 0
    %v1059 = vsub.s32 0, %v924
    %v1060 = vsel %vm1058, %v1059, %v924
    %v1061 = vshrl.u32 %v1060, 4
    %v1062 = vand.u32 %v1060, 15
    %v1063 = vsub.s32 0, %v1062
    %v1064 = vsel %vm1058, %v1063, %v1062
    %vm1065 = vcmp.lt.s32.totalorder %v925, 0
    %v1066 = vsub.s32 0, %v925
    %v1067 = vsel %vm1065, %v1066, %v925
    %v1068 = vshrl.u32 %v1067, 4
    %v1069 = vand.u32 %v1067, 15
    %v1070 = vsub.s32 0, %v1069
    %v1071 = vsel %vm1065, %v1070, %v1069
    %vm1072 = vcmp.lt.s32.totalorder %v926, 0
    %v1073 = vsub.s32 0, %v926
    %v1074 = vsel %vm1072, %v1073, %v926
    %v1075 = vshrl.u32 %v1074, 4
    %v1076 = vand.u32 %v1074, 15
    %v1077 = vsub.s32 0, %v1076
    %v1078 = vsel %vm1072, %v1077, %v1076
    %vm1079 = vcmp.lt.s32.totalorder %v927, 0
    %v1080 = vsub.s32 0, %v927
    %v1081 = vsel %vm1079, %v1080, %v927
    %v1082 = vshrl.u32 %v1081, 4
    %v1083 = vand.u32 %v1081, 15
    %v1084 = vsub.s32 0, %v1083
    %v1085 = vsel %vm1079, %v1084, %v1083
    %vm1086 = vcmp.lt.s32.totalorder %v928, 0
    %v1087 = vsub.s32 0, %v928
    %v1088 = vsel %vm1086, %v1087, %v928
    %v1089 = vshrl.u32 %v1088, 4
    %v1090 = vand.u32 %v1088, 15
    %v1091 = vsub.s32 0, %v1090
    %v1092 = vsel %vm1086, %v1091, %v1090
    %vm1093 = vcmp.lt.s32.totalorder %v929, 0
    %v1094 = vsub.s32 0, %v929
    %v1095 = vsel %vm1093, %v1094, %v929
    %v1096 = vshrl.u32 %v1095, 4
    %v1097 = vand.u32 %v1095, 15
    %v1098 = vsub.s32 0, %v1097
    %v1099 = vsel %vm1093, %v1098, %v1097
    %vm1100 = vcmp.lt.s32.totalorder %v930, 0
    %v1101 = vsub.s32 0, %v930
    %v1102 = vsel %vm1100, %v1101, %v930
    %v1103 = vshrl.u32 %v1102, 4
    %v1104 = vand.u32 %v1102, 15
    %v1105 = vsub.s32 0, %v1104
    %v1106 = vsel %vm1100, %v1105, %v1104
    %vm1107 = vcmp.lt.s32.totalorder %v931, 0
    %v1108 = vsub.s32 0, %v931
    %v1109 = vsel %vm1107, %v1108, %v931
    %v1110 = vshrl.u32 %v1109, 4
    %v1111 = vand.u32 %v1109, 15
    %v1112 = vsub.s32 0, %v1111
    %v1113 = vsel %vm1107, %v1112, %v1111
    %vm1114 = vcmp.lt.s32.totalorder %v932, 0
    %v1115 = vsub.s32 0, %v932
    %v1116 = vsel %vm1114, %v1115, %v932
    %v1117 = vshrl.u32 %v1116, 4
    %v1118 = vand.u32 %v1116, 15
    %v1119 = vsub.s32 0, %v1118
    %v1120 = vsel %vm1114, %v1119, %v1118
    %vm1121 = vcmp.lt.s32.totalorder %v933, 0
    %v1122 = vsub.s32 0, %v933
    %v1123 = vsel %vm1121, %v1122, %v933
    %v1124 = vshrl.u32 %v1123, 4
    %v1125 = vand.u32 %v1123, 15
    %v1126 = vsub.s32 0, %v1125
    %v1127 = vsel %vm1121, %v1126, %v1125
    %vm1128 = vcmp.lt.s32.totalorder %v934, 0
    %v1129 = vsub.s32 0, %v934
    %v1130 = vsel %vm1128, %v1129, %v934
    %v1131 = vshrl.u32 %v1130, 4
    %v1132 = vand.u32 %v1130, 15
    %v1133 = vsub.s32 0, %v1132
    %v1134 = vsel %vm1128, %v1133, %v1132
    %vm1135 = vcmp.lt.s32.totalorder %v935, 0
    %v1136 = vsub.s32 0, %v935
    %v1137 = vsel %vm1135, %v1136, %v935
    %v1138 = vshrl.u32 %v1137, 4
    %v1139 = vand.u32 %v1137, 15
    %v1140 = vsub.s32 0, %v1139
    %v1141 = vsel %vm1135, %v1140, %v1139
    %vm1142 = vcmp.lt.s32.totalorder %v936, 0
    %v1143 = vsub.s32 0, %v936
    %v1144 = vsel %vm1142, %v1143, %v936
    %v1145 = vshrl.u32 %v1144, 4
    %v1146 = vand.u32 %v1144, 15
    %v1147 = vsub.s32 0, %v1146
    %v1148 = vsel %vm1142, %v1147, %v1146
    %vm1149 = vcmp.lt.s32.totalorder %v937, 0
    %v1150 = vsub.s32 0, %v937
    %v1151 = vsel %vm1149, %v1150, %v937
    %v1152 = vshrl.u32 %v1151, 4
    %v1153 = vand.u32 %v1151, 15
    %v1154 = vsub.s32 0, %v1153
    %v1155 = vsel %vm1149, %v1154, %v1153
    %vm1156 = vcmp.lt.s32.totalorder %v938, 0
    %v1157 = vsub.s32 0, %v938
    %v1158 = vsel %vm1156, %v1157, %v938
    %v1159 = vshrl.u32 %v1158, 4
    %v1160 = vand.u32 %v1158, 15
    %v1161 = vsub.s32 0, %v1160
    %v1162 = vsel %vm1156, %v1161, %v1160
    %vm1163 = vcmp.lt.s32.totalorder %v939, 0
    %v1164 = vsub.s32 0, %v939
    %v1165 = vsel %vm1163, %v1164, %v939
    %v1166 = vshrl.u32 %v1165, 4
    %v1167 = vand.u32 %v1165, 15
    %v1168 = vsub.s32 0, %v1167
    %v1169 = vsel %vm1163, %v1168, %v1167
    %vm1170 = vcmp.lt.s32.totalorder %v940, 0
    %v1171 = vsub.s32 0, %v940
    %v1172 = vsel %vm1170, %v1171, %v940
    %v1173 = vshrl.u32 %v1172, 4
    %v1174 = vand.u32 %v1172, 15
    %v1175 = vsub.s32 0, %v1174
    %v1176 = vsel %vm1170, %v1175, %v1174
    %vm1177 = vcmp.lt.s32.totalorder %v941, 0
    %v1178 = vsub.s32 0, %v941
    %v1179 = vsel %vm1177, %v1178, %v941
    %v1180 = vshrl.u32 %v1179, 4
    %v1181 = vand.u32 %v1179, 15
    %v1182 = vsub.s32 0, %v1181
    %v1183 = vsel %vm1177, %v1182, %v1181
    %vm1184 = vcmp.lt.s32.totalorder %v942, 0
    %v1185 = vsub.s32 0, %v942
    %v1186 = vsel %vm1184, %v1185, %v942
    %v1187 = vshrl.u32 %v1186, 4
    %v1188 = vand.u32 %v1186, 15
    %v1189 = vsub.s32 0, %v1188
    %v1190 = vsel %vm1184, %v1189, %v1188
    %vm1191 = vcmp.lt.s32.totalorder %v943, 0
    %v1192 = vsub.s32 0, %v943
    %v1193 = vsel %vm1191, %v1192, %v943
    %v1194 = vshrl.u32 %v1193, 4
    %v1195 = vand.u32 %v1193, 15
    %v1196 = vsub.s32 0, %v1195
    %v1197 = vsel %vm1191, %v1196, %v1195
    %vm1198 = vcmp.lt.s32.totalorder %v944, 0
    %v1199 = vsub.s32 0, %v944
    %v1200 = vsel %vm1198, %v1199, %v944
    %v1201 = vshrl.u32 %v1200, 4
    %v1202 = vand.u32 %v1200, 15
    %v1203 = vsub.s32 0, %v1202
    %v1204 = vsel %vm1198, %v1203, %v1202
    %vm1205 = vcmp.lt.s32.totalorder %v945, 0
    %v1206 = vsub.s32 0, %v945
    %v1207 = vsel %vm1205, %v1206, %v945
    %v1208 = vshrl.u32 %v1207, 4
    %v1209 = vand.u32 %v1207, 15
    %v1210 = vsub.s32 0, %v1209
    %v1211 = vsel %vm1205, %v1210, %v1209
    %vm1212 = vcmp.lt.s32.totalorder %v946, 0
    %v1213 = vsub.s32 0, %v946
    %v1214 = vsel %vm1212, %v1213, %v946
    %v1215 = vshrl.u32 %v1214, 4
    %v1216 = vand.u32 %v1214, 15
    %v1217 = vsub.s32 0, %v1216
    %v1218 = vsel %vm1212, %v1217, %v1216
    %vm1219 = vcmp.lt.s32.totalorder %v947, 0
    %v1220 = vsub.s32 0, %v947
    %v1221 = vsel %vm1219, %v1220, %v947
    %v1222 = vshrl.u32 %v1221, 4
    %v1223 = vand.u32 %v1221, 15
    %v1224 = vsub.s32 0, %v1223
    %v1225 = vsel %vm1219, %v1224, %v1223
    %vm1226 = vcmp.lt.s32.totalorder %v948, 0
    %v1227 = vsub.s32 0, %v948
    %v1228 = vsel %vm1226, %v1227, %v948
    %v1229 = vshrl.u32 %v1228, 4
    %v1230 = vand.u32 %v1228, 15
    %v1231 = vsub.s32 0, %v1230
    %v1232 = vsel %vm1226, %v1231, %v1230
    %vm1233 = vcmp.lt.s32.totalorder %v949, 0
    %v1234 = vsub.s32 0, %v949
    %v1235 = vsel %vm1233, %v1234, %v949
    %v1236 = vshrl.u32 %v1235, 4
    %v1237 = vand.u32 %v1235, 15
    %v1238 = vsub.s32 0, %v1237
    %v1239 = vsel %vm1233, %v1238, %v1237
    %vm1240 = vcmp.lt.s32.totalorder %v950, 0
    %v1241 = vsub.s32 0, %v950
    %v1242 = vsel %vm1240, %v1241, %v950
    %v1243 = vshrl.u32 %v1242, 4
    %v1244 = vand.u32 %v1242, 15
    %v1245 = vsub.s32 0, %v1244
    %v1246 = vsel %vm1240, %v1245, %v1244
    %vm1247 = vcmp.lt.s32.totalorder %v951, 0
    %v1248 = vsub.s32 0, %v951
    %v1249 = vsel %vm1247, %v1248, %v951
    %v1250 = vshrl.u32 %v1249, 4
    %v1251 = vand.u32 %v1249, 15
    %v1252 = vsub.s32 0, %v1251
    %v1253 = vsel %vm1247, %v1252, %v1251
    %vm1254 = vcmp.lt.s32.totalorder %v952, 0
    %v1255 = vsub.s32 0, %v952
    %v1256 = vsel %vm1254, %v1255, %v952
    %v1257 = vshrl.u32 %v1256, 4
    %v1258 = vand.u32 %v1256, 15
    %v1259 = vsub.s32 0, %v1258
    %v1260 = vsel %vm1254, %v1259, %v1258
    %vm1261 = vcmp.lt.s32.totalorder %v953, 0
    %v1262 = vsub.s32 0, %v953
    %v1263 = vsel %vm1261, %v1262, %v953
    %v1264 = vshrl.u32 %v1263, 4
    %v1265 = vand.u32 %v1263, 15
    %v1266 = vsub.s32 0, %v1265
    %v1267 = vsel %vm1261, %v1266, %v1265
    %vm1268 = vcmp.lt.s32.totalorder %v954, 0
    %v1269 = vsub.s32 0, %v954
    %v1270 = vsel %vm1268, %v1269, %v954
    %v1271 = vshrl.u32 %v1270, 4
    %v1272 = vand.u32 %v1270, 15
    %v1273 = vsub.s32 0, %v1272
    %v1274 = vsel %vm1268, %v1273, %v1272
    %vm1275 = vcmp.lt.s32.totalorder %v955, 0
    %v1276 = vsub.s32 0, %v955
    %v1277 = vsel %vm1275, %v1276, %v955
    %v1278 = vshrl.u32 %v1277, 4
    %v1279 = vand.u32 %v1277, 15
    %v1280 = vsub.s32 0, %v1279
    %v1281 = vsel %vm1275, %v1280, %v1279
    %vm1282 = vcmp.lt.s32.totalorder %v956, 0
    %v1283 = vsub.s32 0, %v956
    %v1284 = vsel %vm1282, %v1283, %v956
    %v1285 = vshrl.u32 %v1284, 4
    %v1286 = vand.u32 %v1284, 15
    %v1287 = vsub.s32 0, %v1286
    %v1288 = vsel %vm1282, %v1287, %v1286
    %vm1289 = vcmp.lt.s32.totalorder %v957, 0
    %v1290 = vsub.s32 0, %v957
    %v1291 = vsel %vm1289, %v1290, %v957
    %v1292 = vshrl.u32 %v1291, 4
    %v1293 = vand.u32 %v1291, 15
    %v1294 = vsub.s32 0, %v1293
    %v1295 = vsel %vm1289, %v1294, %v1293
    %vm1296 = vcmp.lt.s32.totalorder %v958, 0
    %v1297 = vsub.s32 0, %v958
    %v1298 = vsel %vm1296, %v1297, %v958
    %v1299 = vshrl.u32 %v1298, 4
    %v1300 = vand.u32 %v1298, 15
    %v1301 = vsub.s32 0, %v1300
    %v1302 = vsel %vm1296, %v1301, %v1300
    %vm1303 = vcmp.lt.s32.totalorder %v959, 0
    %v1304 = vsub.s32 0, %v959
    %v1305 = vsel %vm1303, %v1304, %v959
    %v1306 = vshrl.u32 %v1305, 4
    %v1307 = vand.u32 %v1305, 15
    %v1308 = vsub.s32 0, %v1307
    %v1309 = vsel %vm1303, %v1308, %v1307
    %vm1310 = vcmp.lt.s32.totalorder %v960, 0
    %v1311 = vsub.s32 0, %v960
    %v1312 = vsel %vm1310, %v1311, %v960
    %v1313 = vshrl.u32 %v1312, 4
    %v1314 = vand.u32 %v1312, 15
    %v1315 = vsub.s32 0, %v1314
    %v1316 = vsel %vm1310, %v1315, %v1314
    %vm1317 = vcmp.lt.s32.totalorder %v961, 0
    %v1318 = vsub.s32 0, %v961
    %v1319 = vsel %vm1317, %v1318, %v961
    %v1320 = vshrl.u32 %v1319, 4
    %v1321 = vand.u32 %v1319, 15
    %v1322 = vsub.s32 0, %v1321
    %v1323 = vsel %vm1317, %v1322, %v1321
    %vm1324 = vcmp.lt.s32.totalorder %v962, 0
    %v1325 = vsub.s32 0, %v962
    %v1326 = vsel %vm1324, %v1325, %v962
    %v1327 = vshrl.u32 %v1326, 4
    %v1328 = vand.u32 %v1326, 15
    %v1329 = vsub.s32 0, %v1328
    %v1330 = vsel %vm1324, %v1329, %v1328
    %vm1331 = vcmp.lt.s32.totalorder %v963, 0
    %v1332 = vsub.s32 0, %v963
    %v1333 = vsel %vm1331, %v1332, %v963
    %v1334 = vshrl.u32 %v1333, 4
    %v1335 = vand.u32 %v1333, 15
    %v1336 = vsub.s32 0, %v1335
    %v1337 = vsel %vm1331, %v1336, %v1335
    %vm1338 = vcmp.lt.s32.totalorder %v964, 0
    %v1339 = vsub.s32 0, %v964
    %v1340 = vsel %vm1338, %v1339, %v964
    %v1341 = vshrl.u32 %v1340, 4
    %v1342 = vand.u32 %v1340, 15
    %v1343 = vsub.s32 0, %v1342
    %v1344 = vsel %vm1338, %v1343, %v1342
    %vm1345 = vcmp.lt.s32.totalorder %v965, 0
    %v1346 = vsub.s32 0, %v965
    %v1347 = vsel %vm1345, %v1346, %v965
    %v1348 = vshrl.u32 %v1347, 4
    %v1349 = vand.u32 %v1347, 15
    %v1350 = vsub.s32 0, %v1349
    %v1351 = vsel %vm1345, %v1350, %v1349
    %vm1352 = vcmp.lt.s32.totalorder %v966, 0
    %v1353 = vsub.s32 0, %v966
    %v1354 = vsel %vm1352, %v1353, %v966
    %v1355 = vshrl.u32 %v1354, 4
    %v1356 = vand.u32 %v1354, 15
    %v1357 = vsub.s32 0, %v1356
    %v1358 = vsel %vm1352, %v1357, %v1356
    %vm1359 = vcmp.lt.s32.totalorder %v967, 0
    %v1360 = vsub.s32 0, %v967
    %v1361 = vsel %vm1359, %v1360, %v967
    %v1362 = vshrl.u32 %v1361, 4
    %v1363 = vand.u32 %v1361, 15
    %v1364 = vsub.s32 0, %v1363
    %v1365 = vsel %vm1359, %v1364, %v1363
    %vm1366 = vcmp.lt.s32.totalorder %v968, 0
    %v1367 = vsub.s32 0, %v968
    %v1368 = vsel %vm1366, %v1367, %v968
    %v1369 = vshrl.u32 %v1368, 4
    %v1370 = vand.u32 %v1368, 15
    %v1371 = vsub.s32 0, %v1370
    %v1372 = vsel %vm1366, %v1371, %v1370
    %vm1373 = vcmp.lt.s32.totalorder %v969, 0
    %v1374 = vsub.s32 0, %v969
    %v1375 = vsel %vm1373, %v1374, %v969
    %v1376 = vshrl.u32 %v1375, 4
    %v1377 = vand.u32 %v1375, 15
    %v1378 = vsub.s32 0, %v1377
    %v1379 = vsel %vm1373, %v1378, %v1377
    %vm1380 = vcmp.lt.s32.totalorder %v970, 0
    %v1381 = vsub.s32 0, %v970
    %v1382 = vsel %vm1380, %v1381, %v970
    %v1383 = vshrl.u32 %v1382, 4
    %v1384 = vand.u32 %v1382, 15
    %v1385 = vsub.s32 0, %v1384
    %v1386 = vsel %vm1380, %v1385, %v1384
    %vm1387 = vcmp.lt.s32.totalorder %v971, 0
    %v1388 = vsub.s32 0, %v971
    %v1389 = vsel %vm1387, %v1388, %v971
    %v1390 = vshrl.u32 %v1389, 4
    %v1391 = vand.u32 %v1389, 15
    %v1392 = vsub.s32 0, %v1391
    %v1393 = vsel %vm1387, %v1392, %v1391
    %vm1394 = vcmp.lt.s32.totalorder %v972, 0
    %v1395 = vsub.s32 0, %v972
    %v1396 = vsel %vm1394, %v1395, %v972
    %v1397 = vshrl.u32 %v1396, 4
    %v1398 = vand.u32 %v1396, 15
    %v1399 = vsub.s32 0, %v1398
    %v1400 = vsel %vm1394, %v1399, %v1398
    %vm1401 = vcmp.lt.s32.totalorder %v973, 0
    %v1402 = vsub.s32 0, %v973
    %v1403 = vsel %vm1401, %v1402, %v973
    %v1404 = vshrl.u32 %v1403, 4
    %v1405 = vand.u32 %v1403, 15
    %v1406 = vsub.s32 0, %v1405
    %v1407 = vsel %vm1401, %v1406, %v1405
    %vm1408 = vcmp.lt.s32.totalorder %v974, 0
    %v1409 = vsub.s32 0, %v974
    %v1410 = vsel %vm1408, %v1409, %v974
    %v1411 = vshrl.u32 %v1410, 4
    %v1412 = vand.u32 %v1410, 15
    %v1413 = vsub.s32 0, %v1412
    %v1414 = vsel %vm1408, %v1413, %v1412
    %vm1415 = vcmp.lt.s32.totalorder %v975, 0
    %v1416 = vsub.s32 0, %v975
    %v1417 = vsel %vm1415, %v1416, %v975
    %v1418 = vshrl.u32 %v1417, 4
    %v1419 = vand.u32 %v1417, 15
    %v1420 = vsub.s32 0, %v1419
    %v1421 = vsel %vm1415, %v1420, %v1419
    %vm1422 = vcmp.lt.s32.totalorder %v976, 0
    %v1423 = vsub.s32 0, %v976
    %v1424 = vsel %vm1422, %v1423, %v976
    %v1425 = vshrl.u32 %v1424, 4
    %v1426 = vand.u32 %v1424, 15
    %v1427 = vsub.s32 0, %v1426
    %v1428 = vsel %vm1422, %v1427, %v1426
    %vm1429 = vcmp.lt.s32.totalorder %v977, 0
    %v1430 = vsub.s32 0, %v977
    %v1431 = vsel %vm1429, %v1430, %v977
    %v1432 = vshrl.u32 %v1431, 4
    %v1433 = vand.u32 %v1431, 15
    %v1434 = vsub.s32 0, %v1433
    %v1435 = vsel %vm1429, %v1434, %v1433
    %vm1436 = vcmp.lt.s32.totalorder %v978, 0
    %v1437 = vsub.s32 0, %v978
    %v1438 = vsel %vm1436, %v1437, %v978
    %v1439 = vshrl.u32 %v1438, 4
    %v1440 = vand.u32 %v1438, 15
    %v1441 = vsub.s32 0, %v1440
    %v1442 = vsel %vm1436, %v1441, %v1440
    %vm1443 = vcmp.lt.s32.totalorder %v979, 0
    %v1444 = vsub.s32 0, %v979
    %v1445 = vsel %vm1443, %v1444, %v979
    %v1446 = vshrl.u32 %v1445, 4
    %v1447 = vand.u32 %v1445, 15
    %v1448 = vsub.s32 0, %v1447
    %v1449 = vsel %vm1443, %v1448, %v1447
    %vm1450 = vcmp.lt.s32.totalorder %v980, 0
    %v1451 = vsub.s32 0, %v980
    %v1452 = vsel %vm1450, %v1451, %v980
    %v1453 = vshrl.u32 %v1452, 4
    %v1454 = vand.u32 %v1452, 15
    %v1455 = vsub.s32 0, %v1454
    %v1456 = vsel %vm1450, %v1455, %v1454
    %vm1457 = vcmp.lt.s32.totalorder %v981, 0
    %v1458 = vsub.s32 0, %v981
    %v1459 = vsel %vm1457, %v1458, %v981
    %v1460 = vshrl.u32 %v1459, 4
    %v1461 = vand.u32 %v1459, 15
    %v1462 = vsub.s32 0, %v1461
    %v1463 = vsel %vm1457, %v1462, %v1461
    %vm1464 = vcmp.lt.s32.totalorder %v982, 0
    %v1465 = vsub.s32 0, %v982
    %v1466 = vsel %vm1464, %v1465, %v982
    %v1467 = vshrl.u32 %v1466, 4
    %v1468 = vand.u32 %v1466, 15
    %v1469 = vsub.s32 0, %v1468
    %v1470 = vsel %vm1464, %v1469, %v1468
    %vm1471 = vcmp.lt.s32.totalorder %v983, 0
    %v1472 = vsub.s32 0, %v983
    %v1473 = vsel %vm1471, %v1472, %v983
    %v1474 = vshrl.u32 %v1473, 4
    %v1475 = vand.u32 %v1473, 15
    %v1476 = vsub.s32 0, %v1475
    %v1477 = vsel %vm1471, %v1476, %v1475
    %vm1478 = vcmp.lt.s32.totalorder %v984, 0
    %v1479 = vsub.s32 0, %v984
    %v1480 = vsel %vm1478, %v1479, %v984
    %v1481 = vshrl.u32 %v1480, 4
    %v1482 = vand.u32 %v1480, 15
    %v1483 = vsub.s32 0, %v1482
    %v1484 = vsel %vm1478, %v1483, %v1482
    %vm1485 = vcmp.lt.s32.totalorder %v985, 0
    %v1486 = vsub.s32 0, %v985
    %v1487 = vsel %vm1485, %v1486, %v985
    %v1488 = vshrl.u32 %v1487, 4
    %v1489 = vand.u32 %v1487, 15
    %v1490 = vsub.s32 0, %v1489
    %v1491 = vsel %vm1485, %v1490, %v1489
    %vm1492 = vcmp.lt.s32.totalorder %v986, 0
    %v1493 = vsub.s32 0, %v986
    %v1494 = vsel %vm1492, %v1493, %v986
    %v1495 = vshrl.u32 %v1494, 4
    %v1496 = vand.u32 %v1494, 15
    %v1497 = vsub.s32 0, %v1496
    %v1498 = vsel %vm1492, %v1497, %v1496
    %vm1499 = vcmp.ne.s32.totalorder %v1057, 0
    %vm1500 = vcmp.ne.s32.totalorder %v1064, 0
    %vm1501 = vcmp.ne.s32.totalorder %v1071, 0
    %vm1502 = vcmp.ne.s32.totalorder %v1078, 0
    %vm1503 = vcmp.ne.s32.totalorder %v1085, 0
    %vm1504 = vcmp.ne.s32.totalorder %v1092, 0
    %vm1505 = vcmp.ne.s32.totalorder %v1099, 0
    %vm1506 = vcmp.ne.s32.totalorder %v1106, 0
    %vm1507 = vcmp.ne.s32.totalorder %v1113, 0
    %vm1508 = vcmp.ne.s32.totalorder %v1120, 0
    %vm1509 = vcmp.ne.s32.totalorder %v1127, 0
    %vm1510 = vcmp.ne.s32.totalorder %v1134, 0
    %vm1511 = vcmp.ne.s32.totalorder %v1141, 0
    %vm1512 = vcmp.ne.s32.totalorder %v1148, 0
    %vm1513 = vcmp.ne.s32.totalorder %v1155, 0
    %vm1514 = vcmp.ne.s32.totalorder %v1162, 0
    %vm1515 = vcmp.ne.s32.totalorder %v1169, 0
    %vm1516 = vcmp.ne.s32.totalorder %v1176, 0
    %vm1517 = vcmp.ne.s32.totalorder %v1183, 0
    %vm1518 = vcmp.ne.s32.totalorder %v1190, 0
    %vm1519 = vcmp.ne.s32.totalorder %v1197, 0
    %vm1520 = vcmp.ne.s32.totalorder %v1204, 0
    %vm1521 = vcmp.ne.s32.totalorder %v1211, 0
    %vm1522 = vcmp.ne.s32.totalorder %v1218, 0
    %vm1523 = vcmp.ne.s32.totalorder %v1225, 0
    %vm1524 = vcmp.ne.s32.totalorder %v1232, 0
    %vm1525 = vcmp.ne.s32.totalorder %v1239, 0
    %vm1526 = vcmp.ne.s32.totalorder %v1246, 0
    %vm1527 = vcmp.ne.s32.totalorder %v1253, 0
    %vm1528 = vcmp.ne.s32.totalorder %v1260, 0
    %vm1529 = vcmp.ne.s32.totalorder %v1267, 0
    %vm1530 = vcmp.ne.s32.totalorder %v1274, 0
    %vm1531 = vcmp.ne.s32.totalorder %v1281, 0
    %vm1532 = vcmp.ne.s32.totalorder %v1288, 0
    %vm1533 = vcmp.ne.s32.totalorder %v1295, 0
    %vm1534 = vcmp.ne.s32.totalorder %v1302, 0
    %vm1535 = vcmp.ne.s32.totalorder %v1309, 0
    %vm1536 = vcmp.ne.s32.totalorder %v1316, 0
    %vm1537 = vcmp.ne.s32.totalorder %v1323, 0
    %vm1538 = vcmp.ne.s32.totalorder %v1330, 0
    %vm1539 = vcmp.ne.s32.totalorder %v1337, 0
    %vm1540 = vcmp.ne.s32.totalorder %v1344, 0
    %vm1541 = vcmp.ne.s32.totalorder %v1351, 0
    %vm1542 = vcmp.ne.s32.totalorder %v1358, 0
    %vm1543 = vcmp.ne.s32.totalorder %v1365, 0
    %vm1544 = vcmp.ne.s32.totalorder %v1372, 0
    %vm1545 = vcmp.ne.s32.totalorder %v1379, 0
    %vm1546 = vcmp.ne.s32.totalorder %v1386, 0
    %vm1547 = vcmp.ne.s32.totalorder %v1393, 0
    %vm1548 = vcmp.ne.s32.totalorder %v1400, 0
    %vm1549 = vcmp.ne.s32.totalorder %v1407, 0
    %vm1550 = vcmp.ne.s32.totalorder %v1414, 0
    %vm1551 = vcmp.ne.s32.totalorder %v1421, 0
    %vm1552 = vcmp.ne.s32.totalorder %v1428, 0
    %vm1553 = vcmp.ne.s32.totalorder %v1435, 0
    %vm1554 = vcmp.ne.s32.totalorder %v1442, 0
    %vm1555 = vcmp.ne.s32.totalorder %v1449, 0
    %vm1556 = vcmp.ne.s32.totalorder %v1456, 0
    %vm1557 = vcmp.ne.s32.totalorder %v1463, 0
    %vm1558 = vcmp.ne.s32.totalorder %v1470, 0
    %vm1559 = vcmp.ne.s32.totalorder %v1477, 0
    %vm1560 = vcmp.ne.s32.totalorder %v1484, 0
    %vm1561 = vcmp.ne.s32.totalorder %v1491, 0
    %vm1562 = vcmp.ne.s32.totalorder %v1498, 0
    %vm1563 = vcmp.lt.s32.totalorder %v1057, 0
    %vm1564 = vcmp.lt.s32.totalorder %v1064, 0
    %vm1565 = vcmp.lt.s32.totalorder %v1071, 0
    %vm1566 = vcmp.lt.s32.totalorder %v1078, 0
    %vm1567 = vcmp.lt.s32.totalorder %v1085, 0
    %vm1568 = vcmp.lt.s32.totalorder %v1092, 0
    %vm1569 = vcmp.lt.s32.totalorder %v1099, 0
    %vm1570 = vcmp.lt.s32.totalorder %v1106, 0
    %vm1571 = vcmp.lt.s32.totalorder %v1113, 0
    %vm1572 = vcmp.lt.s32.totalorder %v1120, 0
    %vm1573 = vcmp.lt.s32.totalorder %v1127, 0
    %vm1574 = vcmp.lt.s32.totalorder %v1134, 0
    %vm1575 = vcmp.lt.s32.totalorder %v1141, 0
    %vm1576 = vcmp.lt.s32.totalorder %v1148, 0
    %vm1577 = vcmp.lt.s32.totalorder %v1155, 0
    %vm1578 = vcmp.lt.s32.totalorder %v1162, 0
    %vm1579 = vcmp.lt.s32.totalorder %v1169, 0
    %vm1580 = vcmp.lt.s32.totalorder %v1176, 0
    %vm1581 = vcmp.lt.s32.totalorder %v1183, 0
    %vm1582 = vcmp.lt.s32.totalorder %v1190, 0
    %vm1583 = vcmp.lt.s32.totalorder %v1197, 0
    %vm1584 = vcmp.lt.s32.totalorder %v1204, 0
    %vm1585 = vcmp.lt.s32.totalorder %v1211, 0
    %vm1586 = vcmp.lt.s32.totalorder %v1218, 0
    %vm1587 = vcmp.lt.s32.totalorder %v1225, 0
    %vm1588 = vcmp.lt.s32.totalorder %v1232, 0
    %vm1589 = vcmp.lt.s32.totalorder %v1239, 0
    %vm1590 = vcmp.lt.s32.totalorder %v1246, 0
    %vm1591 = vcmp.lt.s32.totalorder %v1253, 0
    %vm1592 = vcmp.lt.s32.totalorder %v1260, 0
    %vm1593 = vcmp.lt.s32.totalorder %v1267, 0
    %vm1594 = vcmp.lt.s32.totalorder %v1274, 0
    %vm1595 = vcmp.lt.s32.totalorder %v1281, 0
    %vm1596 = vcmp.lt.s32.totalorder %v1288, 0
    %vm1597 = vcmp.lt.s32.totalorder %v1295, 0
    %vm1598 = vcmp.lt.s32.totalorder %v1302, 0
    %vm1599 = vcmp.lt.s32.totalorder %v1309, 0
    %vm1600 = vcmp.lt.s32.totalorder %v1316, 0
    %vm1601 = vcmp.lt.s32.totalorder %v1323, 0
    %vm1602 = vcmp.lt.s32.totalorder %v1330, 0
    %vm1603 = vcmp.lt.s32.totalorder %v1337, 0
    %vm1604 = vcmp.lt.s32.totalorder %v1344, 0
    %vm1605 = vcmp.lt.s32.totalorder %v1351, 0
    %vm1606 = vcmp.lt.s32.totalorder %v1358, 0
    %vm1607 = vcmp.lt.s32.totalorder %v1365, 0
    %vm1608 = vcmp.lt.s32.totalorder %v1372, 0
    %vm1609 = vcmp.lt.s32.totalorder %v1379, 0
    %vm1610 = vcmp.lt.s32.totalorder %v1386, 0
    %vm1611 = vcmp.lt.s32.totalorder %v1393, 0
    %vm1612 = vcmp.lt.s32.totalorder %v1400, 0
    %vm1613 = vcmp.lt.s32.totalorder %v1407, 0
    %vm1614 = vcmp.lt.s32.totalorder %v1414, 0
    %vm1615 = vcmp.lt.s32.totalorder %v1421, 0
    %vm1616 = vcmp.lt.s32.totalorder %v1428, 0
    %vm1617 = vcmp.lt.s32.totalorder %v1435, 0
    %vm1618 = vcmp.lt.s32.totalorder %v1442, 0
    %vm1619 = vcmp.lt.s32.totalorder %v1449, 0
    %vm1620 = vcmp.lt.s32.totalorder %v1456, 0
    %vm1621 = vcmp.lt.s32.totalorder %v1463, 0
    %vm1622 = vcmp.lt.s32.totalorder %v1470, 0
    %vm1623 = vcmp.lt.s32.totalorder %v1477, 0
    %vm1624 = vcmp.lt.s32.totalorder %v1484, 0
    %vm1625 = vcmp.lt.s32.totalorder %v1491, 0
    %vm1626 = vcmp.lt.s32.totalorder %v1498, 0
    %vm1627 = vmand %vm1563, %vm1499
    %vm1628 = vmand %vm1564, %vm1500
    %vm1629 = vmand %vm1565, %vm1501
    %vm1630 = vmand %vm1566, %vm1502
    %vm1631 = vmand %vm1567, %vm1503
    %vm1632 = vmand %vm1568, %vm1504
    %vm1633 = vmand %vm1569, %vm1505
    %vm1634 = vmand %vm1570, %vm1506
    %vm1635 = vmand %vm1571, %vm1507
    %vm1636 = vmand %vm1572, %vm1508
    %vm1637 = vmand %vm1573, %vm1509
    %vm1638 = vmand %vm1574, %vm1510
    %vm1639 = vmand %vm1575, %vm1511
    %vm1640 = vmand %vm1576, %vm1512
    %vm1641 = vmand %vm1577, %vm1513
    %vm1642 = vmand %vm1578, %vm1514
    %vm1643 = vmand %vm1579, %vm1515
    %vm1644 = vmand %vm1580, %vm1516
    %vm1645 = vmand %vm1581, %vm1517
    %vm1646 = vmand %vm1582, %vm1518
    %vm1647 = vmand %vm1583, %vm1519
    %vm1648 = vmand %vm1584, %vm1520
    %vm1649 = vmand %vm1585, %vm1521
    %vm1650 = vmand %vm1586, %vm1522
    %vm1651 = vmand %vm1587, %vm1523
    %vm1652 = vmand %vm1588, %vm1524
    %vm1653 = vmand %vm1589, %vm1525
    %vm1654 = vmand %vm1590, %vm1526
    %vm1655 = vmand %vm1591, %vm1527
    %vm1656 = vmand %vm1592, %vm1528
    %vm1657 = vmand %vm1593, %vm1529
    %vm1658 = vmand %vm1594, %vm1530
    %vm1659 = vmand %vm1595, %vm1531
    %vm1660 = vmand %vm1596, %vm1532
    %vm1661 = vmand %vm1597, %vm1533
    %vm1662 = vmand %vm1598, %vm1534
    %vm1663 = vmand %vm1599, %vm1535
    %vm1664 = vmand %vm1600, %vm1536
    %vm1665 = vmand %vm1601, %vm1537
    %vm1666 = vmand %vm1602, %vm1538
    %vm1667 = vmand %vm1603, %vm1539
    %vm1668 = vmand %vm1604, %vm1540
    %vm1669 = vmand %vm1605, %vm1541
    %vm1670 = vmand %vm1606, %vm1542
    %vm1671 = vmand %vm1607, %vm1543
    %vm1672 = vmand %vm1608, %vm1544
    %vm1673 = vmand %vm1609, %vm1545
    %vm1674 = vmand %vm1610, %vm1546
    %vm1675 = vmand %vm1611, %vm1547
    %vm1676 = vmand %vm1612, %vm1548
    %vm1677 = vmand %vm1613, %vm1549
    %vm1678 = vmand %vm1614, %vm1550
    %vm1679 = vmand %vm1615, %vm1551
    %vm1680 = vmand %vm1616, %vm1552
    %vm1681 = vmand %vm1617, %vm1553
    %vm1682 = vmand %vm1618, %vm1554
    %vm1683 = vmand %vm1619, %vm1555
    %vm1684 = vmand %vm1620, %vm1556
    %vm1685 = vmand %vm1621, %vm1557
    %vm1686 = vmand %vm1622, %vm1558
    %vm1687 = vmand %vm1623, %vm1559
    %vm1688 = vmand %vm1624, %vm1560
    %vm1689 = vmand %vm1625, %vm1561
    %vm1690 = vmand %vm1626, %vm1562
    %v1691 = vadd.s32 %v1057, 16
    %v1692 = vadd.s32 %v1064, 16
    %v1693 = vadd.s32 %v1071, 16
    %v1694 = vadd.s32 %v1078, 16
    %v1695 = vadd.s32 %v1085, 16
    %v1696 = vadd.s32 %v1092, 16
    %v1697 = vadd.s32 %v1099, 16
    %v1698 = vadd.s32 %v1106, 16
    %v1699 = vadd.s32 %v1113, 16
    %v1700 = vadd.s32 %v1120, 16
    %v1701 = vadd.s32 %v1127, 16
    %v1702 = vadd.s32 %v1134, 16
    %v1703 = vadd.s32 %v1141, 16
    %v1704 = vadd.s32 %v1148, 16
    %v1705 = vadd.s32 %v1155, 16
    %v1706 = vadd.s32 %v1162, 16
    %v1707 = vadd.s32 %v1169, 16
    %v1708 = vadd.s32 %v1176, 16
    %v1709 = vadd.s32 %v1183, 16
    %v1710 = vadd.s32 %v1190, 16
    %v1711 = vadd.s32 %v1197, 16
    %v1712 = vadd.s32 %v1204, 16
    %v1713 = vadd.s32 %v1211, 16
    %v1714 = vadd.s32 %v1218, 16
    %v1715 = vadd.s32 %v1225, 16
    %v1716 = vadd.s32 %v1232, 16
    %v1717 = vadd.s32 %v1239, 16
    %v1718 = vadd.s32 %v1246, 16
    %v1719 = vadd.s32 %v1253, 16
    %v1720 = vadd.s32 %v1260, 16
    %v1721 = vadd.s32 %v1267, 16
    %v1722 = vadd.s32 %v1274, 16
    %v1723 = vadd.s32 %v1281, 16
    %v1724 = vadd.s32 %v1288, 16
    %v1725 = vadd.s32 %v1295, 16
    %v1726 = vadd.s32 %v1302, 16
    %v1727 = vadd.s32 %v1309, 16
    %v1728 = vadd.s32 %v1316, 16
    %v1729 = vadd.s32 %v1323, 16
    %v1730 = vadd.s32 %v1330, 16
    %v1731 = vadd.s32 %v1337, 16
    %v1732 = vadd.s32 %v1344, 16
    %v1733 = vadd.s32 %v1351, 16
    %v1734 = vadd.s32 %v1358, 16
    %v1735 = vadd.s32 %v1365, 16
    %v1736 = vadd.s32 %v1372, 16
    %v1737 = vadd.s32 %v1379, 16
    %v1738 = vadd.s32 %v1386, 16
    %v1739 = vadd.s32 %v1393, 16
    %v1740 = vadd.s32 %v1400, 16
    %v1741 = vadd.s32 %v1407, 16
    %v1742 = vadd.s32 %v1414, 16
    %v1743 = vadd.s32 %v1421, 16
    %v1744 = vadd.s32 %v1428, 16
    %v1745 = vadd.s32 %v1435, 16
    %v1746 = vadd.s32 %v1442, 16
    %v1747 = vadd.s32 %v1449, 16
    %v1748 = vadd.s32 %v1456, 16
    %v1749 = vadd.s32 %v1463, 16
    %v1750 = vadd.s32 %v1470, 16
    %v1751 = vadd.s32 %v1477, 16
    %v1752 = vadd.s32 %v1484, 16
    %v1753 = vadd.s32 %v1491, 16
    %v1754 = vadd.s32 %v1498, 16
    %v1755 = vsel %vm1627, %v1691, %v1057
    %v1756 = vsel %vm1628, %v1692, %v1064
    %v1757 = vsel %vm1629, %v1693, %v1071
    %v1758 = vsel %vm1630, %v1694, %v1078
    %v1759 = vsel %vm1631, %v1695, %v1085
    %v1760 = vsel %vm1632, %v1696, %v1092
    %v1761 = vsel %vm1633, %v1697, %v1099
    %v1762 = vsel %vm1634, %v1698, %v1106
    %v1763 = vsel %vm1635, %v1699, %v1113
    %v1764 = vsel %vm1636, %v1700, %v1120
    %v1765 = vsel %vm1637, %v1701, %v1127
    %v1766 = vsel %vm1638, %v1702, %v1134
    %v1767 = vsel %vm1639, %v1703, %v1141
    %v1768 = vsel %vm1640, %v1704, %v1148
    %v1769 = vsel %vm1641, %v1705, %v1155
    %v1770 = vsel %vm1642, %v1706, %v1162
    %v1771 = vsel %vm1643, %v1707, %v1169
    %v1772 = vsel %vm1644, %v1708, %v1176
    %v1773 = vsel %vm1645, %v1709, %v1183
    %v1774 = vsel %vm1646, %v1710, %v1190
    %v1775 = vsel %vm1647, %v1711, %v1197
    %v1776 = vsel %vm1648, %v1712, %v1204
    %v1777 = vsel %vm1649, %v1713, %v1211
    %v1778 = vsel %vm1650, %v1714, %v1218
    %v1779 = vsel %vm1651, %v1715, %v1225
    %v1780 = vsel %vm1652, %v1716, %v1232
    %v1781 = vsel %vm1653, %v1717, %v1239
    %v1782 = vsel %vm1654, %v1718, %v1246
    %v1783 = vsel %vm1655, %v1719, %v1253
    %v1784 = vsel %vm1656, %v1720, %v1260
    %v1785 = vsel %vm1657, %v1721, %v1267
    %v1786 = vsel %vm1658, %v1722, %v1274
    %v1787 = vsel %vm1659, %v1723, %v1281
    %v1788 = vsel %vm1660, %v1724, %v1288
    %v1789 = vsel %vm1661, %v1725, %v1295
    %v1790 = vsel %vm1662, %v1726, %v1302
    %v1791 = vsel %vm1663, %v1727, %v1309
    %v1792 = vsel %vm1664, %v1728, %v1316
    %v1793 = vsel %vm1665, %v1729, %v1323
    %v1794 = vsel %vm1666, %v1730, %v1330
    %v1795 = vsel %vm1667, %v1731, %v1337
    %v1796 = vsel %vm1668, %v1732, %v1344
    %v1797 = vsel %vm1669, %v1733, %v1351
    %v1798 = vsel %vm1670, %v1734, %v1358
    %v1799 = vsel %vm1671, %v1735, %v1365
    %v1800 = vsel %vm1672, %v1736, %v1372
    %v1801 = vsel %vm1673, %v1737, %v1379
    %v1802 = vsel %vm1674, %v1738, %v1386
    %v1803 = vsel %vm1675, %v1739, %v1393
    %v1804 = vsel %vm1676, %v1740, %v1400
    %v1805 = vsel %vm1677, %v1741, %v1407
    %v1806 = vsel %vm1678, %v1742, %v1414
    %v1807 = vsel %vm1679, %v1743, %v1421
    %v1808 = vsel %vm1680, %v1744, %v1428
    %v1809 = vsel %vm1681, %v1745, %v1435
    %v1810 = vsel %vm1682, %v1746, %v1442
    %v1811 = vsel %vm1683, %v1747, %v1449
    %v1812 = vsel %vm1684, %v1748, %v1456
    %v1813 = vsel %vm1685, %v1749, %v1463
    %v1814 = vsel %vm1686, %v1750, %v1470
    %v1815 = vsel %vm1687, %v1751, %v1477
    %v1816 = vsel %vm1688, %v1752, %v1484
    %v1817 = vsel %vm1689, %v1753, %v1491
    %v1818 = vsel %vm1690, %v1754, %v1498
    %vm1819 = vcmp.ne.s32.totalorder %v1755, 0
    %vm1820 = vcmp.ne.s32.totalorder %v1756, 0
    %vm1821 = vcmp.ne.s32.totalorder %v1757, 0
    %vm1822 = vcmp.ne.s32.totalorder %v1758, 0
    %vm1823 = vcmp.ne.s32.totalorder %v1759, 0
    %vm1824 = vcmp.ne.s32.totalorder %v1760, 0
    %vm1825 = vcmp.ne.s32.totalorder %v1761, 0
    %vm1826 = vcmp.ne.s32.totalorder %v1762, 0
    %vm1827 = vcmp.ne.s32.totalorder %v1763, 0
    %vm1828 = vcmp.ne.s32.totalorder %v1764, 0
    %vm1829 = vcmp.ne.s32.totalorder %v1765, 0
    %vm1830 = vcmp.ne.s32.totalorder %v1766, 0
    %vm1831 = vcmp.ne.s32.totalorder %v1767, 0
    %vm1832 = vcmp.ne.s32.totalorder %v1768, 0
    %vm1833 = vcmp.ne.s32.totalorder %v1769, 0
    %vm1834 = vcmp.ne.s32.totalorder %v1770, 0
    %vm1835 = vcmp.ne.s32.totalorder %v1771, 0
    %vm1836 = vcmp.ne.s32.totalorder %v1772, 0
    %vm1837 = vcmp.ne.s32.totalorder %v1773, 0
    %vm1838 = vcmp.ne.s32.totalorder %v1774, 0
    %vm1839 = vcmp.ne.s32.totalorder %v1775, 0
    %vm1840 = vcmp.ne.s32.totalorder %v1776, 0
    %vm1841 = vcmp.ne.s32.totalorder %v1777, 0
    %vm1842 = vcmp.ne.s32.totalorder %v1778, 0
    %vm1843 = vcmp.ne.s32.totalorder %v1779, 0
    %vm1844 = vcmp.ne.s32.totalorder %v1780, 0
    %vm1845 = vcmp.ne.s32.totalorder %v1781, 0
    %vm1846 = vcmp.ne.s32.totalorder %v1782, 0
    %vm1847 = vcmp.ne.s32.totalorder %v1783, 0
    %vm1848 = vcmp.ne.s32.totalorder %v1784, 0
    %vm1849 = vcmp.ne.s32.totalorder %v1785, 0
    %vm1850 = vcmp.ne.s32.totalorder %v1786, 0
    %vm1851 = vcmp.ne.s32.totalorder %v1787, 0
    %vm1852 = vcmp.ne.s32.totalorder %v1788, 0
    %vm1853 = vcmp.ne.s32.totalorder %v1789, 0
    %vm1854 = vcmp.ne.s32.totalorder %v1790, 0
    %vm1855 = vcmp.ne.s32.totalorder %v1791, 0
    %vm1856 = vcmp.ne.s32.totalorder %v1792, 0
    %vm1857 = vcmp.ne.s32.totalorder %v1793, 0
    %vm1858 = vcmp.ne.s32.totalorder %v1794, 0
    %vm1859 = vcmp.ne.s32.totalorder %v1795, 0
    %vm1860 = vcmp.ne.s32.totalorder %v1796, 0
    %vm1861 = vcmp.ne.s32.totalorder %v1797, 0
    %vm1862 = vcmp.ne.s32.totalorder %v1798, 0
    %vm1863 = vcmp.ne.s32.totalorder %v1799, 0
    %vm1864 = vcmp.ne.s32.totalorder %v1800, 0
    %vm1865 = vcmp.ne.s32.totalorder %v1801, 0
    %vm1866 = vcmp.ne.s32.totalorder %v1802, 0
    %vm1867 = vcmp.ne.s32.totalorder %v1803, 0
    %vm1868 = vcmp.ne.s32.totalorder %v1804, 0
    %vm1869 = vcmp.ne.s32.totalorder %v1805, 0
    %vm1870 = vcmp.ne.s32.totalorder %v1806, 0
    %vm1871 = vcmp.ne.s32.totalorder %v1807, 0
    %vm1872 = vcmp.ne.s32.totalorder %v1808, 0
    %vm1873 = vcmp.ne.s32.totalorder %v1809, 0
    %vm1874 = vcmp.ne.s32.totalorder %v1810, 0
    %vm1875 = vcmp.ne.s32.totalorder %v1811, 0
    %vm1876 = vcmp.ne.s32.totalorder %v1812, 0
    %vm1877 = vcmp.ne.s32.totalorder %v1813, 0
    %vm1878 = vcmp.ne.s32.totalorder %v1814, 0
    %vm1879 = vcmp.ne.s32.totalorder %v1815, 0
    %vm1880 = vcmp.ne.s32.totalorder %v1816, 0
    %vm1881 = vcmp.ne.s32.totalorder %v1817, 0
    %vm1882 = vcmp.ne.s32.totalorder %v1818, 0
    %vm1883 = vmand %vm987, %vm1819
    %vm1884 = vmand %vm988, %vm1820
    %vm1885 = vmand %vm989, %vm1821
    %vm1886 = vmand %vm990, %vm1822
    %vm1887 = vmand %vm991, %vm1823
    %vm1888 = vmand %vm992, %vm1824
    %vm1889 = vmand %vm993, %vm1825
    %vm1890 = vmand %vm994, %vm1826
    %vm1891 = vmand %vm995, %vm1827
    %vm1892 = vmand %vm996, %vm1828
    %vm1893 = vmand %vm997, %vm1829
    %vm1894 = vmand %vm998, %vm1830
    %vm1895 = vmand %vm999, %vm1831
    %vm1896 = vmand %vm1000, %vm1832
    %vm1897 = vmand %vm1001, %vm1833
    %vm1898 = vmand %vm1002, %vm1834
    %vm1899 = vmand %vm1003, %vm1835
    %vm1900 = vmand %vm1004, %vm1836
    %vm1901 = vmand %vm1005, %vm1837
    %vm1902 = vmand %vm1006, %vm1838
    %vm1903 = vmand %vm1007, %vm1839
    %vm1904 = vmand %vm1008, %vm1840
    %vm1905 = vmand %vm1009, %vm1841
    %vm1906 = vmand %vm1010, %vm1842
    %vm1907 = vmand %vm1011, %vm1843
    %vm1908 = vmand %vm1012, %vm1844
    %vm1909 = vmand %vm1013, %vm1845
    %vm1910 = vmand %vm1014, %vm1846
    %vm1911 = vmand %vm1015, %vm1847
    %vm1912 = vmand %vm1016, %vm1848
    %vm1913 = vmand %vm1017, %vm1849
    %vm1914 = vmand %vm1018, %vm1850
    %vm1915 = vmand %vm1019, %vm1851
    %vm1916 = vmand %vm1020, %vm1852
    %vm1917 = vmand %vm1021, %vm1853
    %vm1918 = vmand %vm1022, %vm1854
    %vm1919 = vmand %vm1023, %vm1855
    %vm1920 = vmand %vm1024, %vm1856
    %vm1921 = vmand %vm1025, %vm1857
    %vm1922 = vmand %vm1026, %vm1858
    %vm1923 = vmand %vm1027, %vm1859
    %vm1924 = vmand %vm1028, %vm1860
    %vm1925 = vmand %vm1029, %vm1861
    %vm1926 = vmand %vm1030, %vm1862
    %vm1927 = vmand %vm1031, %vm1863
    %vm1928 = vmand %vm1032, %vm1864
    %vm1929 = vmand %vm1033, %vm1865
    %vm1930 = vmand %vm1034, %vm1866
    %vm1931 = vmand %vm1035, %vm1867
    %vm1932 = vmand %vm1036, %vm1868
    %vm1933 = vmand %vm1037, %vm1869
    %vm1934 = vmand %vm1038, %vm1870
    %vm1935 = vmand %vm1039, %vm1871
    %vm1936 = vmand %vm1040, %vm1872
    %vm1937 = vmand %vm1041, %vm1873
    %vm1938 = vmand %vm1042, %vm1874
    %vm1939 = vmand %vm1043, %vm1875
    %vm1940 = vmand %vm1044, %vm1876
    %vm1941 = vmand %vm1045, %vm1877
    %vm1942 = vmand %vm1046, %vm1878
    %vm1943 = vmand %vm1047, %vm1879
    %vm1944 = vmand %vm1048, %vm1880
    %vm1945 = vmand %vm1049, %vm1881
    %vm1946 = vmand %vm1050, %vm1882
    %vm1947 = vcmp.gt.f32.partialorder %v90, 0.0
    %vm1948 = vcmp.gt.f32.partialorder %v91, 0.0
    %vm1949 = vcmp.gt.f32.partialorder %v92, 0.0
    %vm1950 = vcmp.gt.f32.partialorder %v93, 0.0
    %vm1951 = vcmp.gt.f32.partialorder %v94, 0.0
    %vm1952 = vcmp.gt.f32.partialorder %v95, 0.0
    %vm1953 = vcmp.gt.f32.partialorder %v96, 0.0
    %vm1954 = vcmp.gt.f32.partialorder %v97, 0.0
    %vm1955 = vcmp.gt.f32.partialorder %v98, 0.0
    %vm1956 = vcmp.gt.f32.partialorder %v99, 0.0
    %vm1957 = vcmp.gt.f32.partialorder %v100, 0.0
    %vm1958 = vcmp.gt.f32.partialorder %v101, 0.0
    %vm1959 = vcmp.gt.f32.partialorder %v102, 0.0
    %vm1960 = vcmp.gt.f32.partialorder %v103, 0.0
    %vm1961 = vcmp.gt.f32.partialorder %v104, 0.0
    %vm1962 = vcmp.gt.f32.partialorder %v105, 0.0
    %vm1963 = vcmp.gt.f32.partialorder %v106, 0.0
    %vm1964 = vcmp.gt.f32.partialorder %v107, 0.0
    %vm1965 = vcmp.gt.f32.partialorder %v108, 0.0
    %vm1966 = vcmp.gt.f32.partialorder %v109, 0.0
    %vm1967 = vcmp.gt.f32.partialorder %v110, 0.0
    %vm1968 = vcmp.gt.f32.partialorder %v111, 0.0
    %vm1969 = vcmp.gt.f32.partialorder %v112, 0.0
    %vm1970 = vcmp.gt.f32.partialorder %v113, 0.0
    %vm1971 = vcmp.gt.f32.partialorder %v114, 0.0
    %vm1972 = vcmp.gt.f32.partialorder %v115, 0.0
    %vm1973 = vcmp.gt.f32.partialorder %v116, 0.0
    %vm1974 = vcmp.gt.f32.partialorder %v117, 0.0
    %vm1975 = vcmp.gt.f32.partialorder %v118, 0.0
    %vm1976 = vcmp.gt.f32.partialorder %v119, 0.0
    %vm1977 = vcmp.gt.f32.partialorder %v120, 0.0
    %vm1978 = vcmp.gt.f32.partialorder %v121, 0.0
    %vm1979 = vcmp.gt.f32.partialorder %v122, 0.0
    %vm1980 = vcmp.gt.f32.partialorder %v123, 0.0
    %vm1981 = vcmp.gt.f32.partialorder %v124, 0.0
    %vm1982 = vcmp.gt.f32.partialorder %v125, 0.0
    %vm1983 = vcmp.gt.f32.partialorder %v126, 0.0
    %vm1984 = vcmp.gt.f32.partialorder %v127, 0.0
    %vm1985 = vcmp.gt.f32.partialorder %v128, 0.0
    %vm1986 = vcmp.gt.f32.partialorder %v129, 0.0
    %vm1987 = vcmp.gt.f32.partialorder %v130, 0.0
    %vm1988 = vcmp.gt.f32.partialorder %v131, 0.0
    %vm1989 = vcmp.gt.f32.partialorder %v132, 0.0
    %vm1990 = vcmp.gt.f32.partialorder %v133, 0.0
    %vm1991 = vcmp.gt.f32.partialorder %v134, 0.0
    %vm1992 = vcmp.gt.f32.partialorder %v135, 0.0
    %vm1993 = vcmp.gt.f32.partialorder %v136, 0.0
    %vm1994 = vcmp.gt.f32.partialorder %v137, 0.0
    %vm1995 = vcmp.gt.f32.partialorder %v138, 0.0
    %vm1996 = vcmp.gt.f32.partialorder %v139, 0.0
    %vm1997 = vcmp.gt.f32.partialorder %v140, 0.0
    %vm1998 = vcmp.gt.f32.partialorder %v141, 0.0
    %vm1999 = vcmp.gt.f32.partialorder %v142, 0.0
    %vm2000 = vcmp.gt.f32.partialorder %v143, 0.0
    %vm2001 = vcmp.gt.f32.partialorder %v144, 0.0
    %vm2002 = vcmp.gt.f32.partialorder %v145, 0.0
    %vm2003 = vcmp.gt.f32.partialorder %v146, 0.0
    %vm2004 = vcmp.gt.f32.partialorder %v147, 0.0
    %vm2005 = vcmp.gt.f32.partialorder %v148, 0.0
    %vm2006 = vcmp.gt.f32.partialorder %v149, 0.0
    %vm2007 = vcmp.gt.f32.partialorder %v150, 0.0
    %vm2008 = vcmp.gt.f32.partialorder %v151, 0.0
    %vm2009 = vcmp.gt.f32.partialorder %v152, 0.0
    %vm2010 = vcmp.gt.f32.partialorder %v153, 0.0
    %v2011 = vmin.f32 %v90, 0.0
    %v2012 = vmin.f32 %v91, 0.0
    %v2013 = vmin.f32 %v92, 0.0
    %v2014 = vmin.f32 %v93, 0.0
    %v2015 = vmin.f32 %v94, 0.0
    %v2016 = vmin.f32 %v95, 0.0
    %v2017 = vmin.f32 %v96, 0.0
    %v2018 = vmin.f32 %v97, 0.0
    %v2019 = vmin.f32 %v98, 0.0
    %v2020 = vmin.f32 %v99, 0.0
    %v2021 = vmin.f32 %v100, 0.0
    %v2022 = vmin.f32 %v101, 0.0
    %v2023 = vmin.f32 %v102, 0.0
    %v2024 = vmin.f32 %v103, 0.0
    %v2025 = vmin.f32 %v104, 0.0
    %v2026 = vmin.f32 %v105, 0.0
    %v2027 = vmin.f32 %v106, 0.0
    %v2028 = vmin.f32 %v107, 0.0
    %v2029 = vmin.f32 %v108, 0.0
    %v2030 = vmin.f32 %v109, 0.0
    %v2031 = vmin.f32 %v110, 0.0
    %v2032 = vmin.f32 %v111, 0.0
    %v2033 = vmin.f32 %v112, 0.0
    %v2034 = vmin.f32 %v113, 0.0
    %v2035 = vmin.f32 %v114, 0.0
    %v2036 = vmin.f32 %v115, 0.0
    %v2037 = vmin.f32 %v116, 0.0
    %v2038 = vmin.f32 %v117, 0.0
    %v2039 = vmin.f32 %v118, 0.0
    %v2040 = vmin.f32 %v119, 0.0
    %v2041 = vmin.f32 %v120, 0.0
    %v2042 = vmin.f32 %v121, 0.0
    %v2043 = vmin.f32 %v122, 0.0
    %v2044 = vmin.f32 %v123, 0.0
    %v2045 = vmin.f32 %v124, 0.0
    %v2046 = vmin.f32 %v125, 0.0
    %v2047 = vmin.f32 %v126, 0.0
    %v2048 = vmin.f32 %v127, 0.0
    %v2049 = vmin.f32 %v128, 0.0
    %v2050 = vmin.f32 %v129, 0.0
    %v2051 = vmin.f32 %v130, 0.0
    %v2052 = vmin.f32 %v131, 0.0
    %v2053 = vmin.f32 %v132, 0.0
    %v2054 = vmin.f32 %v133, 0.0
    %v2055 = vmin.f32 %v134, 0.0
    %v2056 = vmin.f32 %v135, 0.0
    %v2057 = vmin.f32 %v136, 0.0
    %v2058 = vmin.f32 %v137, 0.0
    %v2059 = vmin.f32 %v138, 0.0
    %v2060 = vmin.f32 %v139, 0.0
    %v2061 = vmin.f32 %v140, 0.0
    %v2062 = vmin.f32 %v141, 0.0
    %v2063 = vmin.f32 %v142, 0.0
    %v2064 = vmin.f32 %v143, 0.0
    %v2065 = vmin.f32 %v144, 0.0
    %v2066 = vmin.f32 %v145, 0.0
    %v2067 = vmin.f32 %v146, 0.0
    %v2068 = vmin.f32 %v147, 0.0
    %v2069 = vmin.f32 %v148, 0.0
    %v2070 = vmin.f32 %v149, 0.0
    %v2071 = vmin.f32 %v150, 0.0
    %v2072 = vmin.f32 %v151, 0.0
    %v2073 = vmin.f32 %v152, 0.0
    %v2074 = vmin.f32 %v153, 0.0
    %v2075 = vmul.f32 %v2011, 1.442695
    %v2076 = vpow.pop %v2075
    %v2077 = vmul.f32 %v2012, 1.442695
    %v2078 = vpow.pop %v2077
    %v2079 = vmul.f32 %v2013, 1.442695
    %v2080 = vpow.pop %v2079
    %v2081 = vmul.f32 %v2014, 1.442695
    %v2082 = vpow.pop %v2081
    %v2083 = vmul.f32 %v2015, 1.442695
    %v2084 = vpow.pop %v2083
    %v2085 = vmul.f32 %v2016, 1.442695
    %v2086 = vpow.pop %v2085
    %v2087 = vmul.f32 %v2017, 1.442695
    %v2088 = vpow.pop %v2087
    %v2089 = vmul.f32 %v2018, 1.442695
    %v2090 = vpow.pop %v2089
    %v2091 = vmul.f32 %v2019, 1.442695
    %v2092 = vpow.pop %v2091
    %v2093 = vmul.f32 %v2020, 1.442695
    %v2094 = vpow.pop %v2093
    %v2095 = vmul.f32 %v2021, 1.442695
    %v2096 = vpow.pop %v2095
    %v2097 = vmul.f32 %v2022, 1.442695
    %v2098 = vpow.pop %v2097
    %v2099 = vmul.f32 %v2023, 1.442695
    %v2100 = vpow.pop %v2099
    %v2101 = vmul.f32 %v2024, 1.442695
    %v2102 = vpow.pop %v2101
    %v2103 = vmul.f32 %v2025, 1.442695
    %v2104 = vpow.pop %v2103
    %v2105 = vmul.f32 %v2026, 1.442695
    %v2106 = vpow.pop %v2105
    %v2107 = vmul.f32 %v2027, 1.442695
    %v2108 = vpow.pop %v2107
    %v2109 = vmul.f32 %v2028, 1.442695
    %v2110 = vpow.pop %v2109
    %v2111 = vmul.f32 %v2029, 1.442695
    %v2112 = vpow.pop %v2111
    %v2113 = vmul.f32 %v2030, 1.442695
    %v2114 = vpow.pop %v2113
    %v2115 = vmul.f32 %v2031, 1.442695
    %v2116 = vpow.pop %v2115
    %v2117 = vmul.f32 %v2032, 1.442695
    %v2118 = vpow.pop %v2117
    %v2119 = vmul.f32 %v2033, 1.442695
    %v2120 = vpow.pop %v2119
    %v2121 = vmul.f32 %v2034, 1.442695
    %v2122 = vpow.pop %v2121
    %v2123 = vmul.f32 %v2035, 1.442695
    %v2124 = vpow.pop %v2123
    %v2125 = vmul.f32 %v2036, 1.442695
    %v2126 = vpow.pop %v2125
    %v2127 = vmul.f32 %v2037, 1.442695
    %v2128 = vpow.pop %v2127
    %v2129 = vmul.f32 %v2038, 1.442695
    %v2130 = vpow.pop %v2129
    %v2131 = vmul.f32 %v2039, 1.442695
    %v2132 = vpow.pop %v2131
    %v2133 = vmul.f32 %v2040, 1.442695
    %v2134 = vpow.pop %v2133
    %v2135 = vmul.f32 %v2041, 1.442695
    %v2136 = vpow.pop %v2135
    %v2137 = vmul.f32 %v2042, 1.442695
    %v2138 = vpow.pop %v2137
    %v2139 = vmul.f32 %v2043, 1.442695
    %v2140 = vpow.pop %v2139
    %v2141 = vmul.f32 %v2044, 1.442695
    %v2142 = vpow.pop %v2141
    %v2143 = vmul.f32 %v2045, 1.442695
    %v2144 = vpow.pop %v2143
    %v2145 = vmul.f32 %v2046, 1.442695
    %v2146 = vpow.pop %v2145
    %v2147 = vmul.f32 %v2047, 1.442695
    %v2148 = vpow.pop %v2147
    %v2149 = vmul.f32 %v2048, 1.442695
    %v2150 = vpow.pop %v2149
    %v2151 = vmul.f32 %v2049, 1.442695
    %v2152 = vpow.pop %v2151
    %v2153 = vmul.f32 %v2050, 1.442695
    %v2154 = vpow.pop %v2153
    %v2155 = vmul.f32 %v2051, 1.442695
    %v2156 = vpow.pop %v2155
    %v2157 = vmul.f32 %v2052, 1.442695
    %v2158 = vpow.pop %v2157
    %v2159 = vmul.f32 %v2053, 1.442695
    %v2160 = vpow.pop %v2159
    %v2161 = vmul.f32 %v2054, 1.442695
    %v2162 = vpow.pop %v2161
    %v2163 = vmul.f32 %v2055, 1.442695
    %v2164 = vpow.pop %v2163
    %v2165 = vmul.f32 %v2056, 1.442695
    %v2166 = vpow.pop %v2165
    %v2167 = vmul.f32 %v2057, 1.442695
    %v2168 = vpow.pop %v2167
    %v2169 = vmul.f32 %v2058, 1.442695
    %v2170 = vpow.pop %v2169
    %v2171 = vmul.f32 %v2059, 1.442695
    %v2172 = vpow.pop %v2171
    %v2173 = vmul.f32 %v2060, 1.442695
    %v2174 = vpow.pop %v2173
    %v2175 = vmul.f32 %v2061, 1.442695
    %v2176 = vpow.pop %v2175
    %v2177 = vmul.f32 %v2062, 1.442695
    %v2178 = vpow.pop %v2177
    %v2179 = vmul.f32 %v2063, 1.442695
    %v2180 = vpow.pop %v2179
    %v2181 = vmul.f32 %v2064, 1.442695
    %v2182 = vpow.pop %v2181
    %v2183 = vmul.f32 %v2065, 1.442695
    %v2184 = vpow.pop %v2183
    %v2185 = vmul.f32 %v2066, 1.442695
    %v2186 = vpow.pop %v2185
    %v2187 = vmul.f32 %v2067, 1.442695
    %v2188 = vpow.pop %v2187
    %v2189 = vmul.f32 %v2068, 1.442695
    %v2190 = vpow.pop %v2189
    %v2191 = vmul.f32 %v2069, 1.442695
    %v2192 = vpow.pop %v2191
    %v2193 = vmul.f32 %v2070, 1.442695
    %v2194 = vpow.pop %v2193
    %v2195 = vmul.f32 %v2071, 1.442695
    %v2196 = vpow.pop %v2195
    %v2197 = vmul.f32 %v2072, 1.442695
    %v2198 = vpow.pop %v2197
    %v2199 = vmul.f32 %v2073, 1.442695
    %v2200 = vpow.pop %v2199
    %v2201 = vmul.f32 %v2074, 1.442695
    %v2202 = vpow.pop %v2201
    %v2203 = vsub.f32 %v2076, 1.0
    %v2204 = vsub.f32 %v2078, 1.0
    %v2205 = vsub.f32 %v2080, 1.0
    %v2206 = vsub.f32 %v2082, 1.0
    %v2207 = vsub.f32 %v2084, 1.0
    %v2208 = vsub.f32 %v2086, 1.0
    %v2209 = vsub.f32 %v2088, 1.0
    %v2210 = vsub.f32 %v2090, 1.0
    %v2211 = vsub.f32 %v2092, 1.0
    %v2212 = vsub.f32 %v2094, 1.0
    %v2213 = vsub.f32 %v2096, 1.0
    %v2214 = vsub.f32 %v2098, 1.0
    %v2215 = vsub.f32 %v2100, 1.0
    %v2216 = vsub.f32 %v2102, 1.0
    %v2217 = vsub.f32 %v2104, 1.0
    %v2218 = vsub.f32 %v2106, 1.0
    %v2219 = vsub.f32 %v2108, 1.0
    %v2220 = vsub.f32 %v2110, 1.0
    %v2221 = vsub.f32 %v2112, 1.0
    %v2222 = vsub.f32 %v2114, 1.0
    %v2223 = vsub.f32 %v2116, 1.0
    %v2224 = vsub.f32 %v2118, 1.0
    %v2225 = vsub.f32 %v2120, 1.0
    %v2226 = vsub.f32 %v2122, 1.0
    %v2227 = vsub.f32 %v2124, 1.0
    %v2228 = vsub.f32 %v2126, 1.0
    %v2229 = vsub.f32 %v2128, 1.0
    %v2230 = vsub.f32 %v2130, 1.0
    %v2231 = vsub.f32 %v2132, 1.0
    %v2232 = vsub.f32 %v2134, 1.0
    %v2233 = vsub.f32 %v2136, 1.0
    %v2234 = vsub.f32 %v2138, 1.0
    %v2235 = vsub.f32 %v2140, 1.0
    %v2236 = vsub.f32 %v2142, 1.0
    %v2237 = vsub.f32 %v2144, 1.0
    %v2238 = vsub.f32 %v2146, 1.0
    %v2239 = vsub.f32 %v2148, 1.0
    %v2240 = vsub.f32 %v2150, 1.0
    %v2241 = vsub.f32 %v2152, 1.0
    %v2242 = vsub.f32 %v2154, 1.0
    %v2243 = vsub.f32 %v2156, 1.0
    %v2244 = vsub.f32 %v2158, 1.0
    %v2245 = vsub.f32 %v2160, 1.0
    %v2246 = vsub.f32 %v2162, 1.0
    %v2247 = vsub.f32 %v2164, 1.0
    %v2248 = vsub.f32 %v2166, 1.0
    %v2249 = vsub.f32 %v2168, 1.0
    %v2250 = vsub.f32 %v2170, 1.0
    %v2251 = vsub.f32 %v2172, 1.0
    %v2252 = vsub.f32 %v2174, 1.0
    %v2253 = vsub.f32 %v2176, 1.0
    %v2254 = vsub.f32 %v2178, 1.0
    %v2255 = vsub.f32 %v2180, 1.0
    %v2256 = vsub.f32 %v2182, 1.0
    %v2257 = vsub.f32 %v2184, 1.0
    %v2258 = vsub.f32 %v2186, 1.0
    %v2259 = vsub.f32 %v2188, 1.0
    %v2260 = vsub.f32 %v2190, 1.0
    %v2261 = vsub.f32 %v2192, 1.0
    %v2262 = vsub.f32 %v2194, 1.0
    %v2263 = vsub.f32 %v2196, 1.0
    %v2264 = vsub.f32 %v2198, 1.0
    %v2265 = vsub.f32 %v2200, 1.0
    %v2266 = vsub.f32 %v2202, 1.0
    %v2267 = vsel %vm1947, %v90, %v2203
    %v2268 = vsel %vm1948, %v91, %v2204
    %v2269 = vsel %vm1949, %v92, %v2205
    %v2270 = vsel %vm1950, %v93, %v2206
    %v2271 = vsel %vm1951, %v94, %v2207
    %v2272 = vsel %vm1952, %v95, %v2208
    %v2273 = vsel %vm1953, %v96, %v2209
    %v2274 = vsel %vm1954, %v97, %v2210
    %v2275 = vsel %vm1955, %v98, %v2211
    %v2276 = vsel %vm1956, %v99, %v2212
    %v2277 = vsel %vm1957, %v100, %v2213
    %v2278 = vsel %vm1958, %v101, %v2214
    %v2279 = vsel %vm1959, %v102, %v2215
    %v2280 = vsel %vm1960, %v103, %v2216
    %v2281 = vsel %vm1961, %v104, %v2217
    %v2282 = vsel %vm1962, %v105, %v2218
    %v2283 = vsel %vm1963, %v106, %v2219
    %v2284 = vsel %vm1964, %v107, %v2220
    %v2285 = vsel %vm1965, %v108, %v2221
    %v2286 = vsel %vm1966, %v109, %v2222
    %v2287 = vsel %vm1967, %v110, %v2223
    %v2288 = vsel %vm1968, %v111, %v2224
    %v2289 = vsel %vm1969, %v112, %v2225
    %v2290 = vsel %vm1970, %v113, %v2226
    %v2291 = vsel %vm1971, %v114, %v2227
    %v2292 = vsel %vm1972, %v115, %v2228
    %v2293 = vsel %vm1973, %v116, %v2229
    %v2294 = vsel %vm1974, %v117, %v2230
    %v2295 = vsel %vm1975, %v118, %v2231
    %v2296 = vsel %vm1976, %v119, %v2232
    %v2297 = vsel %vm1977, %v120, %v2233
    %v2298 = vsel %vm1978, %v121, %v2234
    %v2299 = vsel %vm1979, %v122, %v2235
    %v2300 = vsel %vm1980, %v123, %v2236
    %v2301 = vsel %vm1981, %v124, %v2237
    %v2302 = vsel %vm1982, %v125, %v2238
    %v2303 = vsel %vm1983, %v126, %v2239
    %v2304 = vsel %vm1984, %v127, %v2240
    %v2305 = vsel %vm1985, %v128, %v2241
    %v2306 = vsel %vm1986, %v129, %v2242
    %v2307 = vsel %vm1987, %v130, %v2243
    %v2308 = vsel %vm1988, %v131, %v2244
    %v2309 = vsel %vm1989, %v132, %v2245
    %v2310 = vsel %vm1990, %v133, %v2246
    %v2311 = vsel %vm1991, %v134, %v2247
    %v2312 = vsel %vm1992, %v135, %v2248
    %v2313 = vsel %vm1993, %v136, %v2249
    %v2314 = vsel %vm1994, %v137, %v2250
    %v2315 = vsel %vm1995, %v138, %v2251
    %v2316 = vsel %vm1996, %v139, %v2252
    %v2317 = vsel %vm1997, %v140, %v2253
    %v2318 = vsel %vm1998, %v141, %v2254
    %v2319 = vsel %vm1999, %v142, %v2255
    %v2320 = vsel %vm2000, %v143, %v2256
    %v2321 = vsel %vm2001, %v144, %v2257
    %v2322 = vsel %vm2002, %v145, %v2258
    %v2323 = vsel %vm2003, %v146, %v2259
    %v2324 = vsel %vm2004, %v147, %v2260
    %v2325 = vsel %vm2005, %v148, %v2261
    %v2326 = vsel %vm2006, %v149, %v2262
    %v2327 = vsel %vm2007, %v150, %v2263
    %v2328 = vsel %vm2008, %v151, %v2264
    %v2329 = vsel %vm2009, %v152, %v2265
    %v2330 = vsel %vm2010, %v153, %v2266
    %v2331 = vsel %vm987, 1, 0
    %v2332 = vsel %vm988, 1, 0
    %v2333 = vsel %vm989, 1, 0
    %v2334 = vsel %vm990, 1, 0
    %v2335 = vsel %vm991, 1, 0
    %v2336 = vsel %vm992, 1, 0
    %v2337 = vsel %vm993, 1, 0
    %v2338 = vsel %vm994, 1, 0
    %v2339 = vsel %vm995, 1, 0
    %v2340 = vsel %vm996, 1, 0
    %v2341 = vsel %vm997, 1, 0
    %v2342 = vsel %vm998, 1, 0
    %v2343 = vsel %vm999, 1, 0
    %v2344 = vsel %vm1000, 1, 0
    %v2345 = vsel %vm1001, 1, 0
    %v2346 = vsel %vm1002, 1, 0
    %v2347 = vsel %vm1003, 1, 0
    %v2348 = vsel %vm1004, 1, 0
    %v2349 = vsel %vm1005, 1, 0
    %v2350 = vsel %vm1006, 1, 0
    %v2351 = vsel %vm1007, 1, 0
    %v2352 = vsel %vm1008, 1, 0
    %v2353 = vsel %vm1009, 1, 0
    %v2354 = vsel %vm1010, 1, 0
    %v2355 = vsel %vm1011, 1, 0
    %v2356 = vsel %vm1012, 1, 0
    %v2357 = vsel %vm1013, 1, 0
    %v2358 = vsel %vm1014, 1, 0
    %v2359 = vsel %vm1015, 1, 0
    %v2360 = vsel %vm1016, 1, 0
    %v2361 = vsel %vm1017, 1, 0
    %v2362 = vsel %vm1018, 1, 0
    %v2363 = vsel %vm1019, 1, 0
    %v2364 = vsel %vm1020, 1, 0
    %v2365 = vsel %vm1021, 1, 0
    %v2366 = vsel %vm1022, 1, 0
    %v2367 = vsel %vm1023, 1, 0
    %v2368 = vsel %vm1024, 1, 0
    %v2369 = vsel %vm1025, 1, 0
    %v2370 = vsel %vm1026, 1, 0
    %v2371 = vsel %vm1027, 1, 0
    %v2372 = vsel %vm1028, 1, 0
    %v2373 = vsel %vm1029, 1, 0
    %v2374 = vsel %vm1030, 1, 0
    %v2375 = vsel %vm1031, 1, 0
    %v2376 = vsel %vm1032, 1, 0
    %v2377 = vsel %vm1033, 1, 0
    %v2378 = vsel %vm1034, 1, 0
    %v2379 = vsel %vm1035, 1, 0
    %v2380 = vsel %vm1036, 1, 0
    %v2381 = vsel %vm1037, 1, 0
    %v2382 = vsel %vm1038, 1, 0
    %v2383 = vsel %vm1039, 1, 0
    %v2384 = vsel %vm1040, 1, 0
    %v2385 = vsel %vm1041, 1, 0
    %v2386 = vsel %vm1042, 1, 0
    %v2387 = vsel %vm1043, 1, 0
    %v2388 = vsel %vm1044, 1, 0
    %v2389 = vsel %vm1045, 1, 0
    %v2390 = vsel %vm1046, 1, 0
    %v2391 = vsel %vm1047, 1, 0
    %v2392 = vsel %vm1048, 1, 0
    %v2393 = vsel %vm1049, 1, 0
    %v2394 = vsel %vm1050, 1, 0
    %vm2395 = vcmp.eq.s32.totalorder %v2331, 1
    %vm2396 = vcmp.eq.s32.totalorder %v2332, 1
    %vm2397 = vcmp.eq.s32.totalorder %v2333, 1
    %vm2398 = vcmp.eq.s32.totalorder %v2334, 1
    %vm2399 = vcmp.eq.s32.totalorder %v2335, 1
    %vm2400 = vcmp.eq.s32.totalorder %v2336, 1
    %vm2401 = vcmp.eq.s32.totalorder %v2337, 1
    %vm2402 = vcmp.eq.s32.totalorder %v2338, 1
    %vm2403 = vcmp.eq.s32.totalorder %v2339, 1
    %vm2404 = vcmp.eq.s32.totalorder %v2340, 1
    %vm2405 = vcmp.eq.s32.totalorder %v2341, 1
    %vm2406 = vcmp.eq.s32.totalorder %v2342, 1
    %vm2407 = vcmp.eq.s32.totalorder %v2343, 1
    %vm2408 = vcmp.eq.s32.totalorder %v2344, 1
    %vm2409 = vcmp.eq.s32.totalorder %v2345, 1
    %vm2410 = vcmp.eq.s32.totalorder %v2346, 1
    %vm2411 = vcmp.eq.s32.totalorder %v2347, 1
    %vm2412 = vcmp.eq.s32.totalorder %v2348, 1
    %vm2413 = vcmp.eq.s32.totalorder %v2349, 1
    %vm2414 = vcmp.eq.s32.totalorder %v2350, 1
    %vm2415 = vcmp.eq.s32.totalorder %v2351, 1
    %vm2416 = vcmp.eq.s32.totalorder %v2352, 1
    %vm2417 = vcmp.eq.s32.totalorder %v2353, 1
    %vm2418 = vcmp.eq.s32.totalorder %v2354, 1
    %vm2419 = vcmp.eq.s32.totalorder %v2355, 1
    %vm2420 = vcmp.eq.s32.totalorder %v2356, 1
    %vm2421 = vcmp.eq.s32.totalorder %v2357, 1
    %vm2422 = vcmp.eq.s32.totalorder %v2358, 1
    %vm2423 = vcmp.eq.s32.totalorder %v2359, 1
    %vm2424 = vcmp.eq.s32.totalorder %v2360, 1
    %vm2425 = vcmp.eq.s32.totalorder %v2361, 1
    %vm2426 = vcmp.eq.s32.totalorder %v2362, 1
    %vm2427 = vcmp.eq.s32.totalorder %v2363, 1
    %vm2428 = vcmp.eq.s32.totalorder %v2364, 1
    %vm2429 = vcmp.eq.s32.totalorder %v2365, 1
    %vm2430 = vcmp.eq.s32.totalorder %v2366, 1
    %vm2431 = vcmp.eq.s32.totalorder %v2367, 1
    %vm2432 = vcmp.eq.s32.totalorder %v2368, 1
    %vm2433 = vcmp.eq.s32.totalorder %v2369, 1
    %vm2434 = vcmp.eq.s32.totalorder %v2370, 1
    %vm2435 = vcmp.eq.s32.totalorder %v2371, 1
    %vm2436 = vcmp.eq.s32.totalorder %v2372, 1
    %vm2437 = vcmp.eq.s32.totalorder %v2373, 1
    %vm2438 = vcmp.eq.s32.totalorder %v2374, 1
    %vm2439 = vcmp.eq.s32.totalorder %v2375, 1
    %vm2440 = vcmp.eq.s32.totalorder %v2376, 1
    %vm2441 = vcmp.eq.s32.totalorder %v2377, 1
    %vm2442 = vcmp.eq.s32.totalorder %v2378, 1
    %vm2443 = vcmp.eq.s32.totalorder %v2379, 1
    %vm2444 = vcmp.eq.s32.totalorder %v2380, 1
    %vm2445 = vcmp.eq.s32.totalorder %v2381, 1
    %vm2446 = vcmp.eq.s32.totalorder %v2382, 1
    %vm2447 = vcmp.eq.s32.totalorder %v2383, 1
    %vm2448 = vcmp.eq.s32.totalorder %v2384, 1
    %vm2449 = vcmp.eq.s32.totalorder %v2385, 1
    %vm2450 = vcmp.eq.s32.totalorder %v2386, 1
    %vm2451 = vcmp.eq.s32.totalorder %v2387, 1
    %vm2452 = vcmp.eq.s32.totalorder %v2388, 1
    %vm2453 = vcmp.eq.s32.totalorder %v2389, 1
    %vm2454 = vcmp.eq.s32.totalorder %v2390, 1
    %vm2455 = vcmp.eq.s32.totalorder %v2391, 1
    %vm2456 = vcmp.eq.s32.totalorder %v2392, 1
    %vm2457 = vcmp.eq.s32.totalorder %v2393, 1
    %vm2458 = vcmp.eq.s32.totalorder %v2394, 1
    %v2459 = vsel %vm2395, %v2329, 0.0
    %v2460 = vsel %vm2396, %v2330, 0.0
    %v2461 = vsel %vm2397, %v2267, 0.0
    %v2462 = vsel %vm2398, %v2268, 0.0
    %v2463 = vsel %vm2399, %v2269, 0.0
    %v2464 = vsel %vm2400, %v2270, 0.0
    %v2465 = vsel %vm2401, %v2271, 0.0
    %v2466 = vsel %vm2402, %v2272, 0.0
    %v2467 = vsel %vm2403, %v2273, 0.0
    %v2468 = vsel %vm2404, %v2274, 0.0
    %v2469 = vsel %vm2405, %v2275, 0.0
    %v2470 = vsel %vm2406, %v2276, 0.0
    %v2471 = vsel %vm2407, %v2277, 0.0
    %v2472 = vsel %vm2408, %v2278, 0.0
    %v2473 = vsel %vm2409, %v2279, 0.0
    %v2474 = vsel %vm2410, %v2280, 0.0
    %v2475 = vsel %vm2411, %v2281, 0.0
    %v2476 = vsel %vm2412, %v2282, 0.0
    %v2477 = vsel %vm2413, %v2283, 0.0
    %v2478 = vsel %vm2414, %v2284, 0.0
    %v2479 = vsel %vm2415, %v2285, 0.0
    %v2480 = vsel %vm2416, %v2286, 0.0
    %v2481 = vsel %vm2417, %v2287, 0.0
    %v2482 = vsel %vm2418, %v2288, 0.0
    %v2483 = vsel %vm2419, %v2289, 0.0
    %v2484 = vsel %vm2420, %v2290, 0.0
    %v2485 = vsel %vm2421, %v2291, 0.0
    %v2486 = vsel %vm2422, %v2292, 0.0
    %v2487 = vsel %vm2423, %v2293, 0.0
    %v2488 = vsel %vm2424, %v2294, 0.0
    %v2489 = vsel %vm2425, %v2295, 0.0
    %v2490 = vsel %vm2426, %v2296, 0.0
    %v2491 = vsel %vm2427, %v2297, 0.0
    %v2492 = vsel %vm2428, %v2298, 0.0
    %v2493 = vsel %vm2429, %v2299, 0.0
    %v2494 = vsel %vm2430, %v2300, 0.0
    %v2495 = vsel %vm2431, %v2301, 0.0
    %v2496 = vsel %vm2432, %v2302, 0.0
    %v2497 = vsel %vm2433, %v2303, 0.0
    %v2498 = vsel %vm2434, %v2304, 0.0
    %v2499 = vsel %vm2435, %v2305, 0.0
    %v2500 = vsel %vm2436, %v2306, 0.0
    %v2501 = vsel %vm2437, %v2307, 0.0
    %v2502 = vsel %vm2438, %v2308, 0.0
    %v2503 = vsel %vm2439, %v2309, 0.0
    %v2504 = vsel %vm2440, %v2310, 0.0
    %v2505 = vsel %vm2441, %v2311, 0.0
    %v2506 = vsel %vm2442, %v2312, 0.0
    %v2507 = vsel %vm2443, %v2313, 0.0
    %v2508 = vsel %vm2444, %v2314, 0.0
    %v2509 = vsel %vm2445, %v2315, 0.0
    %v2510 = vsel %vm2446, %v2316, 0.0
    %v2511 = vsel %vm2447, %v2317, 0.0
    %v2512 = vsel %vm2448, %v2318, 0.0
    %v2513 = vsel %vm2449, %v2319, 0.0
    %v2514 = vsel %vm2450, %v2320, 0.0
    %v2515 = vsel %vm2451, %v2321, 0.0
    %v2516 = vsel %vm2452, %v2322, 0.0
    %v2517 = vsel %vm2453, %v2323, 0.0
    %v2518 = vsel %vm2454, %v2324, 0.0
    %v2519 = vsel %vm2455, %v2325, 0.0
    %v2520 = vsel %vm2456, %v2326, 0.0
    %v2521 = vsel %vm2457, %v2327, 0.0
    %v2522 = vsel %vm2458, %v2328, 0.0
    %v2523 = vrot.slane %v2267, 7
    %v2524 = vrot.slane %v2268, 7
    %v2525 = vrot.slane %v2269, 7
    %v2526 = vrot.slane %v2270, 7
    %v2527 = vrot.slane %v2271, 7
    %v2528 = vrot.slane %v2272, 7
    %v2529 = vrot.slane %v2273, 7
    %v2530 = vrot.slane %v2274, 7
    %v2531 = vrot.slane %v2275, 7
    %v2532 = vrot.slane %v2276, 7
    %v2533 = vrot.slane %v2277, 7
    %v2534 = vrot.slane %v2278, 7
    %v2535 = vrot.slane %v2279, 7
    %v2536 = vrot.slane %v2280, 7
    %v2537 = vrot.slane %v2281, 7
    %v2538 = vrot.slane %v2282, 7
    %v2539 = vrot.slane %v2283, 7
    %v2540 = vrot.slane %v2284, 7
    %v2541 = vrot.slane %v2285, 7
    %v2542 = vrot.slane %v2286, 7
    %v2543 = vrot.slane %v2287, 7
    %v2544 = vrot.slane %v2288, 7
    %v2545 = vrot.slane %v2289, 7
    %v2546 = vrot.slane %v2290, 7
    %v2547 = vrot.slane %v2291, 7
    %v2548 = vrot.slane %v2292, 7
    %v2549 = vrot.slane %v2293, 7
    %v2550 = vrot.slane %v2294, 7
    %v2551 = vrot.slane %v2295, 7
    %v2552 = vrot.slane %v2296, 7
    %v2553 = vrot.slane %v2297, 7
    %v2554 = vrot.slane %v2298, 7
    %v2555 = vrot.slane %v2299, 7
    %v2556 = vrot.slane %v2300, 7
    %v2557 = vrot.slane %v2301, 7
    %v2558 = vrot.slane %v2302, 7
    %v2559 = vrot.slane %v2303, 7
    %v2560 = vrot.slane %v2304, 7
    %v2561 = vrot.slane %v2305, 7
    %v2562 = vrot.slane %v2306, 7
    %v2563 = vrot.slane %v2307, 7
    %v2564 = vrot.slane %v2308, 7
    %v2565 = vrot.slane %v2309, 7
    %v2566 = vrot.slane %v2310, 7
    %v2567 = vrot.slane %v2311, 7
    %v2568 = vrot.slane %v2312, 7
    %v2569 = vrot.slane %v2313, 7
    %v2570 = vrot.slane %v2314, 7
    %v2571 = vrot.slane %v2315, 7
    %v2572 = vrot.slane %v2316, 7
    %v2573 = vrot.slane %v2317, 7
    %v2574 = vrot.slane %v2318, 7
    %v2575 = vrot.slane %v2319, 7
    %v2576 = vrot.slane %v2320, 7
    %v2577 = vrot.slane %v2321, 7
    %v2578 = vrot.slane %v2322, 7
    %v2579 = vrot.slane %v2323, 7
    %v2580 = vrot.slane %v2324, 7
    %v2581 = vrot.slane %v2325, 7
    %v2582 = vrot.slane %v2326, 7
    %v2583 = vrot.slane %v2327, 7
    %v2584 = vrot.slane %v2328, 7
    %v2585 = vrot.slane %v2329, 7
    %v2586 = vrot.slane %v2330, 7
    %vm2587 = vcmp.lt.s32.totalorder %v155, 1
    %v2588 = vsel %vm2587, %v2585, %v2586
    %v2589 = vsel %vm2587, %v2584, %v2585
    %v2590 = vsel %vm2587, %v2583, %v2584
    %v2591 = vsel %vm2587, %v2582, %v2583
    %v2592 = vsel %vm2587, %v2581, %v2582
    %v2593 = vsel %vm2587, %v2580, %v2581
    %v2594 = vsel %vm2587, %v2579, %v2580
    %v2595 = vsel %vm2587, %v2578, %v2579
    %v2596 = vsel %vm2587, %v2577, %v2578
    %v2597 = vsel %vm2587, %v2576, %v2577
    %v2598 = vsel %vm2587, %v2575, %v2576
    %v2599 = vsel %vm2587, %v2574, %v2575
    %v2600 = vsel %vm2587, %v2573, %v2574
    %v2601 = vsel %vm2587, %v2572, %v2573
    %v2602 = vsel %vm2587, %v2571, %v2572
    %v2603 = vsel %vm2587, %v2570, %v2571
    %v2604 = vsel %vm2587, %v2569, %v2570
    %v2605 = vsel %vm2587, %v2568, %v2569
    %v2606 = vsel %vm2587, %v2567, %v2568
    %v2607 = vsel %vm2587, %v2566, %v2567
    %v2608 = vsel %vm2587, %v2565, %v2566
    %v2609 = vsel %vm2587, %v2564, %v2565
    %v2610 = vsel %vm2587, %v2563, %v2564
    %v2611 = vsel %vm2587, %v2562, %v2563
    %v2612 = vsel %vm2587, %v2561, %v2562
    %v2613 = vsel %vm2587, %v2560, %v2561
    %v2614 = vsel %vm2587, %v2559, %v2560
    %v2615 = vsel %vm2587, %v2558, %v2559
    %v2616 = vsel %vm2587, %v2557, %v2558
    %v2617 = vsel %vm2587, %v2556, %v2557
    %v2618 = vsel %vm2587, %v2555, %v2556
    %v2619 = vsel %vm2587, %v2554, %v2555
    %v2620 = vsel %vm2587, %v2553, %v2554
    %v2621 = vsel %vm2587, %v2552, %v2553
    %v2622 = vsel %vm2587, %v2551, %v2552
    %v2623 = vsel %vm2587, %v2550, %v2551
    %v2624 = vsel %vm2587, %v2549, %v2550
    %v2625 = vsel %vm2587, %v2548, %v2549
    %v2626 = vsel %vm2587, %v2547, %v2548
    %v2627 = vsel %vm2587, %v2546, %v2547
    %v2628 = vsel %vm2587, %v2545, %v2546
    %v2629 = vsel %vm2587, %v2544, %v2545
    %v2630 = vsel %vm2587, %v2543, %v2544
    %v2631 = vsel %vm2587, %v2542, %v2543
    %v2632 = vsel %vm2587, %v2541, %v2542
    %v2633 = vsel %vm2587, %v2540, %v2541
    %v2634 = vsel %vm2587, %v2539, %v2540
    %v2635 = vsel %vm2587, %v2538, %v2539
    %v2636 = vsel %vm2587, %v2537, %v2538
    %v2637 = vsel %vm2587, %v2536, %v2537
    %v2638 = vsel %vm2587, %v2535, %v2536
    %v2639 = vsel %vm2587, %v2534, %v2535
    %v2640 = vsel %vm2587, %v2533, %v2534
    %v2641 = vsel %vm2587, %v2532, %v2533
    %v2642 = vsel %vm2587, %v2531, %v2532
    %v2643 = vsel %vm2587, %v2530, %v2531
    %v2644 = vsel %vm2587, %v2529, %v2530
    %v2645 = vsel %vm2587, %v2528, %v2529
    %v2646 = vsel %vm2587, %v2527, %v2528
    %v2647 = vsel %vm2587, %v2526, %v2527
    %v2648 = vsel %vm2587, %v2525, %v2526
    %v2649 = vsel %vm2587, %v2524, %v2525
    %v2650 = vsel %vm2587, %v2523, %v2524
    %v2651 = vsel %vm2587, %v2586, %v2523
    %v2652 = vsel %vm1819, 1, 0
    %v2653 = vsel %vm1820, 1, 0
    %v2654 = vsel %vm1821, 1, 0
    %v2655 = vsel %vm1822, 1, 0
    %v2656 = vsel %vm1823, 1, 0
    %v2657 = vsel %vm1824, 1, 0
    %v2658 = vsel %vm1825, 1, 0
    %v2659 = vsel %vm1826, 1, 0
    %v2660 = vsel %vm1827, 1, 0
    %v2661 = vsel %vm1828, 1, 0
    %v2662 = vsel %vm1829, 1, 0
    %v2663 = vsel %vm1830, 1, 0
    %v2664 = vsel %vm1831, 1, 0
    %v2665 = vsel %vm1832, 1, 0
    %v2666 = vsel %vm1833, 1, 0
    %v2667 = vsel %vm1834, 1, 0
    %v2668 = vsel %vm1835, 1, 0
    %v2669 = vsel %vm1836, 1, 0
    %v2670 = vsel %vm1837, 1, 0
    %v2671 = vsel %vm1838, 1, 0
    %v2672 = vsel %vm1839, 1, 0
    %v2673 = vsel %vm1840, 1, 0
    %v2674 = vsel %vm1841, 1, 0
    %v2675 = vsel %vm1842, 1, 0
    %v2676 = vsel %vm1843, 1, 0
    %v2677 = vsel %vm1844, 1, 0
    %v2678 = vsel %vm1845, 1, 0
    %v2679 = vsel %vm1846, 1, 0
    %v2680 = vsel %vm1847, 1, 0
    %v2681 = vsel %vm1848, 1, 0
    %v2682 = vsel %vm1849, 1, 0
    %v2683 = vsel %vm1850, 1, 0
    %v2684 = vsel %vm1851, 1, 0
    %v2685 = vsel %vm1852, 1, 0
    %v2686 = vsel %vm1853, 1, 0
    %v2687 = vsel %vm1854, 1, 0
    %v2688 = vsel %vm1855, 1, 0
    %v2689 = vsel %vm1856, 1, 0
    %v2690 = vsel %vm1857, 1, 0
    %v2691 = vsel %vm1858, 1, 0
    %v2692 = vsel %vm1859, 1, 0
    %v2693 = vsel %vm1860, 1, 0
    %v2694 = vsel %vm1861, 1, 0
    %v2695 = vsel %vm1862, 1, 0
    %v2696 = vsel %vm1863, 1, 0
    %v2697 = vsel %vm1864, 1, 0
    %v2698 = vsel %vm1865, 1, 0
    %v2699 = vsel %vm1866, 1, 0
    %v2700 = vsel %vm1867, 1, 0
    %v2701 = vsel %vm1868, 1, 0
    %v2702 = vsel %vm1869, 1, 0
    %v2703 = vsel %vm1870, 1, 0
    %v2704 = vsel %vm1871, 1, 0
    %v2705 = vsel %vm1872, 1, 0
    %v2706 = vsel %vm1873, 1, 0
    %v2707 = vsel %vm1874, 1, 0
    %v2708 = vsel %vm1875, 1, 0
    %v2709 = vsel %vm1876, 1, 0
    %v2710 = vsel %vm1877, 1, 0
    %v2711 = vsel %vm1878, 1, 0
    %v2712 = vsel %vm1879, 1, 0
    %v2713 = vsel %vm1880, 1, 0
    %v2714 = vsel %vm1881, 1, 0
    %v2715 = vsel %vm1882, 1, 0
    %vm2716 = vcmp.eq.s32.totalorder %v2652, 1
    %vm2717 = vcmp.eq.s32.totalorder %v2653, 1
    %vm2718 = vcmp.eq.s32.totalorder %v2654, 1
    %vm2719 = vcmp.eq.s32.totalorder %v2655, 1
    %vm2720 = vcmp.eq.s32.totalorder %v2656, 1
    %vm2721 = vcmp.eq.s32.totalorder %v2657, 1
    %vm2722 = vcmp.eq.s32.totalorder %v2658, 1
    %vm2723 = vcmp.eq.s32.totalorder %v2659, 1
    %vm2724 = vcmp.eq.s32.totalorder %v2660, 1
    %vm2725 = vcmp.eq.s32.totalorder %v2661, 1
    %vm2726 = vcmp.eq.s32.totalorder %v2662, 1
    %vm2727 = vcmp.eq.s32.totalorder %v2663, 1
    %vm2728 = vcmp.eq.s32.totalorder %v2664, 1
    %vm2729 = vcmp.eq.s32.totalorder %v2665, 1
    %vm2730 = vcmp.eq.s32.totalorder %v2666, 1
    %vm2731 = vcmp.eq.s32.totalorder %v2667, 1
    %vm2732 = vcmp.eq.s32.totalorder %v2668, 1
    %vm2733 = vcmp.eq.s32.totalorder %v2669, 1
    %vm2734 = vcmp.eq.s32.totalorder %v2670, 1
    %vm2735 = vcmp.eq.s32.totalorder %v2671, 1
    %vm2736 = vcmp.eq.s32.totalorder %v2672, 1
    %vm2737 = vcmp.eq.s32.totalorder %v2673, 1
    %vm2738 = vcmp.eq.s32.totalorder %v2674, 1
    %vm2739 = vcmp.eq.s32.totalorder %v2675, 1
    %vm2740 = vcmp.eq.s32.totalorder %v2676, 1
    %vm2741 = vcmp.eq.s32.totalorder %v2677, 1
    %vm2742 = vcmp.eq.s32.totalorder %v2678, 1
    %vm2743 = vcmp.eq.s32.totalorder %v2679, 1
    %vm2744 = vcmp.eq.s32.totalorder %v2680, 1
    %vm2745 = vcmp.eq.s32.totalorder %v2681, 1
    %vm2746 = vcmp.eq.s32.totalorder %v2682, 1
    %vm2747 = vcmp.eq.s32.totalorder %v2683, 1
    %vm2748 = vcmp.eq.s32.totalorder %v2684, 1
    %vm2749 = vcmp.eq.s32.totalorder %v2685, 1
    %vm2750 = vcmp.eq.s32.totalorder %v2686, 1
    %vm2751 = vcmp.eq.s32.totalorder %v2687, 1
    %vm2752 = vcmp.eq.s32.totalorder %v2688, 1
    %vm2753 = vcmp.eq.s32.totalorder %v2689, 1
    %vm2754 = vcmp.eq.s32.totalorder %v2690, 1
    %vm2755 = vcmp.eq.s32.totalorder %v2691, 1
    %vm2756 = vcmp.eq.s32.totalorder %v2692, 1
    %vm2757 = vcmp.eq.s32.totalorder %v2693, 1
    %vm2758 = vcmp.eq.s32.totalorder %v2694, 1
    %vm2759 = vcmp.eq.s32.totalorder %v2695, 1
    %vm2760 = vcmp.eq.s32.totalorder %v2696, 1
    %vm2761 = vcmp.eq.s32.totalorder %v2697, 1
    %vm2762 = vcmp.eq.s32.totalorder %v2698, 1
    %vm2763 = vcmp.eq.s32.totalorder %v2699, 1
    %vm2764 = vcmp.eq.s32.totalorder %v2700, 1
    %vm2765 = vcmp.eq.s32.totalorder %v2701, 1
    %vm2766 = vcmp.eq.s32.totalorder %v2702, 1
    %vm2767 = vcmp.eq.s32.totalorder %v2703, 1
    %vm2768 = vcmp.eq.s32.totalorder %v2704, 1
    %vm2769 = vcmp.eq.s32.totalorder %v2705, 1
    %vm2770 = vcmp.eq.s32.totalorder %v2706, 1
    %vm2771 = vcmp.eq.s32.totalorder %v2707, 1
    %vm2772 = vcmp.eq.s32.totalorder %v2708, 1
    %vm2773 = vcmp.eq.s32.totalorder %v2709, 1
    %vm2774 = vcmp.eq.s32.totalorder %v2710, 1
    %vm2775 = vcmp.eq.s32.totalorder %v2711, 1
    %vm2776 = vcmp.eq.s32.totalorder %v2712, 1
    %vm2777 = vcmp.eq.s32.totalorder %v2713, 1
    %vm2778 = vcmp.eq.s32.totalorder %v2714, 1
    %vm2779 = vcmp.eq.s32.totalorder %v2715, 1
    %v2780 = vsel %vm2716, %v2651, 0.0
    %v2781 = vsel %vm2717, %v2650, 0.0
    %v2782 = vsel %vm2718, %v2649, 0.0
    %v2783 = vsel %vm2719, %v2648, 0.0
    %v2784 = vsel %vm2720, %v2647, 0.0
    %v2785 = vsel %vm2721, %v2646, 0.0
    %v2786 = vsel %vm2722, %v2645, 0.0
    %v2787 = vsel %vm2723, %v2644, 0.0
    %v2788 = vsel %vm2724, %v2643, 0.0
    %v2789 = vsel %vm2725, %v2642, 0.0
    %v2790 = vsel %vm2726, %v2641, 0.0
    %v2791 = vsel %vm2727, %v2640, 0.0
    %v2792 = vsel %vm2728, %v2639, 0.0
    %v2793 = vsel %vm2729, %v2638, 0.0
    %v2794 = vsel %vm2730, %v2637, 0.0
    %v2795 = vsel %vm2731, %v2636, 0.0
    %v2796 = vsel %vm2732, %v2635, 0.0
    %v2797 = vsel %vm2733, %v2634, 0.0
    %v2798 = vsel %vm2734, %v2633, 0.0
    %v2799 = vsel %vm2735, %v2632, 0.0
    %v2800 = vsel %vm2736, %v2631, 0.0
    %v2801 = vsel %vm2737, %v2630, 0.0
    %v2802 = vsel %vm2738, %v2629, 0.0
    %v2803 = vsel %vm2739, %v2628, 0.0
    %v2804 = vsel %vm2740, %v2627, 0.0
    %v2805 = vsel %vm2741, %v2626, 0.0
    %v2806 = vsel %vm2742, %v2625, 0.0
    %v2807 = vsel %vm2743, %v2624, 0.0
    %v2808 = vsel %vm2744, %v2623, 0.0
    %v2809 = vsel %vm2745, %v2622, 0.0
    %v2810 = vsel %vm2746, %v2621, 0.0
    %v2811 = vsel %vm2747, %v2620, 0.0
    %v2812 = vsel %vm2748, %v2619, 0.0
    %v2813 = vsel %vm2749, %v2618, 0.0
    %v2814 = vsel %vm2750, %v2617, 0.0
    %v2815 = vsel %vm2751, %v2616, 0.0
    %v2816 = vsel %vm2752, %v2615, 0.0
    %v2817 = vsel %vm2753, %v2614, 0.0
    %v2818 = vsel %vm2754, %v2613, 0.0
    %v2819 = vsel %vm2755, %v2612, 0.0
    %v2820 = vsel %vm2756, %v2611, 0.0
    %v2821 = vsel %vm2757, %v2610, 0.0
    %v2822 = vsel %vm2758, %v2609, 0.0
    %v2823 = vsel %vm2759, %v2608, 0.0
    %v2824 = vsel %vm2760, %v2607, 0.0
    %v2825 = vsel %vm2761, %v2606, 0.0
    %v2826 = vsel %vm2762, %v2605, 0.0
    %v2827 = vsel %vm2763, %v2604, 0.0
    %v2828 = vsel %vm2764, %v2603, 0.0
    %v2829 = vsel %vm2765, %v2602, 0.0
    %v2830 = vsel %vm2766, %v2601, 0.0
    %v2831 = vsel %vm2767, %v2600, 0.0
    %v2832 = vsel %vm2768, %v2599, 0.0
    %v2833 = vsel %vm2769, %v2598, 0.0
    %v2834 = vsel %vm2770, %v2597, 0.0
    %v2835 = vsel %vm2771, %v2596, 0.0
    %v2836 = vsel %vm2772, %v2595, 0.0
    %v2837 = vsel %vm2773, %v2594, 0.0
    %v2838 = vsel %vm2774, %v2593, 0.0
    %v2839 = vsel %vm2775, %v2592, 0.0
    %v2840 = vsel %vm2776, %v2591, 0.0
    %v2841 = vsel %vm2777, %v2590, 0.0
    %v2842 = vsel %vm2778, %v2589, 0.0
    %v2843 = vsel %vm2779, %v2588, 0.0
    %v2844 = vsel %vm1883, 1, 0
    %v2845 = vsel %vm1884, 1, 0
    %v2846 = vsel %vm1885, 1, 0
    %v2847 = vsel %vm1886, 1, 0
    %v2848 = vsel %vm1887, 1, 0
    %v2849 = vsel %vm1888, 1, 0
    %v2850 = vsel %vm1889, 1, 0
    %v2851 = vsel %vm1890, 1, 0
    %v2852 = vsel %vm1891, 1, 0
    %v2853 = vsel %vm1892, 1, 0
    %v2854 = vsel %vm1893, 1, 0
    %v2855 = vsel %vm1894, 1, 0
    %v2856 = vsel %vm1895, 1, 0
    %v2857 = vsel %vm1896, 1, 0
    %v2858 = vsel %vm1897, 1, 0
    %v2859 = vsel %vm1898, 1, 0
    %v2860 = vsel %vm1899, 1, 0
    %v2861 = vsel %vm1900, 1, 0
    %v2862 = vsel %vm1901, 1, 0
    %v2863 = vsel %vm1902, 1, 0
    %v2864 = vsel %vm1903, 1, 0
    %v2865 = vsel %vm1904, 1, 0
    %v2866 = vsel %vm1905, 1, 0
    %v2867 = vsel %vm1906, 1, 0
    %v2868 = vsel %vm1907, 1, 0
    %v2869 = vsel %vm1908, 1, 0
    %v2870 = vsel %vm1909, 1, 0
    %v2871 = vsel %vm1910, 1, 0
    %v2872 = vsel %vm1911, 1, 0
    %v2873 = vsel %vm1912, 1, 0
    %v2874 = vsel %vm1913, 1, 0
    %v2875 = vsel %vm1914, 1, 0
    %v2876 = vsel %vm1915, 1, 0
    %v2877 = vsel %vm1916, 1, 0
    %v2878 = vsel %vm1917, 1, 0
    %v2879 = vsel %vm1918, 1, 0
    %v2880 = vsel %vm1919, 1, 0
    %v2881 = vsel %vm1920, 1, 0
    %v2882 = vsel %vm1921, 1, 0
    %v2883 = vsel %vm1922, 1, 0
    %v2884 = vsel %vm1923, 1, 0
    %v2885 = vsel %vm1924, 1, 0
    %v2886 = vsel %vm1925, 1, 0
    %v2887 = vsel %vm1926, 1, 0
    %v2888 = vsel %vm1927, 1, 0
    %v2889 = vsel %vm1928, 1, 0
    %v2890 = vsel %vm1929, 1, 0
    %v2891 = vsel %vm1930, 1, 0
    %v2892 = vsel %vm1931, 1, 0
    %v2893 = vsel %vm1932, 1, 0
    %v2894 = vsel %vm1933, 1, 0
    %v2895 = vsel %vm1934, 1, 0
    %v2896 = vsel %vm1935, 1, 0
    %v2897 = vsel %vm1936, 1, 0
    %v2898 = vsel %vm1937, 1, 0
    %v2899 = vsel %vm1938, 1, 0
    %v2900 = vsel %vm1939, 1, 0
    %v2901 = vsel %vm1940, 1, 0
    %v2902 = vsel %vm1941, 1, 0
    %v2903 = vsel %vm1942, 1, 0
    %v2904 = vsel %vm1943, 1, 0
    %v2905 = vsel %vm1944, 1, 0
    %v2906 = vsel %vm1945, 1, 0
    %v2907 = vsel %vm1946, 1, 0
    %vm2908 = vcmp.eq.s32.totalorder %v2844, 1
    %vm2909 = vcmp.eq.s32.totalorder %v2845, 1
    %vm2910 = vcmp.eq.s32.totalorder %v2846, 1
    %vm2911 = vcmp.eq.s32.totalorder %v2847, 1
    %vm2912 = vcmp.eq.s32.totalorder %v2848, 1
    %vm2913 = vcmp.eq.s32.totalorder %v2849, 1
    %vm2914 = vcmp.eq.s32.totalorder %v2850, 1
    %vm2915 = vcmp.eq.s32.totalorder %v2851, 1
    %vm2916 = vcmp.eq.s32.totalorder %v2852, 1
    %vm2917 = vcmp.eq.s32.totalorder %v2853, 1
    %vm2918 = vcmp.eq.s32.totalorder %v2854, 1
    %vm2919 = vcmp.eq.s32.totalorder %v2855, 1
    %vm2920 = vcmp.eq.s32.totalorder %v2856, 1
    %vm2921 = vcmp.eq.s32.totalorder %v2857, 1
    %vm2922 = vcmp.eq.s32.totalorder %v2858, 1
    %vm2923 = vcmp.eq.s32.totalorder %v2859, 1
    %vm2924 = vcmp.eq.s32.totalorder %v2860, 1
    %vm2925 = vcmp.eq.s32.totalorder %v2861, 1
    %vm2926 = vcmp.eq.s32.totalorder %v2862, 1
    %vm2927 = vcmp.eq.s32.totalorder %v2863, 1
    %vm2928 = vcmp.eq.s32.totalorder %v2864, 1
    %vm2929 = vcmp.eq.s32.totalorder %v2865, 1
    %vm2930 = vcmp.eq.s32.totalorder %v2866, 1
    %vm2931 = vcmp.eq.s32.totalorder %v2867, 1
    %vm2932 = vcmp.eq.s32.totalorder %v2868, 1
    %vm2933 = vcmp.eq.s32.totalorder %v2869, 1
    %vm2934 = vcmp.eq.s32.totalorder %v2870, 1
    %vm2935 = vcmp.eq.s32.totalorder %v2871, 1
    %vm2936 = vcmp.eq.s32.totalorder %v2872, 1
    %vm2937 = vcmp.eq.s32.totalorder %v2873, 1
    %vm2938 = vcmp.eq.s32.totalorder %v2874, 1
    %vm2939 = vcmp.eq.s32.totalorder %v2875, 1
    %vm2940 = vcmp.eq.s32.totalorder %v2876, 1
    %vm2941 = vcmp.eq.s32.totalorder %v2877, 1
    %vm2942 = vcmp.eq.s32.totalorder %v2878, 1
    %vm2943 = vcmp.eq.s32.totalorder %v2879, 1
    %vm2944 = vcmp.eq.s32.totalorder %v2880, 1
    %vm2945 = vcmp.eq.s32.totalorder %v2881, 1
    %vm2946 = vcmp.eq.s32.totalorder %v2882, 1
    %vm2947 = vcmp.eq.s32.totalorder %v2883, 1
    %vm2948 = vcmp.eq.s32.totalorder %v2884, 1
    %vm2949 = vcmp.eq.s32.totalorder %v2885, 1
    %vm2950 = vcmp.eq.s32.totalorder %v2886, 1
    %vm2951 = vcmp.eq.s32.totalorder %v2887, 1
    %vm2952 = vcmp.eq.s32.totalorder %v2888, 1
    %vm2953 = vcmp.eq.s32.totalorder %v2889, 1
    %vm2954 = vcmp.eq.s32.totalorder %v2890, 1
    %vm2955 = vcmp.eq.s32.totalorder %v2891, 1
    %vm2956 = vcmp.eq.s32.totalorder %v2892, 1
    %vm2957 = vcmp.eq.s32.totalorder %v2893, 1
    %vm2958 = vcmp.eq.s32.totalorder %v2894, 1
    %vm2959 = vcmp.eq.s32.totalorder %v2895, 1
    %vm2960 = vcmp.eq.s32.totalorder %v2896, 1
    %vm2961 = vcmp.eq.s32.totalorder %v2897, 1
    %vm2962 = vcmp.eq.s32.totalorder %v2898, 1
    %vm2963 = vcmp.eq.s32.totalorder %v2899, 1
    %vm2964 = vcmp.eq.s32.totalorder %v2900, 1
    %vm2965 = vcmp.eq.s32.totalorder %v2901, 1
    %vm2966 = vcmp.eq.s32.totalorder %v2902, 1
    %vm2967 = vcmp.eq.s32.totalorder %v2903, 1
    %vm2968 = vcmp.eq.s32.totalorder %v2904, 1
    %vm2969 = vcmp.eq.s32.totalorder %v2905, 1
    %vm2970 = vcmp.eq.s32.totalorder %v2906, 1
    %vm2971 = vcmp.eq.s32.totalorder %v2907, 1
    %v2972 = vsel %vm2908, %v2589, 0.0
    %v2973 = vsel %vm2909, %v2588, 0.0
    %v2974 = vsel %vm2910, %v2651, 0.0
    %v2975 = vsel %vm2911, %v2650, 0.0
    %v2976 = vsel %vm2912, %v2649, 0.0
    %v2977 = vsel %vm2913, %v2648, 0.0
    %v2978 = vsel %vm2914, %v2647, 0.0
    %v2979 = vsel %vm2915, %v2646, 0.0
    %v2980 = vsel %vm2916, %v2645, 0.0
    %v2981 = vsel %vm2917, %v2644, 0.0
    %v2982 = vsel %vm2918, %v2643, 0.0
    %v2983 = vsel %vm2919, %v2642, 0.0
    %v2984 = vsel %vm2920, %v2641, 0.0
    %v2985 = vsel %vm2921, %v2640, 0.0
    %v2986 = vsel %vm2922, %v2639, 0.0
    %v2987 = vsel %vm2923, %v2638, 0.0
    %v2988 = vsel %vm2924, %v2637, 0.0
    %v2989 = vsel %vm2925, %v2636, 0.0
    %v2990 = vsel %vm2926, %v2635, 0.0
    %v2991 = vsel %vm2927, %v2634, 0.0
    %v2992 = vsel %vm2928, %v2633, 0.0
    %v2993 = vsel %vm2929, %v2632, 0.0
    %v2994 = vsel %vm2930, %v2631, 0.0
    %v2995 = vsel %vm2931, %v2630, 0.0
    %v2996 = vsel %vm2932, %v2629, 0.0
    %v2997 = vsel %vm2933, %v2628, 0.0
    %v2998 = vsel %vm2934, %v2627, 0.0
    %v2999 = vsel %vm2935, %v2626, 0.0
    %v3000 = vsel %vm2936, %v2625, 0.0
    %v3001 = vsel %vm2937, %v2624, 0.0
    %v3002 = vsel %vm2938, %v2623, 0.0
    %v3003 = vsel %vm2939, %v2622, 0.0
    %v3004 = vsel %vm2940, %v2621, 0.0
    %v3005 = vsel %vm2941, %v2620, 0.0
    %v3006 = vsel %vm2942, %v2619, 0.0
    %v3007 = vsel %vm2943, %v2618, 0.0
    %v3008 = vsel %vm2944, %v2617, 0.0
    %v3009 = vsel %vm2945, %v2616, 0.0
    %v3010 = vsel %vm2946, %v2615, 0.0
    %v3011 = vsel %vm2947, %v2614, 0.0
    %v3012 = vsel %vm2948, %v2613, 0.0
    %v3013 = vsel %vm2949, %v2612, 0.0
    %v3014 = vsel %vm2950, %v2611, 0.0
    %v3015 = vsel %vm2951, %v2610, 0.0
    %v3016 = vsel %vm2952, %v2609, 0.0
    %v3017 = vsel %vm2953, %v2608, 0.0
    %v3018 = vsel %vm2954, %v2607, 0.0
    %v3019 = vsel %vm2955, %v2606, 0.0
    %v3020 = vsel %vm2956, %v2605, 0.0
    %v3021 = vsel %vm2957, %v2604, 0.0
    %v3022 = vsel %vm2958, %v2603, 0.0
    %v3023 = vsel %vm2959, %v2602, 0.0
    %v3024 = vsel %vm2960, %v2601, 0.0
    %v3025 = vsel %vm2961, %v2600, 0.0
    %v3026 = vsel %vm2962, %v2599, 0.0
    %v3027 = vsel %vm2963, %v2598, 0.0
    %v3028 = vsel %vm2964, %v2597, 0.0
    %v3029 = vsel %vm2965, %v2596, 0.0
    %v3030 = vsel %vm2966, %v2595, 0.0
    %v3031 = vsel %vm2967, %v2594, 0.0
    %v3032 = vsel %vm2968, %v2593, 0.0
    %v3033 = vsel %vm2969, %v2592, 0.0
    %v3034 = vsel %vm2970, %v2591, 0.0
    %v3035 = vsel %vm2971, %v2590, 0.0
    %v3036 = vpack.c.bf16 %v2973, %v2972
    %v3037 = vpack.c.bf16 %v2460, %v2459
    %v3038 = vpack.c.bf16 %v2781, %v2780
    %v3039 = vpack.c.bf16 %v2268, %v2267
    %v3040 = vpack.c.bf16 %v2975, %v2974
    %v3041 = vpack.c.bf16 %v2462, %v2461
    %v3042 = vpack.c.bf16 %v2783, %v2782
    %v3043 = vpack.c.bf16 %v2270, %v2269
    %v3044 = vpack.c.bf16 %v2977, %v2976
    %v3045 = vpack.c.bf16 %v2464, %v2463
    %v3046 = vpack.c.bf16 %v2785, %v2784
    %v3047 = vpack.c.bf16 %v2272, %v2271
    %v3048 = vpack.c.bf16 %v2979, %v2978
    %v3049 = vpack.c.bf16 %v2466, %v2465
    %v3050 = vpack.c.bf16 %v2787, %v2786
    %v3051 = vpack.c.bf16 %v2274, %v2273
    %v3052 = vpack.c.bf16 %v2981, %v2980
    %v3053 = vpack.c.bf16 %v2468, %v2467
    %v3054 = vpack.c.bf16 %v2789, %v2788
    %v3055 = vpack.c.bf16 %v2276, %v2275
    %v3056 = vpack.c.bf16 %v2983, %v2982
    %v3057 = vpack.c.bf16 %v2470, %v2469
    %v3058 = vpack.c.bf16 %v2791, %v2790
    %v3059 = vpack.c.bf16 %v2278, %v2277
    %v3060 = vpack.c.bf16 %v2985, %v2984
    %v3061 = vpack.c.bf16 %v2472, %v2471
    %v3062 = vpack.c.bf16 %v2793, %v2792
    %v3063 = vpack.c.bf16 %v2280, %v2279
    %v3064 = vpack.c.bf16 %v2987, %v2986
    %v3065 = vpack.c.bf16 %v2474, %v2473
    %v3066 = vpack.c.bf16 %v2795, %v2794
    %v3067 = vpack.c.bf16 %v2282, %v2281
    %v3068 = vpack.c.bf16 %v2989, %v2988
    %v3069 = vpack.c.bf16 %v2476, %v2475
    %v3070 = vpack.c.bf16 %v2797, %v2796
    %v3071 = vpack.c.bf16 %v2284, %v2283
    %v3072 = vpack.c.bf16 %v2991, %v2990
    %v3073 = vpack.c.bf16 %v2478, %v2477
    %v3074 = vpack.c.bf16 %v2799, %v2798
    %v3075 = vpack.c.bf16 %v2286, %v2285
    %v3076 = vpack.c.bf16 %v2993, %v2992
    %v3077 = vpack.c.bf16 %v2480, %v2479
    %v3078 = vpack.c.bf16 %v2801, %v2800
    %v3079 = vpack.c.bf16 %v2288, %v2287
    %v3080 = vpack.c.bf16 %v2995, %v2994
    %v3081 = vpack.c.bf16 %v2482, %v2481
    %v3082 = vpack.c.bf16 %v2803, %v2802
    %v3083 = vpack.c.bf16 %v2290, %v2289
    %v3084 = vpack.c.bf16 %v2997, %v2996
    %v3085 = vpack.c.bf16 %v2484, %v2483
    %v3086 = vpack.c.bf16 %v2805, %v2804
    %v3087 = vpack.c.bf16 %v2292, %v2291
    %v3088 = vpack.c.bf16 %v2999, %v2998
    %v3089 = vpack.c.bf16 %v2486, %v2485
    %v3090 = vpack.c.bf16 %v2807, %v2806
    %v3091 = vpack.c.bf16 %v2294, %v2293
    %v3092 = vpack.c.bf16 %v3001, %v3000
    %v3093 = vpack.c.bf16 %v2488, %v2487
    %v3094 = vpack.c.bf16 %v2809, %v2808
    %v3095 = vpack.c.bf16 %v2296, %v2295
    %v3096 = vpack.c.bf16 %v3003, %v3002
    %v3097 = vpack.c.bf16 %v2490, %v2489
    %v3098 = vpack.c.bf16 %v2811, %v2810
    %v3099 = vpack.c.bf16 %v2298, %v2297
    %v3100 = vpack.c.bf16 %v3005, %v3004
    %v3101 = vpack.c.bf16 %v2492, %v2491
    %v3102 = vpack.c.bf16 %v2813, %v2812
    %v3103 = vpack.c.bf16 %v2300, %v2299
    %v3104 = vpack.c.bf16 %v3007, %v3006
    %v3105 = vpack.c.bf16 %v2494, %v2493
    %v3106 = vpack.c.bf16 %v2815, %v2814
    %v3107 = vpack.c.bf16 %v2302, %v2301
    %v3108 = vpack.c.bf16 %v3009, %v3008
    %v3109 = vpack.c.bf16 %v2496, %v2495
    %v3110 = vpack.c.bf16 %v2817, %v2816
    %v3111 = vpack.c.bf16 %v2304, %v2303
    %v3112 = vpack.c.bf16 %v3011, %v3010
    %v3113 = vpack.c.bf16 %v2498, %v2497
    %v3114 = vpack.c.bf16 %v2819, %v2818
    %v3115 = vpack.c.bf16 %v2306, %v2305
    %v3116 = vpack.c.bf16 %v3013, %v3012
    %v3117 = vpack.c.bf16 %v2500, %v2499
    %v3118 = vpack.c.bf16 %v2821, %v2820
    %v3119 = vpack.c.bf16 %v2308, %v2307
    %v3120 = vpack.c.bf16 %v3015, %v3014
    %v3121 = vpack.c.bf16 %v2502, %v2501
    %v3122 = vpack.c.bf16 %v2823, %v2822
    %v3123 = vpack.c.bf16 %v2310, %v2309
    %v3124 = vpack.c.bf16 %v3017, %v3016
    %v3125 = vpack.c.bf16 %v2504, %v2503
    %v3126 = vpack.c.bf16 %v2825, %v2824
    %v3127 = vpack.c.bf16 %v2312, %v2311
    %v3128 = vpack.c.bf16 %v3019, %v3018
    %v3129 = vpack.c.bf16 %v2506, %v2505
    %v3130 = vpack.c.bf16 %v2827, %v2826
    %v3131 = vpack.c.bf16 %v2314, %v2313
    %v3132 = vpack.c.bf16 %v3021, %v3020
    %v3133 = vpack.c.bf16 %v2508, %v2507
    %v3134 = vpack.c.bf16 %v2829, %v2828
    %v3135 = vpack.c.bf16 %v2316, %v2315
    %v3136 = vpack.c.bf16 %v3023, %v3022
    %v3137 = vpack.c.bf16 %v2510, %v2509
    %v3138 = vpack.c.bf16 %v2831, %v2830
    %v3139 = vpack.c.bf16 %v2318, %v2317
    %v3140 = vpack.c.bf16 %v3025, %v3024
    %v3141 = vpack.c.bf16 %v2512, %v2511
    %v3142 = vpack.c.bf16 %v2833, %v2832
    %v3143 = vpack.c.bf16 %v2320, %v2319
    %v3144 = vpack.c.bf16 %v3027, %v3026
    %v3145 = vpack.c.bf16 %v2514, %v2513
    %v3146 = vpack.c.bf16 %v2835, %v2834
    %v3147 = vpack.c.bf16 %v2322, %v2321
    %v3148 = vpack.c.bf16 %v3029, %v3028
    %v3149 = vpack.c.bf16 %v2516, %v2515
    %v3150 = vpack.c.bf16 %v2837, %v2836
    %v3151 = vpack.c.bf16 %v2324, %v2323
    %v3152 = vpack.c.bf16 %v3031, %v3030
    %v3153 = vpack.c.bf16 %v2518, %v2517
    %v3154 = vpack.c.bf16 %v2839, %v2838
    %v3155 = vpack.c.bf16 %v2326, %v2325
    %v3156 = vpack.c.bf16 %v3033, %v3032
    %v3157 = vpack.c.bf16 %v2520, %v2519
    %v3158 = vpack.c.bf16 %v2841, %v2840
    %v3159 = vpack.c.bf16 %v2328, %v2327
    %v3160 = vpack.c.bf16 %v3035, %v3034
    %v3161 = vpack.c.bf16 %v2522, %v2521
    %v3162 = vpack.c.bf16 %v2843, %v2842
    %v3163 = vpack.c.bf16 %v2330, %v2329
    %v3164 = vld [vmem:[#allocation5] sm:$0xf]
    %v3165 = vld [vmem:[#allocation5 + $0x4] sm:$0xf]
    %v3166 = vld [vmem:[#allocation5 + $0x8] sm:$0xf]
    %v3167 = vld [vmem:[#allocation5 + $0xc] sm:$0xf]
    %v3168 = vld [vmem:[#allocation5 + $0x10] sm:$0xf]
    %v3169 = vld [vmem:[#allocation5 + $0x14] sm:$0xf]
    %v3170 = vld [vmem:[#allocation5 + $0x18] sm:$0xf]
    %v3171 = vld [vmem:[#allocation5 + $0x1c] sm:$0xf]
    %v3172 = vld [vmem:[#allocation5 + $0x20] sm:$0xf]
    %v3173 = vld [vmem:[#allocation5 + $0x24] sm:$0xf]
    %v3174 = vld [vmem:[#allocation5 + $0x28] sm:$0xf]
    %v3175 = vld [vmem:[#allocation5 + $0x2c] sm:$0xf]
    %v3176 = vld [vmem:[#allocation5 + $0x30] sm:$0xf]
    %v3177 = vld [vmem:[#allocation5 + $0x34] sm:$0xf]
    %v3178 = vld [vmem:[#allocation5 + $0x38] sm:$0xf]
    %v3179 = vld [vmem:[#allocation5 + $0x3c] sm:$0xf]
    %v3180 = vld [vmem:[#allocation5 + $0x40] sm:$0xf]
    %v3181 = vld [vmem:[#allocation5 + $0x44] sm:$0xf]
    %v3182 = vld [vmem:[#allocation5 + $0x48] sm:$0xf]
    %v3183 = vld [vmem:[#allocation5 + $0x4c] sm:$0xf]
    %v3184 = vld [vmem:[#allocation5 + $0x50] sm:$0xf]
    %v3185 = vld [vmem:[#allocation5 + $0x54] sm:$0xf]
    %v3186 = vld [vmem:[#allocation5 + $0x58] sm:$0xf]
    %v3187 = vld [vmem:[#allocation5 + $0x5c] sm:$0xf]
    %v3188 = vld [vmem:[#allocation5 + $0x60] sm:$0xf]
    %v3189 = vld [vmem:[#allocation5 + $0x64] sm:$0xf]
    %v3190 = vld [vmem:[#allocation5 + $0x68] sm:$0xf]
    %v3191 = vld [vmem:[#allocation5 + $0x6c] sm:$0xf]
    %v3192 = vld [vmem:[#allocation5 + $0x70] sm:$0xf]
    %v3193 = vld [vmem:[#allocation5 + $0x74] sm:$0xf]
    %v3194 = vld [vmem:[#allocation5 + $0x78] sm:$0xf]
    %v3195 = vld [vmem:[#allocation5 + $0x7c] sm:$0xf]
    %v3196 = vld [vmem:[#allocation5 + $0x80] sm:$0xf]
    %v3197 = vld [vmem:[#allocation5 + $0x84] sm:$0xf]
    %v3198 = vld [vmem:[#allocation5 + $0x88] sm:$0xf]
    %v3199 = vld [vmem:[#allocation5 + $0x8c] sm:$0xf]
    %v3200 = vld [vmem:[#allocation5 + $0x90] sm:$0xf]
    %v3201 = vld [vmem:[#allocation5 + $0x94] sm:$0xf]
    %v3202 = vld [vmem:[#allocation5 + $0x98] sm:$0xf]
    %v3203 = vld [vmem:[#allocation5 + $0x9c] sm:$0xf]
    %v3204 = vld [vmem:[#allocation5 + $0xa0] sm:$0xf]
    %v3205 = vld [vmem:[#allocation5 + $0xa4] sm:$0xf]
    %v3206 = vld [vmem:[#allocation5 + $0xa8] sm:$0xf]
    %v3207 = vld [vmem:[#allocation5 + $0xac] sm:$0xf]
    %v3208 = vld [vmem:[#allocation5 + $0xb0] sm:$0xf]
    %v3209 = vld [vmem:[#allocation5 + $0xb4] sm:$0xf]
    %v3210 = vld [vmem:[#allocation5 + $0xb8] sm:$0xf]
    %v3211 = vld [vmem:[#allocation5 + $0xbc] sm:$0xf]
    %v3212 = vld [vmem:[#allocation5 + $0xc0] sm:$0xf]
    %v3213 = vld [vmem:[#allocation5 + $0xc4] sm:$0xf]
    %v3214 = vld [vmem:[#allocation5 + $0xc8] sm:$0xf]
    %v3215 = vld [vmem:[#allocation5 + $0xcc] sm:$0xf]
    %v3216 = vld [vmem:[#allocation5 + $0xd0] sm:$0xf]
    %v3217 = vld [vmem:[#allocation5 + $0xd4] sm:$0xf]
    %v3218 = vld [vmem:[#allocation5 + $0xd8] sm:$0xf]
    %v3219 = vld [vmem:[#allocation5 + $0xdc] sm:$0xf]
    %v3220 = vld [vmem:[#allocation5 + $0xe0] sm:$0xf]
    %v3221 = vld [vmem:[#allocation5 + $0xe4] sm:$0xf]
    %v3222 = vld [vmem:[#allocation5 + $0xe8] sm:$0xf]
    %v3223 = vld [vmem:[#allocation5 + $0xec] sm:$0xf]
    %v3224 = vld [vmem:[#allocation5 + $0xf0] sm:$0xf]
    %v3225 = vld [vmem:[#allocation5 + $0xf4] sm:$0xf]
    %v3226 = vld [vmem:[#allocation5 + $0xf8] sm:$0xf]
    %v3227 = vld [vmem:[#allocation5 + $0xfc] sm:$0xf]
    %v3228 = vld [vmem:[%s2] sm:$0x1]
    %v3230 = vperm.slane %v3228, 0
    %v3296 = vunpack.c.l.b16 %v3164
    %v3297 = vunpack.c.l.b16 %v3165
    %v3298 = vunpack.c.l.b16 %v3166
    %v3299 = vunpack.c.l.b16 %v3167
    %v3300 = vunpack.c.l.b16 %v3168
    %v3301 = vunpack.c.l.b16 %v3169
    %v3302 = vunpack.c.l.b16 %v3170
    %v3303 = vunpack.c.l.b16 %v3171
    %v3304 = vunpack.c.l.b16 %v3172
    %v3305 = vunpack.c.l.b16 %v3173
    %v3306 = vunpack.c.l.b16 %v3174
    %v3307 = vunpack.c.l.b16 %v3175
    %v3308 = vunpack.c.l.b16 %v3176
    %v3309 = vunpack.c.l.b16 %v3177
    %v3310 = vunpack.c.l.b16 %v3178
    %v3311 = vunpack.c.l.b16 %v3179
    %v3312 = vunpack.c.l.b16 %v3180
    %v3313 = vunpack.c.l.b16 %v3181
    %v3314 = vunpack.c.l.b16 %v3182
    %v3315 = vunpack.c.l.b16 %v3183
    %v3316 = vunpack.c.l.b16 %v3184
    %v3317 = vunpack.c.l.b16 %v3185
    %v3318 = vunpack.c.l.b16 %v3186
    %v3319 = vunpack.c.l.b16 %v3187
    %v3320 = vunpack.c.l.b16 %v3188
    %v3321 = vunpack.c.l.b16 %v3189
    %v3322 = vunpack.c.l.b16 %v3190
    %v3323 = vunpack.c.l.b16 %v3191
    %v3324 = vunpack.c.l.b16 %v3192
    %v3325 = vunpack.c.l.b16 %v3193
    %v3326 = vunpack.c.l.b16 %v3194
    %v3327 = vunpack.c.l.b16 %v3195
    %v3328 = vunpack.c.l.b16 %v3196
    %v3329 = vunpack.c.l.b16 %v3197
    %v3330 = vunpack.c.l.b16 %v3198
    %v3331 = vunpack.c.l.b16 %v3199
    %v3332 = vunpack.c.l.b16 %v3200
    %v3333 = vunpack.c.l.b16 %v3201
    %v3334 = vunpack.c.l.b16 %v3202
    %v3335 = vunpack.c.l.b16 %v3203
    %v3336 = vunpack.c.l.b16 %v3204
    %v3337 = vunpack.c.l.b16 %v3205
    %v3338 = vunpack.c.l.b16 %v3206
    %v3339 = vunpack.c.l.b16 %v3207
    %v3340 = vunpack.c.l.b16 %v3208
    %v3341 = vunpack.c.l.b16 %v3209
    %v3342 = vunpack.c.l.b16 %v3210
    %v3343 = vunpack.c.l.b16 %v3211
    %v3344 = vunpack.c.l.b16 %v3212
    %v3345 = vunpack.c.l.b16 %v3213
    %v3346 = vunpack.c.l.b16 %v3214
    %v3347 = vunpack.c.l.b16 %v3215
    %v3348 = vunpack.c.l.b16 %v3216
    %v3349 = vunpack.c.l.b16 %v3217
    %v3350 = vunpack.c.l.b16 %v3218
    %v3351 = vunpack.c.l.b16 %v3219
    %v3352 = vunpack.c.l.b16 %v3220
    %v3353 = vunpack.c.l.b16 %v3221
    %v3354 = vunpack.c.l.b16 %v3222
    %v3355 = vunpack.c.l.b16 %v3223
    %v3356 = vunpack.c.l.b16 %v3224
    %v3357 = vunpack.c.l.b16 %v3225
    %v3358 = vunpack.c.l.b16 %v3226
    %v3359 = vunpack.c.l.b16 %v3227
    %v3360 = vpack.c.b16 %v3297, %v3296
    %v3361 = vpack.c.b16 %v3299, %v3298
    %v3362 = vpack.c.b16 %v3301, %v3300
    %v3363 = vpack.c.b16 %v3303, %v3302
    %v3364 = vpack.c.b16 %v3305, %v3304
    %v3365 = vpack.c.b16 %v3307, %v3306
    %v3366 = vpack.c.b16 %v3309, %v3308
    %v3367 = vpack.c.b16 %v3311, %v3310
    %v3368 = vpack.c.b16 %v3313, %v3312
    %v3369 = vpack.c.b16 %v3315, %v3314
    %v3370 = vpack.c.b16 %v3317, %v3316
    %v3371 = vpack.c.b16 %v3319, %v3318
    %v3372 = vpack.c.b16 %v3321, %v3320
    %v3373 = vpack.c.b16 %v3323, %v3322
    %v3374 = vpack.c.b16 %v3325, %v3324
    %v3375 = vpack.c.b16 %v3327, %v3326
    %v3376 = vpack.c.b16 %v3329, %v3328
    %v3377 = vpack.c.b16 %v3331, %v3330
    %v3378 = vpack.c.b16 %v3333, %v3332
    %v3379 = vpack.c.b16 %v3335, %v3334
    %v3380 = vpack.c.b16 %v3337, %v3336
    %v3381 = vpack.c.b16 %v3339, %v3338
    %v3382 = vpack.c.b16 %v3341, %v3340
    %v3383 = vpack.c.b16 %v3343, %v3342
    %v3384 = vpack.c.b16 %v3345, %v3344
    %v3385 = vpack.c.b16 %v3347, %v3346
    %v3386 = vpack.c.b16 %v3349, %v3348
    %v3387 = vpack.c.b16 %v3351, %v3350
    %v3388 = vpack.c.b16 %v3353, %v3352
    %v3389 = vpack.c.b16 %v3355, %v3354
    %v3390 = vpack.c.b16 %v3357, %v3356
    %v3391 = vpack.c.b16 %v3359, %v3358
    %3424 = vmatpush.bf16.msra.mxu0 %v3367
    %3425 = vmatpush.bf16.msra.mxu0 %v3366
    %3426 = vmatpush.bf16.msra.mxu0 %v3365
    %3427 = vmatpush.bf16.msra.mxu0 %v3364
    %3428 = vmatpush.bf16.msra.mxu0 %v3363
    %3429 = vmatpush.bf16.msra.mxu0 %v3362
    %3430 = vmatpush.bf16.msra.mxu0 %v3361
    %3431 = vmatpush.bf16.msra.mxu0 %v3360
    %3432 = vmatmul.bf16.gmra.mxu0 %v3036
    %v3433 = vpop.f32.mrf.mxu0
    %v3434 = vadd.f32 %v3230, %v3433
    %v3435 = vpop.f32.mrf.mxu0
    %v3436 = vadd.f32 %v3230, %v3435
    %3437 = vmatmul.bf16.gmra.mxu0 %v3040
    %v3438 = vpop.f32.mrf.mxu0
    %v3439 = vadd.f32 %v3230, %v3438
    %v3440 = vpop.f32.mrf.mxu0
    %v3441 = vadd.f32 %v3230, %v3440
    %3442 = vmatmul.bf16.gmra.mxu0 %v3044
    %v3443 = vpop.f32.mrf.mxu0
    %v3444 = vadd.f32 %v3230, %v3443
    %v3445 = vpop.f32.mrf.mxu0
    %v3446 = vadd.f32 %v3230, %v3445
    %3447 = vmatmul.bf16.gmra.mxu0 %v3048
    %v3448 = vpop.f32.mrf.mxu0
    %v3449 = vadd.f32 %v3230, %v3448
    %v3450 = vpop.f32.mrf.mxu0
    %v3451 = vadd.f32 %v3230, %v3450
    %3452 = vmatmul.bf16.gmra.mxu0 %v3052
    %v3453 = vpop.f32.mrf.mxu0
    %v3454 = vadd.f32 %v3230, %v3453
    %v3455 = vpop.f32.mrf.mxu0
    %v3456 = vadd.f32 %v3230, %v3455
    %3457 = vmatmul.bf16.gmra.mxu0 %v3056
    %v3458 = vpop.f32.mrf.mxu0
    %v3459 = vadd.f32 %v3230, %v3458
    %v3460 = vpop.f32.mrf.mxu0
    %v3461 = vadd.f32 %v3230, %v3460
    %3462 = vmatmul.bf16.gmra.mxu0 %v3060
    %v3463 = vpop.f32.mrf.mxu0
    %v3464 = vadd.f32 %v3230, %v3463
    %v3465 = vpop.f32.mrf.mxu0
    %v3466 = vadd.f32 %v3230, %v3465
    %3467 = vmatmul.bf16.gmra.mxu0 %v3064
    %v3468 = vpop.f32.mrf.mxu0
    %v3469 = vadd.f32 %v3230, %v3468
    %v3470 = vpop.f32.mrf.mxu0
    %v3471 = vadd.f32 %v3230, %v3470
    %3472 = vmatmul.bf16.gmra.mxu0 %v3068
    %v3473 = vpop.f32.mrf.mxu0
    %v3474 = vadd.f32 %v3230, %v3473
    %v3475 = vpop.f32.mrf.mxu0
    %v3476 = vadd.f32 %v3230, %v3475
    %3477 = vmatmul.bf16.gmra.mxu0 %v3072
    %v3478 = vpop.f32.mrf.mxu0
    %v3479 = vadd.f32 %v3230, %v3478
    %v3480 = vpop.f32.mrf.mxu0
    %v3481 = vadd.f32 %v3230, %v3480
    %3482 = vmatmul.bf16.gmra.mxu0 %v3076
    %v3483 = vpop.f32.mrf.mxu0
    %v3484 = vadd.f32 %v3230, %v3483
    %v3485 = vpop.f32.mrf.mxu0
    %v3486 = vadd.f32 %v3230, %v3485
    %3487 = vmatmul.bf16.gmra.mxu0 %v3080
    %v3488 = vpop.f32.mrf.mxu0
    %v3489 = vadd.f32 %v3230, %v3488
    %v3490 = vpop.f32.mrf.mxu0
    %v3491 = vadd.f32 %v3230, %v3490
    %3492 = vmatmul.bf16.gmra.mxu0 %v3084
    %v3493 = vpop.f32.mrf.mxu0
    %v3494 = vadd.f32 %v3230, %v3493
    %v3495 = vpop.f32.mrf.mxu0
    %v3496 = vadd.f32 %v3230, %v3495
    %3497 = vmatmul.bf16.gmra.mxu0 %v3088
    %v3498 = vpop.f32.mrf.mxu0
    %v3499 = vadd.f32 %v3230, %v3498
    %v3500 = vpop.f32.mrf.mxu0
    %v3501 = vadd.f32 %v3230, %v3500
    %3502 = vmatmul.bf16.gmra.mxu0 %v3092
    %v3503 = vpop.f32.mrf.mxu0
    %v3504 = vadd.f32 %v3230, %v3503
    %v3505 = vpop.f32.mrf.mxu0
    %v3506 = vadd.f32 %v3230, %v3505
    %3507 = vmatmul.bf16.gmra.mxu0 %v3096
    %v3508 = vpop.f32.mrf.mxu0
    %v3509 = vadd.f32 %v3230, %v3508
    %v3510 = vpop.f32.mrf.mxu0
    %v3511 = vadd.f32 %v3230, %v3510
    %3512 = vmatmul.bf16.gmra.mxu0 %v3100
    %v3513 = vpop.f32.mrf.mxu0
    %v3514 = vadd.f32 %v3230, %v3513
    %v3515 = vpop.f32.mrf.mxu0
    %v3516 = vadd.f32 %v3230, %v3515
    %3517 = vmatmul.bf16.gmra.mxu0 %v3104
    %v3518 = vpop.f32.mrf.mxu0
    %v3519 = vadd.f32 %v3230, %v3518
    %v3520 = vpop.f32.mrf.mxu0
    %v3521 = vadd.f32 %v3230, %v3520
    %3522 = vmatmul.bf16.gmra.mxu0 %v3108
    %v3523 = vpop.f32.mrf.mxu0
    %v3524 = vadd.f32 %v3230, %v3523
    %v3525 = vpop.f32.mrf.mxu0
    %v3526 = vadd.f32 %v3230, %v3525
    %3527 = vmatmul.bf16.gmra.mxu0 %v3112
    %v3528 = vpop.f32.mrf.mxu0
    %v3529 = vadd.f32 %v3230, %v3528
    %v3530 = vpop.f32.mrf.mxu0
    %v3531 = vadd.f32 %v3230, %v3530
    %3532 = vmatmul.bf16.gmra.mxu0 %v3116
    %v3533 = vpop.f32.mrf.mxu0
    %v3534 = vadd.f32 %v3230, %v3533
    %v3535 = vpop.f32.mrf.mxu0
    %v3536 = vadd.f32 %v3230, %v3535
    %3537 = vmatmul.bf16.gmra.mxu0 %v3120
    %v3538 = vpop.f32.mrf.mxu0
    %v3539 = vadd.f32 %v3230, %v3538
    %v3540 = vpop.f32.mrf.mxu0
    %v3541 = vadd.f32 %v3230, %v3540
    %3542 = vmatmul.bf16.gmra.mxu0 %v3124
    %v3543 = vpop.f32.mrf.mxu0
    %v3544 = vadd.f32 %v3230, %v3543
    %v3545 = vpop.f32.mrf.mxu0
    %v3546 = vadd.f32 %v3230, %v3545
    %3547 = vmatmul.bf16.gmra.mxu0 %v3128
    %v3548 = vpop.f32.mrf.mxu0
    %v3549 = vadd.f32 %v3230, %v3548
    %v3550 = vpop.f32.mrf.mxu0
    %v3551 = vadd.f32 %v3230, %v3550
    %3552 = vmatmul.bf16.gmra.mxu0 %v3132
    %v3553 = vpop.f32.mrf.mxu0
    %v3554 = vadd.f32 %v3230, %v3553
    %v3555 = vpop.f32.mrf.mxu0
    %v3556 = vadd.f32 %v3230, %v3555
    %3557 = vmatmul.bf16.gmra.mxu0 %v3136
    %v3558 = vpop.f32.mrf.mxu0
    %v3559 = vadd.f32 %v3230, %v3558
    %v3560 = vpop.f32.mrf.mxu0
    %v3561 = vadd.f32 %v3230, %v3560
    %3562 = vmatmul.bf16.gmra.mxu0 %v3140
    %v3563 = vpop.f32.mrf.mxu0
    %v3564 = vadd.f32 %v3230, %v3563
    %v3565 = vpop.f32.mrf.mxu0
    %v3566 = vadd.f32 %v3230, %v3565
    %3567 = vmatmul.bf16.gmra.mxu0 %v3144
    %v3568 = vpop.f32.mrf.mxu0
    %v3569 = vadd.f32 %v3230, %v3568
    %v3570 = vpop.f32.mrf.mxu0
    %v3571 = vadd.f32 %v3230, %v3570
    %3572 = vmatmul.bf16.gmra.mxu0 %v3148
    %v3573 = vpop.f32.mrf.mxu0
    %v3574 = vadd.f32 %v3230, %v3573
    %v3575 = vpop.f32.mrf.mxu0
    %v3576 = vadd.f32 %v3230, %v3575
    %3577 = vmatmul.bf16.gmra.mxu0 %v3152
    %v3578 = vpop.f32.mrf.mxu0
    %v3579 = vadd.f32 %v3230, %v3578
    %v3580 = vpop.f32.mrf.mxu0
    %v3581 = vadd.f32 %v3230, %v3580
    %3582 = vmatmul.bf16.gmra.mxu0 %v3156
    %v3583 = vpop.f32.mrf.mxu0
    %v3584 = vadd.f32 %v3230, %v3583
    %v3585 = vpop.f32.mrf.mxu0
    %v3586 = vadd.f32 %v3230, %v3585
    %3587 = vmatmul.bf16.gmra.mxu0 %v3160
    %v3588 = vpop.f32.mrf.mxu0
    %v3589 = vadd.f32 %v3230, %v3588
    %v3590 = vpop.f32.mrf.mxu0
    %v3591 = vadd.f32 %v3230, %v3590
    %3592 = vdwg.mxu0
    %3593 = vmatpush.bf16.msra.mxu0 %v3375
    %3594 = vmatpush.bf16.msra.mxu0 %v3374
    %3595 = vmatpush.bf16.msra.mxu0 %v3373
    %3596 = vmatpush.bf16.msra.mxu0 %v3372
    %3597 = vmatpush.bf16.msra.mxu0 %v3371
    %3598 = vmatpush.bf16.msra.mxu0 %v3370
    %3599 = vmatpush.bf16.msra.mxu0 %v3369
    %3600 = vmatpush.bf16.msra.mxu0 %v3368
    %3601 = vmatmul.bf16.gmra.mxu0 %v3037
    %v3602 = vpop.f32.mrf.mxu0
    %v3603 = vadd.f32 %v3434, %v3602
    %v3604 = vpop.f32.mrf.mxu0
    %v3605 = vadd.f32 %v3436, %v3604
    %3606 = vmatmul.bf16.gmra.mxu0 %v3041
    %v3607 = vpop.f32.mrf.mxu0
    %v3608 = vadd.f32 %v3439, %v3607
    %v3609 = vpop.f32.mrf.mxu0
    %v3610 = vadd.f32 %v3441, %v3609
    %3611 = vmatmul.bf16.gmra.mxu0 %v3045
    %v3612 = vpop.f32.mrf.mxu0
    %v3613 = vadd.f32 %v3444, %v3612
    %v3614 = vpop.f32.mrf.mxu0
    %v3615 = vadd.f32 %v3446, %v3614
    %3616 = vmatmul.bf16.gmra.mxu0 %v3049
    %v3617 = vpop.f32.mrf.mxu0
    %v3618 = vadd.f32 %v3449, %v3617
    %v3619 = vpop.f32.mrf.mxu0
    %v3620 = vadd.f32 %v3451, %v3619
    %3621 = vmatmul.bf16.gmra.mxu0 %v3053
    %v3622 = vpop.f32.mrf.mxu0
    %v3623 = vadd.f32 %v3454, %v3622
    %v3624 = vpop.f32.mrf.mxu0
    %v3625 = vadd.f32 %v3456, %v3624
    %3626 = vmatmul.bf16.gmra.mxu0 %v3057
    %v3627 = vpop.f32.mrf.mxu0
    %v3628 = vadd.f32 %v3459, %v3627
    %v3629 = vpop.f32.mrf.mxu0
    %v3630 = vadd.f32 %v3461, %v3629
    %3631 = vmatmul.bf16.gmra.mxu0 %v3061
    %v3632 = vpop.f32.mrf.mxu0
    %v3633 = vadd.f32 %v3464, %v3632
    %v3634 = vpop.f32.mrf.mxu0
    %v3635 = vadd.f32 %v3466, %v3634
    %3636 = vmatmul.bf16.gmra.mxu0 %v3065
    %v3637 = vpop.f32.mrf.mxu0
    %v3638 = vadd.f32 %v3469, %v3637
    %v3639 = vpop.f32.mrf.mxu0
    %v3640 = vadd.f32 %v3471, %v3639
    %3641 = vmatmul.bf16.gmra.mxu0 %v3069
    %v3642 = vpop.f32.mrf.mxu0
    %v3643 = vadd.f32 %v3474, %v3642
    %v3644 = vpop.f32.mrf.mxu0
    %v3645 = vadd.f32 %v3476, %v3644
    %3646 = vmatmul.bf16.gmra.mxu0 %v3073
    %v3647 = vpop.f32.mrf.mxu0
    %v3648 = vadd.f32 %v3479, %v3647
    %v3649 = vpop.f32.mrf.mxu0
    %v3650 = vadd.f32 %v3481, %v3649
    %3651 = vmatmul.bf16.gmra.mxu0 %v3077
    %v3652 = vpop.f32.mrf.mxu0
    %v3653 = vadd.f32 %v3484, %v3652
    %v3654 = vpop.f32.mrf.mxu0
    %v3655 = vadd.f32 %v3486, %v3654
    %3656 = vmatmul.bf16.gmra.mxu0 %v3081
    %v3657 = vpop.f32.mrf.mxu0
    %v3658 = vadd.f32 %v3489, %v3657
    %v3659 = vpop.f32.mrf.mxu0
    %v3660 = vadd.f32 %v3491, %v3659
    %3661 = vmatmul.bf16.gmra.mxu0 %v3085
    %v3662 = vpop.f32.mrf.mxu0
    %v3663 = vadd.f32 %v3494, %v3662
    %v3664 = vpop.f32.mrf.mxu0
    %v3665 = vadd.f32 %v3496, %v3664
    %3666 = vmatmul.bf16.gmra.mxu0 %v3089
    %v3667 = vpop.f32.mrf.mxu0
    %v3668 = vadd.f32 %v3499, %v3667
    %v3669 = vpop.f32.mrf.mxu0
    %v3670 = vadd.f32 %v3501, %v3669
    %3671 = vmatmul.bf16.gmra.mxu0 %v3093
    %v3672 = vpop.f32.mrf.mxu0
    %v3673 = vadd.f32 %v3504, %v3672
    %v3674 = vpop.f32.mrf.mxu0
    %v3675 = vadd.f32 %v3506, %v3674
    %3676 = vmatmul.bf16.gmra.mxu0 %v3097
    %v3677 = vpop.f32.mrf.mxu0
    %v3678 = vadd.f32 %v3509, %v3677
    %v3679 = vpop.f32.mrf.mxu0
    %v3680 = vadd.f32 %v3511, %v3679
    %3681 = vmatmul.bf16.gmra.mxu0 %v3101
    %v3682 = vpop.f32.mrf.mxu0
    %v3683 = vadd.f32 %v3514, %v3682
    %v3684 = vpop.f32.mrf.mxu0
    %v3685 = vadd.f32 %v3516, %v3684
    %3686 = vmatmul.bf16.gmra.mxu0 %v3105
    %v3687 = vpop.f32.mrf.mxu0
    %v3688 = vadd.f32 %v3519, %v3687
    %v3689 = vpop.f32.mrf.mxu0
    %v3690 = vadd.f32 %v3521, %v3689
    %3691 = vmatmul.bf16.gmra.mxu0 %v3109
    %v3692 = vpop.f32.mrf.mxu0
    %v3693 = vadd.f32 %v3524, %v3692
    %v3694 = vpop.f32.mrf.mxu0
    %v3695 = vadd.f32 %v3526, %v3694
    %3696 = vmatmul.bf16.gmra.mxu0 %v3113
    %v3697 = vpop.f32.mrf.mxu0
    %v3698 = vadd.f32 %v3529, %v3697
    %v3699 = vpop.f32.mrf.mxu0
    %v3700 = vadd.f32 %v3531, %v3699
    %3701 = vmatmul.bf16.gmra.mxu0 %v3117
    %v3702 = vpop.f32.mrf.mxu0
    %v3703 = vadd.f32 %v3534, %v3702
    %v3704 = vpop.f32.mrf.mxu0
    %v3705 = vadd.f32 %v3536, %v3704
    %3706 = vmatmul.bf16.gmra.mxu0 %v3121
    %v3707 = vpop.f32.mrf.mxu0
    %v3708 = vadd.f32 %v3539, %v3707
    %v3709 = vpop.f32.mrf.mxu0
    %v3710 = vadd.f32 %v3541, %v3709
    %3711 = vmatmul.bf16.gmra.mxu0 %v3125
    %v3712 = vpop.f32.mrf.mxu0
    %v3713 = vadd.f32 %v3544, %v3712
    %v3714 = vpop.f32.mrf.mxu0
    %v3715 = vadd.f32 %v3546, %v3714
    %3716 = vmatmul.bf16.gmra.mxu0 %v3129
    %v3717 = vpop.f32.mrf.mxu0
    %v3718 = vadd.f32 %v3549, %v3717
    %v3719 = vpop.f32.mrf.mxu0
    %v3720 = vadd.f32 %v3551, %v3719
    %3721 = vmatmul.bf16.gmra.mxu0 %v3133
    %v3722 = vpop.f32.mrf.mxu0
    %v3723 = vadd.f32 %v3554, %v3722
    %v3724 = vpop.f32.mrf.mxu0
    %v3725 = vadd.f32 %v3556, %v3724
    %3726 = vmatmul.bf16.gmra.mxu0 %v3137
    %v3727 = vpop.f32.mrf.mxu0
    %v3728 = vadd.f32 %v3559, %v3727
    %v3729 = vpop.f32.mrf.mxu0
    %v3730 = vadd.f32 %v3561, %v3729
    %3731 = vmatmul.bf16.gmra.mxu0 %v3141
    %v3732 = vpop.f32.mrf.mxu0
    %v3733 = vadd.f32 %v3564, %v3732
    %v3734 = vpop.f32.mrf.mxu0
    %v3735 = vadd.f32 %v3566, %v3734
    %3736 = vmatmul.bf16.gmra.mxu0 %v3145
    %v3737 = vpop.f32.mrf.mxu0
    %v3738 = vadd.f32 %v3569, %v3737
    %v3739 = vpop.f32.mrf.mxu0
    %v3740 = vadd.f32 %v3571, %v3739
    %3741 = vmatmul.bf16.gmra.mxu0 %v3149
    %v3742 = vpop.f32.mrf.mxu0
    %v3743 = vadd.f32 %v3574, %v3742
    %v3744 = vpop.f32.mrf.mxu0
    %v3745 = vadd.f32 %v3576, %v3744
    %3746 = vmatmul.bf16.gmra.mxu0 %v3153
    %v3747 = vpop.f32.mrf.mxu0
    %v3748 = vadd.f32 %v3579, %v3747
    %v3749 = vpop.f32.mrf.mxu0
    %v3750 = vadd.f32 %v3581, %v3749
    %3751 = vmatmul.bf16.gmra.mxu0 %v3157
    %v3752 = vpop.f32.mrf.mxu0
    %v3753 = vadd.f32 %v3584, %v3752
    %v3754 = vpop.f32.mrf.mxu0
    %v3755 = vadd.f32 %v3586, %v3754
    %3756 = vmatmul.bf16.gmra.mxu0 %v3161
    %v3757 = vpop.f32.mrf.mxu0
    %v3758 = vadd.f32 %v3589, %v3757
    %v3759 = vpop.f32.mrf.mxu0
    %v3760 = vadd.f32 %v3591, %v3759
    %3761 = vdwg.mxu0
    %3762 = vmatpush.bf16.msra.mxu0 %v3383
    %3763 = vmatpush.bf16.msra.mxu0 %v3382
    %3764 = vmatpush.bf16.msra.mxu0 %v3381
    %3765 = vmatpush.bf16.msra.mxu0 %v3380
    %3766 = vmatpush.bf16.msra.mxu0 %v3379
    %3767 = vmatpush.bf16.msra.mxu0 %v3378
    %3768 = vmatpush.bf16.msra.mxu0 %v3377
    %3769 = vmatpush.bf16.msra.mxu0 %v3376
    %3770 = vmatmul.bf16.gmra.mxu0 %v3038
    %v3771 = vpop.f32.mrf.mxu0
    %v3772 = vadd.f32 %v3603, %v3771
    %v3773 = vpop.f32.mrf.mxu0
    %v3774 = vadd.f32 %v3605, %v3773
    %3775 = vmatmul.bf16.gmra.mxu0 %v3042
    %v3776 = vpop.f32.mrf.mxu0
    %v3777 = vadd.f32 %v3608, %v3776
    %v3778 = vpop.f32.mrf.mxu0
    %v3779 = vadd.f32 %v3610, %v3778
    %3780 = vmatmul.bf16.gmra.mxu0 %v3046
    %v3781 = vpop.f32.mrf.mxu0
    %v3782 = vadd.f32 %v3613, %v3781
    %v3783 = vpop.f32.mrf.mxu0
    %v3784 = vadd.f32 %v3615, %v3783
    %3785 = vmatmul.bf16.gmra.mxu0 %v3050
    %v3786 = vpop.f32.mrf.mxu0
    %v3787 = vadd.f32 %v3618, %v3786
    %v3788 = vpop.f32.mrf.mxu0
    %v3789 = vadd.f32 %v3620, %v3788
    %3790 = vmatmul.bf16.gmra.mxu0 %v3054
    %v3791 = vpop.f32.mrf.mxu0
    %v3792 = vadd.f32 %v3623, %v3791
    %v3793 = vpop.f32.mrf.mxu0
    %v3794 = vadd.f32 %v3625, %v3793
    %3795 = vmatmul.bf16.gmra.mxu0 %v3058
    %v3796 = vpop.f32.mrf.mxu0
    %v3797 = vadd.f32 %v3628, %v3796
    %v3798 = vpop.f32.mrf.mxu0
    %v3799 = vadd.f32 %v3630, %v3798
    %3800 = vmatmul.bf16.gmra.mxu0 %v3062
    %v3801 = vpop.f32.mrf.mxu0
    %v3802 = vadd.f32 %v3633, %v3801
    %v3803 = vpop.f32.mrf.mxu0
    %v3804 = vadd.f32 %v3635, %v3803
    %3805 = vmatmul.bf16.gmra.mxu0 %v3066
    %v3806 = vpop.f32.mrf.mxu0
    %v3807 = vadd.f32 %v3638, %v3806
    %v3808 = vpop.f32.mrf.mxu0
    %v3809 = vadd.f32 %v3640, %v3808
    %3810 = vmatmul.bf16.gmra.mxu0 %v3070
    %v3811 = vpop.f32.mrf.mxu0
    %v3812 = vadd.f32 %v3643, %v3811
    %v3813 = vpop.f32.mrf.mxu0
    %v3814 = vadd.f32 %v3645, %v3813
    %3815 = vmatmul.bf16.gmra.mxu0 %v3074
    %v3816 = vpop.f32.mrf.mxu0
    %v3817 = vadd.f32 %v3648, %v3816
    %v3818 = vpop.f32.mrf.mxu0
    %v3819 = vadd.f32 %v3650, %v3818
    %3820 = vmatmul.bf16.gmra.mxu0 %v3078
    %v3821 = vpop.f32.mrf.mxu0
    %v3822 = vadd.f32 %v3653, %v3821
    %v3823 = vpop.f32.mrf.mxu0
    %v3824 = vadd.f32 %v3655, %v3823
    %3825 = vmatmul.bf16.gmra.mxu0 %v3082
    %v3826 = vpop.f32.mrf.mxu0
    %v3827 = vadd.f32 %v3658, %v3826
    %v3828 = vpop.f32.mrf.mxu0
    %v3829 = vadd.f32 %v3660, %v3828
    %3830 = vmatmul.bf16.gmra.mxu0 %v3086
    %v3831 = vpop.f32.mrf.mxu0
    %v3832 = vadd.f32 %v3663, %v3831
    %v3833 = vpop.f32.mrf.mxu0
    %v3834 = vadd.f32 %v3665, %v3833
    %3835 = vmatmul.bf16.gmra.mxu0 %v3090
    %v3836 = vpop.f32.mrf.mxu0
    %v3837 = vadd.f32 %v3668, %v3836
    %v3838 = vpop.f32.mrf.mxu0
    %v3839 = vadd.f32 %v3670, %v3838
    %3840 = vmatmul.bf16.gmra.mxu0 %v3094
    %v3841 = vpop.f32.mrf.mxu0
    %v3842 = vadd.f32 %v3673, %v3841
    %v3843 = vpop.f32.mrf.mxu0
    %v3844 = vadd.f32 %v3675, %v3843
    %3845 = vmatmul.bf16.gmra.mxu0 %v3098
    %v3846 = vpop.f32.mrf.mxu0
    %v3847 = vadd.f32 %v3678, %v3846
    %v3848 = vpop.f32.mrf.mxu0
    %v3849 = vadd.f32 %v3680, %v3848
    %3850 = vmatmul.bf16.gmra.mxu0 %v3102
    %v3851 = vpop.f32.mrf.mxu0
    %v3852 = vadd.f32 %v3683, %v3851
    %v3853 = vpop.f32.mrf.mxu0
    %v3854 = vadd.f32 %v3685, %v3853
    %3855 = vmatmul.bf16.gmra.mxu0 %v3106
    %v3856 = vpop.f32.mrf.mxu0
    %v3857 = vadd.f32 %v3688, %v3856
    %v3858 = vpop.f32.mrf.mxu0
    %v3859 = vadd.f32 %v3690, %v3858
    %3860 = vmatmul.bf16.gmra.mxu0 %v3110
    %v3861 = vpop.f32.mrf.mxu0
    %v3862 = vadd.f32 %v3693, %v3861
    %v3863 = vpop.f32.mrf.mxu0
    %v3864 = vadd.f32 %v3695, %v3863
    %3865 = vmatmul.bf16.gmra.mxu0 %v3114
    %v3866 = vpop.f32.mrf.mxu0
    %v3867 = vadd.f32 %v3698, %v3866
    %v3868 = vpop.f32.mrf.mxu0
    %v3869 = vadd.f32 %v3700, %v3868
    %3870 = vmatmul.bf16.gmra.mxu0 %v3118
    %v3871 = vpop.f32.mrf.mxu0
    %v3872 = vadd.f32 %v3703, %v3871
    %v3873 = vpop.f32.mrf.mxu0
    %v3874 = vadd.f32 %v3705, %v3873
    %3875 = vmatmul.bf16.gmra.mxu0 %v3122
    %v3876 = vpop.f32.mrf.mxu0
    %v3877 = vadd.f32 %v3708, %v3876
    %v3878 = vpop.f32.mrf.mxu0
    %v3879 = vadd.f32 %v3710, %v3878
    %3880 = vmatmul.bf16.gmra.mxu0 %v3126
    %v3881 = vpop.f32.mrf.mxu0
    %v3882 = vadd.f32 %v3713, %v3881
    %v3883 = vpop.f32.mrf.mxu0
    %v3884 = vadd.f32 %v3715, %v3883
    %3885 = vmatmul.bf16.gmra.mxu0 %v3130
    %v3886 = vpop.f32.mrf.mxu0
    %v3887 = vadd.f32 %v3718, %v3886
    %v3888 = vpop.f32.mrf.mxu0
    %v3889 = vadd.f32 %v3720, %v3888
    %3890 = vmatmul.bf16.gmra.mxu0 %v3134
    %v3891 = vpop.f32.mrf.mxu0
    %v3892 = vadd.f32 %v3723, %v3891
    %v3893 = vpop.f32.mrf.mxu0
    %v3894 = vadd.f32 %v3725, %v3893
    %3895 = vmatmul.bf16.gmra.mxu0 %v3138
    %v3896 = vpop.f32.mrf.mxu0
    %v3897 = vadd.f32 %v3728, %v3896
    %v3898 = vpop.f32.mrf.mxu0
    %v3899 = vadd.f32 %v3730, %v3898
    %3900 = vmatmul.bf16.gmra.mxu0 %v3142
    %v3901 = vpop.f32.mrf.mxu0
    %v3902 = vadd.f32 %v3733, %v3901
    %v3903 = vpop.f32.mrf.mxu0
    %v3904 = vadd.f32 %v3735, %v3903
    %3905 = vmatmul.bf16.gmra.mxu0 %v3146
    %v3906 = vpop.f32.mrf.mxu0
    %v3907 = vadd.f32 %v3738, %v3906
    %v3908 = vpop.f32.mrf.mxu0
    %v3909 = vadd.f32 %v3740, %v3908
    %3910 = vmatmul.bf16.gmra.mxu0 %v3150
    %v3911 = vpop.f32.mrf.mxu0
    %v3912 = vadd.f32 %v3743, %v3911
    %v3913 = vpop.f32.mrf.mxu0
    %v3914 = vadd.f32 %v3745, %v3913
    %3915 = vmatmul.bf16.gmra.mxu0 %v3154
    %v3916 = vpop.f32.mrf.mxu0
    %v3917 = vadd.f32 %v3748, %v3916
    %v3918 = vpop.f32.mrf.mxu0
    %v3919 = vadd.f32 %v3750, %v3918
    %3920 = vmatmul.bf16.gmra.mxu0 %v3158
    %v3921 = vpop.f32.mrf.mxu0
    %v3922 = vadd.f32 %v3753, %v3921
    %v3923 = vpop.f32.mrf.mxu0
    %v3924 = vadd.f32 %v3755, %v3923
    %3925 = vmatmul.bf16.gmra.mxu0 %v3162
    %v3926 = vpop.f32.mrf.mxu0
    %v3927 = vadd.f32 %v3758, %v3926
    %v3928 = vpop.f32.mrf.mxu0
    %v3929 = vadd.f32 %v3760, %v3928
    %3930 = vdwg.mxu0
    %3931 = vmatpush.bf16.msra.mxu0 %v3391
    %3932 = vmatpush.bf16.msra.mxu0 %v3390
    %3933 = vmatpush.bf16.msra.mxu0 %v3389
    %3934 = vmatpush.bf16.msra.mxu0 %v3388
    %3935 = vmatpush.bf16.msra.mxu0 %v3387
    %3936 = vmatpush.bf16.msra.mxu0 %v3386
    %3937 = vmatpush.bf16.msra.mxu0 %v3385
    %3938 = vmatpush.bf16.msra.mxu0 %v3384
    %3939 = vmatmul.bf16.gmra.mxu0 %v3039
    %v3940 = vpop.f32.mrf.mxu0
    %v3941 = vadd.f32 %v3772, %v3940
    %v3942 = vpop.f32.mrf.mxu0
    %v3943 = vadd.f32 %v3774, %v3942
    %3944 = vmatmul.bf16.gmra.mxu0 %v3043
    %v3945 = vpop.f32.mrf.mxu0
    %v3946 = vadd.f32 %v3777, %v3945
    %v3947 = vpop.f32.mrf.mxu0
    %v3948 = vadd.f32 %v3779, %v3947
    %3949 = vmatmul.bf16.gmra.mxu0 %v3047
    %v3950 = vpop.f32.mrf.mxu0
    %v3951 = vadd.f32 %v3782, %v3950
    %v3952 = vpop.f32.mrf.mxu0
    %v3953 = vadd.f32 %v3784, %v3952
    %3954 = vmatmul.bf16.gmra.mxu0 %v3051
    %v3955 = vpop.f32.mrf.mxu0
    %v3956 = vadd.f32 %v3787, %v3955
    %v3957 = vpop.f32.mrf.mxu0
    %v3958 = vadd.f32 %v3789, %v3957
    %3959 = vmatmul.bf16.gmra.mxu0 %v3055
    %v3960 = vpop.f32.mrf.mxu0
    %v3961 = vadd.f32 %v3792, %v3960
    %v3962 = vpop.f32.mrf.mxu0
    %v3963 = vadd.f32 %v3794, %v3962
    %3964 = vmatmul.bf16.gmra.mxu0 %v3059
    %v3965 = vpop.f32.mrf.mxu0
    %v3966 = vadd.f32 %v3797, %v3965
    %v3967 = vpop.f32.mrf.mxu0
    %v3968 = vadd.f32 %v3799, %v3967
    %3969 = vmatmul.bf16.gmra.mxu0 %v3063
    %v3970 = vpop.f32.mrf.mxu0
    %v3971 = vadd.f32 %v3802, %v3970
    %v3972 = vpop.f32.mrf.mxu0
    %v3973 = vadd.f32 %v3804, %v3972
    %3974 = vmatmul.bf16.gmra.mxu0 %v3067
    %v3975 = vpop.f32.mrf.mxu0
    %v3976 = vadd.f32 %v3807, %v3975
    %v3977 = vpop.f32.mrf.mxu0
    %v3978 = vadd.f32 %v3809, %v3977
    %3979 = vmatmul.bf16.gmra.mxu0 %v3071
    %v3980 = vpop.f32.mrf.mxu0
    %v3981 = vadd.f32 %v3812, %v3980
    %v3982 = vpop.f32.mrf.mxu0
    %v3983 = vadd.f32 %v3814, %v3982
    %3984 = vmatmul.bf16.gmra.mxu0 %v3075
    %v3985 = vpop.f32.mrf.mxu0
    %v3986 = vadd.f32 %v3817, %v3985
    %v3987 = vpop.f32.mrf.mxu0
    %v3988 = vadd.f32 %v3819, %v3987
    %3989 = vmatmul.bf16.gmra.mxu0 %v3079
    %v3990 = vpop.f32.mrf.mxu0
    %v3991 = vadd.f32 %v3822, %v3990
    %v3992 = vpop.f32.mrf.mxu0
    %v3993 = vadd.f32 %v3824, %v3992
    %3994 = vmatmul.bf16.gmra.mxu0 %v3083
    %v3995 = vpop.f32.mrf.mxu0
    %v3996 = vadd.f32 %v3827, %v3995
    %v3997 = vpop.f32.mrf.mxu0
    %v3998 = vadd.f32 %v3829, %v3997
    %3999 = vmatmul.bf16.gmra.mxu0 %v3087
    %v4000 = vpop.f32.mrf.mxu0
    %v4001 = vadd.f32 %v3832, %v4000
    %v4002 = vpop.f32.mrf.mxu0
    %v4003 = vadd.f32 %v3834, %v4002
    %4004 = vmatmul.bf16.gmra.mxu0 %v3091
    %v4005 = vpop.f32.mrf.mxu0
    %v4006 = vadd.f32 %v3837, %v4005
    %v4007 = vpop.f32.mrf.mxu0
    %v4008 = vadd.f32 %v3839, %v4007
    %4009 = vmatmul.bf16.gmra.mxu0 %v3095
    %v4010 = vpop.f32.mrf.mxu0
    %v4011 = vadd.f32 %v3842, %v4010
    %v4012 = vpop.f32.mrf.mxu0
    %v4013 = vadd.f32 %v3844, %v4012
    %4014 = vmatmul.bf16.gmra.mxu0 %v3099
    %v4015 = vpop.f32.mrf.mxu0
    %v4016 = vadd.f32 %v3847, %v4015
    %v4017 = vpop.f32.mrf.mxu0
    %v4018 = vadd.f32 %v3849, %v4017
    %4019 = vmatmul.bf16.gmra.mxu0 %v3103
    %v4020 = vpop.f32.mrf.mxu0
    %v4021 = vadd.f32 %v3852, %v4020
    %v4022 = vpop.f32.mrf.mxu0
    %v4023 = vadd.f32 %v3854, %v4022
    %4024 = vmatmul.bf16.gmra.mxu0 %v3107
    %v4025 = vpop.f32.mrf.mxu0
    %v4026 = vadd.f32 %v3857, %v4025
    %v4027 = vpop.f32.mrf.mxu0
    %v4028 = vadd.f32 %v3859, %v4027
    %4029 = vmatmul.bf16.gmra.mxu0 %v3111
    %v4030 = vpop.f32.mrf.mxu0
    %v4031 = vadd.f32 %v3862, %v4030
    %v4032 = vpop.f32.mrf.mxu0
    %v4033 = vadd.f32 %v3864, %v4032
    %4034 = vmatmul.bf16.gmra.mxu0 %v3115
    %v4035 = vpop.f32.mrf.mxu0
    %v4036 = vadd.f32 %v3867, %v4035
    %v4037 = vpop.f32.mrf.mxu0
    %v4038 = vadd.f32 %v3869, %v4037
    %4039 = vmatmul.bf16.gmra.mxu0 %v3119
    %v4040 = vpop.f32.mrf.mxu0
    %v4041 = vadd.f32 %v3872, %v4040
    %v4042 = vpop.f32.mrf.mxu0
    %v4043 = vadd.f32 %v3874, %v4042
    %4044 = vmatmul.bf16.gmra.mxu0 %v3123
    %v4045 = vpop.f32.mrf.mxu0
    %v4046 = vadd.f32 %v3877, %v4045
    %v4047 = vpop.f32.mrf.mxu0
    %v4048 = vadd.f32 %v3879, %v4047
    %4049 = vmatmul.bf16.gmra.mxu0 %v3127
    %v4050 = vpop.f32.mrf.mxu0
    %v4051 = vadd.f32 %v3882, %v4050
    %v4052 = vpop.f32.mrf.mxu0
    %v4053 = vadd.f32 %v3884, %v4052
    %4054 = vmatmul.bf16.gmra.mxu0 %v3131
    %v4055 = vpop.f32.mrf.mxu0
    %v4056 = vadd.f32 %v3887, %v4055
    %v4057 = vpop.f32.mrf.mxu0
    %v4058 = vadd.f32 %v3889, %v4057
    %4059 = vmatmul.bf16.gmra.mxu0 %v3135
    %v4060 = vpop.f32.mrf.mxu0
    %v4061 = vadd.f32 %v3892, %v4060
    %v4062 = vpop.f32.mrf.mxu0
    %v4063 = vadd.f32 %v3894, %v4062
    %4064 = vmatmul.bf16.gmra.mxu0 %v3139
    %v4065 = vpop.f32.mrf.mxu0
    %v4066 = vadd.f32 %v3897, %v4065
    %v4067 = vpop.f32.mrf.mxu0
    %v4068 = vadd.f32 %v3899, %v4067
    %4069 = vmatmul.bf16.gmra.mxu0 %v3143
    %v4070 = vpop.f32.mrf.mxu0
    %v4071 = vadd.f32 %v3902, %v4070
    %v4072 = vpop.f32.mrf.mxu0
    %v4073 = vadd.f32 %v3904, %v4072
    %4074 = vmatmul.bf16.gmra.mxu0 %v3147
    %v4075 = vpop.f32.mrf.mxu0
    %v4076 = vadd.f32 %v3907, %v4075
    %v4077 = vpop.f32.mrf.mxu0
    %v4078 = vadd.f32 %v3909, %v4077
    %4079 = vmatmul.bf16.gmra.mxu0 %v3151
    %v4080 = vpop.f32.mrf.mxu0
    %v4081 = vadd.f32 %v3912, %v4080
    %v4082 = vpop.f32.mrf.mxu0
    %v4083 = vadd.f32 %v3914, %v4082
    %4084 = vmatmul.bf16.gmra.mxu0 %v3155
    %v4085 = vpop.f32.mrf.mxu0
    %v4086 = vadd.f32 %v3917, %v4085
    %v4087 = vpop.f32.mrf.mxu0
    %v4088 = vadd.f32 %v3919, %v4087
    %4089 = vmatmul.bf16.gmra.mxu0 %v3159
    %v4090 = vpop.f32.mrf.mxu0
    %v4091 = vadd.f32 %v3922, %v4090
    %v4092 = vpop.f32.mrf.mxu0
    %v4093 = vadd.f32 %v3924, %v4092
    %4094 = vmatmul.bf16.gmra.mxu0 %v3163
    %v4095 = vpop.f32.mrf.mxu0
    %v4096 = vadd.f32 %v3927, %v4095
    %v4097 = vpop.f32.mrf.mxu0
    %v4098 = vadd.f32 %v3929, %v4097
    %4099 = vdwg.mxu0
    %vm4100 = vcmp.gt.f32.partialorder %v3941, 0.0
    %vm4101 = vcmp.gt.f32.partialorder %v3943, 0.0
    %vm4102 = vcmp.gt.f32.partialorder %v3946, 0.0
    %vm4103 = vcmp.gt.f32.partialorder %v3948, 0.0
    %vm4104 = vcmp.gt.f32.partialorder %v3951, 0.0
    %vm4105 = vcmp.gt.f32.partialorder %v3953, 0.0
    %vm4106 = vcmp.gt.f32.partialorder %v3956, 0.0
    %vm4107 = vcmp.gt.f32.partialorder %v3958, 0.0
    %vm4108 = vcmp.gt.f32.partialorder %v3961, 0.0
    %vm4109 = vcmp.gt.f32.partialorder %v3963, 0.0
    %vm4110 = vcmp.gt.f32.partialorder %v3966, 0.0
    %vm4111 = vcmp.gt.f32.partialorder %v3968, 0.0
    %vm4112 = vcmp.gt.f32.partialorder %v3971, 0.0
    %vm4113 = vcmp.gt.f32.partialorder %v3973, 0.0
    %vm4114 = vcmp.gt.f32.partialorder %v3976, 0.0
    %vm4115 = vcmp.gt.f32.partialorder %v3978, 0.0
    %vm4116 = vcmp.gt.f32.partialorder %v3981, 0.0
    %vm4117 = vcmp.gt.f32.partialorder %v3983, 0.0
    %vm4118 = vcmp.gt.f32.partialorder %v3986, 0.0
    %vm4119 = vcmp.gt.f32.partialorder %v3988, 0.0
    %vm4120 = vcmp.gt.f32.partialorder %v3991, 0.0
    %vm4121 = vcmp.gt.f32.partialorder %v3993, 0.0
    %vm4122 = vcmp.gt.f32.partialorder %v3996, 0.0
    %vm4123 = vcmp.gt.f32.partialorder %v3998, 0.0
    %vm4124 = vcmp.gt.f32.partialorder %v4001, 0.0
    %vm4125 = vcmp.gt.f32.partialorder %v4003, 0.0
    %vm4126 = vcmp.gt.f32.partialorder %v4006, 0.0
    %vm4127 = vcmp.gt.f32.partialorder %v4008, 0.0
    %vm4128 = vcmp.gt.f32.partialorder %v4011, 0.0
    %vm4129 = vcmp.gt.f32.partialorder %v4013, 0.0
    %vm4130 = vcmp.gt.f32.partialorder %v4016, 0.0
    %vm4131 = vcmp.gt.f32.partialorder %v4018, 0.0
    %vm4132 = vcmp.gt.f32.partialorder %v4021, 0.0
    %vm4133 = vcmp.gt.f32.partialorder %v4023, 0.0
    %vm4134 = vcmp.gt.f32.partialorder %v4026, 0.0
    %vm4135 = vcmp.gt.f32.partialorder %v4028, 0.0
    %vm4136 = vcmp.gt.f32.partialorder %v4031, 0.0
    %vm4137 = vcmp.gt.f32.partialorder %v4033, 0.0
    %vm4138 = vcmp.gt.f32.partialorder %v4036, 0.0
    %vm4139 = vcmp.gt.f32.partialorder %v4038, 0.0
    %vm4140 = vcmp.gt.f32.partialorder %v4041, 0.0
    %vm4141 = vcmp.gt.f32.partialorder %v4043, 0.0
    %vm4142 = vcmp.gt.f32.partialorder %v4046, 0.0
    %vm4143 = vcmp.gt.f32.partialorder %v4048, 0.0
    %vm4144 = vcmp.gt.f32.partialorder %v4051, 0.0
    %vm4145 = vcmp.gt.f32.partialorder %v4053, 0.0
    %vm4146 = vcmp.gt.f32.partialorder %v4056, 0.0
    %vm4147 = vcmp.gt.f32.partialorder %v4058, 0.0
    %vm4148 = vcmp.gt.f32.partialorder %v4061, 0.0
    %vm4149 = vcmp.gt.f32.partialorder %v4063, 0.0
    %vm4150 = vcmp.gt.f32.partialorder %v4066, 0.0
    %vm4151 = vcmp.gt.f32.partialorder %v4068, 0.0
    %vm4152 = vcmp.gt.f32.partialorder %v4071, 0.0
    %vm4153 = vcmp.gt.f32.partialorder %v4073, 0.0
    %vm4154 = vcmp.gt.f32.partialorder %v4076, 0.0
    %vm4155 = vcmp.gt.f32.partialorder %v4078, 0.0
    %vm4156 = vcmp.gt.f32.partialorder %v4081, 0.0
    %vm4157 = vcmp.gt.f32.partialorder %v4083, 0.0
    %vm4158 = vcmp.gt.f32.partialorder %v4086, 0.0
    %vm4159 = vcmp.gt.f32.partialorder %v4088, 0.0
    %vm4160 = vcmp.gt.f32.partialorder %v4091, 0.0
    %vm4161 = vcmp.gt.f32.partialorder %v4093, 0.0
    %vm4162 = vcmp.gt.f32.partialorder %v4096, 0.0
    %vm4163 = vcmp.gt.f32.partialorder %v4098, 0.0
    %v4164 = vmin.f32 %v3941, 0.0
    %v4165 = vmin.f32 %v3943, 0.0
    %v4166 = vmin.f32 %v3946, 0.0
    %v4167 = vmin.f32 %v3948, 0.0
    %v4168 = vmin.f32 %v3951, 0.0
    %v4169 = vmin.f32 %v3953, 0.0
    %v4170 = vmin.f32 %v3956, 0.0
    %v4171 = vmin.f32 %v3958, 0.0
    %v4172 = vmin.f32 %v3961, 0.0
    %v4173 = vmin.f32 %v3963, 0.0
    %v4174 = vmin.f32 %v3966, 0.0
    %v4175 = vmin.f32 %v3968, 0.0
    %v4176 = vmin.f32 %v3971, 0.0
    %v4177 = vmin.f32 %v3973, 0.0
    %v4178 = vmin.f32 %v3976, 0.0
    %v4179 = vmin.f32 %v3978, 0.0
    %v4180 = vmin.f32 %v3981, 0.0
    %v4181 = vmin.f32 %v3983, 0.0
    %v4182 = vmin.f32 %v3986, 0.0
    %v4183 = vmin.f32 %v3988, 0.0
    %v4184 = vmin.f32 %v3991, 0.0
    %v4185 = vmin.f32 %v3993, 0.0
    %v4186 = vmin.f32 %v3996, 0.0
    %v4187 = vmin.f32 %v3998, 0.0
    %v4188 = vmin.f32 %v4001, 0.0
    %v4189 = vmin.f32 %v4003, 0.0
    %v4190 = vmin.f32 %v4006, 0.0
    %v4191 = vmin.f32 %v4008, 0.0
    %v4192 = vmin.f32 %v4011, 0.0
    %v4193 = vmin.f32 %v4013, 0.0
    %v4194 = vmin.f32 %v4016, 0.0
    %v4195 = vmin.f32 %v4018, 0.0
    %v4196 = vmin.f32 %v4021, 0.0
    %v4197 = vmin.f32 %v4023, 0.0
    %v4198 = vmin.f32 %v4026, 0.0
    %v4199 = vmin.f32 %v4028, 0.0
    %v4200 = vmin.f32 %v4031, 0.0
    %v4201 = vmin.f32 %v4033, 0.0
    %v4202 = vmin.f32 %v4036, 0.0
    %v4203 = vmin.f32 %v4038, 0.0
    %v4204 = vmin.f32 %v4041, 0.0
    %v4205 = vmin.f32 %v4043, 0.0
    %v4206 = vmin.f32 %v4046, 0.0
    %v4207 = vmin.f32 %v4048, 0.0
    %v4208 = vmin.f32 %v4051, 0.0
    %v4209 = vmin.f32 %v4053, 0.0
    %v4210 = vmin.f32 %v4056, 0.0
    %v4211 = vmin.f32 %v4058, 0.0
    %v4212 = vmin.f32 %v4061, 0.0
    %v4213 = vmin.f32 %v4063, 0.0
    %v4214 = vmin.f32 %v4066, 0.0
    %v4215 = vmin.f32 %v4068, 0.0
    %v4216 = vmin.f32 %v4071, 0.0
    %v4217 = vmin.f32 %v4073, 0.0
    %v4218 = vmin.f32 %v4076, 0.0
    %v4219 = vmin.f32 %v4078, 0.0
    %v4220 = vmin.f32 %v4081, 0.0
    %v4221 = vmin.f32 %v4083, 0.0
    %v4222 = vmin.f32 %v4086, 0.0
    %v4223 = vmin.f32 %v4088, 0.0
    %v4224 = vmin.f32 %v4091, 0.0
    %v4225 = vmin.f32 %v4093, 0.0
    %v4226 = vmin.f32 %v4096, 0.0
    %v4227 = vmin.f32 %v4098, 0.0
    %v4228 = vmul.f32 %v4164, 1.442695
    %v4229 = vpow.pop %v4228
    %v4230 = vmul.f32 %v4165, 1.442695
    %v4231 = vpow.pop %v4230
    %v4232 = vmul.f32 %v4166, 1.442695
    %v4233 = vpow.pop %v4232
    %v4234 = vmul.f32 %v4167, 1.442695
    %v4235 = vpow.pop %v4234
    %v4236 = vmul.f32 %v4168, 1.442695
    %v4237 = vpow.pop %v4236
    %v4238 = vmul.f32 %v4169, 1.442695
    %v4239 = vpow.pop %v4238
    %v4240 = vmul.f32 %v4170, 1.442695
    %v4241 = vpow.pop %v4240
    %v4242 = vmul.f32 %v4171, 1.442695
    %v4243 = vpow.pop %v4242
    %v4244 = vmul.f32 %v4172, 1.442695
    %v4245 = vpow.pop %v4244
    %v4246 = vmul.f32 %v4173, 1.442695
    %v4247 = vpow.pop %v4246
    %v4248 = vmul.f32 %v4174, 1.442695
    %v4249 = vpow.pop %v4248
    %v4250 = vmul.f32 %v4175, 1.442695
    %v4251 = vpow.pop %v4250
    %v4252 = vmul.f32 %v4176, 1.442695
    %v4253 = vpow.pop %v4252
    %v4254 = vmul.f32 %v4177, 1.442695
    %v4255 = vpow.pop %v4254
    %v4256 = vmul.f32 %v4178, 1.442695
    %v4257 = vpow.pop %v4256
    %v4258 = vmul.f32 %v4179, 1.442695
    %v4259 = vpow.pop %v4258
    %v4260 = vmul.f32 %v4180, 1.442695
    %v4261 = vpow.pop %v4260
    %v4262 = vmul.f32 %v4181, 1.442695
    %v4263 = vpow.pop %v4262
    %v4264 = vmul.f32 %v4182, 1.442695
    %v4265 = vpow.pop %v4264
    %v4266 = vmul.f32 %v4183, 1.442695
    %v4267 = vpow.pop %v4266
    %v4268 = vmul.f32 %v4184, 1.442695
    %v4269 = vpow.pop %v4268
    %v4270 = vmul.f32 %v4185, 1.442695
    %v4271 = vpow.pop %v4270
    %v4272 = vmul.f32 %v4186, 1.442695
    %v4273 = vpow.pop %v4272
    %v4274 = vmul.f32 %v4187, 1.442695
    %v4275 = vpow.pop %v4274
    %v4276 = vmul.f32 %v4188, 1.442695
    %v4277 = vpow.pop %v4276
    %v4278 = vmul.f32 %v4189, 1.442695
    %v4279 = vpow.pop %v4278
    %v4280 = vmul.f32 %v4190, 1.442695
    %v4281 = vpow.pop %v4280
    %v4282 = vmul.f32 %v4191, 1.442695
    %v4283 = vpow.pop %v4282
    %v4284 = vmul.f32 %v4192, 1.442695
    %v4285 = vpow.pop %v4284
    %v4286 = vmul.f32 %v4193, 1.442695
    %v4287 = vpow.pop %v4286
    %v4288 = vmul.f32 %v4194, 1.442695
    %v4289 = vpow.pop %v4288
    %v4290 = vmul.f32 %v4195, 1.442695
    %v4291 = vpow.pop %v4290
    %v4292 = vmul.f32 %v4196, 1.442695
    %v4293 = vpow.pop %v4292
    %v4294 = vmul.f32 %v4197, 1.442695
    %v4295 = vpow.pop %v4294
    %v4296 = vmul.f32 %v4198, 1.442695
    %v4297 = vpow.pop %v4296
    %v4298 = vmul.f32 %v4199, 1.442695
    %v4299 = vpow.pop %v4298
    %v4300 = vmul.f32 %v4200, 1.442695
    %v4301 = vpow.pop %v4300
    %v4302 = vmul.f32 %v4201, 1.442695
    %v4303 = vpow.pop %v4302
    %v4304 = vmul.f32 %v4202, 1.442695
    %v4305 = vpow.pop %v4304
    %v4306 = vmul.f32 %v4203, 1.442695
    %v4307 = vpow.pop %v4306
    %v4308 = vmul.f32 %v4204, 1.442695
    %v4309 = vpow.pop %v4308
    %v4310 = vmul.f32 %v4205, 1.442695
    %v4311 = vpow.pop %v4310
    %v4312 = vmul.f32 %v4206, 1.442695
    %v4313 = vpow.pop %v4312
    %v4314 = vmul.f32 %v4207, 1.442695
    %v4315 = vpow.pop %v4314
    %v4316 = vmul.f32 %v4208, 1.442695
    %v4317 = vpow.pop %v4316
    %v4318 = vmul.f32 %v4209, 1.442695
    %v4319 = vpow.pop %v4318
    %v4320 = vmul.f32 %v4210, 1.442695
    %v4321 = vpow.pop %v4320
    %v4322 = vmul.f32 %v4211, 1.442695
    %v4323 = vpow.pop %v4322
    %v4324 = vmul.f32 %v4212, 1.442695
    %v4325 = vpow.pop %v4324
    %v4326 = vmul.f32 %v4213, 1.442695
    %v4327 = vpow.pop %v4326
    %v4328 = vmul.f32 %v4214, 1.442695
    %v4329 = vpow.pop %v4328
    %v4330 = vmul.f32 %v4215, 1.442695
    %v4331 = vpow.pop %v4330
    %v4332 = vmul.f32 %v4216, 1.442695
    %v4333 = vpow.pop %v4332
    %v4334 = vmul.f32 %v4217, 1.442695
    %v4335 = vpow.pop %v4334
    %v4336 = vmul.f32 %v4218, 1.442695
    %v4337 = vpow.pop %v4336
    %v4338 = vmul.f32 %v4219, 1.442695
    %v4339 = vpow.pop %v4338
    %v4340 = vmul.f32 %v4220, 1.442695
    %v4341 = vpow.pop %v4340
    %v4342 = vmul.f32 %v4221, 1.442695
    %v4343 = vpow.pop %v4342
    %v4344 = vmul.f32 %v4222, 1.442695
    %v4345 = vpow.pop %v4344
    %v4346 = vmul.f32 %v4223, 1.442695
    %v4347 = vpow.pop %v4346
    %v4348 = vmul.f32 %v4224, 1.442695
    %v4349 = vpow.pop %v4348
    %v4350 = vmul.f32 %v4225, 1.442695
    %v4351 = vpow.pop %v4350
    %v4352 = vmul.f32 %v4226, 1.442695
    %v4353 = vpow.pop %v4352
    %v4354 = vmul.f32 %v4227, 1.442695
    %v4355 = vpow.pop %v4354
    %v4356 = vsub.f32 %v4229, 1.0
    %v4357 = vsub.f32 %v4231, 1.0
    %v4358 = vsub.f32 %v4233, 1.0
    %v4359 = vsub.f32 %v4235, 1.0
    %v4360 = vsub.f32 %v4237, 1.0
    %v4361 = vsub.f32 %v4239, 1.0
    %v4362 = vsub.f32 %v4241, 1.0
    %v4363 = vsub.f32 %v4243, 1.0
    %v4364 = vsub.f32 %v4245, 1.0
    %v4365 = vsub.f32 %v4247, 1.0
    %v4366 = vsub.f32 %v4249, 1.0
    %v4367 = vsub.f32 %v4251, 1.0
    %v4368 = vsub.f32 %v4253, 1.0
    %v4369 = vsub.f32 %v4255, 1.0
    %v4370 = vsub.f32 %v4257, 1.0
    %v4371 = vsub.f32 %v4259, 1.0
    %v4372 = vsub.f32 %v4261, 1.0
    %v4373 = vsub.f32 %v4263, 1.0
    %v4374 = vsub.f32 %v4265, 1.0
    %v4375 = vsub.f32 %v4267, 1.0
    %v4376 = vsub.f32 %v4269, 1.0
    %v4377 = vsub.f32 %v4271, 1.0
    %v4378 = vsub.f32 %v4273, 1.0
    %v4379 = vsub.f32 %v4275, 1.0
    %v4380 = vsub.f32 %v4277, 1.0
    %v4381 = vsub.f32 %v4279, 1.0
    %v4382 = vsub.f32 %v4281, 1.0
    %v4383 = vsub.f32 %v4283, 1.0
    %v4384 = vsub.f32 %v4285, 1.0
    %v4385 = vsub.f32 %v4287, 1.0
    %v4386 = vsub.f32 %v4289, 1.0
    %v4387 = vsub.f32 %v4291, 1.0
    %v4388 = vsub.f32 %v4293, 1.0
    %v4389 = vsub.f32 %v4295, 1.0
    %v4390 = vsub.f32 %v4297, 1.0
    %v4391 = vsub.f32 %v4299, 1.0
    %v4392 = vsub.f32 %v4301, 1.0
    %v4393 = vsub.f32 %v4303, 1.0
    %v4394 = vsub.f32 %v4305, 1.0
    %v4395 = vsub.f32 %v4307, 1.0
    %v4396 = vsub.f32 %v4309, 1.0
    %v4397 = vsub.f32 %v4311, 1.0
    %v4398 = vsub.f32 %v4313, 1.0
    %v4399 = vsub.f32 %v4315, 1.0
    %v4400 = vsub.f32 %v4317, 1.0
    %v4401 = vsub.f32 %v4319, 1.0
    %v4402 = vsub.f32 %v4321, 1.0
    %v4403 = vsub.f32 %v4323, 1.0
    %v4404 = vsub.f32 %v4325, 1.0
    %v4405 = vsub.f32 %v4327, 1.0
    %v4406 = vsub.f32 %v4329, 1.0
    %v4407 = vsub.f32 %v4331, 1.0
    %v4408 = vsub.f32 %v4333, 1.0
    %v4409 = vsub.f32 %v4335, 1.0
    %v4410 = vsub.f32 %v4337, 1.0
    %v4411 = vsub.f32 %v4339, 1.0
    %v4412 = vsub.f32 %v4341, 1.0
    %v4413 = vsub.f32 %v4343, 1.0
    %v4414 = vsub.f32 %v4345, 1.0
    %v4415 = vsub.f32 %v4347, 1.0
    %v4416 = vsub.f32 %v4349, 1.0
    %v4417 = vsub.f32 %v4351, 1.0
    %v4418 = vsub.f32 %v4353, 1.0
    %v4419 = vsub.f32 %v4355, 1.0
    %v4420 = vsel %vm4100, %v3941, %v4356
    %v4421 = vsel %vm4101, %v3943, %v4357
    %v4422 = vsel %vm4102, %v3946, %v4358
    %v4423 = vsel %vm4103, %v3948, %v4359
    %v4424 = vsel %vm4104, %v3951, %v4360
    %v4425 = vsel %vm4105, %v3953, %v4361
    %v4426 = vsel %vm4106, %v3956, %v4362
    %v4427 = vsel %vm4107, %v3958, %v4363
    %v4428 = vsel %vm4108, %v3961, %v4364
    %v4429 = vsel %vm4109, %v3963, %v4365
    %v4430 = vsel %vm4110, %v3966, %v4366
    %v4431 = vsel %vm4111, %v3968, %v4367
    %v4432 = vsel %vm4112, %v3971, %v4368
    %v4433 = vsel %vm4113, %v3973, %v4369
    %v4434 = vsel %vm4114, %v3976, %v4370
    %v4435 = vsel %vm4115, %v3978, %v4371
    %v4436 = vsel %vm4116, %v3981, %v4372
    %v4437 = vsel %vm4117, %v3983, %v4373
    %v4438 = vsel %vm4118, %v3986, %v4374
    %v4439 = vsel %vm4119, %v3988, %v4375
    %v4440 = vsel %vm4120, %v3991, %v4376
    %v4441 = vsel %vm4121, %v3993, %v4377
    %v4442 = vsel %vm4122, %v3996, %v4378
    %v4443 = vsel %vm4123, %v3998, %v4379
    %v4444 = vsel %vm4124, %v4001, %v4380
    %v4445 = vsel %vm4125, %v4003, %v4381
    %v4446 = vsel %vm4126, %v4006, %v4382
    %v4447 = vsel %vm4127, %v4008, %v4383
    %v4448 = vsel %vm4128, %v4011, %v4384
    %v4449 = vsel %vm4129, %v4013, %v4385
    %v4450 = vsel %vm4130, %v4016, %v4386
    %v4451 = vsel %vm4131, %v4018, %v4387
    %v4452 = vsel %vm4132, %v4021, %v4388
    %v4453 = vsel %vm4133, %v4023, %v4389
    %v4454 = vsel %vm4134, %v4026, %v4390
    %v4455 = vsel %vm4135, %v4028, %v4391
    %v4456 = vsel %vm4136, %v4031, %v4392
    %v4457 = vsel %vm4137, %v4033, %v4393
    %v4458 = vsel %vm4138, %v4036, %v4394
    %v4459 = vsel %vm4139, %v4038, %v4395
    %v4460 = vsel %vm4140, %v4041, %v4396
    %v4461 = vsel %vm4141, %v4043, %v4397
    %v4462 = vsel %vm4142, %v4046, %v4398
    %v4463 = vsel %vm4143, %v4048, %v4399
    %v4464 = vsel %vm4144, %v4051, %v4400
    %v4465 = vsel %vm4145, %v4053, %v4401
    %v4466 = vsel %vm4146, %v4056, %v4402
    %v4467 = vsel %vm4147, %v4058, %v4403
    %v4468 = vsel %vm4148, %v4061, %v4404
    %v4469 = vsel %vm4149, %v4063, %v4405
    %v4470 = vsel %vm4150, %v4066, %v4406
    %v4471 = vsel %vm4151, %v4068, %v4407
    %v4472 = vsel %vm4152, %v4071, %v4408
    %v4473 = vsel %vm4153, %v4073, %v4409
    %v4474 = vsel %vm4154, %v4076, %v4410
    %v4475 = vsel %vm4155, %v4078, %v4411
    %v4476 = vsel %vm4156, %v4081, %v4412
    %v4477 = vsel %vm4157, %v4083, %v4413
    %v4478 = vsel %vm4158, %v4086, %v4414
    %v4479 = vsel %vm4159, %v4088, %v4415
    %v4480 = vsel %vm4160, %v4091, %v4416
    %v4481 = vsel %vm4161, %v4093, %v4417
    %v4482 = vsel %vm4162, %v4096, %v4418
    %v4483 = vsel %vm4163, %v4098, %v4419
    %v4484 = vsel %vm2395, %v4482, 0.0
    %v4485 = vsel %vm2396, %v4483, 0.0
    %v4486 = vsel %vm2397, %v4420, 0.0
    %v4487 = vsel %vm2398, %v4421, 0.0
    %v4488 = vsel %vm2399, %v4422, 0.0
    %v4489 = vsel %vm2400, %v4423, 0.0
    %v4490 = vsel %vm2401, %v4424, 0.0
    %v4491 = vsel %vm2402, %v4425, 0.0
    %v4492 = vsel %vm2403, %v4426, 0.0
    %v4493 = vsel %vm2404, %v4427, 0.0
    %v4494 = vsel %vm2405, %v4428, 0.0
    %v4495 = vsel %vm2406, %v4429, 0.0
    %v4496 = vsel %vm2407, %v4430, 0.0
    %v4497 = vsel %vm2408, %v4431, 0.0
    %v4498 = vsel %vm2409, %v4432, 0.0
    %v4499 = vsel %vm2410, %v4433, 0.0
    %v4500 = vsel %vm2411, %v4434, 0.0
    %v4501 = vsel %vm2412, %v4435, 0.0
    %v4502 = vsel %vm2413, %v4436, 0.0
    %v4503 = vsel %vm2414, %v4437, 0.0
    %v4504 = vsel %vm2415, %v4438, 0.0
    %v4505 = vsel %vm2416, %v4439, 0.0
    %v4506 = vsel %vm2417, %v4440, 0.0
    %v4507 = vsel %vm2418, %v4441, 0.0
    %v4508 = vsel %vm2419, %v4442, 0.0
    %v4509 = vsel %vm2420, %v4443, 0.0
    %v4510 = vsel %vm2421, %v4444, 0.0
    %v4511 = vsel %vm2422, %v4445, 0.0
    %v4512 = vsel %vm2423, %v4446, 0.0
    %v4513 = vsel %vm2424, %v4447, 0.0
    %v4514 = vsel %vm2425, %v4448, 0.0
    %v4515 = vsel %vm2426, %v4449, 0.0
    %v4516 = vsel %vm2427, %v4450, 0.0
    %v4517 = vsel %vm2428, %v4451, 0.0
    %v4518 = vsel %vm2429, %v4452, 0.0
    %v4519 = vsel %vm2430, %v4453, 0.0
    %v4520 = vsel %vm2431, %v4454, 0.0
    %v4521 = vsel %vm2432, %v4455, 0.0
    %v4522 = vsel %vm2433, %v4456, 0.0
    %v4523 = vsel %vm2434, %v4457, 0.0
    %v4524 = vsel %vm2435, %v4458, 0.0
    %v4525 = vsel %vm2436, %v4459, 0.0
    %v4526 = vsel %vm2437, %v4460, 0.0
    %v4527 = vsel %vm2438, %v4461, 0.0
    %v4528 = vsel %vm2439, %v4462, 0.0
    %v4529 = vsel %vm2440, %v4463, 0.0
    %v4530 = vsel %vm2441, %v4464, 0.0
    %v4531 = vsel %vm2442, %v4465, 0.0
    %v4532 = vsel %vm2443, %v4466, 0.0
    %v4533 = vsel %vm2444, %v4467, 0.0
    %v4534 = vsel %vm2445, %v4468, 0.0
    %v4535 = vsel %vm2446, %v4469, 0.0
    %v4536 = vsel %vm2447, %v4470, 0.0
    %v4537 = vsel %vm2448, %v4471, 0.0
    %v4538 = vsel %vm2449, %v4472, 0.0
    %v4539 = vsel %vm2450, %v4473, 0.0
    %v4540 = vsel %vm2451, %v4474, 0.0
    %v4541 = vsel %vm2452, %v4475, 0.0
    %v4542 = vsel %vm2453, %v4476, 0.0
    %v4543 = vsel %vm2454, %v4477, 0.0
    %v4544 = vsel %vm2455, %v4478, 0.0
    %v4545 = vsel %vm2456, %v4479, 0.0
    %v4546 = vsel %vm2457, %v4480, 0.0
    %v4547 = vsel %vm2458, %v4481, 0.0
    %v4548 = vrot.slane %v4420, 7
    %v4549 = vrot.slane %v4421, 7
    %v4550 = vrot.slane %v4422, 7
    %v4551 = vrot.slane %v4423, 7
    %v4552 = vrot.slane %v4424, 7
    %v4553 = vrot.slane %v4425, 7
    %v4554 = vrot.slane %v4426, 7
    %v4555 = vrot.slane %v4427, 7
    %v4556 = vrot.slane %v4428, 7
    %v4557 = vrot.slane %v4429, 7
    %v4558 = vrot.slane %v4430, 7
    %v4559 = vrot.slane %v4431, 7
    %v4560 = vrot.slane %v4432, 7
    %v4561 = vrot.slane %v4433, 7
    %v4562 = vrot.slane %v4434, 7
    %v4563 = vrot.slane %v4435, 7
    %v4564 = vrot.slane %v4436, 7
    %v4565 = vrot.slane %v4437, 7
    %v4566 = vrot.slane %v4438, 7
    %v4567 = vrot.slane %v4439, 7
    %v4568 = vrot.slane %v4440, 7
    %v4569 = vrot.slane %v4441, 7
    %v4570 = vrot.slane %v4442, 7
    %v4571 = vrot.slane %v4443, 7
    %v4572 = vrot.slane %v4444, 7
    %v4573 = vrot.slane %v4445, 7
    %v4574 = vrot.slane %v4446, 7
    %v4575 = vrot.slane %v4447, 7
    %v4576 = vrot.slane %v4448, 7
    %v4577 = vrot.slane %v4449, 7
    %v4578 = vrot.slane %v4450, 7
    %v4579 = vrot.slane %v4451, 7
    %v4580 = vrot.slane %v4452, 7
    %v4581 = vrot.slane %v4453, 7
    %v4582 = vrot.slane %v4454, 7
    %v4583 = vrot.slane %v4455, 7
    %v4584 = vrot.slane %v4456, 7
    %v4585 = vrot.slane %v4457, 7
    %v4586 = vrot.slane %v4458, 7
    %v4587 = vrot.slane %v4459, 7
    %v4588 = vrot.slane %v4460, 7
    %v4589 = vrot.slane %v4461, 7
    %v4590 = vrot.slane %v4462, 7
    %v4591 = vrot.slane %v4463, 7
    %v4592 = vrot.slane %v4464, 7
    %v4593 = vrot.slane %v4465, 7
    %v4594 = vrot.slane %v4466, 7
    %v4595 = vrot.slane %v4467, 7
    %v4596 = vrot.slane %v4468, 7
    %v4597 = vrot.slane %v4469, 7
    %v4598 = vrot.slane %v4470, 7
    %v4599 = vrot.slane %v4471, 7
    %v4600 = vrot.slane %v4472, 7
    %v4601 = vrot.slane %v4473, 7
    %v4602 = vrot.slane %v4474, 7
    %v4603 = vrot.slane %v4475, 7
    %v4604 = vrot.slane %v4476, 7
    %v4605 = vrot.slane %v4477, 7
    %v4606 = vrot.slane %v4478, 7
    %v4607 = vrot.slane %v4479, 7
    %v4608 = vrot.slane %v4480, 7
    %v4609 = vrot.slane %v4481, 7
    %v4610 = vrot.slane %v4482, 7
    %v4611 = vrot.slane %v4483, 7
    %v4612 = vsel %vm2587, %v4610, %v4611
    %v4613 = vsel %vm2587, %v4609, %v4610
    %v4614 = vsel %vm2587, %v4608, %v4609
    %v4615 = vsel %vm2587, %v4607, %v4608
    %v4616 = vsel %vm2587, %v4606, %v4607
    %v4617 = vsel %vm2587, %v4605, %v4606
    %v4618 = vsel %vm2587, %v4604, %v4605
    %v4619 = vsel %vm2587, %v4603, %v4604
    %v4620 = vsel %vm2587, %v4602, %v4603
    %v4621 = vsel %vm2587, %v4601, %v4602
    %v4622 = vsel %vm2587, %v4600, %v4601
    %v4623 = vsel %vm2587, %v4599, %v4600
    %v4624 = vsel %vm2587, %v4598, %v4599
    %v4625 = vsel %vm2587, %v4597, %v4598
    %v4626 = vsel %vm2587, %v4596, %v4597
    %v4627 = vsel %vm2587, %v4595, %v4596
    %v4628 = vsel %vm2587, %v4594, %v4595
    %v4629 = vsel %vm2587, %v4593, %v4594
    %v4630 = vsel %vm2587, %v4592, %v4593
    %v4631 = vsel %vm2587, %v4591, %v4592
    %v4632 = vsel %vm2587, %v4590, %v4591
    %v4633 = vsel %vm2587, %v4589, %v4590
    %v4634 = vsel %vm2587, %v4588, %v4589
    %v4635 = vsel %vm2587, %v4587, %v4588
    %v4636 = vsel %vm2587, %v4586, %v4587
    %v4637 = vsel %vm2587, %v4585, %v4586
    %v4638 = vsel %vm2587, %v4584, %v4585
    %v4639 = vsel %vm2587, %v4583, %v4584
    %v4640 = vsel %vm2587, %v4582, %v4583
    %v4641 = vsel %vm2587, %v4581, %v4582
    %v4642 = vsel %vm2587, %v4580, %v4581
    %v4643 = vsel %vm2587, %v4579, %v4580
    %v4644 = vsel %vm2587, %v4578, %v4579
    %v4645 = vsel %vm2587, %v4577, %v4578
    %v4646 = vsel %vm2587, %v4576, %v4577
    %v4647 = vsel %vm2587, %v4575, %v4576
    %v4648 = vsel %vm2587, %v4574, %v4575
    %v4649 = vsel %vm2587, %v4573, %v4574
    %v4650 = vsel %vm2587, %v4572, %v4573
    %v4651 = vsel %vm2587, %v4571, %v4572
    %v4652 = vsel %vm2587, %v4570, %v4571
    %v4653 = vsel %vm2587, %v4569, %v4570
    %v4654 = vsel %vm2587, %v4568, %v4569
    %v4655 = vsel %vm2587, %v4567, %v4568
    %v4656 = vsel %vm2587, %v4566, %v4567
    %v4657 = vsel %vm2587, %v4565, %v4566
    %v4658 = vsel %vm2587, %v4564, %v4565
    %v4659 = vsel %vm2587, %v4563, %v4564
    %v4660 = vsel %vm2587, %v4562, %v4563
    %v4661 = vsel %vm2587, %v4561, %v4562
    %v4662 = vsel %vm2587, %v4560, %v4561
    %v4663 = vsel %vm2587, %v4559, %v4560
    %v4664 = vsel %vm2587, %v4558, %v4559
    %v4665 = vsel %vm2587, %v4557, %v4558
    %v4666 = vsel %vm2587, %v4556, %v4557
    %v4667 = vsel %vm2587, %v4555, %v4556
    %v4668 = vsel %vm2587, %v4554, %v4555
    %v4669 = vsel %vm2587, %v4553, %v4554
    %v4670 = vsel %vm2587, %v4552, %v4553
    %v4671 = vsel %vm2587, %v4551, %v4552
    %v4672 = vsel %vm2587, %v4550, %v4551
    %v4673 = vsel %vm2587, %v4549, %v4550
    %v4674 = vsel %vm2587, %v4548, %v4549
    %v4675 = vsel %vm2587, %v4611, %v4548
    %v4676 = vsel %vm2716, %v4675, 0.0
    %v4677 = vsel %vm2717, %v4674, 0.0
    %v4678 = vsel %vm2718, %v4673, 0.0
    %v4679 = vsel %vm2719, %v4672, 0.0
    %v4680 = vsel %vm2720, %v4671, 0.0
    %v4681 = vsel %vm2721, %v4670, 0.0
    %v4682 = vsel %vm2722, %v4669, 0.0
    %v4683 = vsel %vm2723, %v4668, 0.0
    %v4684 = vsel %vm2724, %v4667, 0.0
    %v4685 = vsel %vm2725, %v4666, 0.0
    %v4686 = vsel %vm2726, %v4665, 0.0
    %v4687 = vsel %vm2727, %v4664, 0.0
    %v4688 = vsel %vm2728, %v4663, 0.0
    %v4689 = vsel %vm2729, %v4662, 0.0
    %v4690 = vsel %vm2730, %v4661, 0.0
    %v4691 = vsel %vm2731, %v4660, 0.0
    %v4692 = vsel %vm2732, %v4659, 0.0
    %v4693 = vsel %vm2733, %v4658, 0.0
    %v4694 = vsel %vm2734, %v4657, 0.0
    %v4695 = vsel %vm2735, %v4656, 0.0
    %v4696 = vsel %vm2736, %v4655, 0.0
    %v4697 = vsel %vm2737, %v4654, 0.0
    %v4698 = vsel %vm2738, %v4653, 0.0
    %v4699 = vsel %vm2739, %v4652, 0.0
    %v4700 = vsel %vm2740, %v4651, 0.0
    %v4701 = vsel %vm2741, %v4650, 0.0
    %v4702 = vsel %vm2742, %v4649, 0.0
    %v4703 = vsel %vm2743, %v4648, 0.0
    %v4704 = vsel %vm2744, %v4647, 0.0
    %v4705 = vsel %vm2745, %v4646, 0.0
    %v4706 = vsel %vm2746, %v4645, 0.0
    %v4707 = vsel %vm2747, %v4644, 0.0
    %v4708 = vsel %vm2748, %v4643, 0.0
    %v4709 = vsel %vm2749, %v4642, 0.0
    %v4710 = vsel %vm2750, %v4641, 0.0
    %v4711 = vsel %vm2751, %v4640, 0.0
    %v4712 = vsel %vm2752, %v4639, 0.0
    %v4713 = vsel %vm2753, %v4638, 0.0
    %v4714 = vsel %vm2754, %v4637, 0.0
    %v4715 = vsel %vm2755, %v4636, 0.0
    %v4716 = vsel %vm2756, %v4635, 0.0
    %v4717 = vsel %vm2757, %v4634, 0.0
    %v4718 = vsel %vm2758, %v4633, 0.0
    %v4719 = vsel %vm2759, %v4632, 0.0
    %v4720 = vsel %vm2760, %v4631, 0.0
    %v4721 = vsel %vm2761, %v4630, 0.0
    %v4722 = vsel %vm2762, %v4629, 0.0
    %v4723 = vsel %vm2763, %v4628, 0.0
    %v4724 = vsel %vm2764, %v4627, 0.0
    %v4725 = vsel %vm2765, %v4626, 0.0
    %v4726 = vsel %vm2766, %v4625, 0.0
    %v4727 = vsel %vm2767, %v4624, 0.0
    %v4728 = vsel %vm2768, %v4623, 0.0
    %v4729 = vsel %vm2769, %v4622, 0.0
    %v4730 = vsel %vm2770, %v4621, 0.0
    %v4731 = vsel %vm2771, %v4620, 0.0
    %v4732 = vsel %vm2772, %v4619, 0.0
    %v4733 = vsel %vm2773, %v4618, 0.0
    %v4734 = vsel %vm2774, %v4617, 0.0
    %v4735 = vsel %vm2775, %v4616, 0.0
    %v4736 = vsel %vm2776, %v4615, 0.0
    %v4737 = vsel %vm2777, %v4614, 0.0
    %v4738 = vsel %vm2778, %v4613, 0.0
    %v4739 = vsel %vm2779, %v4612, 0.0
    %v4740 = vsel %vm2908, %v4613, 0.0
    %v4741 = vsel %vm2909, %v4612, 0.0
    %v4742 = vsel %vm2910, %v4675, 0.0
    %v4743 = vsel %vm2911, %v4674, 0.0
    %v4744 = vsel %vm2912, %v4673, 0.0
    %v4745 = vsel %vm2913, %v4672, 0.0
    %v4746 = vsel %vm2914, %v4671, 0.0
    %v4747 = vsel %vm2915, %v4670, 0.0
    %v4748 = vsel %vm2916, %v4669, 0.0
    %v4749 = vsel %vm2917, %v4668, 0.0
    %v4750 = vsel %vm2918, %v4667, 0.0
    %v4751 = vsel %vm2919, %v4666, 0.0
    %v4752 = vsel %vm2920, %v4665, 0.0
    %v4753 = vsel %vm2921, %v4664, 0.0
    %v4754 = vsel %vm2922, %v4663, 0.0
    %v4755 = vsel %vm2923, %v4662, 0.0
    %v4756 = vsel %vm2924, %v4661, 0.0
    %v4757 = vsel %vm2925, %v4660, 0.0
    %v4758 = vsel %vm2926, %v4659, 0.0
    %v4759 = vsel %vm2927, %v4658, 0.0
    %v4760 = vsel %vm2928, %v4657, 0.0
    %v4761 = vsel %vm2929, %v4656, 0.0
    %v4762 = vsel %vm2930, %v4655, 0.0
    %v4763 = vsel %vm2931, %v4654, 0.0
    %v4764 = vsel %vm2932, %v4653, 0.0
    %v4765 = vsel %vm2933, %v4652, 0.0
    %v4766 = vsel %vm2934, %v4651, 0.0
    %v4767 = vsel %vm2935, %v4650, 0.0
    %v4768 = vsel %vm2936, %v4649, 0.0
    %v4769 = vsel %vm2937, %v4648, 0.0
    %v4770 = vsel %vm2938, %v4647, 0.0
    %v4771 = vsel %vm2939, %v4646, 0.0
    %v4772 = vsel %vm2940, %v4645, 0.0
    %v4773 = vsel %vm2941, %v4644, 0.0
    %v4774 = vsel %vm2942, %v4643, 0.0
    %v4775 = vsel %vm2943, %v4642, 0.0
    %v4776 = vsel %vm2944, %v4641, 0.0
    %v4777 = vsel %vm2945, %v4640, 0.0
    %v4778 = vsel %vm2946, %v4639, 0.0
    %v4779 = vsel %vm2947, %v4638, 0.0
    %v4780 = vsel %vm2948, %v4637, 0.0
    %v4781 = vsel %vm2949, %v4636, 0.0
    %v4782 = vsel %vm2950, %v4635, 0.0
    %v4783 = vsel %vm2951, %v4634, 0.0
    %v4784 = vsel %vm2952, %v4633, 0.0
    %v4785 = vsel %vm2953, %v4632, 0.0
    %v4786 = vsel %vm2954, %v4631, 0.0
    %v4787 = vsel %vm2955, %v4630, 0.0
    %v4788 = vsel %vm2956, %v4629, 0.0
    %v4789 = vsel %vm2957, %v4628, 0.0
    %v4790 = vsel %vm2958, %v4627, 0.0
    %v4791 = vsel %vm2959, %v4626, 0.0
    %v4792 = vsel %vm2960, %v4625, 0.0
    %v4793 = vsel %vm2961, %v4624, 0.0
    %v4794 = vsel %vm2962, %v4623, 0.0
    %v4795 = vsel %vm2963, %v4622, 0.0
    %v4796 = vsel %vm2964, %v4621, 0.0
    %v4797 = vsel %vm2965, %v4620, 0.0
    %v4798 = vsel %vm2966, %v4619, 0.0
    %v4799 = vsel %vm2967, %v4618, 0.0
    %v4800 = vsel %vm2968, %v4617, 0.0
    %v4801 = vsel %vm2969, %v4616, 0.0
    %v4802 = vsel %vm2970, %v4615, 0.0
    %v4803 = vsel %vm2971, %v4614, 0.0
    %v4804 = vpack.c.bf16 %v4741, %v4740
    %v4805 = vpack.c.bf16 %v4485, %v4484
    %v4806 = vpack.c.bf16 %v4677, %v4676
    %v4807 = vpack.c.bf16 %v4421, %v4420
    %v4808 = vpack.c.bf16 %v4743, %v4742
    %v4809 = vpack.c.bf16 %v4487, %v4486
    %v4810 = vpack.c.bf16 %v4679, %v4678
    %v4811 = vpack.c.bf16 %v4423, %v4422
    %v4812 = vpack.c.bf16 %v4745, %v4744
    %v4813 = vpack.c.bf16 %v4489, %v4488
    %v4814 = vpack.c.bf16 %v4681, %v4680
    %v4815 = vpack.c.bf16 %v4425, %v4424
    %v4816 = vpack.c.bf16 %v4747, %v4746
    %v4817 = vpack.c.bf16 %v4491, %v4490
    %v4818 = vpack.c.bf16 %v4683, %v4682
    %v4819 = vpack.c.bf16 %v4427, %v4426
    %v4820 = vpack.c.bf16 %v4749, %v4748
    %v4821 = vpack.c.bf16 %v4493, %v4492
    %v4822 = vpack.c.bf16 %v4685, %v4684
    %v4823 = vpack.c.bf16 %v4429, %v4428
    %v4824 = vpack.c.bf16 %v4751, %v4750
    %v4825 = vpack.c.bf16 %v4495, %v4494
    %v4826 = vpack.c.bf16 %v4687, %v4686
    %v4827 = vpack.c.bf16 %v4431, %v4430
    %v4828 = vpack.c.bf16 %v4753, %v4752
    %v4829 = vpack.c.bf16 %v4497, %v4496
    %v4830 = vpack.c.bf16 %v4689, %v4688
    %v4831 = vpack.c.bf16 %v4433, %v4432
    %v4832 = vpack.c.bf16 %v4755, %v4754
    %v4833 = vpack.c.bf16 %v4499, %v4498
    %v4834 = vpack.c.bf16 %v4691, %v4690
    %v4835 = vpack.c.bf16 %v4435, %v4434
    %v4836 = vpack.c.bf16 %v4757, %v4756
    %v4837 = vpack.c.bf16 %v4501, %v4500
    %v4838 = vpack.c.bf16 %v4693, %v4692
    %v4839 = vpack.c.bf16 %v4437, %v4436
    %v4840 = vpack.c.bf16 %v4759, %v4758
    %v4841 = vpack.c.bf16 %v4503, %v4502
    %v4842 = vpack.c.bf16 %v4695, %v4694
    %v4843 = vpack.c.bf16 %v4439, %v4438
    %v4844 = vpack.c.bf16 %v4761, %v4760
    %v4845 = vpack.c.bf16 %v4505, %v4504
    %v4846 = vpack.c.bf16 %v4697, %v4696
    %v4847 = vpack.c.bf16 %v4441, %v4440
    %v4848 = vpack.c.bf16 %v4763, %v4762
    %v4849 = vpack.c.bf16 %v4507, %v4506
    %v4850 = vpack.c.bf16 %v4699, %v4698
    %v4851 = vpack.c.bf16 %v4443, %v4442
    %v4852 = vpack.c.bf16 %v4765, %v4764
    %v4853 = vpack.c.bf16 %v4509, %v4508
    %v4854 = vpack.c.bf16 %v4701, %v4700
    %v4855 = vpack.c.bf16 %v4445, %v4444
    %v4856 = vpack.c.bf16 %v4767, %v4766
    %v4857 = vpack.c.bf16 %v4511, %v4510
    %v4858 = vpack.c.bf16 %v4703, %v4702
    %v4859 = vpack.c.bf16 %v4447, %v4446
    %v4860 = vpack.c.bf16 %v4769, %v4768
    %v4861 = vpack.c.bf16 %v4513, %v4512
    %v4862 = vpack.c.bf16 %v4705, %v4704
    %v4863 = vpack.c.bf16 %v4449, %v4448
    %v4864 = vpack.c.bf16 %v4771, %v4770
    %v4865 = vpack.c.bf16 %v4515, %v4514
    %v4866 = vpack.c.bf16 %v4707, %v4706
    %v4867 = vpack.c.bf16 %v4451, %v4450
    %v4868 = vpack.c.bf16 %v4773, %v4772
    %v4869 = vpack.c.bf16 %v4517, %v4516
    %v4870 = vpack.c.bf16 %v4709, %v4708
    %v4871 = vpack.c.bf16 %v4453, %v4452
    %v4872 = vpack.c.bf16 %v4775, %v4774
    %v4873 = vpack.c.bf16 %v4519, %v4518
    %v4874 = vpack.c.bf16 %v4711, %v4710
    %v4875 = vpack.c.bf16 %v4455, %v4454
    %v4876 = vpack.c.bf16 %v4777, %v4776
    %v4877 = vpack.c.bf16 %v4521, %v4520
    %v4878 = vpack.c.bf16 %v4713, %v4712
    %v4879 = vpack.c.bf16 %v4457, %v4456
    %v4880 = vpack.c.bf16 %v4779, %v4778
    %v4881 = vpack.c.bf16 %v4523, %v4522
    %v4882 = vpack.c.bf16 %v4715, %v4714
    %v4883 = vpack.c.bf16 %v4459, %v4458
    %v4884 = vpack.c.bf16 %v4781, %v4780
    %v4885 = vpack.c.bf16 %v4525, %v4524
    %v4886 = vpack.c.bf16 %v4717, %v4716
    %v4887 = vpack.c.bf16 %v4461, %v4460
    %v4888 = vpack.c.bf16 %v4783, %v4782
    %v4889 = vpack.c.bf16 %v4527, %v4526
    %v4890 = vpack.c.bf16 %v4719, %v4718
    %v4891 = vpack.c.bf16 %v4463, %v4462
    %v4892 = vpack.c.bf16 %v4785, %v4784
    %v4893 = vpack.c.bf16 %v4529, %v4528
    %v4894 = vpack.c.bf16 %v4721, %v4720
    %v4895 = vpack.c.bf16 %v4465, %v4464
    %v4896 = vpack.c.bf16 %v4787, %v4786
    %v4897 = vpack.c.bf16 %v4531, %v4530
    %v4898 = vpack.c.bf16 %v4723, %v4722
    %v4899 = vpack.c.bf16 %v4467, %v4466
    %v4900 = vpack.c.bf16 %v4789, %v4788
    %v4901 = vpack.c.bf16 %v4533, %v4532
    %v4902 = vpack.c.bf16 %v4725, %v4724
    %v4903 = vpack.c.bf16 %v4469, %v4468
    %v4904 = vpack.c.bf16 %v4791, %v4790
    %v4905 = vpack.c.bf16 %v4535, %v4534
    %v4906 = vpack.c.bf16 %v4727, %v4726
    %v4907 = vpack.c.bf16 %v4471, %v4470
    %v4908 = vpack.c.bf16 %v4793, %v4792
    %v4909 = vpack.c.bf16 %v4537, %v4536
    %v4910 = vpack.c.bf16 %v4729, %v4728
    %v4911 = vpack.c.bf16 %v4473, %v4472
    %v4912 = vpack.c.bf16 %v4795, %v4794
    %v4913 = vpack.c.bf16 %v4539, %v4538
    %v4914 = vpack.c.bf16 %v4731, %v4730
    %v4915 = vpack.c.bf16 %v4475, %v4474
    %v4916 = vpack.c.bf16 %v4797, %v4796
    %v4917 = vpack.c.bf16 %v4541, %v4540
    %v4918 = vpack.c.bf16 %v4733, %v4732
    %v4919 = vpack.c.bf16 %v4477, %v4476
    %v4920 = vpack.c.bf16 %v4799, %v4798
    %v4921 = vpack.c.bf16 %v4543, %v4542
    %v4922 = vpack.c.bf16 %v4735, %v4734
    %v4923 = vpack.c.bf16 %v4479, %v4478
    %v4924 = vpack.c.bf16 %v4801, %v4800
    %v4925 = vpack.c.bf16 %v4545, %v4544
    %v4926 = vpack.c.bf16 %v4737, %v4736
    %v4927 = vpack.c.bf16 %v4481, %v4480
    %v4928 = vpack.c.bf16 %v4803, %v4802
    %v4929 = vpack.c.bf16 %v4547, %v4546
    %v4930 = vpack.c.bf16 %v4739, %v4738
    %v4931 = vpack.c.bf16 %v4483, %v4482
    %v4932 = vld [vmem:[#allocation7] sm:$0xf]
    %v4933 = vld [vmem:[#allocation7 + $0x4] sm:$0xf]
    %v4934 = vld [vmem:[#allocation7 + $0x8] sm:$0xf]
    %v4935 = vld [vmem:[#allocation7 + $0xc] sm:$0xf]
    %v4936 = vld [vmem:[#allocation7 + $0x10] sm:$0xf]
    %v4937 = vld [vmem:[#allocation7 + $0x14] sm:$0xf]
    %v4938 = vld [vmem:[#allocation7 + $0x18] sm:$0xf]
    %v4939 = vld [vmem:[#allocation7 + $0x1c] sm:$0xf]
    %v4940 = vld [vmem:[#allocation7 + $0x20] sm:$0xf]
    %v4941 = vld [vmem:[#allocation7 + $0x24] sm:$0xf]
    %v4942 = vld [vmem:[#allocation7 + $0x28] sm:$0xf]
    %v4943 = vld [vmem:[#allocation7 + $0x2c] sm:$0xf]
    %v4944 = vld [vmem:[#allocation7 + $0x30] sm:$0xf]
    %v4945 = vld [vmem:[#allocation7 + $0x34] sm:$0xf]
    %v4946 = vld [vmem:[#allocation7 + $0x38] sm:$0xf]
    %v4947 = vld [vmem:[#allocation7 + $0x3c] sm:$0xf]
    %v4948 = vld [vmem:[#allocation7 + $0x40] sm:$0xf]
    %v4949 = vld [vmem:[#allocation7 + $0x44] sm:$0xf]
    %v4950 = vld [vmem:[#allocation7 + $0x48] sm:$0xf]
    %v4951 = vld [vmem:[#allocation7 + $0x4c] sm:$0xf]
    %v4952 = vld [vmem:[#allocation7 + $0x50] sm:$0xf]
    %v4953 = vld [vmem:[#allocation7 + $0x54] sm:$0xf]
    %v4954 = vld [vmem:[#allocation7 + $0x58] sm:$0xf]
    %v4955 = vld [vmem:[#allocation7 + $0x5c] sm:$0xf]
    %v4956 = vld [vmem:[#allocation7 + $0x60] sm:$0xf]
    %v4957 = vld [vmem:[#allocation7 + $0x64] sm:$0xf]
    %v4958 = vld [vmem:[#allocation7 + $0x68] sm:$0xf]
    %v4959 = vld [vmem:[#allocation7 + $0x6c] sm:$0xf]
    %v4960 = vld [vmem:[#allocation7 + $0x70] sm:$0xf]
    %v4961 = vld [vmem:[#allocation7 + $0x74] sm:$0xf]
    %v4962 = vld [vmem:[#allocation7 + $0x78] sm:$0xf]
    %v4963 = vld [vmem:[#allocation7 + $0x7c] sm:$0xf]
    %v4964 = vld [vmem:[#allocation7 + $0x80] sm:$0xf]
    %v4965 = vld [vmem:[#allocation7 + $0x84] sm:$0xf]
    %v4966 = vld [vmem:[#allocation7 + $0x88] sm:$0xf]
    %v4967 = vld [vmem:[#allocation7 + $0x8c] sm:$0xf]
    %v4968 = vld [vmem:[#allocation7 + $0x90] sm:$0xf]
    %v4969 = vld [vmem:[#allocation7 + $0x94] sm:$0xf]
    %v4970 = vld [vmem:[#allocation7 + $0x98] sm:$0xf]
    %v4971 = vld [vmem:[#allocation7 + $0x9c] sm:$0xf]
    %v4972 = vld [vmem:[#allocation7 + $0xa0] sm:$0xf]
    %v4973 = vld [vmem:[#allocation7 + $0xa4] sm:$0xf]
    %v4974 = vld [vmem:[#allocation7 + $0xa8] sm:$0xf]
    %v4975 = vld [vmem:[#allocation7 + $0xac] sm:$0xf]
    %v4976 = vld [vmem:[#allocation7 + $0xb0] sm:$0xf]
    %v4977 = vld [vmem:[#allocation7 + $0xb4] sm:$0xf]
    %v4978 = vld [vmem:[#allocation7 + $0xb8] sm:$0xf]
    %v4979 = vld [vmem:[#allocation7 + $0xbc] sm:$0xf]
    %v4980 = vld [vmem:[#allocation7 + $0xc0] sm:$0xf]
    %v4981 = vld [vmem:[#allocation7 + $0xc4] sm:$0xf]
    %v4982 = vld [vmem:[#allocation7 + $0xc8] sm:$0xf]
    %v4983 = vld [vmem:[#allocation7 + $0xcc] sm:$0xf]
    %v4984 = vld [vmem:[#allocation7 + $0xd0] sm:$0xf]
    %v4985 = vld [vmem:[#allocation7 + $0xd4] sm:$0xf]
    %v4986 = vld [vmem:[#allocation7 + $0xd8] sm:$0xf]
    %v4987 = vld [vmem:[#allocation7 + $0xdc] sm:$0xf]
    %v4988 = vld [vmem:[#allocation7 + $0xe0] sm:$0xf]
    %v4989 = vld [vmem:[#allocation7 + $0xe4] sm:$0xf]
    %v4990 = vld [vmem:[#allocation7 + $0xe8] sm:$0xf]
    %v4991 = vld [vmem:[#allocation7 + $0xec] sm:$0xf]
    %v4992 = vld [vmem:[#allocation7 + $0xf0] sm:$0xf]
    %v4993 = vld [vmem:[#allocation7 + $0xf4] sm:$0xf]
    %v4994 = vld [vmem:[#allocation7 + $0xf8] sm:$0xf]
    %v4995 = vld [vmem:[#allocation7 + $0xfc] sm:$0xf]
    %v4996 = vld [vmem:[%s4] sm:$0x1]
    %v4998 = vperm.slane %v4996, 0
    %v5064 = vunpack.c.l.b16 %v4932
    %v5065 = vunpack.c.l.b16 %v4933
    %v5066 = vunpack.c.l.b16 %v4934
    %v5067 = vunpack.c.l.b16 %v4935
    %v5068 = vunpack.c.l.b16 %v4936
    %v5069 = vunpack.c.l.b16 %v4937
    %v5070 = vunpack.c.l.b16 %v4938
    %v5071 = vunpack.c.l.b16 %v4939
    %v5072 = vunpack.c.l.b16 %v4940
    %v5073 = vunpack.c.l.b16 %v4941
    %v5074 = vunpack.c.l.b16 %v4942
    %v5075 = vunpack.c.l.b16 %v4943
    %v5076 = vunpack.c.l.b16 %v4944
    %v5077 = vunpack.c.l.b16 %v4945
    %v5078 = vunpack.c.l.b16 %v4946
    %v5079 = vunpack.c.l.b16 %v4947
    %v5080 = vunpack.c.l.b16 %v4948
    %v5081 = vunpack.c.l.b16 %v4949
    %v5082 = vunpack.c.l.b16 %v4950
    %v5083 = vunpack.c.l.b16 %v4951
    %v5084 = vunpack.c.l.b16 %v4952
    %v5085 = vunpack.c.l.b16 %v4953
    %v5086 = vunpack.c.l.b16 %v4954
    %v5087 = vunpack.c.l.b16 %v4955
    %v5088 = vunpack.c.l.b16 %v4956
    %v5089 = vunpack.c.l.b16 %v4957
    %v5090 = vunpack.c.l.b16 %v4958
    %v5091 = vunpack.c.l.b16 %v4959
    %v5092 = vunpack.c.l.b16 %v4960
    %v5093 = vunpack.c.l.b16 %v4961
    %v5094 = vunpack.c.l.b16 %v4962
    %v5095 = vunpack.c.l.b16 %v4963
    %v5096 = vunpack.c.l.b16 %v4964
    %v5097 = vunpack.c.l.b16 %v4965
    %v5098 = vunpack.c.l.b16 %v4966
    %v5099 = vunpack.c.l.b16 %v4967
    %v5100 = vunpack.c.l.b16 %v4968
    %v5101 = vunpack.c.l.b16 %v4969
    %v5102 = vunpack.c.l.b16 %v4970
    %v5103 = vunpack.c.l.b16 %v4971
    %v5104 = vunpack.c.l.b16 %v4972
    %v5105 = vunpack.c.l.b16 %v4973
    %v5106 = vunpack.c.l.b16 %v4974
    %v5107 = vunpack.c.l.b16 %v4975
    %v5108 = vunpack.c.l.b16 %v4976
    %v5109 = vunpack.c.l.b16 %v4977
    %v5110 = vunpack.c.l.b16 %v4978
    %v5111 = vunpack.c.l.b16 %v4979
    %v5112 = vunpack.c.l.b16 %v4980
    %v5113 = vunpack.c.l.b16 %v4981
    %v5114 = vunpack.c.l.b16 %v4982
    %v5115 = vunpack.c.l.b16 %v4983
    %v5116 = vunpack.c.l.b16 %v4984
    %v5117 = vunpack.c.l.b16 %v4985
    %v5118 = vunpack.c.l.b16 %v4986
    %v5119 = vunpack.c.l.b16 %v4987
    %v5120 = vunpack.c.l.b16 %v4988
    %v5121 = vunpack.c.l.b16 %v4989
    %v5122 = vunpack.c.l.b16 %v4990
    %v5123 = vunpack.c.l.b16 %v4991
    %v5124 = vunpack.c.l.b16 %v4992
    %v5125 = vunpack.c.l.b16 %v4993
    %v5126 = vunpack.c.l.b16 %v4994
    %v5127 = vunpack.c.l.b16 %v4995
    %v5128 = vpack.c.b16 %v5065, %v5064
    %v5129 = vpack.c.b16 %v5067, %v5066
    %v5130 = vpack.c.b16 %v5069, %v5068
    %v5131 = vpack.c.b16 %v5071, %v5070
    %v5132 = vpack.c.b16 %v5073, %v5072
    %v5133 = vpack.c.b16 %v5075, %v5074
    %v5134 = vpack.c.b16 %v5077, %v5076
    %v5135 = vpack.c.b16 %v5079, %v5078
    %v5136 = vpack.c.b16 %v5081, %v5080
    %v5137 = vpack.c.b16 %v5083, %v5082
    %v5138 = vpack.c.b16 %v5085, %v5084
    %v5139 = vpack.c.b16 %v5087, %v5086
    %v5140 = vpack.c.b16 %v5089, %v5088
    %v5141 = vpack.c.b16 %v5091, %v5090
    %v5142 = vpack.c.b16 %v5093, %v5092
    %v5143 = vpack.c.b16 %v5095, %v5094
    %v5144 = vpack.c.b16 %v5097, %v5096
    %v5145 = vpack.c.b16 %v5099, %v5098
    %v5146 = vpack.c.b16 %v5101, %v5100
    %v5147 = vpack.c.b16 %v5103, %v5102
    %v5148 = vpack.c.b16 %v5105, %v5104
    %v5149 = vpack.c.b16 %v5107, %v5106
    %v5150 = vpack.c.b16 %v5109, %v5108
    %v5151 = vpack.c.b16 %v5111, %v5110
    %v5152 = vpack.c.b16 %v5113, %v5112
    %v5153 = vpack.c.b16 %v5115, %v5114
    %v5154 = vpack.c.b16 %v5117, %v5116
    %v5155 = vpack.c.b16 %v5119, %v5118
    %v5156 = vpack.c.b16 %v5121, %v5120
    %v5157 = vpack.c.b16 %v5123, %v5122
    %v5158 = vpack.c.b16 %v5125, %v5124
    %v5159 = vpack.c.b16 %v5127, %v5126
    %5192 = vmatpush.bf16.msra.mxu0 %v5135
    %5193 = vmatpush.bf16.msra.mxu0 %v5134
    %5194 = vmatpush.bf16.msra.mxu0 %v5133
    %5195 = vmatpush.bf16.msra.mxu0 %v5132
    %5196 = vmatpush.bf16.msra.mxu0 %v5131
    %5197 = vmatpush.bf16.msra.mxu0 %v5130
    %5198 = vmatpush.bf16.msra.mxu0 %v5129
    %5199 = vmatpush.bf16.msra.mxu0 %v5128
    %5200 = vmatmul.bf16.gmra.mxu0 %v4804
    %v5201 = vpop.f32.mrf.mxu0
    %v5202 = vadd.f32 %v4998, %v5201
    %v5203 = vpop.f32.mrf.mxu0
    %v5204 = vadd.f32 %v4998, %v5203
    %5205 = vmatmul.bf16.gmra.mxu0 %v4808
    %v5206 = vpop.f32.mrf.mxu0
    %v5207 = vadd.f32 %v4998, %v5206
    %v5208 = vpop.f32.mrf.mxu0
    %v5209 = vadd.f32 %v4998, %v5208
    %5210 = vmatmul.bf16.gmra.mxu0 %v4812
    %v5211 = vpop.f32.mrf.mxu0
    %v5212 = vadd.f32 %v4998, %v5211
    %v5213 = vpop.f32.mrf.mxu0
    %v5214 = vadd.f32 %v4998, %v5213
    %5215 = vmatmul.bf16.gmra.mxu0 %v4816
    %v5216 = vpop.f32.mrf.mxu0
    %v5217 = vadd.f32 %v4998, %v5216
    %v5218 = vpop.f32.mrf.mxu0
    %v5219 = vadd.f32 %v4998, %v5218
    %5220 = vmatmul.bf16.gmra.mxu0 %v4820
    %v5221 = vpop.f32.mrf.mxu0
    %v5222 = vadd.f32 %v4998, %v5221
    %v5223 = vpop.f32.mrf.mxu0
    %v5224 = vadd.f32 %v4998, %v5223
    %5225 = vmatmul.bf16.gmra.mxu0 %v4824
    %v5226 = vpop.f32.mrf.mxu0
    %v5227 = vadd.f32 %v4998, %v5226
    %v5228 = vpop.f32.mrf.mxu0
    %v5229 = vadd.f32 %v4998, %v5228
    %5230 = vmatmul.bf16.gmra.mxu0 %v4828
    %v5231 = vpop.f32.mrf.mxu0
    %v5232 = vadd.f32 %v4998, %v5231
    %v5233 = vpop.f32.mrf.mxu0
    %v5234 = vadd.f32 %v4998, %v5233
    %5235 = vmatmul.bf16.gmra.mxu0 %v4832
    %v5236 = vpop.f32.mrf.mxu0
    %v5237 = vadd.f32 %v4998, %v5236
    %v5238 = vpop.f32.mrf.mxu0
    %v5239 = vadd.f32 %v4998, %v5238
    %5240 = vmatmul.bf16.gmra.mxu0 %v4836
    %v5241 = vpop.f32.mrf.mxu0
    %v5242 = vadd.f32 %v4998, %v5241
    %v5243 = vpop.f32.mrf.mxu0
    %v5244 = vadd.f32 %v4998, %v5243
    %5245 = vmatmul.bf16.gmra.mxu0 %v4840
    %v5246 = vpop.f32.mrf.mxu0
    %v5247 = vadd.f32 %v4998, %v5246
    %v5248 = vpop.f32.mrf.mxu0
    %v5249 = vadd.f32 %v4998, %v5248
    %5250 = vmatmul.bf16.gmra.mxu0 %v4844
    %v5251 = vpop.f32.mrf.mxu0
    %v5252 = vadd.f32 %v4998, %v5251
    %v5253 = vpop.f32.mrf.mxu0
    %v5254 = vadd.f32 %v4998, %v5253
    %5255 = vmatmul.bf16.gmra.mxu0 %v4848
    %v5256 = vpop.f32.mrf.mxu0
    %v5257 = vadd.f32 %v4998, %v5256
    %v5258 = vpop.f32.mrf.mxu0
    %v5259 = vadd.f32 %v4998, %v5258
    %5260 = vmatmul.bf16.gmra.mxu0 %v4852
    %v5261 = vpop.f32.mrf.mxu0
    %v5262 = vadd.f32 %v4998, %v5261
    %v5263 = vpop.f32.mrf.mxu0
    %v5264 = vadd.f32 %v4998, %v5263
    %5265 = vmatmul.bf16.gmra.mxu0 %v4856
    %v5266 = vpop.f32.mrf.mxu0
    %v5267 = vadd.f32 %v4998, %v5266
    %v5268 = vpop.f32.mrf.mxu0
    %v5269 = vadd.f32 %v4998, %v5268
    %5270 = vmatmul.bf16.gmra.mxu0 %v4860
    %v5271 = vpop.f32.mrf.mxu0
    %v5272 = vadd.f32 %v4998, %v5271
    %v5273 = vpop.f32.mrf.mxu0
    %v5274 = vadd.f32 %v4998, %v5273
    %5275 = vmatmul.bf16.gmra.mxu0 %v4864
    %v5276 = vpop.f32.mrf.mxu0
    %v5277 = vadd.f32 %v4998, %v5276
    %v5278 = vpop.f32.mrf.mxu0
    %v5279 = vadd.f32 %v4998, %v5278
    %5280 = vmatmul.bf16.gmra.mxu0 %v4868
    %v5281 = vpop.f32.mrf.mxu0
    %v5282 = vadd.f32 %v4998, %v5281
    %v5283 = vpop.f32.mrf.mxu0
    %v5284 = vadd.f32 %v4998, %v5283
    %5285 = vmatmul.bf16.gmra.mxu0 %v4872
    %v5286 = vpop.f32.mrf.mxu0
    %v5287 = vadd.f32 %v4998, %v5286
    %v5288 = vpop.f32.mrf.mxu0
    %v5289 = vadd.f32 %v4998, %v5288
    %5290 = vmatmul.bf16.gmra.mxu0 %v4876
    %v5291 = vpop.f32.mrf.mxu0
    %v5292 = vadd.f32 %v4998, %v5291
    %v5293 = vpop.f32.mrf.mxu0
    %v5294 = vadd.f32 %v4998, %v5293
    %5295 = vmatmul.bf16.gmra.mxu0 %v4880
    %v5296 = vpop.f32.mrf.mxu0
    %v5297 = vadd.f32 %v4998, %v5296
    %v5298 = vpop.f32.mrf.mxu0
    %v5299 = vadd.f32 %v4998, %v5298
    %5300 = vmatmul.bf16.gmra.mxu0 %v4884
    %v5301 = vpop.f32.mrf.mxu0
    %v5302 = vadd.f32 %v4998, %v5301
    %v5303 = vpop.f32.mrf.mxu0
    %v5304 = vadd.f32 %v4998, %v5303
    %5305 = vmatmul.bf16.gmra.mxu0 %v4888
    %v5306 = vpop.f32.mrf.mxu0
    %v5307 = vadd.f32 %v4998, %v5306
    %v5308 = vpop.f32.mrf.mxu0
    %v5309 = vadd.f32 %v4998, %v5308
    %5310 = vmatmul.bf16.gmra.mxu0 %v4892
    %v5311 = vpop.f32.mrf.mxu0
    %v5312 = vadd.f32 %v4998, %v5311
    %v5313 = vpop.f32.mrf.mxu0
    %v5314 = vadd.f32 %v4998, %v5313
    %5315 = vmatmul.bf16.gmra.mxu0 %v4896
    %v5316 = vpop.f32.mrf.mxu0
    %v5317 = vadd.f32 %v4998, %v5316
    %v5318 = vpop.f32.mrf.mxu0
    %v5319 = vadd.f32 %v4998, %v5318
    %5320 = vmatmul.bf16.gmra.mxu0 %v4900
    %v5321 = vpop.f32.mrf.mxu0
    %v5322 = vadd.f32 %v4998, %v5321
    %v5323 = vpop.f32.mrf.mxu0
    %v5324 = vadd.f32 %v4998, %v5323
    %5325 = vmatmul.bf16.gmra.mxu0 %v4904
    %v5326 = vpop.f32.mrf.mxu0
    %v5327 = vadd.f32 %v4998, %v5326
    %v5328 = vpop.f32.mrf.mxu0
    %v5329 = vadd.f32 %v4998, %v5328
    %5330 = vmatmul.bf16.gmra.mxu0 %v4908
    %v5331 = vpop.f32.mrf.mxu0
    %v5332 = vadd.f32 %v4998, %v5331
    %v5333 = vpop.f32.mrf.mxu0
    %v5334 = vadd.f32 %v4998, %v5333
    %5335 = vmatmul.bf16.gmra.mxu0 %v4912
    %v5336 = vpop.f32.mrf.mxu0
    %v5337 = vadd.f32 %v4998, %v5336
    %v5338 = vpop.f32.mrf.mxu0
    %v5339 = vadd.f32 %v4998, %v5338
    %5340 = vmatmul.bf16.gmra.mxu0 %v4916
    %v5341 = vpop.f32.mrf.mxu0
    %v5342 = vadd.f32 %v4998, %v5341
    %v5343 = vpop.f32.mrf.mxu0
    %v5344 = vadd.f32 %v4998, %v5343
    %5345 = vmatmul.bf16.gmra.mxu0 %v4920
    %v5346 = vpop.f32.mrf.mxu0
    %v5347 = vadd.f32 %v4998, %v5346
    %v5348 = vpop.f32.mrf.mxu0
    %v5349 = vadd.f32 %v4998, %v5348
    %5350 = vmatmul.bf16.gmra.mxu0 %v4924
    %v5351 = vpop.f32.mrf.mxu0
    %v5352 = vadd.f32 %v4998, %v5351
    %v5353 = vpop.f32.mrf.mxu0
    %v5354 = vadd.f32 %v4998, %v5353
    %5355 = vmatmul.bf16.gmra.mxu0 %v4928
    %v5356 = vpop.f32.mrf.mxu0
    %v5357 = vadd.f32 %v4998, %v5356
    %v5358 = vpop.f32.mrf.mxu0
    %v5359 = vadd.f32 %v4998, %v5358
    %5360 = vdwg.mxu0
    %5361 = vmatpush.bf16.msra.mxu0 %v5143
    %5362 = vmatpush.bf16.msra.mxu0 %v5142
    %5363 = vmatpush.bf16.msra.mxu0 %v5141
    %5364 = vmatpush.bf16.msra.mxu0 %v5140
    %5365 = vmatpush.bf16.msra.mxu0 %v5139
    %5366 = vmatpush.bf16.msra.mxu0 %v5138
    %5367 = vmatpush.bf16.msra.mxu0 %v5137
    %5368 = vmatpush.bf16.msra.mxu0 %v5136
    %5369 = vmatmul.bf16.gmra.mxu0 %v4805
    %v5370 = vpop.f32.mrf.mxu0
    %v5371 = vadd.f32 %v5202, %v5370
    %v5372 = vpop.f32.mrf.mxu0
    %v5373 = vadd.f32 %v5204, %v5372
    %5374 = vmatmul.bf16.gmra.mxu0 %v4809
    %v5375 = vpop.f32.mrf.mxu0
    %v5376 = vadd.f32 %v5207, %v5375
    %v5377 = vpop.f32.mrf.mxu0
    %v5378 = vadd.f32 %v5209, %v5377
    %5379 = vmatmul.bf16.gmra.mxu0 %v4813
    %v5380 = vpop.f32.mrf.mxu0
    %v5381 = vadd.f32 %v5212, %v5380
    %v5382 = vpop.f32.mrf.mxu0
    %v5383 = vadd.f32 %v5214, %v5382
    %5384 = vmatmul.bf16.gmra.mxu0 %v4817
    %v5385 = vpop.f32.mrf.mxu0
    %v5386 = vadd.f32 %v5217, %v5385
    %v5387 = vpop.f32.mrf.mxu0
    %v5388 = vadd.f32 %v5219, %v5387
    %5389 = vmatmul.bf16.gmra.mxu0 %v4821
    %v5390 = vpop.f32.mrf.mxu0
    %v5391 = vadd.f32 %v5222, %v5390
    %v5392 = vpop.f32.mrf.mxu0
    %v5393 = vadd.f32 %v5224, %v5392
    %5394 = vmatmul.bf16.gmra.mxu0 %v4825
    %v5395 = vpop.f32.mrf.mxu0
    %v5396 = vadd.f32 %v5227, %v5395
    %v5397 = vpop.f32.mrf.mxu0
    %v5398 = vadd.f32 %v5229, %v5397
    %5399 = vmatmul.bf16.gmra.mxu0 %v4829
    %v5400 = vpop.f32.mrf.mxu0
    %v5401 = vadd.f32 %v5232, %v5400
    %v5402 = vpop.f32.mrf.mxu0
    %v5403 = vadd.f32 %v5234, %v5402
    %5404 = vmatmul.bf16.gmra.mxu0 %v4833
    %v5405 = vpop.f32.mrf.mxu0
    %v5406 = vadd.f32 %v5237, %v5405
    %v5407 = vpop.f32.mrf.mxu0
    %v5408 = vadd.f32 %v5239, %v5407
    %5409 = vmatmul.bf16.gmra.mxu0 %v4837
    %v5410 = vpop.f32.mrf.mxu0
    %v5411 = vadd.f32 %v5242, %v5410
    %v5412 = vpop.f32.mrf.mxu0
    %v5413 = vadd.f32 %v5244, %v5412
    %5414 = vmatmul.bf16.gmra.mxu0 %v4841
    %v5415 = vpop.f32.mrf.mxu0
    %v5416 = vadd.f32 %v5247, %v5415
    %v5417 = vpop.f32.mrf.mxu0
    %v5418 = vadd.f32 %v5249, %v5417
    %5419 = vmatmul.bf16.gmra.mxu0 %v4845
    %v5420 = vpop.f32.mrf.mxu0
    %v5421 = vadd.f32 %v5252, %v5420
    %v5422 = vpop.f32.mrf.mxu0
    %v5423 = vadd.f32 %v5254, %v5422
    %5424 = vmatmul.bf16.gmra.mxu0 %v4849
    %v5425 = vpop.f32.mrf.mxu0
    %v5426 = vadd.f32 %v5257, %v5425
    %v5427 = vpop.f32.mrf.mxu0
    %v5428 = vadd.f32 %v5259, %v5427
    %5429 = vmatmul.bf16.gmra.mxu0 %v4853
    %v5430 = vpop.f32.mrf.mxu0
    %v5431 = vadd.f32 %v5262, %v5430
    %v5432 = vpop.f32.mrf.mxu0
    %v5433 = vadd.f32 %v5264, %v5432
    %5434 = vmatmul.bf16.gmra.mxu0 %v4857
    %v5435 = vpop.f32.mrf.mxu0
    %v5436 = vadd.f32 %v5267, %v5435
    %v5437 = vpop.f32.mrf.mxu0
    %v5438 = vadd.f32 %v5269, %v5437
    %5439 = vmatmul.bf16.gmra.mxu0 %v4861
    %v5440 = vpop.f32.mrf.mxu0
    %v5441 = vadd.f32 %v5272, %v5440
    %v5442 = vpop.f32.mrf.mxu0
    %v5443 = vadd.f32 %v5274, %v5442
    %5444 = vmatmul.bf16.gmra.mxu0 %v4865
    %v5445 = vpop.f32.mrf.mxu0
    %v5446 = vadd.f32 %v5277, %v5445
    %v5447 = vpop.f32.mrf.mxu0
    %v5448 = vadd.f32 %v5279, %v5447
    %5449 = vmatmul.bf16.gmra.mxu0 %v4869
    %v5450 = vpop.f32.mrf.mxu0
    %v5451 = vadd.f32 %v5282, %v5450
    %v5452 = vpop.f32.mrf.mxu0
    %v5453 = vadd.f32 %v5284, %v5452
    %5454 = vmatmul.bf16.gmra.mxu0 %v4873
    %v5455 = vpop.f32.mrf.mxu0
    %v5456 = vadd.f32 %v5287, %v5455
    %v5457 = vpop.f32.mrf.mxu0
    %v5458 = vadd.f32 %v5289, %v5457
    %5459 = vmatmul.bf16.gmra.mxu0 %v4877
    %v5460 = vpop.f32.mrf.mxu0
    %v5461 = vadd.f32 %v5292, %v5460
    %v5462 = vpop.f32.mrf.mxu0
    %v5463 = vadd.f32 %v5294, %v5462
    %5464 = vmatmul.bf16.gmra.mxu0 %v4881
    %v5465 = vpop.f32.mrf.mxu0
    %v5466 = vadd.f32 %v5297, %v5465
    %v5467 = vpop.f32.mrf.mxu0
    %v5468 = vadd.f32 %v5299, %v5467
    %5469 = vmatmul.bf16.gmra.mxu0 %v4885
    %v5470 = vpop.f32.mrf.mxu0
    %v5471 = vadd.f32 %v5302, %v5470
    %v5472 = vpop.f32.mrf.mxu0
    %v5473 = vadd.f32 %v5304, %v5472
    %5474 = vmatmul.bf16.gmra.mxu0 %v4889
    %v5475 = vpop.f32.mrf.mxu0
    %v5476 = vadd.f32 %v5307, %v5475
    %v5477 = vpop.f32.mrf.mxu0
    %v5478 = vadd.f32 %v5309, %v5477
    %5479 = vmatmul.bf16.gmra.mxu0 %v4893
    %v5480 = vpop.f32.mrf.mxu0
    %v5481 = vadd.f32 %v5312, %v5480
    %v5482 = vpop.f32.mrf.mxu0
    %v5483 = vadd.f32 %v5314, %v5482
    %5484 = vmatmul.bf16.gmra.mxu0 %v4897
    %v5485 = vpop.f32.mrf.mxu0
    %v5486 = vadd.f32 %v5317, %v5485
    %v5487 = vpop.f32.mrf.mxu0
    %v5488 = vadd.f32 %v5319, %v5487
    %5489 = vmatmul.bf16.gmra.mxu0 %v4901
    %v5490 = vpop.f32.mrf.mxu0
    %v5491 = vadd.f32 %v5322, %v5490
    %v5492 = vpop.f32.mrf.mxu0
    %v5493 = vadd.f32 %v5324, %v5492
    %5494 = vmatmul.bf16.gmra.mxu0 %v4905
    %v5495 = vpop.f32.mrf.mxu0
    %v5496 = vadd.f32 %v5327, %v5495
    %v5497 = vpop.f32.mrf.mxu0
    %v5498 = vadd.f32 %v5329, %v5497
    %5499 = vmatmul.bf16.gmra.mxu0 %v4909
    %v5500 = vpop.f32.mrf.mxu0
    %v5501 = vadd.f32 %v5332, %v5500
    %v5502 = vpop.f32.mrf.mxu0
    %v5503 = vadd.f32 %v5334, %v5502
    %5504 = vmatmul.bf16.gmra.mxu0 %v4913
    %v5505 = vpop.f32.mrf.mxu0
    %v5506 = vadd.f32 %v5337, %v5505
    %v5507 = vpop.f32.mrf.mxu0
    %v5508 = vadd.f32 %v5339, %v5507
    %5509 = vmatmul.bf16.gmra.mxu0 %v4917
    %v5510 = vpop.f32.mrf.mxu0
    %v5511 = vadd.f32 %v5342, %v5510
    %v5512 = vpop.f32.mrf.mxu0
    %v5513 = vadd.f32 %v5344, %v5512
    %5514 = vmatmul.bf16.gmra.mxu0 %v4921
    %v5515 = vpop.f32.mrf.mxu0
    %v5516 = vadd.f32 %v5347, %v5515
    %v5517 = vpop.f32.mrf.mxu0
    %v5518 = vadd.f32 %v5349, %v5517
    %5519 = vmatmul.bf16.gmra.mxu0 %v4925
    %v5520 = vpop.f32.mrf.mxu0
    %v5521 = vadd.f32 %v5352, %v5520
    %v5522 = vpop.f32.mrf.mxu0
    %v5523 = vadd.f32 %v5354, %v5522
    %5524 = vmatmul.bf16.gmra.mxu0 %v4929
    %v5525 = vpop.f32.mrf.mxu0
    %v5526 = vadd.f32 %v5357, %v5525
    %v5527 = vpop.f32.mrf.mxu0
    %v5528 = vadd.f32 %v5359, %v5527
    %5529 = vdwg.mxu0
    %5530 = vmatpush.bf16.msra.mxu0 %v5151
    %5531 = vmatpush.bf16.msra.mxu0 %v5150
    %5532 = vmatpush.bf16.msra.mxu0 %v5149
    %5533 = vmatpush.bf16.msra.mxu0 %v5148
    %5534 = vmatpush.bf16.msra.mxu0 %v5147
    %5535 = vmatpush.bf16.msra.mxu0 %v5146
    %5536 = vmatpush.bf16.msra.mxu0 %v5145
    %5537 = vmatpush.bf16.msra.mxu0 %v5144
    %5538 = vmatmul.bf16.gmra.mxu0 %v4806
    %v5539 = vpop.f32.mrf.mxu0
    %v5540 = vadd.f32 %v5371, %v5539
    %v5541 = vpop.f32.mrf.mxu0
    %v5542 = vadd.f32 %v5373, %v5541
    %5543 = vmatmul.bf16.gmra.mxu0 %v4810
    %v5544 = vpop.f32.mrf.mxu0
    %v5545 = vadd.f32 %v5376, %v5544
    %v5546 = vpop.f32.mrf.mxu0
    %v5547 = vadd.f32 %v5378, %v5546
    %5548 = vmatmul.bf16.gmra.mxu0 %v4814
    %v5549 = vpop.f32.mrf.mxu0
    %v5550 = vadd.f32 %v5381, %v5549
    %v5551 = vpop.f32.mrf.mxu0
    %v5552 = vadd.f32 %v5383, %v5551
    %5553 = vmatmul.bf16.gmra.mxu0 %v4818
    %v5554 = vpop.f32.mrf.mxu0
    %v5555 = vadd.f32 %v5386, %v5554
    %v5556 = vpop.f32.mrf.mxu0
    %v5557 = vadd.f32 %v5388, %v5556
    %5558 = vmatmul.bf16.gmra.mxu0 %v4822
    %v5559 = vpop.f32.mrf.mxu0
    %v5560 = vadd.f32 %v5391, %v5559
    %v5561 = vpop.f32.mrf.mxu0
    %v5562 = vadd.f32 %v5393, %v5561
    %5563 = vmatmul.bf16.gmra.mxu0 %v4826
    %v5564 = vpop.f32.mrf.mxu0
    %v5565 = vadd.f32 %v5396, %v5564
    %v5566 = vpop.f32.mrf.mxu0
    %v5567 = vadd.f32 %v5398, %v5566
    %5568 = vmatmul.bf16.gmra.mxu0 %v4830
    %v5569 = vpop.f32.mrf.mxu0
    %v5570 = vadd.f32 %v5401, %v5569
    %v5571 = vpop.f32.mrf.mxu0
    %v5572 = vadd.f32 %v5403, %v5571
    %5573 = vmatmul.bf16.gmra.mxu0 %v4834
    %v5574 = vpop.f32.mrf.mxu0
    %v5575 = vadd.f32 %v5406, %v5574
    %v5576 = vpop.f32.mrf.mxu0
    %v5577 = vadd.f32 %v5408, %v5576
    %5578 = vmatmul.bf16.gmra.mxu0 %v4838
    %v5579 = vpop.f32.mrf.mxu0
    %v5580 = vadd.f32 %v5411, %v5579
    %v5581 = vpop.f32.mrf.mxu0
    %v5582 = vadd.f32 %v5413, %v5581
    %5583 = vmatmul.bf16.gmra.mxu0 %v4842
    %v5584 = vpop.f32.mrf.mxu0
    %v5585 = vadd.f32 %v5416, %v5584
    %v5586 = vpop.f32.mrf.mxu0
    %v5587 = vadd.f32 %v5418, %v5586
    %5588 = vmatmul.bf16.gmra.mxu0 %v4846
    %v5589 = vpop.f32.mrf.mxu0
    %v5590 = vadd.f32 %v5421, %v5589
    %v5591 = vpop.f32.mrf.mxu0
    %v5592 = vadd.f32 %v5423, %v5591
    %5593 = vmatmul.bf16.gmra.mxu0 %v4850
    %v5594 = vpop.f32.mrf.mxu0
    %v5595 = vadd.f32 %v5426, %v5594
    %v5596 = vpop.f32.mrf.mxu0
    %v5597 = vadd.f32 %v5428, %v5596
    %5598 = vmatmul.bf16.gmra.mxu0 %v4854
    %v5599 = vpop.f32.mrf.mxu0
    %v5600 = vadd.f32 %v5431, %v5599
    %v5601 = vpop.f32.mrf.mxu0
    %v5602 = vadd.f32 %v5433, %v5601
    %5603 = vmatmul.bf16.gmra.mxu0 %v4858
    %v5604 = vpop.f32.mrf.mxu0
    %v5605 = vadd.f32 %v5436, %v5604
    %v5606 = vpop.f32.mrf.mxu0
    %v5607 = vadd.f32 %v5438, %v5606
    %5608 = vmatmul.bf16.gmra.mxu0 %v4862
    %v5609 = vpop.f32.mrf.mxu0
    %v5610 = vadd.f32 %v5441, %v5609
    %v5611 = vpop.f32.mrf.mxu0
    %v5612 = vadd.f32 %v5443, %v5611
    %5613 = vmatmul.bf16.gmra.mxu0 %v4866
    %v5614 = vpop.f32.mrf.mxu0
    %v5615 = vadd.f32 %v5446, %v5614
    %v5616 = vpop.f32.mrf.mxu0
    %v5617 = vadd.f32 %v5448, %v5616
    %5618 = vmatmul.bf16.gmra.mxu0 %v4870
    %v5619 = vpop.f32.mrf.mxu0
    %v5620 = vadd.f32 %v5451, %v5619
    %v5621 = vpop.f32.mrf.mxu0
    %v5622 = vadd.f32 %v5453, %v5621
    %5623 = vmatmul.bf16.gmra.mxu0 %v4874
    %v5624 = vpop.f32.mrf.mxu0
    %v5625 = vadd.f32 %v5456, %v5624
    %v5626 = vpop.f32.mrf.mxu0
    %v5627 = vadd.f32 %v5458, %v5626
    %5628 = vmatmul.bf16.gmra.mxu0 %v4878
    %v5629 = vpop.f32.mrf.mxu0
    %v5630 = vadd.f32 %v5461, %v5629
    %v5631 = vpop.f32.mrf.mxu0
    %v5632 = vadd.f32 %v5463, %v5631
    %5633 = vmatmul.bf16.gmra.mxu0 %v4882
    %v5634 = vpop.f32.mrf.mxu0
    %v5635 = vadd.f32 %v5466, %v5634
    %v5636 = vpop.f32.mrf.mxu0
    %v5637 = vadd.f32 %v5468, %v5636
    %5638 = vmatmul.bf16.gmra.mxu0 %v4886
    %v5639 = vpop.f32.mrf.mxu0
    %v5640 = vadd.f32 %v5471, %v5639
    %v5641 = vpop.f32.mrf.mxu0
    %v5642 = vadd.f32 %v5473, %v5641
    %5643 = vmatmul.bf16.gmra.mxu0 %v4890
    %v5644 = vpop.f32.mrf.mxu0
    %v5645 = vadd.f32 %v5476, %v5644
    %v5646 = vpop.f32.mrf.mxu0
    %v5647 = vadd.f32 %v5478, %v5646
    %5648 = vmatmul.bf16.gmra.mxu0 %v4894
    %v5649 = vpop.f32.mrf.mxu0
    %v5650 = vadd.f32 %v5481, %v5649
    %v5651 = vpop.f32.mrf.mxu0
    %v5652 = vadd.f32 %v5483, %v5651
    %5653 = vmatmul.bf16.gmra.mxu0 %v4898
    %v5654 = vpop.f32.mrf.mxu0
    %v5655 = vadd.f32 %v5486, %v5654
    %v5656 = vpop.f32.mrf.mxu0
    %v5657 = vadd.f32 %v5488, %v5656
    %5658 = vmatmul.bf16.gmra.mxu0 %v4902
    %v5659 = vpop.f32.mrf.mxu0
    %v5660 = vadd.f32 %v5491, %v5659
    %v5661 = vpop.f32.mrf.mxu0
    %v5662 = vadd.f32 %v5493, %v5661
    %5663 = vmatmul.bf16.gmra.mxu0 %v4906
    %v5664 = vpop.f32.mrf.mxu0
    %v5665 = vadd.f32 %v5496, %v5664
    %v5666 = vpop.f32.mrf.mxu0
    %v5667 = vadd.f32 %v5498, %v5666
    %5668 = vmatmul.bf16.gmra.mxu0 %v4910
    %v5669 = vpop.f32.mrf.mxu0
    %v5670 = vadd.f32 %v5501, %v5669
    %v5671 = vpop.f32.mrf.mxu0
    %v5672 = vadd.f32 %v5503, %v5671
    %5673 = vmatmul.bf16.gmra.mxu0 %v4914
    %v5674 = vpop.f32.mrf.mxu0
    %v5675 = vadd.f32 %v5506, %v5674
    %v5676 = vpop.f32.mrf.mxu0
    %v5677 = vadd.f32 %v5508, %v5676
    %5678 = vmatmul.bf16.gmra.mxu0 %v4918
    %v5679 = vpop.f32.mrf.mxu0
    %v5680 = vadd.f32 %v5511, %v5679
    %v5681 = vpop.f32.mrf.mxu0
    %v5682 = vadd.f32 %v5513, %v5681
    %5683 = vmatmul.bf16.gmra.mxu0 %v4922
    %v5684 = vpop.f32.mrf.mxu0
    %v5685 = vadd.f32 %v5516, %v5684
    %v5686 = vpop.f32.mrf.mxu0
    %v5687 = vadd.f32 %v5518, %v5686
    %5688 = vmatmul.bf16.gmra.mxu0 %v4926
    %v5689 = vpop.f32.mrf.mxu0
    %v5690 = vadd.f32 %v5521, %v5689
    %v5691 = vpop.f32.mrf.mxu0
    %v5692 = vadd.f32 %v5523, %v5691
    %5693 = vmatmul.bf16.gmra.mxu0 %v4930
    %v5694 = vpop.f32.mrf.mxu0
    %v5695 = vadd.f32 %v5526, %v5694
    %v5696 = vpop.f32.mrf.mxu0
    %v5697 = vadd.f32 %v5528, %v5696
    %5698 = vdwg.mxu0
    %5699 = vmatpush.bf16.msra.mxu0 %v5159
    %5700 = vmatpush.bf16.msra.mxu0 %v5158
    %5701 = vmatpush.bf16.msra.mxu0 %v5157
    %5702 = vmatpush.bf16.msra.mxu0 %v5156
    %5703 = vmatpush.bf16.msra.mxu0 %v5155
    %5704 = vmatpush.bf16.msra.mxu0 %v5154
    %5705 = vmatpush.bf16.msra.mxu0 %v5153
    %5706 = vmatpush.bf16.msra.mxu0 %v5152
    %5707 = vmatmul.bf16.gmra.mxu0 %v4807
    %v5708 = vpop.f32.mrf.mxu0
    %v5709 = vadd.f32 %v5540, %v5708
    %v5710 = vpop.f32.mrf.mxu0
    %v5711 = vadd.f32 %v5542, %v5710
    %5712 = vmatmul.bf16.gmra.mxu0 %v4811
    %v5713 = vpop.f32.mrf.mxu0
    %v5714 = vadd.f32 %v5545, %v5713
    %v5715 = vpop.f32.mrf.mxu0
    %v5716 = vadd.f32 %v5547, %v5715
    %5717 = vmatmul.bf16.gmra.mxu0 %v4815
    %v5718 = vpop.f32.mrf.mxu0
    %v5719 = vadd.f32 %v5550, %v5718
    %v5720 = vpop.f32.mrf.mxu0
    %v5721 = vadd.f32 %v5552, %v5720
    %5722 = vmatmul.bf16.gmra.mxu0 %v4819
    %v5723 = vpop.f32.mrf.mxu0
    %v5724 = vadd.f32 %v5555, %v5723
    %v5725 = vpop.f32.mrf.mxu0
    %v5726 = vadd.f32 %v5557, %v5725
    %5727 = vmatmul.bf16.gmra.mxu0 %v4823
    %v5728 = vpop.f32.mrf.mxu0
    %v5729 = vadd.f32 %v5560, %v5728
    %v5730 = vpop.f32.mrf.mxu0
    %v5731 = vadd.f32 %v5562, %v5730
    %5732 = vmatmul.bf16.gmra.mxu0 %v4827
    %v5733 = vpop.f32.mrf.mxu0
    %v5734 = vadd.f32 %v5565, %v5733
    %v5735 = vpop.f32.mrf.mxu0
    %v5736 = vadd.f32 %v5567, %v5735
    %5737 = vmatmul.bf16.gmra.mxu0 %v4831
    %v5738 = vpop.f32.mrf.mxu0
    %v5739 = vadd.f32 %v5570, %v5738
    %v5740 = vpop.f32.mrf.mxu0
    %v5741 = vadd.f32 %v5572, %v5740
    %5742 = vmatmul.bf16.gmra.mxu0 %v4835
    %v5743 = vpop.f32.mrf.mxu0
    %v5744 = vadd.f32 %v5575, %v5743
    %v5745 = vpop.f32.mrf.mxu0
    %v5746 = vadd.f32 %v5577, %v5745
    %5747 = vmatmul.bf16.gmra.mxu0 %v4839
    %v5748 = vpop.f32.mrf.mxu0
    %v5749 = vadd.f32 %v5580, %v5748
    %v5750 = vpop.f32.mrf.mxu0
    %v5751 = vadd.f32 %v5582, %v5750
    %5752 = vmatmul.bf16.gmra.mxu0 %v4843
    %v5753 = vpop.f32.mrf.mxu0
    %v5754 = vadd.f32 %v5585, %v5753
    %v5755 = vpop.f32.mrf.mxu0
    %v5756 = vadd.f32 %v5587, %v5755
    %5757 = vmatmul.bf16.gmra.mxu0 %v4847
    %v5758 = vpop.f32.mrf.mxu0
    %v5759 = vadd.f32 %v5590, %v5758
    %v5760 = vpop.f32.mrf.mxu0
    %v5761 = vadd.f32 %v5592, %v5760
    %5762 = vmatmul.bf16.gmra.mxu0 %v4851
    %v5763 = vpop.f32.mrf.mxu0
    %v5764 = vadd.f32 %v5595, %v5763
    %v5765 = vpop.f32.mrf.mxu0
    %v5766 = vadd.f32 %v5597, %v5765
    %5767 = vmatmul.bf16.gmra.mxu0 %v4855
    %v5768 = vpop.f32.mrf.mxu0
    %v5769 = vadd.f32 %v5600, %v5768
    %v5770 = vpop.f32.mrf.mxu0
    %v5771 = vadd.f32 %v5602, %v5770
    %5772 = vmatmul.bf16.gmra.mxu0 %v4859
    %v5773 = vpop.f32.mrf.mxu0
    %v5774 = vadd.f32 %v5605, %v5773
    %v5775 = vpop.f32.mrf.mxu0
    %v5776 = vadd.f32 %v5607, %v5775
    %5777 = vmatmul.bf16.gmra.mxu0 %v4863
    %v5778 = vpop.f32.mrf.mxu0
    %v5779 = vadd.f32 %v5610, %v5778
    %v5780 = vpop.f32.mrf.mxu0
    %v5781 = vadd.f32 %v5612, %v5780
    %5782 = vmatmul.bf16.gmra.mxu0 %v4867
    %v5783 = vpop.f32.mrf.mxu0
    %v5784 = vadd.f32 %v5615, %v5783
    %v5785 = vpop.f32.mrf.mxu0
    %v5786 = vadd.f32 %v5617, %v5785
    %5787 = vmatmul.bf16.gmra.mxu0 %v4871
    %v5788 = vpop.f32.mrf.mxu0
    %v5789 = vadd.f32 %v5620, %v5788
    %v5790 = vpop.f32.mrf.mxu0
    %v5791 = vadd.f32 %v5622, %v5790
    %5792 = vmatmul.bf16.gmra.mxu0 %v4875
    %v5793 = vpop.f32.mrf.mxu0
    %v5794 = vadd.f32 %v5625, %v5793
    %v5795 = vpop.f32.mrf.mxu0
    %v5796 = vadd.f32 %v5627, %v5795
    %5797 = vmatmul.bf16.gmra.mxu0 %v4879
    %v5798 = vpop.f32.mrf.mxu0
    %v5799 = vadd.f32 %v5630, %v5798
    %v5800 = vpop.f32.mrf.mxu0
    %v5801 = vadd.f32 %v5632, %v5800
    %5802 = vmatmul.bf16.gmra.mxu0 %v4883
    %v5803 = vpop.f32.mrf.mxu0
    %v5804 = vadd.f32 %v5635, %v5803
    %v5805 = vpop.f32.mrf.mxu0
    %v5806 = vadd.f32 %v5637, %v5805
    %5807 = vmatmul.bf16.gmra.mxu0 %v4887
    %v5808 = vpop.f32.mrf.mxu0
    %v5809 = vadd.f32 %v5640, %v5808
    %v5810 = vpop.f32.mrf.mxu0
    %v5811 = vadd.f32 %v5642, %v5810
    %5812 = vmatmul.bf16.gmra.mxu0 %v4891
    %v5813 = vpop.f32.mrf.mxu0
    %v5814 = vadd.f32 %v5645, %v5813
    %v5815 = vpop.f32.mrf.mxu0
    %v5816 = vadd.f32 %v5647, %v5815
    %5817 = vmatmul.bf16.gmra.mxu0 %v4895
    %v5818 = vpop.f32.mrf.mxu0
    %v5819 = vadd.f32 %v5650, %v5818
    %v5820 = vpop.f32.mrf.mxu0
    %v5821 = vadd.f32 %v5652, %v5820
    %5822 = vmatmul.bf16.gmra.mxu0 %v4899
    %v5823 = vpop.f32.mrf.mxu0
    %v5824 = vadd.f32 %v5655, %v5823
    %v5825 = vpop.f32.mrf.mxu0
    %v5826 = vadd.f32 %v5657, %v5825
    %5827 = vmatmul.bf16.gmra.mxu0 %v4903
    %v5828 = vpop.f32.mrf.mxu0
    %v5829 = vadd.f32 %v5660, %v5828
    %v5830 = vpop.f32.mrf.mxu0
    %v5831 = vadd.f32 %v5662, %v5830
    %5832 = vmatmul.bf16.gmra.mxu0 %v4907
    %v5833 = vpop.f32.mrf.mxu0
    %v5834 = vadd.f32 %v5665, %v5833
    %v5835 = vpop.f32.mrf.mxu0
    %v5836 = vadd.f32 %v5667, %v5835
    %5837 = vmatmul.bf16.gmra.mxu0 %v4911
    %v5838 = vpop.f32.mrf.mxu0
    %v5839 = vadd.f32 %v5670, %v5838
    %v5840 = vpop.f32.mrf.mxu0
    %v5841 = vadd.f32 %v5672, %v5840
    %5842 = vmatmul.bf16.gmra.mxu0 %v4915
    %v5843 = vpop.f32.mrf.mxu0
    %v5844 = vadd.f32 %v5675, %v5843
    %v5845 = vpop.f32.mrf.mxu0
    %v5846 = vadd.f32 %v5677, %v5845
    %5847 = vmatmul.bf16.gmra.mxu0 %v4919
    %v5848 = vpop.f32.mrf.mxu0
    %v5849 = vadd.f32 %v5680, %v5848
    %v5850 = vpop.f32.mrf.mxu0
    %v5851 = vadd.f32 %v5682, %v5850
    %5852 = vmatmul.bf16.gmra.mxu0 %v4923
    %v5853 = vpop.f32.mrf.mxu0
    %v5854 = vadd.f32 %v5685, %v5853
    %v5855 = vpop.f32.mrf.mxu0
    %v5856 = vadd.f32 %v5687, %v5855
    %5857 = vmatmul.bf16.gmra.mxu0 %v4927
    %v5858 = vpop.f32.mrf.mxu0
    %v5859 = vadd.f32 %v5690, %v5858
    %v5860 = vpop.f32.mrf.mxu0
    %v5861 = vadd.f32 %v5692, %v5860
    %5862 = vmatmul.bf16.gmra.mxu0 %v4931
    %v5863 = vpop.f32.mrf.mxu0
    %v5864 = vadd.f32 %v5695, %v5863
    %v5865 = vpop.f32.mrf.mxu0
    %v5866 = vadd.f32 %v5697, %v5865
    %5867 = vdwg.mxu0
    %v5868 = vld [vmem:[#allocation8] sm:$0xf]
    %v5869 = vld [vmem:[#allocation8 + $0x4] sm:$0xf]
    %v5870 = vld [vmem:[#allocation8 + $0x8] sm:$0xf]
    %v5871 = vld [vmem:[#allocation8 + $0xc] sm:$0xf]
    %v5872 = vld [vmem:[#allocation8 + $0x10] sm:$0xf]
    %v5873 = vld [vmem:[#allocation8 + $0x14] sm:$0xf]
    %v5874 = vld [vmem:[#allocation8 + $0x18] sm:$0xf]
    %v5875 = vld [vmem:[#allocation8 + $0x1c] sm:$0xf]
    %v5876 = vld [vmem:[#allocation8 + $0x20] sm:$0xf]
    %v5877 = vld [vmem:[#allocation8 + $0x24] sm:$0xf]
    %v5878 = vld [vmem:[#allocation8 + $0x28] sm:$0xf]
    %v5879 = vld [vmem:[#allocation8 + $0x2c] sm:$0xf]
    %v5880 = vld [vmem:[#allocation8 + $0x30] sm:$0xf]
    %v5881 = vld [vmem:[#allocation8 + $0x34] sm:$0xf]
    %v5882 = vld [vmem:[#allocation8 + $0x38] sm:$0xf]
    %v5883 = vld [vmem:[#allocation8 + $0x3c] sm:$0xf]
    %v5884 = vld [vmem:[#allocation8 + $0x40] sm:$0xf]
    %v5885 = vld [vmem:[#allocation8 + $0x44] sm:$0xf]
    %v5886 = vld [vmem:[#allocation8 + $0x48] sm:$0xf]
    %v5887 = vld [vmem:[#allocation8 + $0x4c] sm:$0xf]
    %v5888 = vld [vmem:[#allocation8 + $0x50] sm:$0xf]
    %v5889 = vld [vmem:[#allocation8 + $0x54] sm:$0xf]
    %v5890 = vld [vmem:[#allocation8 + $0x58] sm:$0xf]
    %v5891 = vld [vmem:[#allocation8 + $0x5c] sm:$0xf]
    %v5892 = vld [vmem:[#allocation8 + $0x60] sm:$0xf]
    %v5893 = vld [vmem:[#allocation8 + $0x64] sm:$0xf]
    %v5894 = vld [vmem:[#allocation8 + $0x68] sm:$0xf]
    %v5895 = vld [vmem:[#allocation8 + $0x6c] sm:$0xf]
    %v5896 = vld [vmem:[#allocation8 + $0x70] sm:$0xf]
    %v5897 = vld [vmem:[#allocation8 + $0x74] sm:$0xf]
    %v5898 = vld [vmem:[#allocation8 + $0x78] sm:$0xf]
    %v5899 = vld [vmem:[#allocation8 + $0x7c] sm:$0xf]
    %v5900 = vld [vmem:[#allocation8 + $0x80] sm:$0xf]
    %v5901 = vld [vmem:[#allocation8 + $0x84] sm:$0xf]
    %v5902 = vld [vmem:[#allocation8 + $0x88] sm:$0xf]
    %v5903 = vld [vmem:[#allocation8 + $0x8c] sm:$0xf]
    %v5904 = vld [vmem:[#allocation8 + $0x90] sm:$0xf]
    %v5905 = vld [vmem:[#allocation8 + $0x94] sm:$0xf]
    %v5906 = vld [vmem:[#allocation8 + $0x98] sm:$0xf]
    %v5907 = vld [vmem:[#allocation8 + $0x9c] sm:$0xf]
    %v5908 = vld [vmem:[#allocation8 + $0xa0] sm:$0xf]
    %v5909 = vld [vmem:[#allocation8 + $0xa4] sm:$0xf]
    %v5910 = vld [vmem:[#allocation8 + $0xa8] sm:$0xf]
    %v5911 = vld [vmem:[#allocation8 + $0xac] sm:$0xf]
    %v5912 = vld [vmem:[#allocation8 + $0xb0] sm:$0xf]
    %v5913 = vld [vmem:[#allocation8 + $0xb4] sm:$0xf]
    %v5914 = vld [vmem:[#allocation8 + $0xb8] sm:$0xf]
    %v5915 = vld [vmem:[#allocation8 + $0xbc] sm:$0xf]
    %v5916 = vld [vmem:[#allocation8 + $0xc0] sm:$0xf]
    %v5917 = vld [vmem:[#allocation8 + $0xc4] sm:$0xf]
    %v5918 = vld [vmem:[#allocation8 + $0xc8] sm:$0xf]
    %v5919 = vld [vmem:[#allocation8 + $0xcc] sm:$0xf]
    %v5920 = vld [vmem:[#allocation8 + $0xd0] sm:$0xf]
    %v5921 = vld [vmem:[#allocation8 + $0xd4] sm:$0xf]
    %v5922 = vld [vmem:[#allocation8 + $0xd8] sm:$0xf]
    %v5923 = vld [vmem:[#allocation8 + $0xdc] sm:$0xf]
    %v5924 = vld [vmem:[#allocation8 + $0xe0] sm:$0xf]
    %v5925 = vld [vmem:[#allocation8 + $0xe4] sm:$0xf]
    %v5926 = vld [vmem:[#allocation8 + $0xe8] sm:$0xf]
    %v5927 = vld [vmem:[#allocation8 + $0xec] sm:$0xf]
    %v5928 = vld [vmem:[#allocation8 + $0xf0] sm:$0xf]
    %v5929 = vld [vmem:[#allocation8 + $0xf4] sm:$0xf]
    %v5930 = vld [vmem:[#allocation8 + $0xf8] sm:$0xf]
    %v5931 = vld [vmem:[#allocation8 + $0xfc] sm:$0xf]
    %v5932 = vld [vmem:[%s6] sm:$0x1]
    %v5934 = vperm.slane %v5932, 0
    %v6000 = vunpack.c.l.b16 %v5868
    %v6001 = vunpack.c.l.b16 %v5869
    %v6002 = vunpack.c.l.b16 %v5870
    %v6003 = vunpack.c.l.b16 %v5871
    %v6004 = vunpack.c.l.b16 %v5872
    %v6005 = vunpack.c.l.b16 %v5873
    %v6006 = vunpack.c.l.b16 %v5874
    %v6007 = vunpack.c.l.b16 %v5875
    %v6008 = vunpack.c.l.b16 %v5876
    %v6009 = vunpack.c.l.b16 %v5877
    %v6010 = vunpack.c.l.b16 %v5878
    %v6011 = vunpack.c.l.b16 %v5879
    %v6012 = vunpack.c.l.b16 %v5880
    %v6013 = vunpack.c.l.b16 %v5881
    %v6014 = vunpack.c.l.b16 %v5882
    %v6015 = vunpack.c.l.b16 %v5883
    %v6016 = vunpack.c.l.b16 %v5884
    %v6017 = vunpack.c.l.b16 %v5885
    %v6018 = vunpack.c.l.b16 %v5886
    %v6019 = vunpack.c.l.b16 %v5887
    %v6020 = vunpack.c.l.b16 %v5888
    %v6021 = vunpack.c.l.b16 %v5889
    %v6022 = vunpack.c.l.b16 %v5890
    %v6023 = vunpack.c.l.b16 %v5891
    %v6024 = vunpack.c.l.b16 %v5892
    %v6025 = vunpack.c.l.b16 %v5893
    %v6026 = vunpack.c.l.b16 %v5894
    %v6027 = vunpack.c.l.b16 %v5895
    %v6028 = vunpack.c.l.b16 %v5896
    %v6029 = vunpack.c.l.b16 %v5897
    %v6030 = vunpack.c.l.b16 %v5898
    %v6031 = vunpack.c.l.b16 %v5899
    %v6032 = vunpack.c.l.b16 %v5900
    %v6033 = vunpack.c.l.b16 %v5901
    %v6034 = vunpack.c.l.b16 %v5902
    %v6035 = vunpack.c.l.b16 %v5903
    %v6036 = vunpack.c.l.b16 %v5904
    %v6037 = vunpack.c.l.b16 %v5905
    %v6038 = vunpack.c.l.b16 %v5906
    %v6039 = vunpack.c.l.b16 %v5907
    %v6040 = vunpack.c.l.b16 %v5908
    %v6041 = vunpack.c.l.b16 %v5909
    %v6042 = vunpack.c.l.b16 %v5910
    %v6043 = vunpack.c.l.b16 %v5911
    %v6044 = vunpack.c.l.b16 %v5912
    %v6045 = vunpack.c.l.b16 %v5913
    %v6046 = vunpack.c.l.b16 %v5914
    %v6047 = vunpack.c.l.b16 %v5915
    %v6048 = vunpack.c.l.b16 %v5916
    %v6049 = vunpack.c.l.b16 %v5917
    %v6050 = vunpack.c.l.b16 %v5918
    %v6051 = vunpack.c.l.b16 %v5919
    %v6052 = vunpack.c.l.b16 %v5920
    %v6053 = vunpack.c.l.b16 %v5921
    %v6054 = vunpack.c.l.b16 %v5922
    %v6055 = vunpack.c.l.b16 %v5923
    %v6056 = vunpack.c.l.b16 %v5924
    %v6057 = vunpack.c.l.b16 %v5925
    %v6058 = vunpack.c.l.b16 %v5926
    %v6059 = vunpack.c.l.b16 %v5927
    %v6060 = vunpack.c.l.b16 %v5928
    %v6061 = vunpack.c.l.b16 %v5929
    %v6062 = vunpack.c.l.b16 %v5930
    %v6063 = vunpack.c.l.b16 %v5931
    %v6064 = vpack.c.b16 %v6001, %v6000
    %v6065 = vpack.c.b16 %v6003, %v6002
    %v6066 = vpack.c.b16 %v6005, %v6004
    %v6067 = vpack.c.b16 %v6007, %v6006
    %v6068 = vpack.c.b16 %v6009, %v6008
    %v6069 = vpack.c.b16 %v6011, %v6010
    %v6070 = vpack.c.b16 %v6013, %v6012
    %v6071 = vpack.c.b16 %v6015, %v6014
    %v6072 = vpack.c.b16 %v6017, %v6016
    %v6073 = vpack.c.b16 %v6019, %v6018
    %v6074 = vpack.c.b16 %v6021, %v6020
    %v6075 = vpack.c.b16 %v6023, %v6022
    %v6076 = vpack.c.b16 %v6025, %v6024
    %v6077 = vpack.c.b16 %v6027, %v6026
    %v6078 = vpack.c.b16 %v6029, %v6028
    %v6079 = vpack.c.b16 %v6031, %v6030
    %v6080 = vpack.c.b16 %v6033, %v6032
    %v6081 = vpack.c.b16 %v6035, %v6034
    %v6082 = vpack.c.b16 %v6037, %v6036
    %v6083 = vpack.c.b16 %v6039, %v6038
    %v6084 = vpack.c.b16 %v6041, %v6040
    %v6085 = vpack.c.b16 %v6043, %v6042
    %v6086 = vpack.c.b16 %v6045, %v6044
    %v6087 = vpack.c.b16 %v6047, %v6046
    %v6088 = vpack.c.b16 %v6049, %v6048
    %v6089 = vpack.c.b16 %v6051, %v6050
    %v6090 = vpack.c.b16 %v6053, %v6052
    %v6091 = vpack.c.b16 %v6055, %v6054
    %v6092 = vpack.c.b16 %v6057, %v6056
    %v6093 = vpack.c.b16 %v6059, %v6058
    %v6094 = vpack.c.b16 %v6061, %v6060
    %v6095 = vpack.c.b16 %v6063, %v6062
    %6128 = vmatpush.bf16.msra.mxu0 %v6071
    %6129 = vmatpush.bf16.msra.mxu0 %v6070
    %6130 = vmatpush.bf16.msra.mxu0 %v6069
    %6131 = vmatpush.bf16.msra.mxu0 %v6068
    %6132 = vmatpush.bf16.msra.mxu0 %v6067
    %6133 = vmatpush.bf16.msra.mxu0 %v6066
    %6134 = vmatpush.bf16.msra.mxu0 %v6065
    %6135 = vmatpush.bf16.msra.mxu0 %v6064
    %6136 = vmatmul.bf16.gmra.mxu0 %v4804
    %v6137 = vpop.f32.mrf.mxu0
    %v6138 = vadd.f32 %v5934, %v6137
    %v6139 = vpop.f32.mrf.mxu0
    %v6140 = vadd.f32 %v5934, %v6139
    %6141 = vmatmul.bf16.gmra.mxu0 %v4808
    %v6142 = vpop.f32.mrf.mxu0
    %v6143 = vadd.f32 %v5934, %v6142
    %v6144 = vpop.f32.mrf.mxu0
    %v6145 = vadd.f32 %v5934, %v6144
    %6146 = vmatmul.bf16.gmra.mxu0 %v4812
    %v6147 = vpop.f32.mrf.mxu0
    %v6148 = vadd.f32 %v5934, %v6147
    %v6149 = vpop.f32.mrf.mxu0
    %v6150 = vadd.f32 %v5934, %v6149
    %6151 = vmatmul.bf16.gmra.mxu0 %v4816
    %v6152 = vpop.f32.mrf.mxu0
    %v6153 = vadd.f32 %v5934, %v6152
    %v6154 = vpop.f32.mrf.mxu0
    %v6155 = vadd.f32 %v5934, %v6154
    %6156 = vmatmul.bf16.gmra.mxu0 %v4820
    %v6157 = vpop.f32.mrf.mxu0
    %v6158 = vadd.f32 %v5934, %v6157
    %v6159 = vpop.f32.mrf.mxu0
    %v6160 = vadd.f32 %v5934, %v6159
    %6161 = vmatmul.bf16.gmra.mxu0 %v4824
    %v6162 = vpop.f32.mrf.mxu0
    %v6163 = vadd.f32 %v5934, %v6162
    %v6164 = vpop.f32.mrf.mxu0
    %v6165 = vadd.f32 %v5934, %v6164
    %6166 = vmatmul.bf16.gmra.mxu0 %v4828
    %v6167 = vpop.f32.mrf.mxu0
    %v6168 = vadd.f32 %v5934, %v6167
    %v6169 = vpop.f32.mrf.mxu0
    %v6170 = vadd.f32 %v5934, %v6169
    %6171 = vmatmul.bf16.gmra.mxu0 %v4832
    %v6172 = vpop.f32.mrf.mxu0
    %v6173 = vadd.f32 %v5934, %v6172
    %v6174 = vpop.f32.mrf.mxu0
    %v6175 = vadd.f32 %v5934, %v6174
    %6176 = vmatmul.bf16.gmra.mxu0 %v4836
    %v6177 = vpop.f32.mrf.mxu0
    %v6178 = vadd.f32 %v5934, %v6177
    %v6179 = vpop.f32.mrf.mxu0
    %v6180 = vadd.f32 %v5934, %v6179
    %6181 = vmatmul.bf16.gmra.mxu0 %v4840
    %v6182 = vpop.f32.mrf.mxu0
    %v6183 = vadd.f32 %v5934, %v6182
    %v6184 = vpop.f32.mrf.mxu0
    %v6185 = vadd.f32 %v5934, %v6184
    %6186 = vmatmul.bf16.gmra.mxu0 %v4844
    %v6187 = vpop.f32.mrf.mxu0
    %v6188 = vadd.f32 %v5934, %v6187
    %v6189 = vpop.f32.mrf.mxu0
    %v6190 = vadd.f32 %v5934, %v6189
    %6191 = vmatmul.bf16.gmra.mxu0 %v4848
    %v6192 = vpop.f32.mrf.mxu0
    %v6193 = vadd.f32 %v5934, %v6192
    %v6194 = vpop.f32.mrf.mxu0
    %v6195 = vadd.f32 %v5934, %v6194
    %6196 = vmatmul.bf16.gmra.mxu0 %v4852
    %v6197 = vpop.f32.mrf.mxu0
    %v6198 = vadd.f32 %v5934, %v6197
    %v6199 = vpop.f32.mrf.mxu0
    %v6200 = vadd.f32 %v5934, %v6199
    %6201 = vmatmul.bf16.gmra.mxu0 %v4856
    %v6202 = vpop.f32.mrf.mxu0
    %v6203 = vadd.f32 %v5934, %v6202
    %v6204 = vpop.f32.mrf.mxu0
    %v6205 = vadd.f32 %v5934, %v6204
    %6206 = vmatmul.bf16.gmra.mxu0 %v4860
    %v6207 = vpop.f32.mrf.mxu0
    %v6208 = vadd.f32 %v5934, %v6207
    %v6209 = vpop.f32.mrf.mxu0
    %v6210 = vadd.f32 %v5934, %v6209
    %6211 = vmatmul.bf16.gmra.mxu0 %v4864
    %v6212 = vpop.f32.mrf.mxu0
    %v6213 = vadd.f32 %v5934, %v6212
    %v6214 = vpop.f32.mrf.mxu0
    %v6215 = vadd.f32 %v5934, %v6214
    %6216 = vmatmul.bf16.gmra.mxu0 %v4868
    %v6217 = vpop.f32.mrf.mxu0
    %v6218 = vadd.f32 %v5934, %v6217
    %v6219 = vpop.f32.mrf.mxu0
    %v6220 = vadd.f32 %v5934, %v6219
    %6221 = vmatmul.bf16.gmra.mxu0 %v4872
    %v6222 = vpop.f32.mrf.mxu0
    %v6223 = vadd.f32 %v5934, %v6222
    %v6224 = vpop.f32.mrf.mxu0
    %v6225 = vadd.f32 %v5934, %v6224
    %6226 = vmatmul.bf16.gmra.mxu0 %v4876
    %v6227 = vpop.f32.mrf.mxu0
    %v6228 = vadd.f32 %v5934, %v6227
    %v6229 = vpop.f32.mrf.mxu0
    %v6230 = vadd.f32 %v5934, %v6229
    %6231 = vmatmul.bf16.gmra.mxu0 %v4880
    %v6232 = vpop.f32.mrf.mxu0
    %v6233 = vadd.f32 %v5934, %v6232
    %v6234 = vpop.f32.mrf.mxu0
    %v6235 = vadd.f32 %v5934, %v6234
    %6236 = vmatmul.bf16.gmra.mxu0 %v4884
    %v6237 = vpop.f32.mrf.mxu0
    %v6238 = vadd.f32 %v5934, %v6237
    %v6239 = vpop.f32.mrf.mxu0
    %v6240 = vadd.f32 %v5934, %v6239
    %6241 = vmatmul.bf16.gmra.mxu0 %v4888
    %v6242 = vpop.f32.mrf.mxu0
    %v6243 = vadd.f32 %v5934, %v6242
    %v6244 = vpop.f32.mrf.mxu0
    %v6245 = vadd.f32 %v5934, %v6244
    %6246 = vmatmul.bf16.gmra.mxu0 %v4892
    %v6247 = vpop.f32.mrf.mxu0
    %v6248 = vadd.f32 %v5934, %v6247
    %v6249 = vpop.f32.mrf.mxu0
    %v6250 = vadd.f32 %v5934, %v6249
    %6251 = vmatmul.bf16.gmra.mxu0 %v4896
    %v6252 = vpop.f32.mrf.mxu0
    %v6253 = vadd.f32 %v5934, %v6252
    %v6254 = vpop.f32.mrf.mxu0
    %v6255 = vadd.f32 %v5934, %v6254
    %6256 = vmatmul.bf16.gmra.mxu0 %v4900
    %v6257 = vpop.f32.mrf.mxu0
    %v6258 = vadd.f32 %v5934, %v6257
    %v6259 = vpop.f32.mrf.mxu0
    %v6260 = vadd.f32 %v5934, %v6259
    %6261 = vmatmul.bf16.gmra.mxu0 %v4904
    %v6262 = vpop.f32.mrf.mxu0
    %v6263 = vadd.f32 %v5934, %v6262
    %v6264 = vpop.f32.mrf.mxu0
    %v6265 = vadd.f32 %v5934, %v6264
    %6266 = vmatmul.bf16.gmra.mxu0 %v4908
    %v6267 = vpop.f32.mrf.mxu0
    %v6268 = vadd.f32 %v5934, %v6267
    %v6269 = vpop.f32.mrf.mxu0
    %v6270 = vadd.f32 %v5934, %v6269
    %6271 = vmatmul.bf16.gmra.mxu0 %v4912
    %v6272 = vpop.f32.mrf.mxu0
    %v6273 = vadd.f32 %v5934, %v6272
    %v6274 = vpop.f32.mrf.mxu0
    %v6275 = vadd.f32 %v5934, %v6274
    %6276 = vmatmul.bf16.gmra.mxu0 %v4916
    %v6277 = vpop.f32.mrf.mxu0
    %v6278 = vadd.f32 %v5934, %v6277
    %v6279 = vpop.f32.mrf.mxu0
    %v6280 = vadd.f32 %v5934, %v6279
    %6281 = vmatmul.bf16.gmra.mxu0 %v4920
    %v6282 = vpop.f32.mrf.mxu0
    %v6283 = vadd.f32 %v5934, %v6282
    %v6284 = vpop.f32.mrf.mxu0
    %v6285 = vadd.f32 %v5934, %v6284
    %6286 = vmatmul.bf16.gmra.mxu0 %v4924
    %v6287 = vpop.f32.mrf.mxu0
    %v6288 = vadd.f32 %v5934, %v6287
    %v6289 = vpop.f32.mrf.mxu0
    %v6290 = vadd.f32 %v5934, %v6289
    %6291 = vmatmul.bf16.gmra.mxu0 %v4928
    %v6292 = vpop.f32.mrf.mxu0
    %v6293 = vadd.f32 %v5934, %v6292
    %v6294 = vpop.f32.mrf.mxu0
    %v6295 = vadd.f32 %v5934, %v6294
    %6296 = vdwg.mxu0
    %6297 = vmatpush.bf16.msra.mxu0 %v6079
    %6298 = vmatpush.bf16.msra.mxu0 %v6078
    %6299 = vmatpush.bf16.msra.mxu0 %v6077
    %6300 = vmatpush.bf16.msra.mxu0 %v6076
    %6301 = vmatpush.bf16.msra.mxu0 %v6075
    %6302 = vmatpush.bf16.msra.mxu0 %v6074
    %6303 = vmatpush.bf16.msra.mxu0 %v6073
    %6304 = vmatpush.bf16.msra.mxu0 %v6072
    %6305 = vmatmul.bf16.gmra.mxu0 %v4805
    %v6306 = vpop.f32.mrf.mxu0
    %v6307 = vadd.f32 %v6138, %v6306
    %v6308 = vpop.f32.mrf.mxu0
    %v6309 = vadd.f32 %v6140, %v6308
    %6310 = vmatmul.bf16.gmra.mxu0 %v4809
    %v6311 = vpop.f32.mrf.mxu0
    %v6312 = vadd.f32 %v6143, %v6311
    %v6313 = vpop.f32.mrf.mxu0
    %v6314 = vadd.f32 %v6145, %v6313
    %6315 = vmatmul.bf16.gmra.mxu0 %v4813
    %v6316 = vpop.f32.mrf.mxu0
    %v6317 = vadd.f32 %v6148, %v6316
    %v6318 = vpop.f32.mrf.mxu0
    %v6319 = vadd.f32 %v6150, %v6318
    %6320 = vmatmul.bf16.gmra.mxu0 %v4817
    %v6321 = vpop.f32.mrf.mxu0
    %v6322 = vadd.f32 %v6153, %v6321
    %v6323 = vpop.f32.mrf.mxu0
    %v6324 = vadd.f32 %v6155, %v6323
    %6325 = vmatmul.bf16.gmra.mxu0 %v4821
    %v6326 = vpop.f32.mrf.mxu0
    %v6327 = vadd.f32 %v6158, %v6326
    %v6328 = vpop.f32.mrf.mxu0
    %v6329 = vadd.f32 %v6160, %v6328
    %6330 = vmatmul.bf16.gmra.mxu0 %v4825
    %v6331 = vpop.f32.mrf.mxu0
    %v6332 = vadd.f32 %v6163, %v6331
    %v6333 = vpop.f32.mrf.mxu0
    %v6334 = vadd.f32 %v6165, %v6333
    %6335 = vmatmul.bf16.gmra.mxu0 %v4829
    %v6336 = vpop.f32.mrf.mxu0
    %v6337 = vadd.f32 %v6168, %v6336
    %v6338 = vpop.f32.mrf.mxu0
    %v6339 = vadd.f32 %v6170, %v6338
    %6340 = vmatmul.bf16.gmra.mxu0 %v4833
    %v6341 = vpop.f32.mrf.mxu0
    %v6342 = vadd.f32 %v6173, %v6341
    %v6343 = vpop.f32.mrf.mxu0
    %v6344 = vadd.f32 %v6175, %v6343
    %6345 = vmatmul.bf16.gmra.mxu0 %v4837
    %v6346 = vpop.f32.mrf.mxu0
    %v6347 = vadd.f32 %v6178, %v6346
    %v6348 = vpop.f32.mrf.mxu0
    %v6349 = vadd.f32 %v6180, %v6348
    %6350 = vmatmul.bf16.gmra.mxu0 %v4841
    %v6351 = vpop.f32.mrf.mxu0
    %v6352 = vadd.f32 %v6183, %v6351
    %v6353 = vpop.f32.mrf.mxu0
    %v6354 = vadd.f32 %v6185, %v6353
    %6355 = vmatmul.bf16.gmra.mxu0 %v4845
    %v6356 = vpop.f32.mrf.mxu0
    %v6357 = vadd.f32 %v6188, %v6356
    %v6358 = vpop.f32.mrf.mxu0
    %v6359 = vadd.f32 %v6190, %v6358
    %6360 = vmatmul.bf16.gmra.mxu0 %v4849
    %v6361 = vpop.f32.mrf.mxu0
    %v6362 = vadd.f32 %v6193, %v6361
    %v6363 = vpop.f32.mrf.mxu0
    %v6364 = vadd.f32 %v6195, %v6363
    %6365 = vmatmul.bf16.gmra.mxu0 %v4853
    %v6366 = vpop.f32.mrf.mxu0
    %v6367 = vadd.f32 %v6198, %v6366
    %v6368 = vpop.f32.mrf.mxu0
    %v6369 = vadd.f32 %v6200, %v6368
    %6370 = vmatmul.bf16.gmra.mxu0 %v4857
    %v6371 = vpop.f32.mrf.mxu0
    %v6372 = vadd.f32 %v6203, %v6371
    %v6373 = vpop.f32.mrf.mxu0
    %v6374 = vadd.f32 %v6205, %v6373
    %6375 = vmatmul.bf16.gmra.mxu0 %v4861
    %v6376 = vpop.f32.mrf.mxu0
    %v6377 = vadd.f32 %v6208, %v6376
    %v6378 = vpop.f32.mrf.mxu0
    %v6379 = vadd.f32 %v6210, %v6378
    %6380 = vmatmul.bf16.gmra.mxu0 %v4865
    %v6381 = vpop.f32.mrf.mxu0
    %v6382 = vadd.f32 %v6213, %v6381
    %v6383 = vpop.f32.mrf.mxu0
    %v6384 = vadd.f32 %v6215, %v6383
    %6385 = vmatmul.bf16.gmra.mxu0 %v4869
    %v6386 = vpop.f32.mrf.mxu0
    %v6387 = vadd.f32 %v6218, %v6386
    %v6388 = vpop.f32.mrf.mxu0
    %v6389 = vadd.f32 %v6220, %v6388
    %6390 = vmatmul.bf16.gmra.mxu0 %v4873
    %v6391 = vpop.f32.mrf.mxu0
    %v6392 = vadd.f32 %v6223, %v6391
    %v6393 = vpop.f32.mrf.mxu0
    %v6394 = vadd.f32 %v6225, %v6393
    %6395 = vmatmul.bf16.gmra.mxu0 %v4877
    %v6396 = vpop.f32.mrf.mxu0
    %v6397 = vadd.f32 %v6228, %v6396
    %v6398 = vpop.f32.mrf.mxu0
    %v6399 = vadd.f32 %v6230, %v6398
    %6400 = vmatmul.bf16.gmra.mxu0 %v4881
    %v6401 = vpop.f32.mrf.mxu0
    %v6402 = vadd.f32 %v6233, %v6401
    %v6403 = vpop.f32.mrf.mxu0
    %v6404 = vadd.f32 %v6235, %v6403
    %6405 = vmatmul.bf16.gmra.mxu0 %v4885
    %v6406 = vpop.f32.mrf.mxu0
    %v6407 = vadd.f32 %v6238, %v6406
    %v6408 = vpop.f32.mrf.mxu0
    %v6409 = vadd.f32 %v6240, %v6408
    %6410 = vmatmul.bf16.gmra.mxu0 %v4889
    %v6411 = vpop.f32.mrf.mxu0
    %v6412 = vadd.f32 %v6243, %v6411
    %v6413 = vpop.f32.mrf.mxu0
    %v6414 = vadd.f32 %v6245, %v6413
    %6415 = vmatmul.bf16.gmra.mxu0 %v4893
    %v6416 = vpop.f32.mrf.mxu0
    %v6417 = vadd.f32 %v6248, %v6416
    %v6418 = vpop.f32.mrf.mxu0
    %v6419 = vadd.f32 %v6250, %v6418
    %6420 = vmatmul.bf16.gmra.mxu0 %v4897
    %v6421 = vpop.f32.mrf.mxu0
    %v6422 = vadd.f32 %v6253, %v6421
    %v6423 = vpop.f32.mrf.mxu0
    %v6424 = vadd.f32 %v6255, %v6423
    %6425 = vmatmul.bf16.gmra.mxu0 %v4901
    %v6426 = vpop.f32.mrf.mxu0
    %v6427 = vadd.f32 %v6258, %v6426
    %v6428 = vpop.f32.mrf.mxu0
    %v6429 = vadd.f32 %v6260, %v6428
    %6430 = vmatmul.bf16.gmra.mxu0 %v4905
    %v6431 = vpop.f32.mrf.mxu0
    %v6432 = vadd.f32 %v6263, %v6431
    %v6433 = vpop.f32.mrf.mxu0
    %v6434 = vadd.f32 %v6265, %v6433
    %6435 = vmatmul.bf16.gmra.mxu0 %v4909
    %v6436 = vpop.f32.mrf.mxu0
    %v6437 = vadd.f32 %v6268, %v6436
    %v6438 = vpop.f32.mrf.mxu0
    %v6439 = vadd.f32 %v6270, %v6438
    %6440 = vmatmul.bf16.gmra.mxu0 %v4913
    %v6441 = vpop.f32.mrf.mxu0
    %v6442 = vadd.f32 %v6273, %v6441
    %v6443 = vpop.f32.mrf.mxu0
    %v6444 = vadd.f32 %v6275, %v6443
    %6445 = vmatmul.bf16.gmra.mxu0 %v4917
    %v6446 = vpop.f32.mrf.mxu0
    %v6447 = vadd.f32 %v6278, %v6446
    %v6448 = vpop.f32.mrf.mxu0
    %v6449 = vadd.f32 %v6280, %v6448
    %6450 = vmatmul.bf16.gmra.mxu0 %v4921
    %v6451 = vpop.f32.mrf.mxu0
    %v6452 = vadd.f32 %v6283, %v6451
    %v6453 = vpop.f32.mrf.mxu0
    %v6454 = vadd.f32 %v6285, %v6453
    %6455 = vmatmul.bf16.gmra.mxu0 %v4925
    %v6456 = vpop.f32.mrf.mxu0
    %v6457 = vadd.f32 %v6288, %v6456
    %v6458 = vpop.f32.mrf.mxu0
    %v6459 = vadd.f32 %v6290, %v6458
    %6460 = vmatmul.bf16.gmra.mxu0 %v4929
    %v6461 = vpop.f32.mrf.mxu0
    %v6462 = vadd.f32 %v6293, %v6461
    %v6463 = vpop.f32.mrf.mxu0
    %v6464 = vadd.f32 %v6295, %v6463
    %6465 = vdwg.mxu0
    %6466 = vmatpush.bf16.msra.mxu0 %v6087
    %6467 = vmatpush.bf16.msra.mxu0 %v6086
    %6468 = vmatpush.bf16.msra.mxu0 %v6085
    %6469 = vmatpush.bf16.msra.mxu0 %v6084
    %6470 = vmatpush.bf16.msra.mxu0 %v6083
    %6471 = vmatpush.bf16.msra.mxu0 %v6082
    %6472 = vmatpush.bf16.msra.mxu0 %v6081
    %6473 = vmatpush.bf16.msra.mxu0 %v6080
    %6474 = vmatmul.bf16.gmra.mxu0 %v4806
    %v6475 = vpop.f32.mrf.mxu0
    %v6476 = vadd.f32 %v6307, %v6475
    %v6477 = vpop.f32.mrf.mxu0
    %v6478 = vadd.f32 %v6309, %v6477
    %6479 = vmatmul.bf16.gmra.mxu0 %v4810
    %v6480 = vpop.f32.mrf.mxu0
    %v6481 = vadd.f32 %v6312, %v6480
    %v6482 = vpop.f32.mrf.mxu0
    %v6483 = vadd.f32 %v6314, %v6482
    %6484 = vmatmul.bf16.gmra.mxu0 %v4814
    %v6485 = vpop.f32.mrf.mxu0
    %v6486 = vadd.f32 %v6317, %v6485
    %v6487 = vpop.f32.mrf.mxu0
    %v6488 = vadd.f32 %v6319, %v6487
    %6489 = vmatmul.bf16.gmra.mxu0 %v4818
    %v6490 = vpop.f32.mrf.mxu0
    %v6491 = vadd.f32 %v6322, %v6490
    %v6492 = vpop.f32.mrf.mxu0
    %v6493 = vadd.f32 %v6324, %v6492
    %6494 = vmatmul.bf16.gmra.mxu0 %v4822
    %v6495 = vpop.f32.mrf.mxu0
    %v6496 = vadd.f32 %v6327, %v6495
    %v6497 = vpop.f32.mrf.mxu0
    %v6498 = vadd.f32 %v6329, %v6497
    %6499 = vmatmul.bf16.gmra.mxu0 %v4826
    %v6500 = vpop.f32.mrf.mxu0
    %v6501 = vadd.f32 %v6332, %v6500
    %v6502 = vpop.f32.mrf.mxu0
    %v6503 = vadd.f32 %v6334, %v6502
    %6504 = vmatmul.bf16.gmra.mxu0 %v4830
    %v6505 = vpop.f32.mrf.mxu0
    %v6506 = vadd.f32 %v6337, %v6505
    %v6507 = vpop.f32.mrf.mxu0
    %v6508 = vadd.f32 %v6339, %v6507
    %6509 = vmatmul.bf16.gmra.mxu0 %v4834
    %v6510 = vpop.f32.mrf.mxu0
    %v6511 = vadd.f32 %v6342, %v6510
    %v6512 = vpop.f32.mrf.mxu0
    %v6513 = vadd.f32 %v6344, %v6512
    %6514 = vmatmul.bf16.gmra.mxu0 %v4838
    %v6515 = vpop.f32.mrf.mxu0
    %v6516 = vadd.f32 %v6347, %v6515
    %v6517 = vpop.f32.mrf.mxu0
    %v6518 = vadd.f32 %v6349, %v6517
    %6519 = vmatmul.bf16.gmra.mxu0 %v4842
    %v6520 = vpop.f32.mrf.mxu0
    %v6521 = vadd.f32 %v6352, %v6520
    %v6522 = vpop.f32.mrf.mxu0
    %v6523 = vadd.f32 %v6354, %v6522
    %6524 = vmatmul.bf16.gmra.mxu0 %v4846
    %v6525 = vpop.f32.mrf.mxu0
    %v6526 = vadd.f32 %v6357, %v6525
    %v6527 = vpop.f32.mrf.mxu0
    %v6528 = vadd.f32 %v6359, %v6527
    %6529 = vmatmul.bf16.gmra.mxu0 %v4850
    %v6530 = vpop.f32.mrf.mxu0
    %v6531 = vadd.f32 %v6362, %v6530
    %v6532 = vpop.f32.mrf.mxu0
    %v6533 = vadd.f32 %v6364, %v6532
    %6534 = vmatmul.bf16.gmra.mxu0 %v4854
    %v6535 = vpop.f32.mrf.mxu0
    %v6536 = vadd.f32 %v6367, %v6535
    %v6537 = vpop.f32.mrf.mxu0
    %v6538 = vadd.f32 %v6369, %v6537
    %6539 = vmatmul.bf16.gmra.mxu0 %v4858
    %v6540 = vpop.f32.mrf.mxu0
    %v6541 = vadd.f32 %v6372, %v6540
    %v6542 = vpop.f32.mrf.mxu0
    %v6543 = vadd.f32 %v6374, %v6542
    %6544 = vmatmul.bf16.gmra.mxu0 %v4862
    %v6545 = vpop.f32.mrf.mxu0
    %v6546 = vadd.f32 %v6377, %v6545
    %v6547 = vpop.f32.mrf.mxu0
    %v6548 = vadd.f32 %v6379, %v6547
    %6549 = vmatmul.bf16.gmra.mxu0 %v4866
    %v6550 = vpop.f32.mrf.mxu0
    %v6551 = vadd.f32 %v6382, %v6550
    %v6552 = vpop.f32.mrf.mxu0
    %v6553 = vadd.f32 %v6384, %v6552
    %6554 = vmatmul.bf16.gmra.mxu0 %v4870
    %v6555 = vpop.f32.mrf.mxu0
    %v6556 = vadd.f32 %v6387, %v6555
    %v6557 = vpop.f32.mrf.mxu0
    %v6558 = vadd.f32 %v6389, %v6557
    %6559 = vmatmul.bf16.gmra.mxu0 %v4874
    %v6560 = vpop.f32.mrf.mxu0
    %v6561 = vadd.f32 %v6392, %v6560
    %v6562 = vpop.f32.mrf.mxu0
    %v6563 = vadd.f32 %v6394, %v6562
    %6564 = vmatmul.bf16.gmra.mxu0 %v4878
    %v6565 = vpop.f32.mrf.mxu0
    %v6566 = vadd.f32 %v6397, %v6565
    %v6567 = vpop.f32.mrf.mxu0
    %v6568 = vadd.f32 %v6399, %v6567
    %6569 = vmatmul.bf16.gmra.mxu0 %v4882
    %v6570 = vpop.f32.mrf.mxu0
    %v6571 = vadd.f32 %v6402, %v6570
    %v6572 = vpop.f32.mrf.mxu0
    %v6573 = vadd.f32 %v6404, %v6572
    %6574 = vmatmul.bf16.gmra.mxu0 %v4886
    %v6575 = vpop.f32.mrf.mxu0
    %v6576 = vadd.f32 %v6407, %v6575
    %v6577 = vpop.f32.mrf.mxu0
    %v6578 = vadd.f32 %v6409, %v6577
    %6579 = vmatmul.bf16.gmra.mxu0 %v4890
    %v6580 = vpop.f32.mrf.mxu0
    %v6581 = vadd.f32 %v6412, %v6580
    %v6582 = vpop.f32.mrf.mxu0
    %v6583 = vadd.f32 %v6414, %v6582
    %6584 = vmatmul.bf16.gmra.mxu0 %v4894
    %v6585 = vpop.f32.mrf.mxu0
    %v6586 = vadd.f32 %v6417, %v6585
    %v6587 = vpop.f32.mrf.mxu0
    %v6588 = vadd.f32 %v6419, %v6587
    %6589 = vmatmul.bf16.gmra.mxu0 %v4898
    %v6590 = vpop.f32.mrf.mxu0
    %v6591 = vadd.f32 %v6422, %v6590
    %v6592 = vpop.f32.mrf.mxu0
    %v6593 = vadd.f32 %v6424, %v6592
    %6594 = vmatmul.bf16.gmra.mxu0 %v4902
    %v6595 = vpop.f32.mrf.mxu0
    %v6596 = vadd.f32 %v6427, %v6595
    %v6597 = vpop.f32.mrf.mxu0
    %v6598 = vadd.f32 %v6429, %v6597
    %6599 = vmatmul.bf16.gmra.mxu0 %v4906
    %v6600 = vpop.f32.mrf.mxu0
    %v6601 = vadd.f32 %v6432, %v6600
    %v6602 = vpop.f32.mrf.mxu0
    %v6603 = vadd.f32 %v6434, %v6602
    %6604 = vmatmul.bf16.gmra.mxu0 %v4910
    %v6605 = vpop.f32.mrf.mxu0
    %v6606 = vadd.f32 %v6437, %v6605
    %v6607 = vpop.f32.mrf.mxu0
    %v6608 = vadd.f32 %v6439, %v6607
    %6609 = vmatmul.bf16.gmra.mxu0 %v4914
    %v6610 = vpop.f32.mrf.mxu0
    %v6611 = vadd.f32 %v6442, %v6610
    %v6612 = vpop.f32.mrf.mxu0
    %v6613 = vadd.f32 %v6444, %v6612
    %6614 = vmatmul.bf16.gmra.mxu0 %v4918
    %v6615 = vpop.f32.mrf.mxu0
    %v6616 = vadd.f32 %v6447, %v6615
    %v6617 = vpop.f32.mrf.mxu0
    %v6618 = vadd.f32 %v6449, %v6617
    %6619 = vmatmul.bf16.gmra.mxu0 %v4922
    %v6620 = vpop.f32.mrf.mxu0
    %v6621 = vadd.f32 %v6452, %v6620
    %v6622 = vpop.f32.mrf.mxu0
    %v6623 = vadd.f32 %v6454, %v6622
    %6624 = vmatmul.bf16.gmra.mxu0 %v4926
    %v6625 = vpop.f32.mrf.mxu0
    %v6626 = vadd.f32 %v6457, %v6625
    %v6627 = vpop.f32.mrf.mxu0
    %v6628 = vadd.f32 %v6459, %v6627
    %6629 = vmatmul.bf16.gmra.mxu0 %v4930
    %v6630 = vpop.f32.mrf.mxu0
    %v6631 = vadd.f32 %v6462, %v6630
    %v6632 = vpop.f32.mrf.mxu0
    %v6633 = vadd.f32 %v6464, %v6632
    %6634 = vdwg.mxu0
    %6635 = vmatpush.bf16.msra.mxu0 %v6095
    %6636 = vmatpush.bf16.msra.mxu0 %v6094
    %6637 = vmatpush.bf16.msra.mxu0 %v6093
    %6638 = vmatpush.bf16.msra.mxu0 %v6092
    %6639 = vmatpush.bf16.msra.mxu0 %v6091
    %6640 = vmatpush.bf16.msra.mxu0 %v6090
    %6641 = vmatpush.bf16.msra.mxu0 %v6089
    %6642 = vmatpush.bf16.msra.mxu0 %v6088
    %6643 = vmatmul.bf16.gmra.mxu0 %v4807
    %v6644 = vpop.f32.mrf.mxu0
    %v6645 = vadd.f32 %v6476, %v6644
    %v6646 = vpop.f32.mrf.mxu0
    %v6647 = vadd.f32 %v6478, %v6646
    %6648 = vmatmul.bf16.gmra.mxu0 %v4811
    %v6649 = vpop.f32.mrf.mxu0
    %v6650 = vadd.f32 %v6481, %v6649
    %v6651 = vpop.f32.mrf.mxu0
    %v6652 = vadd.f32 %v6483, %v6651
    %6653 = vmatmul.bf16.gmra.mxu0 %v4815
    %v6654 = vpop.f32.mrf.mxu0
    %v6655 = vadd.f32 %v6486, %v6654
    %v6656 = vpop.f32.mrf.mxu0
    %v6657 = vadd.f32 %v6488, %v6656
    %6658 = vmatmul.bf16.gmra.mxu0 %v4819
    %v6659 = vpop.f32.mrf.mxu0
    %v6660 = vadd.f32 %v6491, %v6659
    %v6661 = vpop.f32.mrf.mxu0
    %v6662 = vadd.f32 %v6493, %v6661
    %6663 = vmatmul.bf16.gmra.mxu0 %v4823
    %v6664 = vpop.f32.mrf.mxu0
    %v6665 = vadd.f32 %v6496, %v6664
    %v6666 = vpop.f32.mrf.mxu0
    %v6667 = vadd.f32 %v6498, %v6666
    %6668 = vmatmul.bf16.gmra.mxu0 %v4827
    %v6669 = vpop.f32.mrf.mxu0
    %v6670 = vadd.f32 %v6501, %v6669
    %v6671 = vpop.f32.mrf.mxu0
    %v6672 = vadd.f32 %v6503, %v6671
    %6673 = vmatmul.bf16.gmra.mxu0 %v4831
    %v6674 = vpop.f32.mrf.mxu0
    %v6675 = vadd.f32 %v6506, %v6674
    %v6676 = vpop.f32.mrf.mxu0
    %v6677 = vadd.f32 %v6508, %v6676
    %6678 = vmatmul.bf16.gmra.mxu0 %v4835
    %v6679 = vpop.f32.mrf.mxu0
    %v6680 = vadd.f32 %v6511, %v6679
    %v6681 = vpop.f32.mrf.mxu0
    %v6682 = vadd.f32 %v6513, %v6681
    %6683 = vmatmul.bf16.gmra.mxu0 %v4839
    %v6684 = vpop.f32.mrf.mxu0
    %v6685 = vadd.f32 %v6516, %v6684
    %v6686 = vpop.f32.mrf.mxu0
    %v6687 = vadd.f32 %v6518, %v6686
    %6688 = vmatmul.bf16.gmra.mxu0 %v4843
    %v6689 = vpop.f32.mrf.mxu0
    %v6690 = vadd.f32 %v6521, %v6689
    %v6691 = vpop.f32.mrf.mxu0
    %v6692 = vadd.f32 %v6523, %v6691
    %6693 = vmatmul.bf16.gmra.mxu0 %v4847
    %v6694 = vpop.f32.mrf.mxu0
    %v6695 = vadd.f32 %v6526, %v6694
    %v6696 = vpop.f32.mrf.mxu0
    %v6697 = vadd.f32 %v6528, %v6696
    %6698 = vmatmul.bf16.gmra.mxu0 %v4851
    %v6699 = vpop.f32.mrf.mxu0
    %v6700 = vadd.f32 %v6531, %v6699
    %v6701 = vpop.f32.mrf.mxu0
    %v6702 = vadd.f32 %v6533, %v6701
    %6703 = vmatmul.bf16.gmra.mxu0 %v4855
    %v6704 = vpop.f32.mrf.mxu0
    %v6705 = vadd.f32 %v6536, %v6704
    %v6706 = vpop.f32.mrf.mxu0
    %v6707 = vadd.f32 %v6538, %v6706
    %6708 = vmatmul.bf16.gmra.mxu0 %v4859
    %v6709 = vpop.f32.mrf.mxu0
    %v6710 = vadd.f32 %v6541, %v6709
    %v6711 = vpop.f32.mrf.mxu0
    %v6712 = vadd.f32 %v6543, %v6711
    %6713 = vmatmul.bf16.gmra.mxu0 %v4863
    %v6714 = vpop.f32.mrf.mxu0
    %v6715 = vadd.f32 %v6546, %v6714
    %v6716 = vpop.f32.mrf.mxu0
    %v6717 = vadd.f32 %v6548, %v6716
    %6718 = vmatmul.bf16.gmra.mxu0 %v4867
    %v6719 = vpop.f32.mrf.mxu0
    %v6720 = vadd.f32 %v6551, %v6719
    %v6721 = vpop.f32.mrf.mxu0
    %v6722 = vadd.f32 %v6553, %v6721
    %6723 = vmatmul.bf16.gmra.mxu0 %v4871
    %v6724 = vpop.f32.mrf.mxu0
    %v6725 = vadd.f32 %v6556, %v6724
    %v6726 = vpop.f32.mrf.mxu0
    %v6727 = vadd.f32 %v6558, %v6726
    %6728 = vmatmul.bf16.gmra.mxu0 %v4875
    %v6729 = vpop.f32.mrf.mxu0
    %v6730 = vadd.f32 %v6561, %v6729
    %v6731 = vpop.f32.mrf.mxu0
    %v6732 = vadd.f32 %v6563, %v6731
    %6733 = vmatmul.bf16.gmra.mxu0 %v4879
    %v6734 = vpop.f32.mrf.mxu0
    %v6735 = vadd.f32 %v6566, %v6734
    %v6736 = vpop.f32.mrf.mxu0
    %v6737 = vadd.f32 %v6568, %v6736
    %6738 = vmatmul.bf16.gmra.mxu0 %v4883
    %v6739 = vpop.f32.mrf.mxu0
    %v6740 = vadd.f32 %v6571, %v6739
    %v6741 = vpop.f32.mrf.mxu0
    %v6742 = vadd.f32 %v6573, %v6741
    %6743 = vmatmul.bf16.gmra.mxu0 %v4887
    %v6744 = vpop.f32.mrf.mxu0
    %v6745 = vadd.f32 %v6576, %v6744
    %v6746 = vpop.f32.mrf.mxu0
    %v6747 = vadd.f32 %v6578, %v6746
    %6748 = vmatmul.bf16.gmra.mxu0 %v4891
    %v6749 = vpop.f32.mrf.mxu0
    %v6750 = vadd.f32 %v6581, %v6749
    %v6751 = vpop.f32.mrf.mxu0
    %v6752 = vadd.f32 %v6583, %v6751
    %6753 = vmatmul.bf16.gmra.mxu0 %v4895
    %v6754 = vpop.f32.mrf.mxu0
    %v6755 = vadd.f32 %v6586, %v6754
    %v6756 = vpop.f32.mrf.mxu0
    %v6757 = vadd.f32 %v6588, %v6756
    %6758 = vmatmul.bf16.gmra.mxu0 %v4899
    %v6759 = vpop.f32.mrf.mxu0
    %v6760 = vadd.f32 %v6591, %v6759
    %v6761 = vpop.f32.mrf.mxu0
    %v6762 = vadd.f32 %v6593, %v6761
    %6763 = vmatmul.bf16.gmra.mxu0 %v4903
    %v6764 = vpop.f32.mrf.mxu0
    %v6765 = vadd.f32 %v6596, %v6764
    %v6766 = vpop.f32.mrf.mxu0
    %v6767 = vadd.f32 %v6598, %v6766
    %6768 = vmatmul.bf16.gmra.mxu0 %v4907
    %v6769 = vpop.f32.mrf.mxu0
    %v6770 = vadd.f32 %v6601, %v6769
    %v6771 = vpop.f32.mrf.mxu0
    %v6772 = vadd.f32 %v6603, %v6771
    %6773 = vmatmul.bf16.gmra.mxu0 %v4911
    %v6774 = vpop.f32.mrf.mxu0
    %v6775 = vadd.f32 %v6606, %v6774
    %v6776 = vpop.f32.mrf.mxu0
    %v6777 = vadd.f32 %v6608, %v6776
    %6778 = vmatmul.bf16.gmra.mxu0 %v4915
    %v6779 = vpop.f32.mrf.mxu0
    %v6780 = vadd.f32 %v6611, %v6779
    %v6781 = vpop.f32.mrf.mxu0
    %v6782 = vadd.f32 %v6613, %v6781
    %6783 = vmatmul.bf16.gmra.mxu0 %v4919
    %v6784 = vpop.f32.mrf.mxu0
    %v6785 = vadd.f32 %v6616, %v6784
    %v6786 = vpop.f32.mrf.mxu0
    %v6787 = vadd.f32 %v6618, %v6786
    %6788 = vmatmul.bf16.gmra.mxu0 %v4923
    %v6789 = vpop.f32.mrf.mxu0
    %v6790 = vadd.f32 %v6621, %v6789
    %v6791 = vpop.f32.mrf.mxu0
    %v6792 = vadd.f32 %v6623, %v6791
    %6793 = vmatmul.bf16.gmra.mxu0 %v4927
    %v6794 = vpop.f32.mrf.mxu0
    %v6795 = vadd.f32 %v6626, %v6794
    %v6796 = vpop.f32.mrf.mxu0
    %v6797 = vadd.f32 %v6628, %v6796
    %6798 = vmatmul.bf16.gmra.mxu0 %v4931
    %v6799 = vpop.f32.mrf.mxu0
    %v6800 = vadd.f32 %v6631, %v6799
    %v6801 = vpop.f32.mrf.mxu0
    %v6802 = vadd.f32 %v6633, %v6801
    %6803 = vdwg.mxu0
    %v6804 = vxor.u32 %v6645, 2147483648
    %v6805 = vxor.u32 %v6647, 2147483648
    %v6806 = vxor.u32 %v6650, 2147483648
    %v6807 = vxor.u32 %v6652, 2147483648
    %v6808 = vxor.u32 %v6655, 2147483648
    %v6809 = vxor.u32 %v6657, 2147483648
    %v6810 = vxor.u32 %v6660, 2147483648
    %v6811 = vxor.u32 %v6662, 2147483648
    %v6812 = vxor.u32 %v6665, 2147483648
    %v6813 = vxor.u32 %v6667, 2147483648
    %v6814 = vxor.u32 %v6670, 2147483648
    %v6815 = vxor.u32 %v6672, 2147483648
    %v6816 = vxor.u32 %v6675, 2147483648
    %v6817 = vxor.u32 %v6677, 2147483648
    %v6818 = vxor.u32 %v6680, 2147483648
    %v6819 = vxor.u32 %v6682, 2147483648
    %v6820 = vxor.u32 %v6685, 2147483648
    %v6821 = vxor.u32 %v6687, 2147483648
    %v6822 = vxor.u32 %v6690, 2147483648
    %v6823 = vxor.u32 %v6692, 2147483648
    %v6824 = vxor.u32 %v6695, 2147483648
    %v6825 = vxor.u32 %v6697, 2147483648
    %v6826 = vxor.u32 %v6700, 2147483648
    %v6827 = vxor.u32 %v6702, 2147483648
    %v6828 = vxor.u32 %v6705, 2147483648
    %v6829 = vxor.u32 %v6707, 2147483648
    %v6830 = vxor.u32 %v6710, 2147483648
    %v6831 = vxor.u32 %v6712, 2147483648
    %v6832 = vxor.u32 %v6715, 2147483648
    %v6833 = vxor.u32 %v6717, 2147483648
    %v6834 = vxor.u32 %v6720, 2147483648
    %v6835 = vxor.u32 %v6722, 2147483648
    %v6836 = vxor.u32 %v6725, 2147483648
    %v6837 = vxor.u32 %v6727, 2147483648
    %v6838 = vxor.u32 %v6730, 2147483648
    %v6839 = vxor.u32 %v6732, 2147483648
    %v6840 = vxor.u32 %v6735, 2147483648
    %v6841 = vxor.u32 %v6737, 2147483648
    %v6842 = vxor.u32 %v6740, 2147483648
    %v6843 = vxor.u32 %v6742, 2147483648
    %v6844 = vxor.u32 %v6745, 2147483648
    %v6845 = vxor.u32 %v6747, 2147483648
    %v6846 = vxor.u32 %v6750, 2147483648
    %v6847 = vxor.u32 %v6752, 2147483648
    %v6848 = vxor.u32 %v6755, 2147483648
    %v6849 = vxor.u32 %v6757, 2147483648
    %v6850 = vxor.u32 %v6760, 2147483648
    %v6851 = vxor.u32 %v6762, 2147483648
    %v6852 = vxor.u32 %v6765, 2147483648
    %v6853 = vxor.u32 %v6767, 2147483648
    %v6854 = vxor.u32 %v6770, 2147483648
    %v6855 = vxor.u32 %v6772, 2147483648
    %v6856 = vxor.u32 %v6775, 2147483648
    %v6857 = vxor.u32 %v6777, 2147483648
    %v6858 = vxor.u32 %v6780, 2147483648
    %v6859 = vxor.u32 %v6782, 2147483648
    %v6860 = vxor.u32 %v6785, 2147483648
    %v6861 = vxor.u32 %v6787, 2147483648
    %v6862 = vxor.u32 %v6790, 2147483648
    %v6863 = vxor.u32 %v6792, 2147483648
    %v6864 = vxor.u32 %v6795, 2147483648
    %v6865 = vxor.u32 %v6797, 2147483648
    %v6866 = vxor.u32 %v6800, 2147483648
    %v6867 = vxor.u32 %v6802, 2147483648
    %v6868 = vmul.f32 %v6804, 1.442695
    %v6869 = vpow.pop %v6868
    %v6870 = vmul.f32 %v6805, 1.442695
    %v6871 = vpow.pop %v6870
    %v6872 = vmul.f32 %v6806, 1.442695
    %v6873 = vpow.pop %v6872
    %v6874 = vmul.f32 %v6807, 1.442695
    %v6875 = vpow.pop %v6874
    %v6876 = vmul.f32 %v6808, 1.442695
    %v6877 = vpow.pop %v6876
    %v6878 = vmul.f32 %v6809, 1.442695
    %v6879 = vpow.pop %v6878
    %v6880 = vmul.f32 %v6810, 1.442695
    %v6881 = vpow.pop %v6880
    %v6882 = vmul.f32 %v6811, 1.442695
    %v6883 = vpow.pop %v6882
    %v6884 = vmul.f32 %v6812, 1.442695
    %v6885 = vpow.pop %v6884
    %v6886 = vmul.f32 %v6813, 1.442695
    %v6887 = vpow.pop %v6886
    %v6888 = vmul.f32 %v6814, 1.442695
    %v6889 = vpow.pop %v6888
    %v6890 = vmul.f32 %v6815, 1.442695
    %v6891 = vpow.pop %v6890
    %v6892 = vmul.f32 %v6816, 1.442695
    %v6893 = vpow.pop %v6892
    %v6894 = vmul.f32 %v6817, 1.442695
    %v6895 = vpow.pop %v6894
    %v6896 = vmul.f32 %v6818, 1.442695
    %v6897 = vpow.pop %v6896
    %v6898 = vmul.f32 %v6819, 1.442695
    %v6899 = vpow.pop %v6898
    %v6900 = vmul.f32 %v6820, 1.442695
    %v6901 = vpow.pop %v6900
    %v6902 = vmul.f32 %v6821, 1.442695
    %v6903 = vpow.pop %v6902
    %v6904 = vmul.f32 %v6822, 1.442695
    %v6905 = vpow.pop %v6904
    %v6906 = vmul.f32 %v6823, 1.442695
    %v6907 = vpow.pop %v6906
    %v6908 = vmul.f32 %v6824, 1.442695
    %v6909 = vpow.pop %v6908
    %v6910 = vmul.f32 %v6825, 1.442695
    %v6911 = vpow.pop %v6910
    %v6912 = vmul.f32 %v6826, 1.442695
    %v6913 = vpow.pop %v6912
    %v6914 = vmul.f32 %v6827, 1.442695
    %v6915 = vpow.pop %v6914
    %v6916 = vmul.f32 %v6828, 1.442695
    %v6917 = vpow.pop %v6916
    %v6918 = vmul.f32 %v6829, 1.442695
    %v6919 = vpow.pop %v6918
    %v6920 = vmul.f32 %v6830, 1.442695
    %v6921 = vpow.pop %v6920
    %v6922 = vmul.f32 %v6831, 1.442695
    %v6923 = vpow.pop %v6922
    %v6924 = vmul.f32 %v6832, 1.442695
    %v6925 = vpow.pop %v6924
    %v6926 = vmul.f32 %v6833, 1.442695
    %v6927 = vpow.pop %v6926
    %v6928 = vmul.f32 %v6834, 1.442695
    %v6929 = vpow.pop %v6928
    %v6930 = vmul.f32 %v6835, 1.442695
    %v6931 = vpow.pop %v6930
    %v6932 = vmul.f32 %v6836, 1.442695
    %v6933 = vpow.pop %v6932
    %v6934 = vmul.f32 %v6837, 1.442695
    %v6935 = vpow.pop %v6934
    %v6936 = vmul.f32 %v6838, 1.442695
    %v6937 = vpow.pop %v6936
    %v6938 = vmul.f32 %v6839, 1.442695
    %v6939 = vpow.pop %v6938
    %v6940 = vmul.f32 %v6840, 1.442695
    %v6941 = vpow.pop %v6940
    %v6942 = vmul.f32 %v6841, 1.442695
    %v6943 = vpow.pop %v6942
    %v6944 = vmul.f32 %v6842, 1.442695
    %v6945 = vpow.pop %v6944
    %v6946 = vmul.f32 %v6843, 1.442695
    %v6947 = vpow.pop %v6946
    %v6948 = vmul.f32 %v6844, 1.442695
    %v6949 = vpow.pop %v6948
    %v6950 = vmul.f32 %v6845, 1.442695
    %v6951 = vpow.pop %v6950
    %v6952 = vmul.f32 %v6846, 1.442695
    %v6953 = vpow.pop %v6952
    %v6954 = vmul.f32 %v6847, 1.442695
    %v6955 = vpow.pop %v6954
    %v6956 = vmul.f32 %v6848, 1.442695
    %v6957 = vpow.pop %v6956
    %v6958 = vmul.f32 %v6849, 1.442695
    %v6959 = vpow.pop %v6958
    %v6960 = vmul.f32 %v6850, 1.442695
    %v6961 = vpow.pop %v6960
    %v6962 = vmul.f32 %v6851, 1.442695
    %v6963 = vpow.pop %v6962
    %v6964 = vmul.f32 %v6852, 1.442695
    %v6965 = vpow.pop %v6964
    %v6966 = vmul.f32 %v6853, 1.442695
    %v6967 = vpow.pop %v6966
    %v6968 = vmul.f32 %v6854, 1.442695
    %v6969 = vpow.pop %v6968
    %v6970 = vmul.f32 %v6855, 1.442695
    %v6971 = vpow.pop %v6970
    %v6972 = vmul.f32 %v6856, 1.442695
    %v6973 = vpow.pop %v6972
    %v6974 = vmul.f32 %v6857, 1.442695
    %v6975 = vpow.pop %v6974
    %v6976 = vmul.f32 %v6858, 1.442695
    %v6977 = vpow.pop %v6976
    %v6978 = vmul.f32 %v6859, 1.442695
    %v6979 = vpow.pop %v6978
    %v6980 = vmul.f32 %v6860, 1.442695
    %v6981 = vpow.pop %v6980
    %v6982 = vmul.f32 %v6861, 1.442695
    %v6983 = vpow.pop %v6982
    %v6984 = vmul.f32 %v6862, 1.442695
    %v6985 = vpow.pop %v6984
    %v6986 = vmul.f32 %v6863, 1.442695
    %v6987 = vpow.pop %v6986
    %v6988 = vmul.f32 %v6864, 1.442695
    %v6989 = vpow.pop %v6988
    %v6990 = vmul.f32 %v6865, 1.442695
    %v6991 = vpow.pop %v6990
    %v6992 = vmul.f32 %v6866, 1.442695
    %v6993 = vpow.pop %v6992
    %v6994 = vmul.f32 %v6867, 1.442695
    %v6995 = vpow.pop %v6994
    %v6996 = vadd.f32 %v6869, 1.0
    %v6997 = vadd.f32 %v6871, 1.0
    %v6998 = vadd.f32 %v6873, 1.0
    %v6999 = vadd.f32 %v6875, 1.0
    %v7000 = vadd.f32 %v6877, 1.0
    %v7001 = vadd.f32 %v6879, 1.0
    %v7002 = vadd.f32 %v6881, 1.0
    %v7003 = vadd.f32 %v6883, 1.0
    %v7004 = vadd.f32 %v6885, 1.0
    %v7005 = vadd.f32 %v6887, 1.0
    %v7006 = vadd.f32 %v6889, 1.0
    %v7007 = vadd.f32 %v6891, 1.0
    %v7008 = vadd.f32 %v6893, 1.0
    %v7009 = vadd.f32 %v6895, 1.0
    %v7010 = vadd.f32 %v6897, 1.0
    %v7011 = vadd.f32 %v6899, 1.0
    %v7012 = vadd.f32 %v6901, 1.0
    %v7013 = vadd.f32 %v6903, 1.0
    %v7014 = vadd.f32 %v6905, 1.0
    %v7015 = vadd.f32 %v6907, 1.0
    %v7016 = vadd.f32 %v6909, 1.0
    %v7017 = vadd.f32 %v6911, 1.0
    %v7018 = vadd.f32 %v6913, 1.0
    %v7019 = vadd.f32 %v6915, 1.0
    %v7020 = vadd.f32 %v6917, 1.0
    %v7021 = vadd.f32 %v6919, 1.0
    %v7022 = vadd.f32 %v6921, 1.0
    %v7023 = vadd.f32 %v6923, 1.0
    %v7024 = vadd.f32 %v6925, 1.0
    %v7025 = vadd.f32 %v6927, 1.0
    %v7026 = vadd.f32 %v6929, 1.0
    %v7027 = vadd.f32 %v6931, 1.0
    %v7028 = vadd.f32 %v6933, 1.0
    %v7029 = vadd.f32 %v6935, 1.0
    %v7030 = vadd.f32 %v6937, 1.0
    %v7031 = vadd.f32 %v6939, 1.0
    %v7032 = vadd.f32 %v6941, 1.0
    %v7033 = vadd.f32 %v6943, 1.0
    %v7034 = vadd.f32 %v6945, 1.0
    %v7035 = vadd.f32 %v6947, 1.0
    %v7036 = vadd.f32 %v6949, 1.0
    %v7037 = vadd.f32 %v6951, 1.0
    %v7038 = vadd.f32 %v6953, 1.0
    %v7039 = vadd.f32 %v6955, 1.0
    %v7040 = vadd.f32 %v6957, 1.0
    %v7041 = vadd.f32 %v6959, 1.0
    %v7042 = vadd.f32 %v6961, 1.0
    %v7043 = vadd.f32 %v6963, 1.0
    %v7044 = vadd.f32 %v6965, 1.0
    %v7045 = vadd.f32 %v6967, 1.0
    %v7046 = vadd.f32 %v6969, 1.0
    %v7047 = vadd.f32 %v6971, 1.0
    %v7048 = vadd.f32 %v6973, 1.0
    %v7049 = vadd.f32 %v6975, 1.0
    %v7050 = vadd.f32 %v6977, 1.0
    %v7051 = vadd.f32 %v6979, 1.0
    %v7052 = vadd.f32 %v6981, 1.0
    %v7053 = vadd.f32 %v6983, 1.0
    %v7054 = vadd.f32 %v6985, 1.0
    %v7055 = vadd.f32 %v6987, 1.0
    %v7056 = vadd.f32 %v6989, 1.0
    %v7057 = vadd.f32 %v6991, 1.0
    %v7058 = vadd.f32 %v6993, 1.0
    %v7059 = vadd.f32 %v6995, 1.0
    %v7060 = vrcp.pop %v6996
    %v7061 = vmul.f32 %v6996, %v7060
    %v7062 = vsub.f32 1.0, %v7061
    %v7063 = vmul.f32 %v7060, %v7062
    %v7064 = vadd.f32 %v7060, %v7063
    %vm7065 = vweird.f32 %v6996
    %vm7066 = vweird.f32 %v7060
    %vm7067 = vmor %vm7065, %vm7066
    %v7068 = vsel %vm7067, %v7060, %v7064
    %v7069 = vand.u32 2147483647, %v6996
    %vm7070 = vcmp.eq.f32.partialorder %v7069, 8.507059e+37
    %v7071 = vand.u32 %v6996, 2147483648
    %v7072 = vor.u32 1.1754944e-38, %v7071
    %v7073 = vsel %vm7070, %v7072, %v7068
    %v7074 = vmul.f32 1.0, %v7073
    %v7075 = vrcp.pop %v6997
    %v7076 = vmul.f32 %v6997, %v7075
    %v7077 = vsub.f32 1.0, %v7076
    %v7078 = vmul.f32 %v7075, %v7077
    %v7079 = vadd.f32 %v7075, %v7078
    %vm7080 = vweird.f32 %v6997
    %vm7081 = vweird.f32 %v7075
    %vm7082 = vmor %vm7080, %vm7081
    %v7083 = vsel %vm7082, %v7075, %v7079
    %v7084 = vand.u32 2147483647, %v6997
    %vm7085 = vcmp.eq.f32.partialorder %v7084, 8.507059e+37
    %v7086 = vand.u32 %v6997, 2147483648
    %v7087 = vor.u32 1.1754944e-38, %v7086
    %v7088 = vsel %vm7085, %v7087, %v7083
    %v7089 = vmul.f32 1.0, %v7088
    %v7090 = vrcp.pop %v6998
    %v7091 = vmul.f32 %v6998, %v7090
    %v7092 = vsub.f32 1.0, %v7091
    %v7093 = vmul.f32 %v7090, %v7092
    %v7094 = vadd.f32 %v7090, %v7093
    %vm7095 = vweird.f32 %v6998
    %vm7096 = vweird.f32 %v7090
    %vm7097 = vmor %vm7095, %vm7096
    %v7098 = vsel %vm7097, %v7090, %v7094
    %v7099 = vand.u32 2147483647, %v6998
    %vm7100 = vcmp.eq.f32.partialorder %v7099, 8.507059e+37
    %v7101 = vand.u32 %v6998, 2147483648
    %v7102 = vor.u32 1.1754944e-38, %v7101
    %v7103 = vsel %vm7100, %v7102, %v7098
    %v7104 = vmul.f32 1.0, %v7103
    %v7105 = vrcp.pop %v6999
    %v7106 = vmul.f32 %v6999, %v7105
    %v7107 = vsub.f32 1.0, %v7106
    %v7108 = vmul.f32 %v7105, %v7107
    %v7109 = vadd.f32 %v7105, %v7108
    %vm7110 = vweird.f32 %v6999
    %vm7111 = vweird.f32 %v7105
    %vm7112 = vmor %vm7110, %vm7111
    %v7113 = vsel %vm7112, %v7105, %v7109
    %v7114 = vand.u32 2147483647, %v6999
    %vm7115 = vcmp.eq.f32.partialorder %v7114, 8.507059e+37
    %v7116 = vand.u32 %v6999, 2147483648
    %v7117 = vor.u32 1.1754944e-38, %v7116
    %v7118 = vsel %vm7115, %v7117, %v7113
    %v7119 = vmul.f32 1.0, %v7118
    %v7120 = vrcp.pop %v7000
    %v7121 = vmul.f32 %v7000, %v7120
    %v7122 = vsub.f32 1.0, %v7121
    %v7123 = vmul.f32 %v7120, %v7122
    %v7124 = vadd.f32 %v7120, %v7123
    %vm7125 = vweird.f32 %v7000
    %vm7126 = vweird.f32 %v7120
    %vm7127 = vmor %vm7125, %vm7126
    %v7128 = vsel %vm7127, %v7120, %v7124
    %v7129 = vand.u32 2147483647, %v7000
    %vm7130 = vcmp.eq.f32.partialorder %v7129, 8.507059e+37
    %v7131 = vand.u32 %v7000, 2147483648
    %v7132 = vor.u32 1.1754944e-38, %v7131
    %v7133 = vsel %vm7130, %v7132, %v7128
    %v7134 = vmul.f32 1.0, %v7133
    %v7135 = vrcp.pop %v7001
    %v7136 = vmul.f32 %v7001, %v7135
    %v7137 = vsub.f32 1.0, %v7136
    %v7138 = vmul.f32 %v7135, %v7137
    %v7139 = vadd.f32 %v7135, %v7138
    %vm7140 = vweird.f32 %v7001
    %vm7141 = vweird.f32 %v7135
    %vm7142 = vmor %vm7140, %vm7141
    %v7143 = vsel %vm7142, %v7135, %v7139
    %v7144 = vand.u32 2147483647, %v7001
    %vm7145 = vcmp.eq.f32.partialorder %v7144, 8.507059e+37
    %v7146 = vand.u32 %v7001, 2147483648
    %v7147 = vor.u32 1.1754944e-38, %v7146
    %v7148 = vsel %vm7145, %v7147, %v7143
    %v7149 = vmul.f32 1.0, %v7148
    %v7150 = vrcp.pop %v7002
    %v7151 = vmul.f32 %v7002, %v7150
    %v7152 = vsub.f32 1.0, %v7151
    %v7153 = vmul.f32 %v7150, %v7152
    %v7154 = vadd.f32 %v7150, %v7153
    %vm7155 = vweird.f32 %v7002
    %vm7156 = vweird.f32 %v7150
    %vm7157 = vmor %vm7155, %vm7156
    %v7158 = vsel %vm7157, %v7150, %v7154
    %v7159 = vand.u32 2147483647, %v7002
    %vm7160 = vcmp.eq.f32.partialorder %v7159, 8.507059e+37
    %v7161 = vand.u32 %v7002, 2147483648
    %v7162 = vor.u32 1.1754944e-38, %v7161
    %v7163 = vsel %vm7160, %v7162, %v7158
    %v7164 = vmul.f32 1.0, %v7163
    %v7165 = vrcp.pop %v7003
    %v7166 = vmul.f32 %v7003, %v7165
    %v7167 = vsub.f32 1.0, %v7166
    %v7168 = vmul.f32 %v7165, %v7167
    %v7169 = vadd.f32 %v7165, %v7168
    %vm7170 = vweird.f32 %v7003
    %vm7171 = vweird.f32 %v7165
    %vm7172 = vmor %vm7170, %vm7171
    %v7173 = vsel %vm7172, %v7165, %v7169
    %v7174 = vand.u32 2147483647, %v7003
    %vm7175 = vcmp.eq.f32.partialorder %v7174, 8.507059e+37
    %v7176 = vand.u32 %v7003, 2147483648
    %v7177 = vor.u32 1.1754944e-38, %v7176
    %v7178 = vsel %vm7175, %v7177, %v7173
    %v7179 = vmul.f32 1.0, %v7178
    %v7180 = vrcp.pop %v7004
    %v7181 = vmul.f32 %v7004, %v7180
    %v7182 = vsub.f32 1.0, %v7181
    %v7183 = vmul.f32 %v7180, %v7182
    %v7184 = vadd.f32 %v7180, %v7183
    %vm7185 = vweird.f32 %v7004
    %vm7186 = vweird.f32 %v7180
    %vm7187 = vmor %vm7185, %vm7186
    %v7188 = vsel %vm7187, %v7180, %v7184
    %v7189 = vand.u32 2147483647, %v7004
    %vm7190 = vcmp.eq.f32.partialorder %v7189, 8.507059e+37
    %v7191 = vand.u32 %v7004, 2147483648
    %v7192 = vor.u32 1.1754944e-38, %v7191
    %v7193 = vsel %vm7190, %v7192, %v7188
    %v7194 = vmul.f32 1.0, %v7193
    %v7195 = vrcp.pop %v7005
    %v7196 = vmul.f32 %v7005, %v7195
    %v7197 = vsub.f32 1.0, %v7196
    %v7198 = vmul.f32 %v7195, %v7197
    %v7199 = vadd.f32 %v7195, %v7198
    %vm7200 = vweird.f32 %v7005
    %vm7201 = vweird.f32 %v7195
    %vm7202 = vmor %vm7200, %vm7201
    %v7203 = vsel %vm7202, %v7195, %v7199
    %v7204 = vand.u32 2147483647, %v7005
    %vm7205 = vcmp.eq.f32.partialorder %v7204, 8.507059e+37
    %v7206 = vand.u32 %v7005, 2147483648
    %v7207 = vor.u32 1.1754944e-38, %v7206
    %v7208 = vsel %vm7205, %v7207, %v7203
    %v7209 = vmul.f32 1.0, %v7208
    %v7210 = vrcp.pop %v7006
    %v7211 = vmul.f32 %v7006, %v7210
    %v7212 = vsub.f32 1.0, %v7211
    %v7213 = vmul.f32 %v7210, %v7212
    %v7214 = vadd.f32 %v7210, %v7213
    %vm7215 = vweird.f32 %v7006
    %vm7216 = vweird.f32 %v7210
    %vm7217 = vmor %vm7215, %vm7216
    %v7218 = vsel %vm7217, %v7210, %v7214
    %v7219 = vand.u32 2147483647, %v7006
    %vm7220 = vcmp.eq.f32.partialorder %v7219, 8.507059e+37
    %v7221 = vand.u32 %v7006, 2147483648
    %v7222 = vor.u32 1.1754944e-38, %v7221
    %v7223 = vsel %vm7220, %v7222, %v7218
    %v7224 = vmul.f32 1.0, %v7223
    %v7225 = vrcp.pop %v7007
    %v7226 = vmul.f32 %v7007, %v7225
    %v7227 = vsub.f32 1.0, %v7226
    %v7228 = vmul.f32 %v7225, %v7227
    %v7229 = vadd.f32 %v7225, %v7228
    %vm7230 = vweird.f32 %v7007
    %vm7231 = vweird.f32 %v7225
    %vm7232 = vmor %vm7230, %vm7231
    %v7233 = vsel %vm7232, %v7225, %v7229
    %v7234 = vand.u32 2147483647, %v7007
    %vm7235 = vcmp.eq.f32.partialorder %v7234, 8.507059e+37
    %v7236 = vand.u32 %v7007, 2147483648
    %v7237 = vor.u32 1.1754944e-38, %v7236
    %v7238 = vsel %vm7235, %v7237, %v7233
    %v7239 = vmul.f32 1.0, %v7238
    %v7240 = vrcp.pop %v7008
    %v7241 = vmul.f32 %v7008, %v7240
    %v7242 = vsub.f32 1.0, %v7241
    %v7243 = vmul.f32 %v7240, %v7242
    %v7244 = vadd.f32 %v7240, %v7243
    %vm7245 = vweird.f32 %v7008
    %vm7246 = vweird.f32 %v7240
    %vm7247 = vmor %vm7245, %vm7246
    %v7248 = vsel %vm7247, %v7240, %v7244
    %v7249 = vand.u32 2147483647, %v7008
    %vm7250 = vcmp.eq.f32.partialorder %v7249, 8.507059e+37
    %v7251 = vand.u32 %v7008, 2147483648
    %v7252 = vor.u32 1.1754944e-38, %v7251
    %v7253 = vsel %vm7250, %v7252, %v7248
    %v7254 = vmul.f32 1.0, %v7253
    %v7255 = vrcp.pop %v7009
    %v7256 = vmul.f32 %v7009, %v7255
    %v7257 = vsub.f32 1.0, %v7256
    %v7258 = vmul.f32 %v7255, %v7257
    %v7259 = vadd.f32 %v7255, %v7258
    %vm7260 = vweird.f32 %v7009
    %vm7261 = vweird.f32 %v7255
    %vm7262 = vmor %vm7260, %vm7261
    %v7263 = vsel %vm7262, %v7255, %v7259
    %v7264 = vand.u32 2147483647, %v7009
    %vm7265 = vcmp.eq.f32.partialorder %v7264, 8.507059e+37
    %v7266 = vand.u32 %v7009, 2147483648
    %v7267 = vor.u32 1.1754944e-38, %v7266
    %v7268 = vsel %vm7265, %v7267, %v7263
    %v7269 = vmul.f32 1.0, %v7268
    %v7270 = vrcp.pop %v7010
    %v7271 = vmul.f32 %v7010, %v7270
    %v7272 = vsub.f32 1.0, %v7271
    %v7273 = vmul.f32 %v7270, %v7272
    %v7274 = vadd.f32 %v7270, %v7273
    %vm7275 = vweird.f32 %v7010
    %vm7276 = vweird.f32 %v7270
    %vm7277 = vmor %vm7275, %vm7276
    %v7278 = vsel %vm7277, %v7270, %v7274
    %v7279 = vand.u32 2147483647, %v7010
    %vm7280 = vcmp.eq.f32.partialorder %v7279, 8.507059e+37
    %v7281 = vand.u32 %v7010, 2147483648
    %v7282 = vor.u32 1.1754944e-38, %v7281
    %v7283 = vsel %vm7280, %v7282, %v7278
    %v7284 = vmul.f32 1.0, %v7283
    %v7285 = vrcp.pop %v7011
    %v7286 = vmul.f32 %v7011, %v7285
    %v7287 = vsub.f32 1.0, %v7286
    %v7288 = vmul.f32 %v7285, %v7287
    %v7289 = vadd.f32 %v7285, %v7288
    %vm7290 = vweird.f32 %v7011
    %vm7291 = vweird.f32 %v7285
    %vm7292 = vmor %vm7290, %vm7291
    %v7293 = vsel %vm7292, %v7285, %v7289
    %v7294 = vand.u32 2147483647, %v7011
    %vm7295 = vcmp.eq.f32.partialorder %v7294, 8.507059e+37
    %v7296 = vand.u32 %v7011, 2147483648
    %v7297 = vor.u32 1.1754944e-38, %v7296
    %v7298 = vsel %vm7295, %v7297, %v7293
    %v7299 = vmul.f32 1.0, %v7298
    %v7300 = vrcp.pop %v7012
    %v7301 = vmul.f32 %v7012, %v7300
    %v7302 = vsub.f32 1.0, %v7301
    %v7303 = vmul.f32 %v7300, %v7302
    %v7304 = vadd.f32 %v7300, %v7303
    %vm7305 = vweird.f32 %v7012
    %vm7306 = vweird.f32 %v7300
    %vm7307 = vmor %vm7305, %vm7306
    %v7308 = vsel %vm7307, %v7300, %v7304
    %v7309 = vand.u32 2147483647, %v7012
    %vm7310 = vcmp.eq.f32.partialorder %v7309, 8.507059e+37
    %v7311 = vand.u32 %v7012, 2147483648
    %v7312 = vor.u32 1.1754944e-38, %v7311
    %v7313 = vsel %vm7310, %v7312, %v7308
    %v7314 = vmul.f32 1.0, %v7313
    %v7315 = vrcp.pop %v7013
    %v7316 = vmul.f32 %v7013, %v7315
    %v7317 = vsub.f32 1.0, %v7316
    %v7318 = vmul.f32 %v7315, %v7317
    %v7319 = vadd.f32 %v7315, %v7318
    %vm7320 = vweird.f32 %v7013
    %vm7321 = vweird.f32 %v7315
    %vm7322 = vmor %vm7320, %vm7321
    %v7323 = vsel %vm7322, %v7315, %v7319
    %v7324 = vand.u32 2147483647, %v7013
    %vm7325 = vcmp.eq.f32.partialorder %v7324, 8.507059e+37
    %v7326 = vand.u32 %v7013, 2147483648
    %v7327 = vor.u32 1.1754944e-38, %v7326
    %v7328 = vsel %vm7325, %v7327, %v7323
    %v7329 = vmul.f32 1.0, %v7328
    %v7330 = vrcp.pop %v7014
    %v7331 = vmul.f32 %v7014, %v7330
    %v7332 = vsub.f32 1.0, %v7331
    %v7333 = vmul.f32 %v7330, %v7332
    %v7334 = vadd.f32 %v7330, %v7333
    %vm7335 = vweird.f32 %v7014
    %vm7336 = vweird.f32 %v7330
    %vm7337 = vmor %vm7335, %vm7336
    %v7338 = vsel %vm7337, %v7330, %v7334
    %v7339 = vand.u32 2147483647, %v7014
    %vm7340 = vcmp.eq.f32.partialorder %v7339, 8.507059e+37
    %v7341 = vand.u32 %v7014, 2147483648
    %v7342 = vor.u32 1.1754944e-38, %v7341
    %v7343 = vsel %vm7340, %v7342, %v7338
    %v7344 = vmul.f32 1.0, %v7343
    %v7345 = vrcp.pop %v7015
    %v7346 = vmul.f32 %v7015, %v7345
    %v7347 = vsub.f32 1.0, %v7346
    %v7348 = vmul.f32 %v7345, %v7347
    %v7349 = vadd.f32 %v7345, %v7348
    %vm7350 = vweird.f32 %v7015
    %vm7351 = vweird.f32 %v7345
    %vm7352 = vmor %vm7350, %vm7351
    %v7353 = vsel %vm7352, %v7345, %v7349
    %v7354 = vand.u32 2147483647, %v7015
    %vm7355 = vcmp.eq.f32.partialorder %v7354, 8.507059e+37
    %v7356 = vand.u32 %v7015, 2147483648
    %v7357 = vor.u32 1.1754944e-38, %v7356
    %v7358 = vsel %vm7355, %v7357, %v7353
    %v7359 = vmul.f32 1.0, %v7358
    %v7360 = vrcp.pop %v7016
    %v7361 = vmul.f32 %v7016, %v7360
    %v7362 = vsub.f32 1.0, %v7361
    %v7363 = vmul.f32 %v7360, %v7362
    %v7364 = vadd.f32 %v7360, %v7363
    %vm7365 = vweird.f32 %v7016
    %vm7366 = vweird.f32 %v7360
    %vm7367 = vmor %vm7365, %vm7366
    %v7368 = vsel %vm7367, %v7360, %v7364
    %v7369 = vand.u32 2147483647, %v7016
    %vm7370 = vcmp.eq.f32.partialorder %v7369, 8.507059e+37
    %v7371 = vand.u32 %v7016, 2147483648
    %v7372 = vor.u32 1.1754944e-38, %v7371
    %v7373 = vsel %vm7370, %v7372, %v7368
    %v7374 = vmul.f32 1.0, %v7373
    %v7375 = vrcp.pop %v7017
    %v7376 = vmul.f32 %v7017, %v7375
    %v7377 = vsub.f32 1.0, %v7376
    %v7378 = vmul.f32 %v7375, %v7377
    %v7379 = vadd.f32 %v7375, %v7378
    %vm7380 = vweird.f32 %v7017
    %vm7381 = vweird.f32 %v7375
    %vm7382 = vmor %vm7380, %vm7381
    %v7383 = vsel %vm7382, %v7375, %v7379
    %v7384 = vand.u32 2147483647, %v7017
    %vm7385 = vcmp.eq.f32.partialorder %v7384, 8.507059e+37
    %v7386 = vand.u32 %v7017, 2147483648
    %v7387 = vor.u32 1.1754944e-38, %v7386
    %v7388 = vsel %vm7385, %v7387, %v7383
    %v7389 = vmul.f32 1.0, %v7388
    %v7390 = vrcp.pop %v7018
    %v7391 = vmul.f32 %v7018, %v7390
    %v7392 = vsub.f32 1.0, %v7391
    %v7393 = vmul.f32 %v7390, %v7392
    %v7394 = vadd.f32 %v7390, %v7393
    %vm7395 = vweird.f32 %v7018
    %vm7396 = vweird.f32 %v7390
    %vm7397 = vmor %vm7395, %vm7396
    %v7398 = vsel %vm7397, %v7390, %v7394
    %v7399 = vand.u32 2147483647, %v7018
    %vm7400 = vcmp.eq.f32.partialorder %v7399, 8.507059e+37
    %v7401 = vand.u32 %v7018, 2147483648
    %v7402 = vor.u32 1.1754944e-38, %v7401
    %v7403 = vsel %vm7400, %v7402, %v7398
    %v7404 = vmul.f32 1.0, %v7403
    %v7405 = vrcp.pop %v7019
    %v7406 = vmul.f32 %v7019, %v7405
    %v7407 = vsub.f32 1.0, %v7406
    %v7408 = vmul.f32 %v7405, %v7407
    %v7409 = vadd.f32 %v7405, %v7408
    %vm7410 = vweird.f32 %v7019
    %vm7411 = vweird.f32 %v7405
    %vm7412 = vmor %vm7410, %vm7411
    %v7413 = vsel %vm7412, %v7405, %v7409
    %v7414 = vand.u32 2147483647, %v7019
    %vm7415 = vcmp.eq.f32.partialorder %v7414, 8.507059e+37
    %v7416 = vand.u32 %v7019, 2147483648
    %v7417 = vor.u32 1.1754944e-38, %v7416
    %v7418 = vsel %vm7415, %v7417, %v7413
    %v7419 = vmul.f32 1.0, %v7418
    %v7420 = vrcp.pop %v7020
    %v7421 = vmul.f32 %v7020, %v7420
    %v7422 = vsub.f32 1.0, %v7421
    %v7423 = vmul.f32 %v7420, %v7422
    %v7424 = vadd.f32 %v7420, %v7423
    %vm7425 = vweird.f32 %v7020
    %vm7426 = vweird.f32 %v7420
    %vm7427 = vmor %vm7425, %vm7426
    %v7428 = vsel %vm7427, %v7420, %v7424
    %v7429 = vand.u32 2147483647, %v7020
    %vm7430 = vcmp.eq.f32.partialorder %v7429, 8.507059e+37
    %v7431 = vand.u32 %v7020, 2147483648
    %v7432 = vor.u32 1.1754944e-38, %v7431
    %v7433 = vsel %vm7430, %v7432, %v7428
    %v7434 = vmul.f32 1.0, %v7433
    %v7435 = vrcp.pop %v7021
    %v7436 = vmul.f32 %v7021, %v7435
    %v7437 = vsub.f32 1.0, %v7436
    %v7438 = vmul.f32 %v7435, %v7437
    %v7439 = vadd.f32 %v7435, %v7438
    %vm7440 = vweird.f32 %v7021
    %vm7441 = vweird.f32 %v7435
    %vm7442 = vmor %vm7440, %vm7441
    %v7443 = vsel %vm7442, %v7435, %v7439
    %v7444 = vand.u32 2147483647, %v7021
    %vm7445 = vcmp.eq.f32.partialorder %v7444, 8.507059e+37
    %v7446 = vand.u32 %v7021, 2147483648
    %v7447 = vor.u32 1.1754944e-38, %v7446
    %v7448 = vsel %vm7445, %v7447, %v7443
    %v7449 = vmul.f32 1.0, %v7448
    %v7450 = vrcp.pop %v7022
    %v7451 = vmul.f32 %v7022, %v7450
    %v7452 = vsub.f32 1.0, %v7451
    %v7453 = vmul.f32 %v7450, %v7452
    %v7454 = vadd.f32 %v7450, %v7453
    %vm7455 = vweird.f32 %v7022
    %vm7456 = vweird.f32 %v7450
    %vm7457 = vmor %vm7455, %vm7456
    %v7458 = vsel %vm7457, %v7450, %v7454
    %v7459 = vand.u32 2147483647, %v7022
    %vm7460 = vcmp.eq.f32.partialorder %v7459, 8.507059e+37
    %v7461 = vand.u32 %v7022, 2147483648
    %v7462 = vor.u32 1.1754944e-38, %v7461
    %v7463 = vsel %vm7460, %v7462, %v7458
    %v7464 = vmul.f32 1.0, %v7463
    %v7465 = vrcp.pop %v7023
    %v7466 = vmul.f32 %v7023, %v7465
    %v7467 = vsub.f32 1.0, %v7466
    %v7468 = vmul.f32 %v7465, %v7467
    %v7469 = vadd.f32 %v7465, %v7468
    %vm7470 = vweird.f32 %v7023
    %vm7471 = vweird.f32 %v7465
    %vm7472 = vmor %vm7470, %vm7471
    %v7473 = vsel %vm7472, %v7465, %v7469
    %v7474 = vand.u32 2147483647, %v7023
    %vm7475 = vcmp.eq.f32.partialorder %v7474, 8.507059e+37
    %v7476 = vand.u32 %v7023, 2147483648
    %v7477 = vor.u32 1.1754944e-38, %v7476
    %v7478 = vsel %vm7475, %v7477, %v7473
    %v7479 = vmul.f32 1.0, %v7478
    %v7480 = vrcp.pop %v7024
    %v7481 = vmul.f32 %v7024, %v7480
    %v7482 = vsub.f32 1.0, %v7481
    %v7483 = vmul.f32 %v7480, %v7482
    %v7484 = vadd.f32 %v7480, %v7483
    %vm7485 = vweird.f32 %v7024
    %vm7486 = vweird.f32 %v7480
    %vm7487 = vmor %vm7485, %vm7486
    %v7488 = vsel %vm7487, %v7480, %v7484
    %v7489 = vand.u32 2147483647, %v7024
    %vm7490 = vcmp.eq.f32.partialorder %v7489, 8.507059e+37
    %v7491 = vand.u32 %v7024, 2147483648
    %v7492 = vor.u32 1.1754944e-38, %v7491
    %v7493 = vsel %vm7490, %v7492, %v7488
    %v7494 = vmul.f32 1.0, %v7493
    %v7495 = vrcp.pop %v7025
    %v7496 = vmul.f32 %v7025, %v7495
    %v7497 = vsub.f32 1.0, %v7496
    %v7498 = vmul.f32 %v7495, %v7497
    %v7499 = vadd.f32 %v7495, %v7498
    %vm7500 = vweird.f32 %v7025
    %vm7501 = vweird.f32 %v7495
    %vm7502 = vmor %vm7500, %vm7501
    %v7503 = vsel %vm7502, %v7495, %v7499
    %v7504 = vand.u32 2147483647, %v7025
    %vm7505 = vcmp.eq.f32.partialorder %v7504, 8.507059e+37
    %v7506 = vand.u32 %v7025, 2147483648
    %v7507 = vor.u32 1.1754944e-38, %v7506
    %v7508 = vsel %vm7505, %v7507, %v7503
    %v7509 = vmul.f32 1.0, %v7508
    %v7510 = vrcp.pop %v7026
    %v7511 = vmul.f32 %v7026, %v7510
    %v7512 = vsub.f32 1.0, %v7511
    %v7513 = vmul.f32 %v7510, %v7512
    %v7514 = vadd.f32 %v7510, %v7513
    %vm7515 = vweird.f32 %v7026
    %vm7516 = vweird.f32 %v7510
    %vm7517 = vmor %vm7515, %vm7516
    %v7518 = vsel %vm7517, %v7510, %v7514
    %v7519 = vand.u32 2147483647, %v7026
    %vm7520 = vcmp.eq.f32.partialorder %v7519, 8.507059e+37
    %v7521 = vand.u32 %v7026, 2147483648
    %v7522 = vor.u32 1.1754944e-38, %v7521
    %v7523 = vsel %vm7520, %v7522, %v7518
    %v7524 = vmul.f32 1.0, %v7523
    %v7525 = vrcp.pop %v7027
    %v7526 = vmul.f32 %v7027, %v7525
    %v7527 = vsub.f32 1.0, %v7526
    %v7528 = vmul.f32 %v7525, %v7527
    %v7529 = vadd.f32 %v7525, %v7528
    %vm7530 = vweird.f32 %v7027
    %vm7531 = vweird.f32 %v7525
    %vm7532 = vmor %vm7530, %vm7531
    %v7533 = vsel %vm7532, %v7525, %v7529
    %v7534 = vand.u32 2147483647, %v7027
    %vm7535 = vcmp.eq.f32.partialorder %v7534, 8.507059e+37
    %v7536 = vand.u32 %v7027, 2147483648
    %v7537 = vor.u32 1.1754944e-38, %v7536
    %v7538 = vsel %vm7535, %v7537, %v7533
    %v7539 = vmul.f32 1.0, %v7538
    %v7540 = vrcp.pop %v7028
    %v7541 = vmul.f32 %v7028, %v7540
    %v7542 = vsub.f32 1.0, %v7541
    %v7543 = vmul.f32 %v7540, %v7542
    %v7544 = vadd.f32 %v7540, %v7543
    %vm7545 = vweird.f32 %v7028
    %vm7546 = vweird.f32 %v7540
    %vm7547 = vmor %vm7545, %vm7546
    %v7548 = vsel %vm7547, %v7540, %v7544
    %v7549 = vand.u32 2147483647, %v7028
    %vm7550 = vcmp.eq.f32.partialorder %v7549, 8.507059e+37
    %v7551 = vand.u32 %v7028, 2147483648
    %v7552 = vor.u32 1.1754944e-38, %v7551
    %v7553 = vsel %vm7550, %v7552, %v7548
    %v7554 = vmul.f32 1.0, %v7553
    %v7555 = vrcp.pop %v7029
    %v7556 = vmul.f32 %v7029, %v7555
    %v7557 = vsub.f32 1.0, %v7556
    %v7558 = vmul.f32 %v7555, %v7557
    %v7559 = vadd.f32 %v7555, %v7558
    %vm7560 = vweird.f32 %v7029
    %vm7561 = vweird.f32 %v7555
    %vm7562 = vmor %vm7560, %vm7561
    %v7563 = vsel %vm7562, %v7555, %v7559
    %v7564 = vand.u32 2147483647, %v7029
    %vm7565 = vcmp.eq.f32.partialorder %v7564, 8.507059e+37
    %v7566 = vand.u32 %v7029, 2147483648
    %v7567 = vor.u32 1.1754944e-38, %v7566
    %v7568 = vsel %vm7565, %v7567, %v7563
    %v7569 = vmul.f32 1.0, %v7568
    %v7570 = vrcp.pop %v7030
    %v7571 = vmul.f32 %v7030, %v7570
    %v7572 = vsub.f32 1.0, %v7571
    %v7573 = vmul.f32 %v7570, %v7572
    %v7574 = vadd.f32 %v7570, %v7573
    %vm7575 = vweird.f32 %v7030
    %vm7576 = vweird.f32 %v7570
    %vm7577 = vmor %vm7575, %vm7576
    %v7578 = vsel %vm7577, %v7570, %v7574
    %v7579 = vand.u32 2147483647, %v7030
    %vm7580 = vcmp.eq.f32.partialorder %v7579, 8.507059e+37
    %v7581 = vand.u32 %v7030, 2147483648
    %v7582 = vor.u32 1.1754944e-38, %v7581
    %v7583 = vsel %vm7580, %v7582, %v7578
    %v7584 = vmul.f32 1.0, %v7583
    %v7585 = vrcp.pop %v7031
    %v7586 = vmul.f32 %v7031, %v7585
    %v7587 = vsub.f32 1.0, %v7586
    %v7588 = vmul.f32 %v7585, %v7587
    %v7589 = vadd.f32 %v7585, %v7588
    %vm7590 = vweird.f32 %v7031
    %vm7591 = vweird.f32 %v7585
    %vm7592 = vmor %vm7590, %vm7591
    %v7593 = vsel %vm7592, %v7585, %v7589
    %v7594 = vand.u32 2147483647, %v7031
    %vm7595 = vcmp.eq.f32.partialorder %v7594, 8.507059e+37
    %v7596 = vand.u32 %v7031, 2147483648
    %v7597 = vor.u32 1.1754944e-38, %v7596
    %v7598 = vsel %vm7595, %v7597, %v7593
    %v7599 = vmul.f32 1.0, %v7598
    %v7600 = vrcp.pop %v7032
    %v7601 = vmul.f32 %v7032, %v7600
    %v7602 = vsub.f32 1.0, %v7601
    %v7603 = vmul.f32 %v7600, %v7602
    %v7604 = vadd.f32 %v7600, %v7603
    %vm7605 = vweird.f32 %v7032
    %vm7606 = vweird.f32 %v7600
    %vm7607 = vmor %vm7605, %vm7606
    %v7608 = vsel %vm7607, %v7600, %v7604
    %v7609 = vand.u32 2147483647, %v7032
    %vm7610 = vcmp.eq.f32.partialorder %v7609, 8.507059e+37
    %v7611 = vand.u32 %v7032, 2147483648
    %v7612 = vor.u32 1.1754944e-38, %v7611
    %v7613 = vsel %vm7610, %v7612, %v7608
    %v7614 = vmul.f32 1.0, %v7613
    %v7615 = vrcp.pop %v7033
    %v7616 = vmul.f32 %v7033, %v7615
    %v7617 = vsub.f32 1.0, %v7616
    %v7618 = vmul.f32 %v7615, %v7617
    %v7619 = vadd.f32 %v7615, %v7618
    %vm7620 = vweird.f32 %v7033
    %vm7621 = vweird.f32 %v7615
    %vm7622 = vmor %vm7620, %vm7621
    %v7623 = vsel %vm7622, %v7615, %v7619
    %v7624 = vand.u32 2147483647, %v7033
    %vm7625 = vcmp.eq.f32.partialorder %v7624, 8.507059e+37
    %v7626 = vand.u32 %v7033, 2147483648
    %v7627 = vor.u32 1.1754944e-38, %v7626
    %v7628 = vsel %vm7625, %v7627, %v7623
    %v7629 = vmul.f32 1.0, %v7628
    %v7630 = vrcp.pop %v7034
    %v7631 = vmul.f32 %v7034, %v7630
    %v7632 = vsub.f32 1.0, %v7631
    %v7633 = vmul.f32 %v7630, %v7632
    %v7634 = vadd.f32 %v7630, %v7633
    %vm7635 = vweird.f32 %v7034
    %vm7636 = vweird.f32 %v7630
    %vm7637 = vmor %vm7635, %vm7636
    %v7638 = vsel %vm7637, %v7630, %v7634
    %v7639 = vand.u32 2147483647, %v7034
    %vm7640 = vcmp.eq.f32.partialorder %v7639, 8.507059e+37
    %v7641 = vand.u32 %v7034, 2147483648
    %v7642 = vor.u32 1.1754944e-38, %v7641
    %v7643 = vsel %vm7640, %v7642, %v7638
    %v7644 = vmul.f32 1.0, %v7643
    %v7645 = vrcp.pop %v7035
    %v7646 = vmul.f32 %v7035, %v7645
    %v7647 = vsub.f32 1.0, %v7646
    %v7648 = vmul.f32 %v7645, %v7647
    %v7649 = vadd.f32 %v7645, %v7648
    %vm7650 = vweird.f32 %v7035
    %vm7651 = vweird.f32 %v7645
    %vm7652 = vmor %vm7650, %vm7651
    %v7653 = vsel %vm7652, %v7645, %v7649
    %v7654 = vand.u32 2147483647, %v7035
    %vm7655 = vcmp.eq.f32.partialorder %v7654, 8.507059e+37
    %v7656 = vand.u32 %v7035, 2147483648
    %v7657 = vor.u32 1.1754944e-38, %v7656
    %v7658 = vsel %vm7655, %v7657, %v7653
    %v7659 = vmul.f32 1.0, %v7658
    %v7660 = vrcp.pop %v7036
    %v7661 = vmul.f32 %v7036, %v7660
    %v7662 = vsub.f32 1.0, %v7661
    %v7663 = vmul.f32 %v7660, %v7662
    %v7664 = vadd.f32 %v7660, %v7663
    %vm7665 = vweird.f32 %v7036
    %vm7666 = vweird.f32 %v7660
    %vm7667 = vmor %vm7665, %vm7666
    %v7668 = vsel %vm7667, %v7660, %v7664
    %v7669 = vand.u32 2147483647, %v7036
    %vm7670 = vcmp.eq.f32.partialorder %v7669, 8.507059e+37
    %v7671 = vand.u32 %v7036, 2147483648
    %v7672 = vor.u32 1.1754944e-38, %v7671
    %v7673 = vsel %vm7670, %v7672, %v7668
    %v7674 = vmul.f32 1.0, %v7673
    %v7675 = vrcp.pop %v7037
    %v7676 = vmul.f32 %v7037, %v7675
    %v7677 = vsub.f32 1.0, %v7676
    %v7678 = vmul.f32 %v7675, %v7677
    %v7679 = vadd.f32 %v7675, %v7678
    %vm7680 = vweird.f32 %v7037
    %vm7681 = vweird.f32 %v7675
    %vm7682 = vmor %vm7680, %vm7681
    %v7683 = vsel %vm7682, %v7675, %v7679
    %v7684 = vand.u32 2147483647, %v7037
    %vm7685 = vcmp.eq.f32.partialorder %v7684, 8.507059e+37
    %v7686 = vand.u32 %v7037, 2147483648
    %v7687 = vor.u32 1.1754944e-38, %v7686
    %v7688 = vsel %vm7685, %v7687, %v7683
    %v7689 = vmul.f32 1.0, %v7688
    %v7690 = vrcp.pop %v7038
    %v7691 = vmul.f32 %v7038, %v7690
    %v7692 = vsub.f32 1.0, %v7691
    %v7693 = vmul.f32 %v7690, %v7692
    %v7694 = vadd.f32 %v7690, %v7693
    %vm7695 = vweird.f32 %v7038
    %vm7696 = vweird.f32 %v7690
    %vm7697 = vmor %vm7695, %vm7696
    %v7698 = vsel %vm7697, %v7690, %v7694
    %v7699 = vand.u32 2147483647, %v7038
    %vm7700 = vcmp.eq.f32.partialorder %v7699, 8.507059e+37
    %v7701 = vand.u32 %v7038, 2147483648
    %v7702 = vor.u32 1.1754944e-38, %v7701
    %v7703 = vsel %vm7700, %v7702, %v7698
    %v7704 = vmul.f32 1.0, %v7703
    %v7705 = vrcp.pop %v7039
    %v7706 = vmul.f32 %v7039, %v7705
    %v7707 = vsub.f32 1.0, %v7706
    %v7708 = vmul.f32 %v7705, %v7707
    %v7709 = vadd.f32 %v7705, %v7708
    %vm7710 = vweird.f32 %v7039
    %vm7711 = vweird.f32 %v7705
    %vm7712 = vmor %vm7710, %vm7711
    %v7713 = vsel %vm7712, %v7705, %v7709
    %v7714 = vand.u32 2147483647, %v7039
    %vm7715 = vcmp.eq.f32.partialorder %v7714, 8.507059e+37
    %v7716 = vand.u32 %v7039, 2147483648
    %v7717 = vor.u32 1.1754944e-38, %v7716
    %v7718 = vsel %vm7715, %v7717, %v7713
    %v7719 = vmul.f32 1.0, %v7718
    %v7720 = vrcp.pop %v7040
    %v7721 = vmul.f32 %v7040, %v7720
    %v7722 = vsub.f32 1.0, %v7721
    %v7723 = vmul.f32 %v7720, %v7722
    %v7724 = vadd.f32 %v7720, %v7723
    %vm7725 = vweird.f32 %v7040
    %vm7726 = vweird.f32 %v7720
    %vm7727 = vmor %vm7725, %vm7726
    %v7728 = vsel %vm7727, %v7720, %v7724
    %v7729 = vand.u32 2147483647, %v7040
    %vm7730 = vcmp.eq.f32.partialorder %v7729, 8.507059e+37
    %v7731 = vand.u32 %v7040, 2147483648
    %v7732 = vor.u32 1.1754944e-38, %v7731
    %v7733 = vsel %vm7730, %v7732, %v7728
    %v7734 = vmul.f32 1.0, %v7733
    %v7735 = vrcp.pop %v7041
    %v7736 = vmul.f32 %v7041, %v7735
    %v7737 = vsub.f32 1.0, %v7736
    %v7738 = vmul.f32 %v7735, %v7737
    %v7739 = vadd.f32 %v7735, %v7738
    %vm7740 = vweird.f32 %v7041
    %vm7741 = vweird.f32 %v7735
    %vm7742 = vmor %vm7740, %vm7741
    %v7743 = vsel %vm7742, %v7735, %v7739
    %v7744 = vand.u32 2147483647, %v7041
    %vm7745 = vcmp.eq.f32.partialorder %v7744, 8.507059e+37
    %v7746 = vand.u32 %v7041, 2147483648
    %v7747 = vor.u32 1.1754944e-38, %v7746
    %v7748 = vsel %vm7745, %v7747, %v7743
    %v7749 = vmul.f32 1.0, %v7748
    %v7750 = vrcp.pop %v7042
    %v7751 = vmul.f32 %v7042, %v7750
    %v7752 = vsub.f32 1.0, %v7751
    %v7753 = vmul.f32 %v7750, %v7752
    %v7754 = vadd.f32 %v7750, %v7753
    %vm7755 = vweird.f32 %v7042
    %vm7756 = vweird.f32 %v7750
    %vm7757 = vmor %vm7755, %vm7756
    %v7758 = vsel %vm7757, %v7750, %v7754
    %v7759 = vand.u32 2147483647, %v7042
    %vm7760 = vcmp.eq.f32.partialorder %v7759, 8.507059e+37
    %v7761 = vand.u32 %v7042, 2147483648
    %v7762 = vor.u32 1.1754944e-38, %v7761
    %v7763 = vsel %vm7760, %v7762, %v7758
    %v7764 = vmul.f32 1.0, %v7763
    %v7765 = vrcp.pop %v7043
    %v7766 = vmul.f32 %v7043, %v7765
    %v7767 = vsub.f32 1.0, %v7766
    %v7768 = vmul.f32 %v7765, %v7767
    %v7769 = vadd.f32 %v7765, %v7768
    %vm7770 = vweird.f32 %v7043
    %vm7771 = vweird.f32 %v7765
    %vm7772 = vmor %vm7770, %vm7771
    %v7773 = vsel %vm7772, %v7765, %v7769
    %v7774 = vand.u32 2147483647, %v7043
    %vm7775 = vcmp.eq.f32.partialorder %v7774, 8.507059e+37
    %v7776 = vand.u32 %v7043, 2147483648
    %v7777 = vor.u32 1.1754944e-38, %v7776
    %v7778 = vsel %vm7775, %v7777, %v7773
    %v7779 = vmul.f32 1.0, %v7778
    %v7780 = vrcp.pop %v7044
    %v7781 = vmul.f32 %v7044, %v7780
    %v7782 = vsub.f32 1.0, %v7781
    %v7783 = vmul.f32 %v7780, %v7782
    %v7784 = vadd.f32 %v7780, %v7783
    %vm7785 = vweird.f32 %v7044
    %vm7786 = vweird.f32 %v7780
    %vm7787 = vmor %vm7785, %vm7786
    %v7788 = vsel %vm7787, %v7780, %v7784
    %v7789 = vand.u32 2147483647, %v7044
    %vm7790 = vcmp.eq.f32.partialorder %v7789, 8.507059e+37
    %v7791 = vand.u32 %v7044, 2147483648
    %v7792 = vor.u32 1.1754944e-38, %v7791
    %v7793 = vsel %vm7790, %v7792, %v7788
    %v7794 = vmul.f32 1.0, %v7793
    %v7795 = vrcp.pop %v7045
    %v7796 = vmul.f32 %v7045, %v7795
    %v7797 = vsub.f32 1.0, %v7796
    %v7798 = vmul.f32 %v7795, %v7797
    %v7799 = vadd.f32 %v7795, %v7798
    %vm7800 = vweird.f32 %v7045
    %vm7801 = vweird.f32 %v7795
    %vm7802 = vmor %vm7800, %vm7801
    %v7803 = vsel %vm7802, %v7795, %v7799
    %v7804 = vand.u32 2147483647, %v7045
    %vm7805 = vcmp.eq.f32.partialorder %v7804, 8.507059e+37
    %v7806 = vand.u32 %v7045, 2147483648
    %v7807 = vor.u32 1.1754944e-38, %v7806
    %v7808 = vsel %vm7805, %v7807, %v7803
    %v7809 = vmul.f32 1.0, %v7808
    %v7810 = vrcp.pop %v7046
    %v7811 = vmul.f32 %v7046, %v7810
    %v7812 = vsub.f32 1.0, %v7811
    %v7813 = vmul.f32 %v7810, %v7812
    %v7814 = vadd.f32 %v7810, %v7813
    %vm7815 = vweird.f32 %v7046
    %vm7816 = vweird.f32 %v7810
    %vm7817 = vmor %vm7815, %vm7816
    %v7818 = vsel %vm7817, %v7810, %v7814
    %v7819 = vand.u32 2147483647, %v7046
    %vm7820 = vcmp.eq.f32.partialorder %v7819, 8.507059e+37
    %v7821 = vand.u32 %v7046, 2147483648
    %v7822 = vor.u32 1.1754944e-38, %v7821
    %v7823 = vsel %vm7820, %v7822, %v7818
    %v7824 = vmul.f32 1.0, %v7823
    %v7825 = vrcp.pop %v7047
    %v7826 = vmul.f32 %v7047, %v7825
    %v7827 = vsub.f32 1.0, %v7826
    %v7828 = vmul.f32 %v7825, %v7827
    %v7829 = vadd.f32 %v7825, %v7828
    %vm7830 = vweird.f32 %v7047
    %vm7831 = vweird.f32 %v7825
    %vm7832 = vmor %vm7830, %vm7831
    %v7833 = vsel %vm7832, %v7825, %v7829
    %v7834 = vand.u32 2147483647, %v7047
    %vm7835 = vcmp.eq.f32.partialorder %v7834, 8.507059e+37
    %v7836 = vand.u32 %v7047, 2147483648
    %v7837 = vor.u32 1.1754944e-38, %v7836
    %v7838 = vsel %vm7835, %v7837, %v7833
    %v7839 = vmul.f32 1.0, %v7838
    %v7840 = vrcp.pop %v7048
    %v7841 = vmul.f32 %v7048, %v7840
    %v7842 = vsub.f32 1.0, %v7841
    %v7843 = vmul.f32 %v7840, %v7842
    %v7844 = vadd.f32 %v7840, %v7843
    %vm7845 = vweird.f32 %v7048
    %vm7846 = vweird.f32 %v7840
    %vm7847 = vmor %vm7845, %vm7846
    %v7848 = vsel %vm7847, %v7840, %v7844
    %v7849 = vand.u32 2147483647, %v7048
    %vm7850 = vcmp.eq.f32.partialorder %v7849, 8.507059e+37
    %v7851 = vand.u32 %v7048, 2147483648
    %v7852 = vor.u32 1.1754944e-38, %v7851
    %v7853 = vsel %vm7850, %v7852, %v7848
    %v7854 = vmul.f32 1.0, %v7853
    %v7855 = vrcp.pop %v7049
    %v7856 = vmul.f32 %v7049, %v7855
    %v7857 = vsub.f32 1.0, %v7856
    %v7858 = vmul.f32 %v7855, %v7857
    %v7859 = vadd.f32 %v7855, %v7858
    %vm7860 = vweird.f32 %v7049
    %vm7861 = vweird.f32 %v7855
    %vm7862 = vmor %vm7860, %vm7861
    %v7863 = vsel %vm7862, %v7855, %v7859
    %v7864 = vand.u32 2147483647, %v7049
    %vm7865 = vcmp.eq.f32.partialorder %v7864, 8.507059e+37
    %v7866 = vand.u32 %v7049, 2147483648
    %v7867 = vor.u32 1.1754944e-38, %v7866
    %v7868 = vsel %vm7865, %v7867, %v7863
    %v7869 = vmul.f32 1.0, %v7868
    %v7870 = vrcp.pop %v7050
    %v7871 = vmul.f32 %v7050, %v7870
    %v7872 = vsub.f32 1.0, %v7871
    %v7873 = vmul.f32 %v7870, %v7872
    %v7874 = vadd.f32 %v7870, %v7873
    %vm7875 = vweird.f32 %v7050
    %vm7876 = vweird.f32 %v7870
    %vm7877 = vmor %vm7875, %vm7876
    %v7878 = vsel %vm7877, %v7870, %v7874
    %v7879 = vand.u32 2147483647, %v7050
    %vm7880 = vcmp.eq.f32.partialorder %v7879, 8.507059e+37
    %v7881 = vand.u32 %v7050, 2147483648
    %v7882 = vor.u32 1.1754944e-38, %v7881
    %v7883 = vsel %vm7880, %v7882, %v7878
    %v7884 = vmul.f32 1.0, %v7883
    %v7885 = vrcp.pop %v7051
    %v7886 = vmul.f32 %v7051, %v7885
    %v7887 = vsub.f32 1.0, %v7886
    %v7888 = vmul.f32 %v7885, %v7887
    %v7889 = vadd.f32 %v7885, %v7888
    %vm7890 = vweird.f32 %v7051
    %vm7891 = vweird.f32 %v7885
    %vm7892 = vmor %vm7890, %vm7891
    %v7893 = vsel %vm7892, %v7885, %v7889
    %v7894 = vand.u32 2147483647, %v7051
    %vm7895 = vcmp.eq.f32.partialorder %v7894, 8.507059e+37
    %v7896 = vand.u32 %v7051, 2147483648
    %v7897 = vor.u32 1.1754944e-38, %v7896
    %v7898 = vsel %vm7895, %v7897, %v7893
    %v7899 = vmul.f32 1.0, %v7898
    %v7900 = vrcp.pop %v7052
    %v7901 = vmul.f32 %v7052, %v7900
    %v7902 = vsub.f32 1.0, %v7901
    %v7903 = vmul.f32 %v7900, %v7902
    %v7904 = vadd.f32 %v7900, %v7903
    %vm7905 = vweird.f32 %v7052
    %vm7906 = vweird.f32 %v7900
    %vm7907 = vmor %vm7905, %vm7906
    %v7908 = vsel %vm7907, %v7900, %v7904
    %v7909 = vand.u32 2147483647, %v7052
    %vm7910 = vcmp.eq.f32.partialorder %v7909, 8.507059e+37
    %v7911 = vand.u32 %v7052, 2147483648
    %v7912 = vor.u32 1.1754944e-38, %v7911
    %v7913 = vsel %vm7910, %v7912, %v7908
    %v7914 = vmul.f32 1.0, %v7913
    %v7915 = vrcp.pop %v7053
    %v7916 = vmul.f32 %v7053, %v7915
    %v7917 = vsub.f32 1.0, %v7916
    %v7918 = vmul.f32 %v7915, %v7917
    %v7919 = vadd.f32 %v7915, %v7918
    %vm7920 = vweird.f32 %v7053
    %vm7921 = vweird.f32 %v7915
    %vm7922 = vmor %vm7920, %vm7921
    %v7923 = vsel %vm7922, %v7915, %v7919
    %v7924 = vand.u32 2147483647, %v7053
    %vm7925 = vcmp.eq.f32.partialorder %v7924, 8.507059e+37
    %v7926 = vand.u32 %v7053, 2147483648
    %v7927 = vor.u32 1.1754944e-38, %v7926
    %v7928 = vsel %vm7925, %v7927, %v7923
    %v7929 = vmul.f32 1.0, %v7928
    %v7930 = vrcp.pop %v7054
    %v7931 = vmul.f32 %v7054, %v7930
    %v7932 = vsub.f32 1.0, %v7931
    %v7933 = vmul.f32 %v7930, %v7932
    %v7934 = vadd.f32 %v7930, %v7933
    %vm7935 = vweird.f32 %v7054
    %vm7936 = vweird.f32 %v7930
    %vm7937 = vmor %vm7935, %vm7936
    %v7938 = vsel %vm7937, %v7930, %v7934
    %v7939 = vand.u32 2147483647, %v7054
    %vm7940 = vcmp.eq.f32.partialorder %v7939, 8.507059e+37
    %v7941 = vand.u32 %v7054, 2147483648
    %v7942 = vor.u32 1.1754944e-38, %v7941
    %v7943 = vsel %vm7940, %v7942, %v7938
    %v7944 = vmul.f32 1.0, %v7943
    %v7945 = vrcp.pop %v7055
    %v7946 = vmul.f32 %v7055, %v7945
    %v7947 = vsub.f32 1.0, %v7946
    %v7948 = vmul.f32 %v7945, %v7947
    %v7949 = vadd.f32 %v7945, %v7948
    %vm7950 = vweird.f32 %v7055
    %vm7951 = vweird.f32 %v7945
    %vm7952 = vmor %vm7950, %vm7951
    %v7953 = vsel %vm7952, %v7945, %v7949
    %v7954 = vand.u32 2147483647, %v7055
    %vm7955 = vcmp.eq.f32.partialorder %v7954, 8.507059e+37
    %v7956 = vand.u32 %v7055, 2147483648
    %v7957 = vor.u32 1.1754944e-38, %v7956
    %v7958 = vsel %vm7955, %v7957, %v7953
    %v7959 = vmul.f32 1.0, %v7958
    %v7960 = vrcp.pop %v7056
    %v7961 = vmul.f32 %v7056, %v7960
    %v7962 = vsub.f32 1.0, %v7961
    %v7963 = vmul.f32 %v7960, %v7962
    %v7964 = vadd.f32 %v7960, %v7963
    %vm7965 = vweird.f32 %v7056
    %vm7966 = vweird.f32 %v7960
    %vm7967 = vmor %vm7965, %vm7966
    %v7968 = vsel %vm7967, %v7960, %v7964
    %v7969 = vand.u32 2147483647, %v7056
    %vm7970 = vcmp.eq.f32.partialorder %v7969, 8.507059e+37
    %v7971 = vand.u32 %v7056, 2147483648
    %v7972 = vor.u32 1.1754944e-38, %v7971
    %v7973 = vsel %vm7970, %v7972, %v7968
    %v7974 = vmul.f32 1.0, %v7973
    %v7975 = vrcp.pop %v7057
    %v7976 = vmul.f32 %v7057, %v7975
    %v7977 = vsub.f32 1.0, %v7976
    %v7978 = vmul.f32 %v7975, %v7977
    %v7979 = vadd.f32 %v7975, %v7978
    %vm7980 = vweird.f32 %v7057
    %vm7981 = vweird.f32 %v7975
    %vm7982 = vmor %vm7980, %vm7981
    %v7983 = vsel %vm7982, %v7975, %v7979
    %v7984 = vand.u32 2147483647, %v7057
    %vm7985 = vcmp.eq.f32.partialorder %v7984, 8.507059e+37
    %v7986 = vand.u32 %v7057, 2147483648
    %v7987 = vor.u32 1.1754944e-38, %v7986
    %v7988 = vsel %vm7985, %v7987, %v7983
    %v7989 = vmul.f32 1.0, %v7988
    %v7990 = vrcp.pop %v7058
    %v7991 = vmul.f32 %v7058, %v7990
    %v7992 = vsub.f32 1.0, %v7991
    %v7993 = vmul.f32 %v7990, %v7992
    %v7994 = vadd.f32 %v7990, %v7993
    %vm7995 = vweird.f32 %v7058
    %vm7996 = vweird.f32 %v7990
    %vm7997 = vmor %vm7995, %vm7996
    %v7998 = vsel %vm7997, %v7990, %v7994
    %v7999 = vand.u32 2147483647, %v7058
    %vm8000 = vcmp.eq.f32.partialorder %v7999, 8.507059e+37
    %v8001 = vand.u32 %v7058, 2147483648
    %v8002 = vor.u32 1.1754944e-38, %v8001
    %v8003 = vsel %vm8000, %v8002, %v7998
    %v8004 = vmul.f32 1.0, %v8003
    %v8005 = vrcp.pop %v7059
    %v8006 = vmul.f32 %v7059, %v8005
    %v8007 = vsub.f32 1.0, %v8006
    %v8008 = vmul.f32 %v8005, %v8007
    %v8009 = vadd.f32 %v8005, %v8008
    %vm8010 = vweird.f32 %v7059
    %vm8011 = vweird.f32 %v8005
    %vm8012 = vmor %vm8010, %vm8011
    %v8013 = vsel %vm8012, %v8005, %v8009
    %v8014 = vand.u32 2147483647, %v7059
    %vm8015 = vcmp.eq.f32.partialorder %v8014, 8.507059e+37
    %v8016 = vand.u32 %v7059, 2147483648
    %v8017 = vor.u32 1.1754944e-38, %v8016
    %v8018 = vsel %vm8015, %v8017, %v8013
    %v8019 = vmul.f32 1.0, %v8018
    %v8020 = vmul.f32 %v5709, %v7074
    %v8021 = vmul.f32 %v5711, %v7089
    %v8022 = vmul.f32 %v5714, %v7104
    %v8023 = vmul.f32 %v5716, %v7119
    %v8024 = vmul.f32 %v5719, %v7134
    %v8025 = vmul.f32 %v5721, %v7149
    %v8026 = vmul.f32 %v5724, %v7164
    %v8027 = vmul.f32 %v5726, %v7179
    %v8028 = vmul.f32 %v5729, %v7194
    %v8029 = vmul.f32 %v5731, %v7209
    %v8030 = vmul.f32 %v5734, %v7224
    %v8031 = vmul.f32 %v5736, %v7239
    %v8032 = vmul.f32 %v5739, %v7254
    %v8033 = vmul.f32 %v5741, %v7269
    %v8034 = vmul.f32 %v5744, %v7284
    %v8035 = vmul.f32 %v5746, %v7299
    %v8036 = vmul.f32 %v5749, %v7314
    %v8037 = vmul.f32 %v5751, %v7329
    %v8038 = vmul.f32 %v5754, %v7344
    %v8039 = vmul.f32 %v5756, %v7359
    %v8040 = vmul.f32 %v5759, %v7374
    %v8041 = vmul.f32 %v5761, %v7389
    %v8042 = vmul.f32 %v5764, %v7404
    %v8043 = vmul.f32 %v5766, %v7419
    %v8044 = vmul.f32 %v5769, %v7434
    %v8045 = vmul.f32 %v5771, %v7449
    %v8046 = vmul.f32 %v5774, %v7464
    %v8047 = vmul.f32 %v5776, %v7479
    %v8048 = vmul.f32 %v5779, %v7494
    %v8049 = vmul.f32 %v5781, %v7509
    %v8050 = vmul.f32 %v5784, %v7524
    %v8051 = vmul.f32 %v5786, %v7539
    %v8052 = vmul.f32 %v5789, %v7554
    %v8053 = vmul.f32 %v5791, %v7569
    %v8054 = vmul.f32 %v5794, %v7584
    %v8055 = vmul.f32 %v5796, %v7599
    %v8056 = vmul.f32 %v5799, %v7614
    %v8057 = vmul.f32 %v5801, %v7629
    %v8058 = vmul.f32 %v5804, %v7644
    %v8059 = vmul.f32 %v5806, %v7659
    %v8060 = vmul.f32 %v5809, %v7674
    %v8061 = vmul.f32 %v5811, %v7689
    %v8062 = vmul.f32 %v5814, %v7704
    %v8063 = vmul.f32 %v5816, %v7719
    %v8064 = vmul.f32 %v5819, %v7734
    %v8065 = vmul.f32 %v5821, %v7749
    %v8066 = vmul.f32 %v5824, %v7764
    %v8067 = vmul.f32 %v5826, %v7779
    %v8068 = vmul.f32 %v5829, %v7794
    %v8069 = vmul.f32 %v5831, %v7809
    %v8070 = vmul.f32 %v5834, %v7824
    %v8071 = vmul.f32 %v5836, %v7839
    %v8072 = vmul.f32 %v5839, %v7854
    %v8073 = vmul.f32 %v5841, %v7869
    %v8074 = vmul.f32 %v5844, %v7884
    %v8075 = vmul.f32 %v5846, %v7899
    %v8076 = vmul.f32 %v5849, %v7914
    %v8077 = vmul.f32 %v5851, %v7929
    %v8078 = vmul.f32 %v5854, %v7944
    %v8079 = vmul.f32 %v5856, %v7959
    %v8080 = vmul.f32 %v5859, %v7974
    %v8081 = vmul.f32 %v5861, %v7989
    %v8082 = vmul.f32 %v5864, %v8004
    %v8083 = vmul.f32 %v5866, %v8019
    %v8084 = vadd.f32 %v90, %v8020
    %v8085 = vadd.f32 %v91, %v8021
    %v8086 = vadd.f32 %v92, %v8022
    %v8087 = vadd.f32 %v93, %v8023
    %v8088 = vadd.f32 %v94, %v8024
    %v8089 = vadd.f32 %v95, %v8025
    %v8090 = vadd.f32 %v96, %v8026
    %v8091 = vadd.f32 %v97, %v8027
    %v8092 = vadd.f32 %v98, %v8028
    %v8093 = vadd.f32 %v99, %v8029
    %v8094 = vadd.f32 %v100, %v8030
    %v8095 = vadd.f32 %v101, %v8031
    %v8096 = vadd.f32 %v102, %v8032
    %v8097 = vadd.f32 %v103, %v8033
    %v8098 = vadd.f32 %v104, %v8034
    %v8099 = vadd.f32 %v105, %v8035
    %v8100 = vadd.f32 %v106, %v8036
    %v8101 = vadd.f32 %v107, %v8037
    %v8102 = vadd.f32 %v108, %v8038
    %v8103 = vadd.f32 %v109, %v8039
    %v8104 = vadd.f32 %v110, %v8040
    %v8105 = vadd.f32 %v111, %v8041
    %v8106 = vadd.f32 %v112, %v8042
    %v8107 = vadd.f32 %v113, %v8043
    %v8108 = vadd.f32 %v114, %v8044
    %v8109 = vadd.f32 %v115, %v8045
    %v8110 = vadd.f32 %v116, %v8046
    %v8111 = vadd.f32 %v117, %v8047
    %v8112 = vadd.f32 %v118, %v8048
    %v8113 = vadd.f32 %v119, %v8049
    %v8114 = vadd.f32 %v120, %v8050
    %v8115 = vadd.f32 %v121, %v8051
    %v8116 = vadd.f32 %v122, %v8052
    %v8117 = vadd.f32 %v123, %v8053
    %v8118 = vadd.f32 %v124, %v8054
    %v8119 = vadd.f32 %v125, %v8055
    %v8120 = vadd.f32 %v126, %v8056
    %v8121 = vadd.f32 %v127, %v8057
    %v8122 = vadd.f32 %v128, %v8058
    %v8123 = vadd.f32 %v129, %v8059
    %v8124 = vadd.f32 %v130, %v8060
    %v8125 = vadd.f32 %v131, %v8061
    %v8126 = vadd.f32 %v132, %v8062
    %v8127 = vadd.f32 %v133, %v8063
    %v8128 = vadd.f32 %v134, %v8064
    %v8129 = vadd.f32 %v135, %v8065
    %v8130 = vadd.f32 %v136, %v8066
    %v8131 = vadd.f32 %v137, %v8067
    %v8132 = vadd.f32 %v138, %v8068
    %v8133 = vadd.f32 %v139, %v8069
    %v8134 = vadd.f32 %v140, %v8070
    %v8135 = vadd.f32 %v141, %v8071
    %v8136 = vadd.f32 %v142, %v8072
    %v8137 = vadd.f32 %v143, %v8073
    %v8138 = vadd.f32 %v144, %v8074
    %v8139 = vadd.f32 %v145, %v8075
    %v8140 = vadd.f32 %v146, %v8076
    %v8141 = vadd.f32 %v147, %v8077
    %v8142 = vadd.f32 %v148, %v8078
    %v8143 = vadd.f32 %v149, %v8079
    %v8144 = vadd.f32 %v150, %v8080
    %v8145 = vadd.f32 %v151, %v8081
    %v8146 = vadd.f32 %v152, %v8082
    %v8147 = vadd.f32 %v153, %v8083
    %8148 = vst [vmem:[#allocation10] sm:$0xff] %v8084
    %8149 = vst [vmem:[#allocation10 + $0x8] sm:$0xff] %v8085
    %8150 = vst [vmem:[#allocation10 + $0x10] sm:$0xff] %v8086
    %8151 = vst [vmem:[#allocation10 + $0x18] sm:$0xff] %v8087
    %8152 = vst [vmem:[#allocation10 + $0x20] sm:$0xff] %v8088
    %8153 = vst [vmem:[#allocation10 + $0x28] sm:$0xff] %v8089
    %8154 = vst [vmem:[#allocation10 + $0x30] sm:$0xff] %v8090
    %8155 = vst [vmem:[#allocation10 + $0x38] sm:$0xff] %v8091
    %8156 = vst [vmem:[#allocation10 + $0x40] sm:$0xff] %v8092
    %8157 = vst [vmem:[#allocation10 + $0x48] sm:$0xff] %v8093
    %8158 = vst [vmem:[#allocation10 + $0x50] sm:$0xff] %v8094
    %8159 = vst [vmem:[#allocation10 + $0x58] sm:$0xff] %v8095
    %8160 = vst [vmem:[#allocation10 + $0x60] sm:$0xff] %v8096
    %8161 = vst [vmem:[#allocation10 + $0x68] sm:$0xff] %v8097
    %8162 = vst [vmem:[#allocation10 + $0x70] sm:$0xff] %v8098
    %8163 = vst [vmem:[#allocation10 + $0x78] sm:$0xff] %v8099
    %8164 = vst [vmem:[#allocation10 + $0x80] sm:$0xff] %v8100
    %8165 = vst [vmem:[#allocation10 + $0x88] sm:$0xff] %v8101
    %8166 = vst [vmem:[#allocation10 + $0x90] sm:$0xff] %v8102
    %8167 = vst [vmem:[#allocation10 + $0x98] sm:$0xff] %v8103
    %8168 = vst [vmem:[#allocation10 + $0xa0] sm:$0xff] %v8104
    %8169 = vst [vmem:[#allocation10 + $0xa8] sm:$0xff] %v8105
    %8170 = vst [vmem:[#allocation10 + $0xb0] sm:$0xff] %v8106
    %8171 = vst [vmem:[#allocation10 + $0xb8] sm:$0xff] %v8107
    %8172 = vst [vmem:[#allocation10 + $0xc0] sm:$0xff] %v8108
    %8173 = vst [vmem:[#allocation10 + $0xc8] sm:$0xff] %v8109
    %8174 = vst [vmem:[#allocation10 + $0xd0] sm:$0xff] %v8110
    %8175 = vst [vmem:[#allocation10 + $0xd8] sm:$0xff] %v8111
    %8176 = vst [vmem:[#allocation10 + $0xe0] sm:$0xff] %v8112
    %8177 = vst [vmem:[#allocation10 + $0xe8] sm:$0xff] %v8113
    %8178 = vst [vmem:[#allocation10 + $0xf0] sm:$0xff] %v8114
    %8179 = vst [vmem:[#allocation10 + $0xf8] sm:$0xff] %v8115
    %8180 = vst [vmem:[#allocation10 + $0x100] sm:$0xff] %v8116
    %8181 = vst [vmem:[#allocation10 + $0x108] sm:$0xff] %v8117
    %8182 = vst [vmem:[#allocation10 + $0x110] sm:$0xff] %v8118
    %8183 = vst [vmem:[#allocation10 + $0x118] sm:$0xff] %v8119
    %8184 = vst [vmem:[#allocation10 + $0x120] sm:$0xff] %v8120
    %8185 = vst [vmem:[#allocation10 + $0x128] sm:$0xff] %v8121
    %8186 = vst [vmem:[#allocation10 + $0x130] sm:$0xff] %v8122
    %8187 = vst [vmem:[#allocation10 + $0x138] sm:$0xff] %v8123
    %8188 = vst [vmem:[#allocation10 + $0x140] sm:$0xff] %v8124
    %8189 = vst [vmem:[#allocation10 + $0x148] sm:$0xff] %v8125
    %8190 = vst [vmem:[#allocation10 + $0x150] sm:$0xff] %v8126
    %8191 = vst [vmem:[#allocation10 + $0x158] sm:$0xff] %v8127
    %8192 = vst [vmem:[#allocation10 + $0x160] sm:$0xff] %v8128
    %8193 = vst [vmem:[#allocation10 + $0x168] sm:$0xff] %v8129
    %8194 = vst [vmem:[#allocation10 + $0x170] sm:$0xff] %v8130
    %8195 = vst [vmem:[#allocation10 + $0x178] sm:$0xff] %v8131
    %8196 = vst [vmem:[#allocation10 + $0x180] sm:$0xff] %v8132
    %8197 = vst [vmem:[#allocation10 + $0x188] sm:$0xff] %v8133
    %8198 = vst [vmem:[#allocation10 + $0x190] sm:$0xff] %v8134
    %8199 = vst [vmem:[#allocation10 + $0x198] sm:$0xff] %v8135
    %8200 = vst [vmem:[#allocation10 + $0x1a0] sm:$0xff] %v8136
    %8201 = vst [vmem:[#allocation10 + $0x1a8] sm:$0xff] %v8137
    %8202 = vst [vmem:[#allocation10 + $0x1b0] sm:$0xff] %v8138
    %8203 = vst [vmem:[#allocation10 + $0x1b8] sm:$0xff] %v8139
    %8204 = vst [vmem:[#allocation10 + $0x1c0] sm:$0xff] %v8140
    %8205 = vst [vmem:[#allocation10 + $0x1c8] sm:$0xff] %v8141
    %8206 = vst [vmem:[#allocation10 + $0x1d0] sm:$0xff] %v8142
    %8207 = vst [vmem:[#allocation10 + $0x1d8] sm:$0xff] %v8143
    %8208 = vst [vmem:[#allocation10 + $0x1e0] sm:$0xff] %v8144
    %8209 = vst [vmem:[#allocation10 + $0x1e8] sm:$0xff] %v8145
    %8210 = vst [vmem:[#allocation10 + $0x1f0] sm:$0xff] %v8146
    %8211 = vst [vmem:[#allocation10 + $0x1f8] sm:$0xff] %v8147
    // Predicated region
    $region46: #{tpu_custom_call.1} parent=1 // pred_check
      _
    $region47: #{tpu_custom_call.1} parent=1 // pred_check_branch
      %8213 = sbr.rel (0) target = $region49
    $region48: #{tpu_custom_call.1} parent=1 // pred_region
      %8215 = vsyncadd [#allocation4], 0
      %s8216 = sshll.u32 [#allocation10], 4
      %s8217 = int_to_ptr.vmem [resolvable:$true] %s8216
      %s8218 = sshll.u32 %s7, 4
      %s8219 = int_to_ptr.hbm [resolvable:$true] %s8218
      %8224 = dma.vmem_to_hbm [thread:$0]  %s8217, 8192, %s8219, [#allocation4], 128, 128, 8
    $region49: #{tpu_custom_call.1} parent=1 // pred_fallthru
      _
    // Predicated region
    $region50: #{tpu_custom_call.1} parent=1 // pred_check
      _
    $region51: #{tpu_custom_call.1} parent=1 // pred_check_branch
      %8226 = sbr.rel (0) target = $region53
    $region52: #{tpu_custom_call.1} parent=1 // pred_region
      %8228 = dma.done [#allocation4], 8192
    $region53: #{tpu_custom_call.1} parent=1 // pred_fallthru
      _
    %8229 = vsyncpa [#allocation3], 1
    %8230 = vsyncpa [#allocation6], 1
    %8231 = vsyncpa [#allocation9], 1
    %8232 = vsyncpa [#allocation4], 1

</llo_original>
